<compile_context>
chip_gen: v6e
topology: v6e:2x2x1
jax: 0.10.0
libtpu: 0.0.40
codegen_flags: <defaults>
</compile_context>

<pallas_src>
import jax
import jax.numpy as jnp
from jax import lax
from jax.experimental import pallas as pl
from jax.experimental.pallas import tpu as pltpu

_BN_EPS = 1e-5


def _upsample_matrix(n_in, n_out):
    """(n_out, n_in) 1-D linear interpolation matrix, align_corners=True (n_out = 2*n_in >= 2)."""
    if n_in == 1:
        return jnp.ones((n_out, 1), jnp.float32)
    pos = jnp.arange(n_out, dtype=jnp.float32) * (n_in - 1) / (n_out - 1)
    lo = jnp.clip(jnp.floor(pos).astype(jnp.int32), 0, n_in - 2)
    frac = pos - lo.astype(jnp.float32)
    rows = jnp.arange(n_out)
    m = jnp.zeros((n_out, n_in), jnp.float32)
    m = m.at[rows, lo].add(1.0 - frac)
    m = m.at[rows, lo + 1].add(frac)
    return m


def _make_decoder_kernel(H2, W2, W1, C1, C2, Cmid, Cout):
    HW = H2 * W2
    # Tap (dy, dx) contributes Q[p + (dy-1)*W2 + (dx-1)] to output row p (flattened h*W2+w).
    # pltpu.roll follows jnp.roll semantics (result[p] = x[p - shift]), so shift = -delta mod HW.
    shifts = [(-((dy - 1) * W2 + (dx - 1))) % HW for dy in range(3) for dx in range(3)]

    def kernel(x1h_ref, x2_ref, uw_ref, w1a_ref, w1b_ref, b1_ref,
               w2_ref, b2_ref, mask_ref, o_ref):
        # x1h_ref : (1, H2, W1, C1) bf16   x1 already H-upsampled (+H-pad folded in)
        # x2_ref  : (1, H2*W2, C2)  bf16   skip connection, rows flattened
        # uw_ref  : (W2, W1)        bf16   W-half of bilinear upsample (+W-pad folded in)
        # w1a_ref : (9, C2, Cmid)   bf16   conv1 taps for the x2 channels   (BN1 scale folded)
        # w1b_ref : (9, C1, Cmid)   bf16   conv1 taps for the upsampled-x1 channels
        # b1_ref  : (1, Cmid)       f32    conv1 bias + BN1 shift
        # w2_ref  : (9, Cmid, Cout) bf16   conv2 taps (BN2 scale folded)
        # b2_ref  : (1, Cout)       f32    conv2 bias + BN2 shift
        # mask_ref: (H2*W2, 9)      f32    per-tap boundary-validity mask (== zero padding)
        # o_ref   : (1, H2*W2, Cout)

        # ---- W-half of the separable upsample: one batched MXU matmul, result is (., ., C1)
        #      channel-minor so the flatten below is layout-free (W2 % 8 == 0).
        uwb = jnp.broadcast_to(uw_ref[...], (H2, W2, W1))
        ups = jnp.einsum('hvw,hwc->hvc', uwb, x1h_ref[0],
                         preferred_element_type=jnp.float32)          # (H2, W2, C1) f32
        ups = ups.reshape(HW, C1).astype(jnp.bfloat16)
        x2v = x2_ref[0]                                                # (HW, C2) bf16

        def conv3x3(tap_matmul, bias_ref, cout):
            acc = jnp.zeros((HW, cout), jnp.float32)
            for t in range(9):
                q = tap_matmul(t)                                      # (HW, cout) f32
                if shifts[t]:                                          # spatial offset via XLU roll
                    q = pltpu.roll(q, shift=shifts[t], axis=0)
                if t != 4:                                             # zero out-of-image taps
                    q = q * mask_ref[:, t:t + 1]
                acc = acc + q
            return jnp.maximum(acc + bias_ref[...], 0.0)               # folded BN shift + ReLU

        # conv1: concat realized by splitting K across (x2 | upsampled x1) weight halves.
        y1 = conv3x3(
            lambda t: jnp.dot(x2v, w1a_ref[t], preferred_element_type=jnp.float32)
                    + jnp.dot(ups, w1b_ref[t], preferred_element_type=jnp.float32),
            b1_ref, Cmid).astype(jnp.bfloat16)

        # conv2
        out = conv3x3(
            lambda t: jnp.dot(y1, w2_ref[t], preferred_element_type=jnp.float32),
            b2_ref, Cout)
        o_ref[0] = out.astype(o_ref.dtype)

    return kernel


def decoder_bottleneck_pallas(x1, x2, params):
    """x1, x2 in NHWC; params hold torch-layout conv weights/biases + eval-mode BN stats."""
    N, H1, W1, C1 = x1.shape
    N2, H2, W2, C2 = x2.shape
    assert N == N2
    Ho, Wo = 2 * H1, 2 * W1
    dY, dX = H2 - Ho, W2 - Wo
    assert dY >= 0 and dX >= 0, "skip connection must be at least as large as the upsampled input"
    padT, padL = dY // 2, dX // 2
    HW = H2 * W2
    Ccat = C1 + C2

    w1, w2 = params["w1"], params["w2"]                 # (Cmid, Ccat, 3, 3), (Cout, Cmid, 3, 3)
    Cmid, Cout = w1.shape[0], w2.shape[0]
    assert w1.shape[1] == Ccat and w2.shape[1] == Cmid

    # --- separable bilinear(align_corners=True) upsample operators, F.pad folded in as zero rows.
    Uh_p = jnp.zeros((H2, H1), jnp.float32).at[padT:padT + Ho, :].set(_upsample_matrix(H1, Ho))
    Uw_p = jnp.zeros((W2, W1), jnp.float32).at[padL:padL + Wo, :].set(_upsample_matrix(W1, Wo))

    # H-half as a tiny pre-step on the low-res tensor (2x x1 bytes); the W-half + both convs stay
    # fused in the kernel so no full-res intermediate ever round-trips HBM.
    x1h = jnp.einsum('gh,nhwc->ngwc', Uh_p, x1.astype(jnp.float32),
                     precision=lax.Precision.HIGHEST).astype(jnp.bfloat16)   # (N, H2, W1, C1)
    uw_b = Uw_p.astype(jnp.bfloat16)

    # --- fold conv bias + eval-mode BN: scale into bf16 tap weights, shift kept in f32.
    s1 = params["bn1_gamma"] * lax.rsqrt(params["bn1_var"] + _BN_EPS)
    b1 = (params["bn1_beta"] + (params["b1"] - params["bn1_mean"]) * s1).reshape(1, Cmid)
    s2 = params["bn2_gamma"] * lax.rsqrt(params["bn2_var"] + _BN_EPS)
    b2 = (params["bn2_beta"] + (params["b2"] - params["bn2_mean"]) * s2).reshape(1, Cout)
    w1_taps = jnp.transpose(w1, (2, 3, 1, 0)).reshape(9, Ccat, Cmid) * s1[None, None, :]
    w2_taps = jnp.transpose(w2, (2, 3, 1, 0)).reshape(9, Cmid, Cout) * s2[None, None, :]
    w1a = w1_taps[:, :C2, :].astype(jnp.bfloat16)       # multiplies x2 (first C2 concat channels)
    w1b = w1_taps[:, C2:, :].astype(jnp.bfloat16)       # multiplies upsampled x1
    w2t = w2_taps.astype(jnp.bfloat16)
    b1 = b1.astype(jnp.float32)
    b2 = b2.astype(jnp.float32)

    # --- per-tap boundary masks (== zero 'SAME' padding), precomputed once.
    row_ok = [jnp.arange(H2) != 0, jnp.ones((H2,), dtype=bool), jnp.arange(H2) != H2 - 1]
    col_ok = [jnp.arange(W2) != 0, jnp.ones((W2,), dtype=bool), jnp.arange(W2) != W2 - 1]
    mask = jnp.stack(
        [(row_ok[dy][:, None] & col_ok[dx][None, :]).reshape(HW)
         for dy in range(3) for dx in range(3)], axis=-1).astype(jnp.float32)   # (HW, 9)

    x2f = x2.reshape(N, HW, C2).astype(jnp.bfloat16)

    conv_flops = 2 * HW * 9 * (Ccat * Cmid + Cmid * Cout)
    ups_flops = 2 * HW * W1 * C1
    cost = pl.CostEstimate(
        flops=int(N * (conv_flops + ups_flops)),
        transcendentals=0,
        bytes_accessed=int(x1h.size * 2 + x2f.size * 2 + uw_b.size * 2
                           + w1a.size * 2 + w1b.size * 2 + w2t.size * 2
                           + mask.size * 4 + b1.size * 4 + b2.size * 4
                           + N * HW * Cout * x1.dtype.itemsize),
    )

    kernel = _make_decoder_kernel(H2, W2, W1, C1, C2, Cmid, Cout)
    out_flat = pl.pallas_call(
        kernel,
        out_shape=jax.ShapeDtypeStruct((N, HW, Cout), x1.dtype),
        grid_spec=pltpu.PrefetchScalarGridSpec(
            num_scalar_prefetch=0,
            grid=(N,),
            in_specs=[
                pl.BlockSpec((1, H2, W1, C1), lambda n: (n, 0, 0, 0)),   # x1h
                pl.BlockSpec((1, HW, C2), lambda n: (n, 0, 0)),          # x2
                pl.BlockSpec((W2, W1), lambda n: (0, 0)),                # Uw
                pl.BlockSpec((9, C2, Cmid), lambda n: (0, 0, 0)),        # w1a
                pl.BlockSpec((9, C1, Cmid), lambda n: (0, 0, 0)),        # w1b
                pl.BlockSpec((1, Cmid), lambda n: (0, 0)),               # b1
                pl.BlockSpec((9, Cmid, Cout), lambda n: (0, 0, 0)),      # w2
                pl.BlockSpec((1, Cout), lambda n: (0, 0)),               # b2
                pl.BlockSpec((HW, 9), lambda n: (0, 0)),                 # tap masks
            ],
            out_specs=pl.BlockSpec((1, HW, Cout), lambda n: (n, 0, 0)),
        ),
        compiler_params=pltpu.CompilerParams(
            dimension_semantics=("parallel",),
            vmem_limit_bytes=56 * 1024 * 1024,
        ),
        cost_estimate=cost,
    )(x1h, x2f, uw_b, w1a, w1b, b1, w2t, b2, mask)

    return out_flat.reshape(N, H2, W2, Cout)


# ----------------------------- pure-JAX reference (for checking) -----------------------------

def _bilinear_upsample_ref(x, Ho, Wo):
    """NHWC bilinear resize, align_corners=True (gather + lerp; independent of the kernel path)."""
    N, H, W, C = x.shape

    def grid(n_in, n_out):
        if n_in == 1:
            lo = jnp.zeros((n_out,), jnp.int32)
            return lo, lo, jnp.zeros((n_out,), jnp.float32)
        pos = jnp.arange(n_out, dtype=jnp.float32) * (n_in - 1) / (n_out - 1)
        lo = jnp.clip(jnp.floor(pos).astype(jnp.int32), 0, n_in - 2)
        return lo, lo + 1, pos - lo.astype(jnp.float32)

    ylo, yhi, fy = grid(H, Ho)
    xlo, xhi, fx = grid(W, Wo)
    fy = fy[None, :, None, None]
    fx = fx[None, None, :, None]
    top = x[:, ylo][:, :, xlo] * (1 - fx) + x[:, ylo][:, :, xhi] * fx
    bot = x[:, yhi][:, :, xlo] * (1 - fx) + x[:, yhi][:, :, xhi] * fx
    return top * (1 - fy) + bot * fy


def decoder_bottleneck_reference(x1, x2, params):
    N, H1, W1, C1 = x1.shape
    _, H2, W2, C2 = x2.shape
    Ho, Wo = 2 * H1, 2 * W1
    up = _bilinear_upsample_ref(x1, Ho, Wo)
    dY, dX = H2 - Ho, W2 - Wo
    up = jnp.pad(up, ((0, 0), (dY // 2, dY - dY // 2), (dX // 2, dX - dX // 2), (0, 0)))
    x = jnp.concatenate([x2, up], axis=-1)

    def conv_bn_relu(h, w_oihw, b, g, beta, mean, var):
        w_hwio = jnp.transpose(w_oihw, (2, 3, 1, 0))
        y = lax.conv_general_dilated(h, w_hwio, (1, 1), "SAME",
                                     dimension_numbers=("NHWC", "HWIO", "NHWC"),
                                     precision=lax.Precision.HIGHEST)
        y = y + b[None, None, None, :]
        y = (y - mean) / jnp.sqrt(var + _BN_EPS) * g + beta
        return jax.nn.relu(y)

    h = conv_bn_relu(x, params["w1"], params["b1"], params["bn1_gamma"],
                     params["bn1_beta"], params["bn1_mean"], params["bn1_var"])
    h = conv_bn_relu(h, params["w2"], params["b2"], params["bn2_gamma"],
                     params["bn2_beta"], params["bn2_mean"], params["bn2_var"])
    return h


if __name__ == "__main__":
    # x1 (low-res) 2x8x8x4, x2 (skip) 2x16x16x4 (NHWC); in_channels = C1 + C2 = 8 ->
    # DoubleConv(8, out_channels, mid=4) per the bilinear=True branch.
    N = 2
    C1, C2 = 4, 4
    H1 = W1 = 8
    H2 = W2 = 16
    in_channels = C1 + C2
    mid_channels = in_channels // 2
    out_channels = 8

    key = jax.random.PRNGKey(0)
    ks = jax.random.split(key, 16)

    x1 = jax.random.normal(ks[0], (N, H1, W1, C1), jnp.float32)
    x2 = jax.random.normal(ks[1], (N, H2, W2, C2), jnp.float32)

    params = dict(
        w1=0.1 * jax.random.normal(ks[2], (mid_channels, in_channels, 3, 3), jnp.float32),
        b1=0.1 * jax.random.normal(ks[3], (mid_channels,), jnp.float32),
        bn1_gamma=1.0 + 0.1 * jax.random.normal(ks[4], (mid_channels,), jnp.float32),
        bn1_beta=0.1 * jax.random.normal(ks[5], (mid_channels,), jnp.float32),
        bn1_mean=0.1 * jax.random.normal(ks[6], (mid_channels,), jnp.float32),
        bn1_var=0.5 + jax.random.uniform(ks[7], (mid_channels,), jnp.float32),
        w2=0.1 * jax.random.normal(ks[8], (out_channels, mid_channels, 3, 3), jnp.float32),
        b2=0.1 * jax.random.normal(ks[9], (out_channels,), jnp.float32),
        bn2_gamma=1.0 + 0.1 * jax.random.normal(ks[10], (out_channels,), jnp.float32),
        bn2_beta=0.1 * jax.random.normal(ks[11], (out_channels,), jnp.float32),
        bn2_mean=0.1 * jax.random.normal(ks[12], (out_channels,), jnp.float32),
        bn2_var=0.5 + jax.random.uniform(ks[13], (out_channels,), jnp.float32),
    )

    out = decoder_bottleneck_pallas(x1, x2, params)
    out = jax.block_until_ready(out)
    assert out.shape == (N, H2, W2, out_channels), out.shape

    ref = decoder_bottleneck_reference(x1, x2, params)
    # bf16 operands with f32 accumulation -> loosened (but still tight) tolerance vs f32 reference.
    if not jnp.allclose(out, ref, rtol=3e-2, atol=3e-2):
        err = jnp.max(jnp.abs(out - ref))
        raise AssertionError(f"Pallas DecoderBottleneck output mismatch (max |err| = {err})")

    print("KERNEL_OK")
</pallas_src>

<mosaic_0001>
module attributes {stable_mosaic.version = 11 : i64} {
  func.func @kernel(%arg0: i32, %arg1: memref<1x16x8x4xbf16, #tpu.memory_space<vmem>>, %arg2: memref<1x256x4xbf16, #tpu.memory_space<vmem>>, %arg3: memref<16x8xbf16, #tpu.memory_space<vmem>>, %arg4: memref<9x4x4xbf16, #tpu.memory_space<vmem>>, %arg5: memref<9x4x4xbf16, #tpu.memory_space<vmem>>, %arg6: memref<1x4xf32, #tpu.memory_space<vmem>>, %arg7: memref<9x4x8xbf16, #tpu.memory_space<vmem>>, %arg8: memref<1x8xf32, #tpu.memory_space<vmem>>, %arg9: memref<256x9xf32, #tpu.memory_space<vmem>>, %arg10: memref<1x256x8xf32, #tpu.memory_space<vmem>>) attributes {dimension_semantics = [#tpu.dimension_semantics<parallel>], iteration_bounds = array<i64: 2>, scalar_prefetch = 0 : i64, scratch_operands = 0 : i64, tpu.core_type = #tpu.core_type<tc>, window_params = [{transform_indices = @transform_0, window_bounds = array<i64: 1, 16, 8, 4>}, {transform_indices = @transform_1, window_bounds = array<i64: 1, 256, 4>}, {pipeline_mode = #tpu.pipeline_mode<synchronous>, transform_indices = @transform_2, window_bounds = array<i64: 16, 8>}, {pipeline_mode = #tpu.pipeline_mode<synchronous>, transform_indices = @transform_3, window_bounds = array<i64: 9, 4, 4>}, {pipeline_mode = #tpu.pipeline_mode<synchronous>, transform_indices = @transform_4, window_bounds = array<i64: 9, 4, 4>}, {pipeline_mode = #tpu.pipeline_mode<synchronous>, transform_indices = @transform_5, window_bounds = array<i64: 1, 4>}, {pipeline_mode = #tpu.pipeline_mode<synchronous>, transform_indices = @transform_6, window_bounds = array<i64: 9, 4, 8>}, {pipeline_mode = #tpu.pipeline_mode<synchronous>, transform_indices = @transform_7, window_bounds = array<i64: 1, 8>}, {pipeline_mode = #tpu.pipeline_mode<synchronous>, transform_indices = @transform_8, window_bounds = array<i64: 256, 9>}, {transform_indices = @transform_9, window_bounds = array<i64: 1, 256, 8>}]} {
    %c0 = arith.constant 0 : index
    %c0_0 = arith.constant 0 : index
    %0 = vector.load %arg3[%c0, %c0_0] : memref<16x8xbf16, #tpu.memory_space<vmem>>, vector<16x8xbf16>
    %1 = vector.shape_cast %0 : vector<16x8xbf16> to vector<1x16x8xbf16>
    %2 = vector.broadcast %1 : vector<1x16x8xbf16> to vector<16x16x8xbf16>
    %c0_1 = arith.constant 0 : index
    %c0_2 = arith.constant 0 : index
    %c0_3 = arith.constant 0 : index
    %c0_4 = arith.constant 0 : index
    %3 = vector.load %arg1[%c0_1, %c0_2, %c0_3, %c0_4] : memref<1x16x8x4xbf16, #tpu.memory_space<vmem>>, vector<1x16x8x4xbf16>
    %4 = vector.shape_cast %3 : vector<1x16x8x4xbf16> to vector<16x8x4xbf16>
    "tpu.trace_start"() <{level = 10 : i32, message = "hvw,hwc->hvc"}> : () -> ()
    %cst = arith.constant dense<0.000000e+00> : vector<16x16x4xf32>
    %5 = tpu.matmul %2, %4, %cst {dimension_numbers = #tpu.dot_dimension_numbers<[2], [1], [1], [2], [0, 0, 0, 1, 1, 2], [0], [0]>} : vector<16x16x8xbf16>, vector<16x8x4xbf16>, vector<16x16x4xf32> -> vector<16x16x4xf32>
    "tpu.trace_stop"() : () -> ()
    %6 = vector.shape_cast %5 : vector<16x16x4xf32> to vector<256x4xf32>
    %7 = arith.truncf %6 : vector<256x4xf32> to vector<256x4xbf16>
    %c0_5 = arith.constant 0 : index
    %c0_6 = arith.constant 0 : index
    %c0_7 = arith.constant 0 : index
    %8 = vector.load %arg2[%c0_5, %c0_6, %c0_7] : memref<1x256x4xbf16, #tpu.memory_space<vmem>>, vector<1x256x4xbf16>
    %9 = vector.shape_cast %8 : vector<1x256x4xbf16> to vector<256x4xbf16>
    %cst_8 = arith.constant 0.000000e+00 : f32
    %10 = vector.broadcast %cst_8 : f32 to vector<256x4xf32>
    %c0_9 = arith.constant 0 : index
    %c0_10 = arith.constant 0 : index
    %c0_11 = arith.constant 0 : index
    %11 = vector.load %arg4[%c0_9, %c0_10, %c0_11] : memref<9x4x4xbf16, #tpu.memory_space<vmem>>, vector<1x4x4xbf16>
    %12 = vector.shape_cast %11 : vector<1x4x4xbf16> to vector<4x4xbf16>
    %cst_12 = arith.constant dense<0.000000e+00> : vector<256x4xf32>
    %13 = tpu.matmul %9, %12, %cst_12 {dimension_numbers = #tpu.dot_dimension_numbers<[1], [0], [0], [1], [0, 0, 1, 1], [], []>} : vector<256x4xbf16>, vector<4x4xbf16>, vector<256x4xf32> -> vector<256x4xf32>
    %c0_13 = arith.constant 0 : index
    %c0_14 = arith.constant 0 : index
    %c0_15 = arith.constant 0 : index
    %14 = vector.load %arg5[%c0_13, %c0_14, %c0_15] : memref<9x4x4xbf16, #tpu.memory_space<vmem>>, vector<1x4x4xbf16>
    %15 = vector.shape_cast %14 : vector<1x4x4xbf16> to vector<4x4xbf16>
    %cst_16 = arith.constant dense<0.000000e+00> : vector<256x4xf32>
    %16 = tpu.matmul %7, %15, %cst_16 {dimension_numbers = #tpu.dot_dimension_numbers<[1], [0], [0], [1], [0, 0, 1, 1], [], []>} : vector<256x4xbf16>, vector<4x4xbf16>, vector<256x4xf32> -> vector<256x4xf32>
    %17 = arith.addf %13, %16 : vector<256x4xf32>
    %c17_i32 = arith.constant 17 : i32
    %18 = tpu.dynamic_rotate %17 by %c17_i32 dim 0 : vector<256x4xf32>, i32 -> vector<256x4xf32>
    %c0_17 = arith.constant 0 : index
    %c0_18 = arith.constant 0 : index
    %19 = vector.load %arg9[%c0_17, %c0_18] : memref<256x9xf32, #tpu.memory_space<vmem>>, vector<256x1xf32>
    %20 = vector.broadcast %19 : vector<256x1xf32> to vector<256x4xf32>
    %21 = arith.mulf %18, %20 : vector<256x4xf32>
    %22 = arith.addf %10, %21 : vector<256x4xf32>
    %c1 = arith.constant 1 : index
    %c0_19 = arith.constant 0 : index
    %c0_20 = arith.constant 0 : index
    %23 = vector.load %arg4[%c1, %c0_19, %c0_20] : memref<9x4x4xbf16, #tpu.memory_space<vmem>>, vector<1x4x4xbf16>
    %24 = vector.shape_cast %23 : vector<1x4x4xbf16> to vector<4x4xbf16>
    %cst_21 = arith.constant dense<0.000000e+00> : vector<256x4xf32>
    %25 = tpu.matmul %9, %24, %cst_21 {dimension_numbers = #tpu.dot_dimension_numbers<[1], [0], [0], [1], [0, 0, 1, 1], [], []>} : vector<256x4xbf16>, vector<4x4xbf16>, vector<256x4xf32> -> vector<256x4xf32>
    %c1_22 = arith.constant 1 : index
    %c0_23 = arith.constant 0 : index
    %c0_24 = arith.constant 0 : index
    %26 = vector.load %arg5[%c1_22, %c0_23, %c0_24] : memref<9x4x4xbf16, #tpu.memory_space<vmem>>, vector<1x4x4xbf16>
    %27 = vector.shape_cast %26 : vector<1x4x4xbf16> to vector<4x4xbf16>
    %cst_25 = arith.constant dense<0.000000e+00> : vector<256x4xf32>
    %28 = tpu.matmul %7, %27, %cst_25 {dimension_numbers = #tpu.dot_dimension_numbers<[1], [0], [0], [1], [0, 0, 1, 1], [], []>} : vector<256x4xbf16>, vector<4x4xbf16>, vector<256x4xf32> -> vector<256x4xf32>
    %29 = arith.addf %25, %28 : vector<256x4xf32>
    %c16_i32 = arith.constant 16 : i32
    %30 = tpu.dynamic_rotate %29 by %c16_i32 dim 0 : vector<256x4xf32>, i32 -> vector<256x4xf32>
    %c0_26 = arith.constant 0 : index
    %c1_27 = arith.constant 1 : index
    %31 = vector.load %arg9[%c0_26, %c1_27] : memref<256x9xf32, #tpu.memory_space<vmem>>, vector<256x1xf32>
    %32 = vector.broadcast %31 : vector<256x1xf32> to vector<256x4xf32>
    %33 = arith.mulf %30, %32 : vector<256x4xf32>
    %34 = arith.addf %22, %33 : vector<256x4xf32>
    %c2 = arith.constant 2 : index
    %c0_28 = arith.constant 0 : index
    %c0_29 = arith.constant 0 : index
    %35 = vector.load %arg4[%c2, %c0_28, %c0_29] : memref<9x4x4xbf16, #tpu.memory_space<vmem>>, vector<1x4x4xbf16>
    %36 = vector.shape_cast %35 : vector<1x4x4xbf16> to vector<4x4xbf16>
    %cst_30 = arith.constant dense<0.000000e+00> : vector<256x4xf32>
    %37 = tpu.matmul %9, %36, %cst_30 {dimension_numbers = #tpu.dot_dimension_numbers<[1], [0], [0], [1], [0, 0, 1, 1], [], []>} : vector<256x4xbf16>, vector<4x4xbf16>, vector<256x4xf32> -> vector<256x4xf32>
    %c2_31 = arith.constant 2 : index
    %c0_32 = arith.constant 0 : index
    %c0_33 = arith.constant 0 : index
    %38 = vector.load %arg5[%c2_31, %c0_32, %c0_33] : memref<9x4x4xbf16, #tpu.memory_space<vmem>>, vector<1x4x4xbf16>
    %39 = vector.shape_cast %38 : vector<1x4x4xbf16> to vector<4x4xbf16>
    %cst_34 = arith.constant dense<0.000000e+00> : vector<256x4xf32>
    %40 = tpu.matmul %7, %39, %cst_34 {dimension_numbers = #tpu.dot_dimension_numbers<[1], [0], [0], [1], [0, 0, 1, 1], [], []>} : vector<256x4xbf16>, vector<4x4xbf16>, vector<256x4xf32> -> vector<256x4xf32>
    %41 = arith.addf %37, %40 : vector<256x4xf32>
    %c15_i32 = arith.constant 15 : i32
    %42 = tpu.dynamic_rotate %41 by %c15_i32 dim 0 : vector<256x4xf32>, i32 -> vector<256x4xf32>
    %c0_35 = arith.constant 0 : index
    %c2_36 = arith.constant 2 : index
    %43 = vector.load %arg9[%c0_35, %c2_36] : memref<256x9xf32, #tpu.memory_space<vmem>>, vector<256x1xf32>
    %44 = vector.broadcast %43 : vector<256x1xf32> to vector<256x4xf32>
    %45 = arith.mulf %42, %44 : vector<256x4xf32>
    %46 = arith.addf %34, %45 : vector<256x4xf32>
    %c3 = arith.constant 3 : index
    %c0_37 = arith.constant 0 : index
    %c0_38 = arith.constant 0 : index
    %47 = vector.load %arg4[%c3, %c0_37, %c0_38] : memref<9x4x4xbf16, #tpu.memory_space<vmem>>, vector<1x4x4xbf16>
    %48 = vector.shape_cast %47 : vector<1x4x4xbf16> to vector<4x4xbf16>
    %cst_39 = arith.constant dense<0.000000e+00> : vector<256x4xf32>
    %49 = tpu.matmul %9, %48, %cst_39 {dimension_numbers = #tpu.dot_dimension_numbers<[1], [0], [0], [1], [0, 0, 1, 1], [], []>} : vector<256x4xbf16>, vector<4x4xbf16>, vector<256x4xf32> -> vector<256x4xf32>
    %c3_40 = arith.constant 3 : index
    %c0_41 = arith.constant 0 : index
    %c0_42 = arith.constant 0 : index
    %50 = vector.load %arg5[%c3_40, %c0_41, %c0_42] : memref<9x4x4xbf16, #tpu.memory_space<vmem>>, vector<1x4x4xbf16>
    %51 = vector.shape_cast %50 : vector<1x4x4xbf16> to vector<4x4xbf16>
    %cst_43 = arith.constant dense<0.000000e+00> : vector<256x4xf32>
    %52 = tpu.matmul %7, %51, %cst_43 {dimension_numbers = #tpu.dot_dimension_numbers<[1], [0], [0], [1], [0, 0, 1, 1], [], []>} : vector<256x4xbf16>, vector<4x4xbf16>, vector<256x4xf32> -> vector<256x4xf32>
    %53 = arith.addf %49, %52 : vector<256x4xf32>
    %c1_i32 = arith.constant 1 : i32
    %54 = tpu.dynamic_rotate %53 by %c1_i32 dim 0 : vector<256x4xf32>, i32 -> vector<256x4xf32>
    %c0_44 = arith.constant 0 : index
    %c3_45 = arith.constant 3 : index
    %55 = vector.load %arg9[%c0_44, %c3_45] : memref<256x9xf32, #tpu.memory_space<vmem>>, vector<256x1xf32>
    %56 = vector.broadcast %55 : vector<256x1xf32> to vector<256x4xf32>
    %57 = arith.mulf %54, %56 : vector<256x4xf32>
    %58 = arith.addf %46, %57 : vector<256x4xf32>
    %c4 = arith.constant 4 : index
    %c0_46 = arith.constant 0 : index
    %c0_47 = arith.constant 0 : index
    %59 = vector.load %arg4[%c4, %c0_46, %c0_47] : memref<9x4x4xbf16, #tpu.memory_space<vmem>>, vector<1x4x4xbf16>
    %60 = vector.shape_cast %59 : vector<1x4x4xbf16> to vector<4x4xbf16>
    %cst_48 = arith.constant dense<0.000000e+00> : vector<256x4xf32>
    %61 = tpu.matmul %9, %60, %cst_48 {dimension_numbers = #tpu.dot_dimension_numbers<[1], [0], [0], [1], [0, 0, 1, 1], [], []>} : vector<256x4xbf16>, vector<4x4xbf16>, vector<256x4xf32> -> vector<256x4xf32>
    %c4_49 = arith.constant 4 : index
    %c0_50 = arith.constant 0 : index
    %c0_51 = arith.constant 0 : index
    %62 = vector.load %arg5[%c4_49, %c0_50, %c0_51] : memref<9x4x4xbf16, #tpu.memory_space<vmem>>, vector<1x4x4xbf16>
    %63 = vector.shape_cast %62 : vector<1x4x4xbf16> to vector<4x4xbf16>
    %cst_52 = arith.constant dense<0.000000e+00> : vector<256x4xf32>
    %64 = tpu.matmul %7, %63, %cst_52 {dimension_numbers = #tpu.dot_dimension_numbers<[1], [0], [0], [1], [0, 0, 1, 1], [], []>} : vector<256x4xbf16>, vector<4x4xbf16>, vector<256x4xf32> -> vector<256x4xf32>
    %65 = arith.addf %61, %64 : vector<256x4xf32>
    %66 = arith.addf %58, %65 : vector<256x4xf32>
    %c5 = arith.constant 5 : index
    %c0_53 = arith.constant 0 : index
    %c0_54 = arith.constant 0 : index
    %67 = vector.load %arg4[%c5, %c0_53, %c0_54] : memref<9x4x4xbf16, #tpu.memory_space<vmem>>, vector<1x4x4xbf16>
    %68 = vector.shape_cast %67 : vector<1x4x4xbf16> to vector<4x4xbf16>
    %cst_55 = arith.constant dense<0.000000e+00> : vector<256x4xf32>
    %69 = tpu.matmul %9, %68, %cst_55 {dimension_numbers = #tpu.dot_dimension_numbers<[1], [0], [0], [1], [0, 0, 1, 1], [], []>} : vector<256x4xbf16>, vector<4x4xbf16>, vector<256x4xf32> -> vector<256x4xf32>
    %c5_56 = arith.constant 5 : index
    %c0_57 = arith.constant 0 : index
    %c0_58 = arith.constant 0 : index
    %70 = vector.load %arg5[%c5_56, %c0_57, %c0_58] : memref<9x4x4xbf16, #tpu.memory_space<vmem>>, vector<1x4x4xbf16>
    %71 = vector.shape_cast %70 : vector<1x4x4xbf16> to vector<4x4xbf16>
    %cst_59 = arith.constant dense<0.000000e+00> : vector<256x4xf32>
    %72 = tpu.matmul %7, %71, %cst_59 {dimension_numbers = #tpu.dot_dimension_numbers<[1], [0], [0], [1], [0, 0, 1, 1], [], []>} : vector<256x4xbf16>, vector<4x4xbf16>, vector<256x4xf32> -> vector<256x4xf32>
    %73 = arith.addf %69, %72 : vector<256x4xf32>
    %c255_i32 = arith.constant 255 : i32
    %74 = tpu.dynamic_rotate %73 by %c255_i32 dim 0 : vector<256x4xf32>, i32 -> vector<256x4xf32>
    %c0_60 = arith.constant 0 : index
    %c5_61 = arith.constant 5 : index
    %75 = vector.load %arg9[%c0_60, %c5_61] : memref<256x9xf32, #tpu.memory_space<vmem>>, vector<256x1xf32>
    %76 = vector.broadcast %75 : vector<256x1xf32> to vector<256x4xf32>
    %77 = arith.mulf %74, %76 : vector<256x4xf32>
    %78 = arith.addf %66, %77 : vector<256x4xf32>
    %c6 = arith.constant 6 : index
    %c0_62 = arith.constant 0 : index
    %c0_63 = arith.constant 0 : index
    %79 = vector.load %arg4[%c6, %c0_62, %c0_63] : memref<9x4x4xbf16, #tpu.memory_space<vmem>>, vector<1x4x4xbf16>
    %80 = vector.shape_cast %79 : vector<1x4x4xbf16> to vector<4x4xbf16>
    %cst_64 = arith.constant dense<0.000000e+00> : vector<256x4xf32>
    %81 = tpu.matmul %9, %80, %cst_64 {dimension_numbers = #tpu.dot_dimension_numbers<[1], [0], [0], [1], [0, 0, 1, 1], [], []>} : vector<256x4xbf16>, vector<4x4xbf16>, vector<256x4xf32> -> vector<256x4xf32>
    %c6_65 = arith.constant 6 : index
    %c0_66 = arith.constant 0 : index
    %c0_67 = arith.constant 0 : index
    %82 = vector.load %arg5[%c6_65, %c0_66, %c0_67] : memref<9x4x4xbf16, #tpu.memory_space<vmem>>, vector<1x4x4xbf16>
    %83 = vector.shape_cast %82 : vector<1x4x4xbf16> to vector<4x4xbf16>
    %cst_68 = arith.constant dense<0.000000e+00> : vector<256x4xf32>
    %84 = tpu.matmul %7, %83, %cst_68 {dimension_numbers = #tpu.dot_dimension_numbers<[1], [0], [0], [1], [0, 0, 1, 1], [], []>} : vector<256x4xbf16>, vector<4x4xbf16>, vector<256x4xf32> -> vector<256x4xf32>
    %85 = arith.addf %81, %84 : vector<256x4xf32>
    %c241_i32 = arith.constant 241 : i32
    %86 = tpu.dynamic_rotate %85 by %c241_i32 dim 0 : vector<256x4xf32>, i32 -> vector<256x4xf32>
    %c0_69 = arith.constant 0 : index
    %c6_70 = arith.constant 6 : index
    %87 = vector.load %arg9[%c0_69, %c6_70] : memref<256x9xf32, #tpu.memory_space<vmem>>, vector<256x1xf32>
    %88 = vector.broadcast %87 : vector<256x1xf32> to vector<256x4xf32>
    %89 = arith.mulf %86, %88 : vector<256x4xf32>
    %90 = arith.addf %78, %89 : vector<256x4xf32>
    %c7 = arith.constant 7 : index
    %c0_71 = arith.constant 0 : index
    %c0_72 = arith.constant 0 : index
    %91 = vector.load %arg4[%c7, %c0_71, %c0_72] : memref<9x4x4xbf16, #tpu.memory_space<vmem>>, vector<1x4x4xbf16>
    %92 = vector.shape_cast %91 : vector<1x4x4xbf16> to vector<4x4xbf16>
    %cst_73 = arith.constant dense<0.000000e+00> : vector<256x4xf32>
    %93 = tpu.matmul %9, %92, %cst_73 {dimension_numbers = #tpu.dot_dimension_numbers<[1], [0], [0], [1], [0, 0, 1, 1], [], []>} : vector<256x4xbf16>, vector<4x4xbf16>, vector<256x4xf32> -> vector<256x4xf32>
    %c7_74 = arith.constant 7 : index
    %c0_75 = arith.constant 0 : index
    %c0_76 = arith.constant 0 : index
    %94 = vector.load %arg5[%c7_74, %c0_75, %c0_76] : memref<9x4x4xbf16, #tpu.memory_space<vmem>>, vector<1x4x4xbf16>
    %95 = vector.shape_cast %94 : vector<1x4x4xbf16> to vector<4x4xbf16>
    %cst_77 = arith.constant dense<0.000000e+00> : vector<256x4xf32>
    %96 = tpu.matmul %7, %95, %cst_77 {dimension_numbers = #tpu.dot_dimension_numbers<[1], [0], [0], [1], [0, 0, 1, 1], [], []>} : vector<256x4xbf16>, vector<4x4xbf16>, vector<256x4xf32> -> vector<256x4xf32>
    %97 = arith.addf %93, %96 : vector<256x4xf32>
    %c240_i32 = arith.constant 240 : i32
    %98 = tpu.dynamic_rotate %97 by %c240_i32 dim 0 : vector<256x4xf32>, i32 -> vector<256x4xf32>
    %c0_78 = arith.constant 0 : index
    %c7_79 = arith.constant 7 : index
    %99 = vector.load %arg9[%c0_78, %c7_79] : memref<256x9xf32, #tpu.memory_space<vmem>>, vector<256x1xf32>
    %100 = vector.broadcast %99 : vector<256x1xf32> to vector<256x4xf32>
    %101 = arith.mulf %98, %100 : vector<256x4xf32>
    %102 = arith.addf %90, %101 : vector<256x4xf32>
    %c8 = arith.constant 8 : index
    %c0_80 = arith.constant 0 : index
    %c0_81 = arith.constant 0 : index
    %103 = vector.load %arg4[%c8, %c0_80, %c0_81] : memref<9x4x4xbf16, #tpu.memory_space<vmem>>, vector<1x4x4xbf16>
    %104 = vector.shape_cast %103 : vector<1x4x4xbf16> to vector<4x4xbf16>
    %cst_82 = arith.constant dense<0.000000e+00> : vector<256x4xf32>
    %105 = tpu.matmul %9, %104, %cst_82 {dimension_numbers = #tpu.dot_dimension_numbers<[1], [0], [0], [1], [0, 0, 1, 1], [], []>} : vector<256x4xbf16>, vector<4x4xbf16>, vector<256x4xf32> -> vector<256x4xf32>
    %c8_83 = arith.constant 8 : index
    %c0_84 = arith.constant 0 : index
    %c0_85 = arith.constant 0 : index
    %106 = vector.load %arg5[%c8_83, %c0_84, %c0_85] : memref<9x4x4xbf16, #tpu.memory_space<vmem>>, vector<1x4x4xbf16>
    %107 = vector.shape_cast %106 : vector<1x4x4xbf16> to vector<4x4xbf16>
    %cst_86 = arith.constant dense<0.000000e+00> : vector<256x4xf32>
    %108 = tpu.matmul %7, %107, %cst_86 {dimension_numbers = #tpu.dot_dimension_numbers<[1], [0], [0], [1], [0, 0, 1, 1], [], []>} : vector<256x4xbf16>, vector<4x4xbf16>, vector<256x4xf32> -> vector<256x4xf32>
    %109 = arith.addf %105, %108 : vector<256x4xf32>
    %c239_i32 = arith.constant 239 : i32
    %110 = tpu.dynamic_rotate %109 by %c239_i32 dim 0 : vector<256x4xf32>, i32 -> vector<256x4xf32>
    %c0_87 = arith.constant 0 : index
    %c8_88 = arith.constant 8 : index
    %111 = vector.load %arg9[%c0_87, %c8_88] : memref<256x9xf32, #tpu.memory_space<vmem>>, vector<256x1xf32>
    %112 = vector.broadcast %111 : vector<256x1xf32> to vector<256x4xf32>
    %113 = arith.mulf %110, %112 : vector<256x4xf32>
    %114 = arith.addf %102, %113 : vector<256x4xf32>
    %c0_89 = arith.constant 0 : index
    %c0_90 = arith.constant 0 : index
    %115 = vector.load %arg6[%c0_89, %c0_90] : memref<1x4xf32, #tpu.memory_space<vmem>>, vector<1x4xf32>
    %116 = vector.broadcast %115 : vector<1x4xf32> to vector<256x4xf32>
    %117 = arith.addf %114, %116 : vector<256x4xf32>
    %cst_91 = arith.constant 0.000000e+00 : f32
    %118 = vector.broadcast %cst_91 : f32 to vector<256x4xf32>
    %119 = arith.maximumf %117, %118 : vector<256x4xf32>
    %120 = arith.truncf %119 : vector<256x4xf32> to vector<256x4xbf16>
    %cst_92 = arith.constant 0.000000e+00 : f32
    %121 = vector.broadcast %cst_92 : f32 to vector<256x8xf32>
    %c0_93 = arith.constant 0 : index
    %c0_94 = arith.constant 0 : index
    %c0_95 = arith.constant 0 : index
    %122 = vector.load %arg7[%c0_93, %c0_94, %c0_95] : memref<9x4x8xbf16, #tpu.memory_space<vmem>>, vector<1x4x8xbf16>
    %123 = vector.shape_cast %122 : vector<1x4x8xbf16> to vector<4x8xbf16>
    %cst_96 = arith.constant dense<0.000000e+00> : vector<256x8xf32>
    %124 = tpu.matmul %120, %123, %cst_96 {dimension_numbers = #tpu.dot_dimension_numbers<[1], [0], [0], [1], [0, 0, 1, 1], [], []>} : vector<256x4xbf16>, vector<4x8xbf16>, vector<256x8xf32> -> vector<256x8xf32>
    %c17_i32_97 = arith.constant 17 : i32
    %125 = tpu.dynamic_rotate %124 by %c17_i32_97 dim 0 : vector<256x8xf32>, i32 -> vector<256x8xf32>
    %c0_98 = arith.constant 0 : index
    %c0_99 = arith.constant 0 : index
    %126 = vector.load %arg9[%c0_98, %c0_99] : memref<256x9xf32, #tpu.memory_space<vmem>>, vector<256x1xf32>
    %127 = vector.broadcast %126 : vector<256x1xf32> to vector<256x8xf32>
    %128 = arith.mulf %125, %127 : vector<256x8xf32>
    %129 = arith.addf %121, %128 : vector<256x8xf32>
    %c1_100 = arith.constant 1 : index
    %c0_101 = arith.constant 0 : index
    %c0_102 = arith.constant 0 : index
    %130 = vector.load %arg7[%c1_100, %c0_101, %c0_102] : memref<9x4x8xbf16, #tpu.memory_space<vmem>>, vector<1x4x8xbf16>
    %131 = vector.shape_cast %130 : vector<1x4x8xbf16> to vector<4x8xbf16>
    %cst_103 = arith.constant dense<0.000000e+00> : vector<256x8xf32>
    %132 = tpu.matmul %120, %131, %cst_103 {dimension_numbers = #tpu.dot_dimension_numbers<[1], [0], [0], [1], [0, 0, 1, 1], [], []>} : vector<256x4xbf16>, vector<4x8xbf16>, vector<256x8xf32> -> vector<256x8xf32>
    %c16_i32_104 = arith.constant 16 : i32
    %133 = tpu.dynamic_rotate %132 by %c16_i32_104 dim 0 : vector<256x8xf32>, i32 -> vector<256x8xf32>
    %c0_105 = arith.constant 0 : index
    %c1_106 = arith.constant 1 : index
    %134 = vector.load %arg9[%c0_105, %c1_106] : memref<256x9xf32, #tpu.memory_space<vmem>>, vector<256x1xf32>
    %135 = vector.broadcast %134 : vector<256x1xf32> to vector<256x8xf32>
    %136 = arith.mulf %133, %135 : vector<256x8xf32>
    %137 = arith.addf %129, %136 : vector<256x8xf32>
    %c2_107 = arith.constant 2 : index
    %c0_108 = arith.constant 0 : index
    %c0_109 = arith.constant 0 : index
    %138 = vector.load %arg7[%c2_107, %c0_108, %c0_109] : memref<9x4x8xbf16, #tpu.memory_space<vmem>>, vector<1x4x8xbf16>
    %139 = vector.shape_cast %138 : vector<1x4x8xbf16> to vector<4x8xbf16>
    %cst_110 = arith.constant dense<0.000000e+00> : vector<256x8xf32>
    %140 = tpu.matmul %120, %139, %cst_110 {dimension_numbers = #tpu.dot_dimension_numbers<[1], [0], [0], [1], [0, 0, 1, 1], [], []>} : vector<256x4xbf16>, vector<4x8xbf16>, vector<256x8xf32> -> vector<256x8xf32>
    %c15_i32_111 = arith.constant 15 : i32
    %141 = tpu.dynamic_rotate %140 by %c15_i32_111 dim 0 : vector<256x8xf32>, i32 -> vector<256x8xf32>
    %c0_112 = arith.constant 0 : index
    %c2_113 = arith.constant 2 : index
    %142 = vector.load %arg9[%c0_112, %c2_113] : memref<256x9xf32, #tpu.memory_space<vmem>>, vector<256x1xf32>
    %143 = vector.broadcast %142 : vector<256x1xf32> to vector<256x8xf32>
    %144 = arith.mulf %141, %143 : vector<256x8xf32>
    %145 = arith.addf %137, %144 : vector<256x8xf32>
    %c3_114 = arith.constant 3 : index
    %c0_115 = arith.constant 0 : index
    %c0_116 = arith.constant 0 : index
    %146 = vector.load %arg7[%c3_114, %c0_115, %c0_116] : memref<9x4x8xbf16, #tpu.memory_space<vmem>>, vector<1x4x8xbf16>
    %147 = vector.shape_cast %146 : vector<1x4x8xbf16> to vector<4x8xbf16>
    %cst_117 = arith.constant dense<0.000000e+00> : vector<256x8xf32>
    %148 = tpu.matmul %120, %147, %cst_117 {dimension_numbers = #tpu.dot_dimension_numbers<[1], [0], [0], [1], [0, 0, 1, 1], [], []>} : vector<256x4xbf16>, vector<4x8xbf16>, vector<256x8xf32> -> vector<256x8xf32>
    %c1_i32_118 = arith.constant 1 : i32
    %149 = tpu.dynamic_rotate %148 by %c1_i32_118 dim 0 : vector<256x8xf32>, i32 -> vector<256x8xf32>
    %c0_119 = arith.constant 0 : index
    %c3_120 = arith.constant 3 : index
    %150 = vector.load %arg9[%c0_119, %c3_120] : memref<256x9xf32, #tpu.memory_space<vmem>>, vector<256x1xf32>
    %151 = vector.broadcast %150 : vector<256x1xf32> to vector<256x8xf32>
    %152 = arith.mulf %149, %151 : vector<256x8xf32>
    %153 = arith.addf %145, %152 : vector<256x8xf32>
    %c4_121 = arith.constant 4 : index
    %c0_122 = arith.constant 0 : index
    %c0_123 = arith.constant 0 : index
    %154 = vector.load %arg7[%c4_121, %c0_122, %c0_123] : memref<9x4x8xbf16, #tpu.memory_space<vmem>>, vector<1x4x8xbf16>
    %155 = vector.shape_cast %154 : vector<1x4x8xbf16> to vector<4x8xbf16>
    %cst_124 = arith.constant dense<0.000000e+00> : vector<256x8xf32>
    %156 = tpu.matmul %120, %155, %cst_124 {dimension_numbers = #tpu.dot_dimension_numbers<[1], [0], [0], [1], [0, 0, 1, 1], [], []>} : vector<256x4xbf16>, vector<4x8xbf16>, vector<256x8xf32> -> vector<256x8xf32>
    %157 = arith.addf %153, %156 : vector<256x8xf32>
    %c5_125 = arith.constant 5 : index
    %c0_126 = arith.constant 0 : index
    %c0_127 = arith.constant 0 : index
    %158 = vector.load %arg7[%c5_125, %c0_126, %c0_127] : memref<9x4x8xbf16, #tpu.memory_space<vmem>>, vector<1x4x8xbf16>
    %159 = vector.shape_cast %158 : vector<1x4x8xbf16> to vector<4x8xbf16>
    %cst_128 = arith.constant dense<0.000000e+00> : vector<256x8xf32>
    %160 = tpu.matmul %120, %159, %cst_128 {dimension_numbers = #tpu.dot_dimension_numbers<[1], [0], [0], [1], [0, 0, 1, 1], [], []>} : vector<256x4xbf16>, vector<4x8xbf16>, vector<256x8xf32> -> vector<256x8xf32>
    %c255_i32_129 = arith.constant 255 : i32
    %161 = tpu.dynamic_rotate %160 by %c255_i32_129 dim 0 : vector<256x8xf32>, i32 -> vector<256x8xf32>
    %c0_130 = arith.constant 0 : index
    %c5_131 = arith.constant 5 : index
    %162 = vector.load %arg9[%c0_130, %c5_131] : memref<256x9xf32, #tpu.memory_space<vmem>>, vector<256x1xf32>
    %163 = vector.broadcast %162 : vector<256x1xf32> to vector<256x8xf32>
    %164 = arith.mulf %161, %163 : vector<256x8xf32>
    %165 = arith.addf %157, %164 : vector<256x8xf32>
    %c6_132 = arith.constant 6 : index
    %c0_133 = arith.constant 0 : index
    %c0_134 = arith.constant 0 : index
    %166 = vector.load %arg7[%c6_132, %c0_133, %c0_134] : memref<9x4x8xbf16, #tpu.memory_space<vmem>>, vector<1x4x8xbf16>
    %167 = vector.shape_cast %166 : vector<1x4x8xbf16> to vector<4x8xbf16>
    %cst_135 = arith.constant dense<0.000000e+00> : vector<256x8xf32>
    %168 = tpu.matmul %120, %167, %cst_135 {dimension_numbers = #tpu.dot_dimension_numbers<[1], [0], [0], [1], [0, 0, 1, 1], [], []>} : vector<256x4xbf16>, vector<4x8xbf16>, vector<256x8xf32> -> vector<256x8xf32>
    %c241_i32_136 = arith.constant 241 : i32
    %169 = tpu.dynamic_rotate %168 by %c241_i32_136 dim 0 : vector<256x8xf32>, i32 -> vector<256x8xf32>
    %c0_137 = arith.constant 0 : index
    %c6_138 = arith.constant 6 : index
    %170 = vector.load %arg9[%c0_137, %c6_138] : memref<256x9xf32, #tpu.memory_space<vmem>>, vector<256x1xf32>
    %171 = vector.broadcast %170 : vector<256x1xf32> to vector<256x8xf32>
    %172 = arith.mulf %169, %171 : vector<256x8xf32>
    %173 = arith.addf %165, %172 : vector<256x8xf32>
    %c7_139 = arith.constant 7 : index
    %c0_140 = arith.constant 0 : index
    %c0_141 = arith.constant 0 : index
    %174 = vector.load %arg7[%c7_139, %c0_140, %c0_141] : memref<9x4x8xbf16, #tpu.memory_space<vmem>>, vector<1x4x8xbf16>
    %175 = vector.shape_cast %174 : vector<1x4x8xbf16> to vector<4x8xbf16>
    %cst_142 = arith.constant dense<0.000000e+00> : vector<256x8xf32>
    %176 = tpu.matmul %120, %175, %cst_142 {dimension_numbers = #tpu.dot_dimension_numbers<[1], [0], [0], [1], [0, 0, 1, 1], [], []>} : vector<256x4xbf16>, vector<4x8xbf16>, vector<256x8xf32> -> vector<256x8xf32>
    %c240_i32_143 = arith.constant 240 : i32
    %177 = tpu.dynamic_rotate %176 by %c240_i32_143 dim 0 : vector<256x8xf32>, i32 -> vector<256x8xf32>
    %c0_144 = arith.constant 0 : index
    %c7_145 = arith.constant 7 : index
    %178 = vector.load %arg9[%c0_144, %c7_145] : memref<256x9xf32, #tpu.memory_space<vmem>>, vector<256x1xf32>
    %179 = vector.broadcast %178 : vector<256x1xf32> to vector<256x8xf32>
    %180 = arith.mulf %177, %179 : vector<256x8xf32>
    %181 = arith.addf %173, %180 : vector<256x8xf32>
    %c8_146 = arith.constant 8 : index
    %c0_147 = arith.constant 0 : index
    %c0_148 = arith.constant 0 : index
    %182 = vector.load %arg7[%c8_146, %c0_147, %c0_148] : memref<9x4x8xbf16, #tpu.memory_space<vmem>>, vector<1x4x8xbf16>
    %183 = vector.shape_cast %182 : vector<1x4x8xbf16> to vector<4x8xbf16>
    %cst_149 = arith.constant dense<0.000000e+00> : vector<256x8xf32>
    %184 = tpu.matmul %120, %183, %cst_149 {dimension_numbers = #tpu.dot_dimension_numbers<[1], [0], [0], [1], [0, 0, 1, 1], [], []>} : vector<256x4xbf16>, vector<4x8xbf16>, vector<256x8xf32> -> vector<256x8xf32>
    %c239_i32_150 = arith.constant 239 : i32
    %185 = tpu.dynamic_rotate %184 by %c239_i32_150 dim 0 : vector<256x8xf32>, i32 -> vector<256x8xf32>
    %c0_151 = arith.constant 0 : index
    %c8_152 = arith.constant 8 : index
    %186 = vector.load %arg9[%c0_151, %c8_152] : memref<256x9xf32, #tpu.memory_space<vmem>>, vector<256x1xf32>
    %187 = vector.broadcast %186 : vector<256x1xf32> to vector<256x8xf32>
    %188 = arith.mulf %185, %187 : vector<256x8xf32>
    %189 = arith.addf %181, %188 : vector<256x8xf32>
    %c0_153 = arith.constant 0 : index
    %c0_154 = arith.constant 0 : index
    %190 = vector.load %arg8[%c0_153, %c0_154] : memref<1x8xf32, #tpu.memory_space<vmem>>, vector<1x8xf32>
    %191 = vector.broadcast %190 : vector<1x8xf32> to vector<256x8xf32>
    %192 = arith.addf %189, %191 : vector<256x8xf32>
    %cst_155 = arith.constant 0.000000e+00 : f32
    %193 = vector.broadcast %cst_155 : f32 to vector<256x8xf32>
    %194 = arith.maximumf %192, %193 : vector<256x8xf32>
    %c0_156 = arith.constant 0 : index
    %c0_157 = arith.constant 0 : index
    %c0_158 = arith.constant 0 : index
    %195 = vector.load %arg10[%c0_156, %c0_157, %c0_158] : memref<1x256x8xf32, #tpu.memory_space<vmem>>, vector<1x256x8xf32>
    %196 = vector.shape_cast %195 : vector<1x256x8xf32> to vector<256x8xf32>
    %197 = vector.shape_cast %194 : vector<256x8xf32> to vector<1x256x8xf32>
    tpu.vector_store %arg10[%c0_156, %c0_157, %c0_158], %197 {strides = array<i32>} : memref<1x256x8xf32, #tpu.memory_space<vmem>>, vector<1x256x8xf32>,
    return
  }
  func.func @transform_0(%arg0: i32) -> (i32, i32, i32, i32) {
    %c0_i32 = arith.constant 0 : i32
    %c0_i32_0 = arith.constant 0 : i32
    %c0_i32_1 = arith.constant 0 : i32
    %c0_i32_2 = arith.constant 0 : i32
    return %arg0, %c0_i32, %c0_i32_0, %c0_i32_1 : i32, i32, i32, i32
  }
  func.func @transform_1(%arg0: i32) -> (i32, i32, i32) {
    %c0_i32 = arith.constant 0 : i32
    %c0_i32_0 = arith.constant 0 : i32
    %c0_i32_1 = arith.constant 0 : i32
    return %arg0, %c0_i32, %c0_i32_0 : i32, i32, i32
  }
  func.func @transform_2(%arg0: i32) -> (i32, i32) {
    %c0_i32 = arith.constant 0 : i32
    %c0_i32_0 = arith.constant 0 : i32
    %c0_i32_1 = arith.constant 0 : i32
    return %c0_i32, %c0_i32_0 : i32, i32
  }
  func.func @transform_3(%arg0: i32) -> (i32, i32, i32) {
    %c0_i32 = arith.constant 0 : i32
    %c0_i32_0 = arith.constant 0 : i32
    %c0_i32_1 = arith.constant 0 : i32
    %c0_i32_2 = arith.constant 0 : i32
    return %c0_i32, %c0_i32_0, %c0_i32_1 : i32, i32, i32
  }
  func.func @transform_4(%arg0: i32) -> (i32, i32, i32) {
    %c0_i32 = arith.constant 0 : i32
    %c0_i32_0 = arith.constant 0 : i32
    %c0_i32_1 = arith.constant 0 : i32
    %c0_i32_2 = arith.constant 0 : i32
    return %c0_i32, %c0_i32_0, %c0_i32_1 : i32, i32, i32
  }
  func.func @transform_5(%arg0: i32) -> (i32, i32) {
    %c0_i32 = arith.constant 0 : i32
    %c0_i32_0 = arith.constant 0 : i32
    %c0_i32_1 = arith.constant 0 : i32
    return %c0_i32, %c0_i32_0 : i32, i32
  }
  func.func @transform_6(%arg0: i32) -> (i32, i32, i32) {
    %c0_i32 = arith.constant 0 : i32
    %c0_i32_0 = arith.constant 0 : i32
    %c0_i32_1 = arith.constant 0 : i32
    %c0_i32_2 = arith.constant 0 : i32
    return %c0_i32, %c0_i32_0, %c0_i32_1 : i32, i32, i32
  }
  func.func @transform_7(%arg0: i32) -> (i32, i32) {
    %c0_i32 = arith.constant 0 : i32
    %c0_i32_0 = arith.constant 0 : i32
    %c0_i32_1 = arith.constant 0 : i32
    return %c0_i32, %c0_i32_0 : i32, i32
  }
  func.func @transform_8(%arg0: i32) -> (i32, i32) {
    %c0_i32 = arith.constant 0 : i32
    %c0_i32_0 = arith.constant 0 : i32
    %c0_i32_1 = arith.constant 0 : i32
    return %c0_i32, %c0_i32_0 : i32, i32
  }
  func.func @transform_9(%arg0: i32) -> (i32, i32, i32) {
    %c0_i32 = arith.constant 0 : i32
    %c0_i32_0 = arith.constant 0 : i32
    %c0_i32_1 = arith.constant 0 : i32
    return %arg0, %c0_i32, %c0_i32_0 : i32, i32, i32
  }
}

</mosaic_0001>

<llo_original>
// kernel: tpu_custom_call.1
$region0: #{tpu_custom_call.1}
  #allocation0 [shape = 'u32[]', space=smem, size = 0x4, offset = 0x4, fixed_abs, tag = 'smem constant byte address 0x4 - core index']
  #allocation1 [shape = 'u32[144,128]{1,0:T(1,128)}', space=vmem, size = 0x12000, scoped, tag = 'internal scratch']
  %s0 = inlined_call_operand.vmem [shape: bf16[2,16,8,4], index: 0, kind: input, shape index: {}]
  %s1 = inlined_call_operand.vmem [shape: bf16[2,256,4], index: 1, kind: input, shape index: {}]
  %s2 = inlined_call_operand.vmem [shape: bf16[16,8], index: 2, kind: input, shape index: {}]
  %s3 = inlined_call_operand.vmem [shape: bf16[9,4,4], index: 3, kind: input, shape index: {}]
  %s4 = inlined_call_operand.vmem [shape: bf16[9,4,4], index: 4, kind: input, shape index: {}]
  %s5 = inlined_call_operand.vmem [shape: f32[1,4], index: 5, kind: input, shape index: {}]
  %s6 = inlined_call_operand.vmem [shape: bf16[9,4,8], index: 6, kind: input, shape index: {}]
  %s7 = inlined_call_operand.vmem [shape: f32[1,8], index: 7, kind: input, shape index: {}]
  %s8 = inlined_call_operand.vmem [shape: f32[256,9], index: 8, kind: input, shape index: {}]
  %s9 = inlined_call_operand.vmem [shape: f32[2,256,8], index: 9, kind: output, shape index: {}]
  %s10 = sld [smem:[#allocation0]]
  $region69: #{tpu_custom_call.1} parent=0
    _
  %s12 = ssub.s32 1, %s10
  %s13 = scalar_select 0, %s12, %s10
  loop: start=0, step=1, limit=4
  $region2: #{tpu_custom_call.1} parent=0 // loop_pre_header
    _
  $region3: #{tpu_custom_call.1} parent=0 // loop_header
    %s15 = sphi 0, %s19
    %p16 = scmp.ge.s32.totalorder %s15, 4
    %s25 = sphi 0, %s27
    %s28 = sphi 0, %s25
    %s29 = sphi 0, %s28
    %s45 = sphi 0, %s29
    %s51 = sphi 0, %s53
    %s54 = sphi 0, %s51
    %s55 = sphi 0, %s54
    %s71 = sphi 0, %s55
    %s75 = sphi 0, %s75
    %s77 = sphi 0, %s75
    %s78 = sphi 0, %s77
    %s92 = sphi 0, %s78
    %s96 = sphi 0, %s96
    %s98 = sphi 0, %s96
    %s99 = sphi 0, %s98
    %s113 = sphi 0, %s99
    %s117 = sphi 0, %s117
    %s119 = sphi 0, %s117
    %s120 = sphi 0, %s119
    %s134 = sphi 0, %s120
    %s138 = sphi 0, %s138
    %s140 = sphi 0, %s138
    %s141 = sphi 0, %s140
    %s155 = sphi 0, %s141
    %s159 = sphi 0, %s159
    %s161 = sphi 0, %s159
    %s162 = sphi 0, %s161
    %s176 = sphi 0, %s162
    %s180 = sphi 0, %s180
    %s182 = sphi 0, %s180
    %s183 = sphi 0, %s182
    %s197 = sphi 0, %s183
    %s201 = sphi 0, %s201
    %s203 = sphi 0, %s201
    %s204 = sphi 0, %s203
    %s218 = sphi 0, %s204
    %s224 = sphi 0, %s226
    %s227 = sphi 0, %s224
    %s228 = sphi 0, %s227
    %s244 = sphi 0, %s228
  $region4: #{tpu_custom_call.1} parent=0 // loop_header_branch
    %18 = sbr.rel (%p16) target = $region8
  $region5: #{tpu_custom_call.1} parent=0 // loop_body
    %s20 = ssub.s32 %s15, 1
    %s21 = ssub.s32 %s15, 2
    %s22 = sadd.s32 %s15, 1
    %s23 = ssub.s32 %s15, %s22
    %p24 = scmp.eq.s32.totalorder %s23, 0
    %s26 = sadd.s32 %s25, 1
    %s27 = scalar_select %p24, %s25, %s26
    %p30 = pneg %p24
    %p31 = scmp.eq.s32.totalorder %s15, 1
    %p32 = por %p30, %p31
    %p33 = scmp.ne.s32.totalorder %s25, %s28
    %p34 = scmp.eq.s32.totalorder %s15, 0
    %p35 = por %p33, %p34
    %p36 = scmp.ne.s32.totalorder %s25, %s28
    %p37 = scmp.eq.s32.totalorder %s20, 1
    %p38 = por %p36, %p37
    %p39 = scmp.ne.s32.totalorder %s28, %s29
    %p40 = scmp.eq.s32.totalorder %s20, 0
    %p41 = por %p39, %p40
    %p42 = scmp.ne.s32.totalorder %s28, %s29
    %p43 = scmp.eq.s32.totalorder %s21, 1
    %p44 = por %p42, %p43
    %p46 = scmp.ne.s32.totalorder %s29, %s45
    %p47 = scmp.eq.s32.totalorder %s21, 0
    %p48 = por %p46, %p47
    %s49 = ssub.s32 %s15, %s22
    %p50 = scmp.eq.s32.totalorder %s49, 0
    %s52 = sadd.s32 %s51, 1
    %s53 = scalar_select %p50, %s51, %s52
    %p56 = pneg %p50
    %p57 = scmp.eq.s32.totalorder %s15, 1
    %p58 = por %p56, %p57
    %p59 = scmp.ne.s32.totalorder %s51, %s54
    %p60 = scmp.eq.s32.totalorder %s15, 0
    %p61 = por %p59, %p60
    %p62 = scmp.ne.s32.totalorder %s51, %s54
    %p63 = scmp.eq.s32.totalorder %s20, 1
    %p64 = por %p62, %p63
    %p65 = scmp.ne.s32.totalorder %s54, %s55
    %p66 = scmp.eq.s32.totalorder %s20, 0
    %p67 = por %p65, %p66
    %p68 = scmp.ne.s32.totalorder %s54, %s55
    %p69 = scmp.eq.s32.totalorder %s21, 1
    %p70 = por %p68, %p69
    %p72 = scmp.ne.s32.totalorder %s55, %s71
    %p73 = scmp.eq.s32.totalorder %s21, 0
    %p74 = por %p72, %p73
    %s76 = sadd.s32 %s75, 1
    %p79 = scmp.eq.s32.totalorder %s15, 1
    %p80 = scmp.ne.s32.totalorder %s75, %s77
    %p81 = scmp.eq.s32.totalorder %s15, 0
    %p82 = por %p80, %p81
    %p83 = scmp.ne.s32.totalorder %s75, %s77
    %p84 = scmp.eq.s32.totalorder %s20, 1
    %p85 = por %p83, %p84
    %p86 = scmp.ne.s32.totalorder %s77, %s78
    %p87 = scmp.eq.s32.totalorder %s20, 0
    %p88 = por %p86, %p87
    %p89 = scmp.ne.s32.totalorder %s77, %s78
    %p90 = scmp.eq.s32.totalorder %s21, 1
    %p91 = por %p89, %p90
    %p93 = scmp.ne.s32.totalorder %s78, %s92
    %p94 = scmp.eq.s32.totalorder %s21, 0
    %p95 = por %p93, %p94
    %s97 = sadd.s32 %s96, 1
    %p100 = scmp.eq.s32.totalorder %s15, 1
    %p101 = scmp.ne.s32.totalorder %s96, %s98
    %p102 = scmp.eq.s32.totalorder %s15, 0
    %p103 = por %p101, %p102
    %p104 = scmp.ne.s32.totalorder %s96, %s98
    %p105 = scmp.eq.s32.totalorder %s20, 1
    %p106 = por %p104, %p105
    %p107 = scmp.ne.s32.totalorder %s98, %s99
    %p108 = scmp.eq.s32.totalorder %s20, 0
    %p109 = por %p107, %p108
    %p110 = scmp.ne.s32.totalorder %s98, %s99
    %p111 = scmp.eq.s32.totalorder %s21, 1
    %p112 = por %p110, %p111
    %p114 = scmp.ne.s32.totalorder %s99, %s113
    %p115 = scmp.eq.s32.totalorder %s21, 0
    %p116 = por %p114, %p115
    %s118 = sadd.s32 %s117, 1
    %p121 = scmp.eq.s32.totalorder %s15, 1
    %p122 = scmp.ne.s32.totalorder %s117, %s119
    %p123 = scmp.eq.s32.totalorder %s15, 0
    %p124 = por %p122, %p123
    %p125 = scmp.ne.s32.totalorder %s117, %s119
    %p126 = scmp.eq.s32.totalorder %s20, 1
    %p127 = por %p125, %p126
    %p128 = scmp.ne.s32.totalorder %s119, %s120
    %p129 = scmp.eq.s32.totalorder %s20, 0
    %p130 = por %p128, %p129
    %p131 = scmp.ne.s32.totalorder %s119, %s120
    %p132 = scmp.eq.s32.totalorder %s21, 1
    %p133 = por %p131, %p132
    %p135 = scmp.ne.s32.totalorder %s120, %s134
    %p136 = scmp.eq.s32.totalorder %s21, 0
    %p137 = por %p135, %p136
    %s139 = sadd.s32 %s138, 1
    %p142 = scmp.eq.s32.totalorder %s15, 1
    %p143 = scmp.ne.s32.totalorder %s138, %s140
    %p144 = scmp.eq.s32.totalorder %s15, 0
    %p145 = por %p143, %p144
    %p146 = scmp.ne.s32.totalorder %s138, %s140
    %p147 = scmp.eq.s32.totalorder %s20, 1
    %p148 = por %p146, %p147
    %p149 = scmp.ne.s32.totalorder %s140, %s141
    %p150 = scmp.eq.s32.totalorder %s20, 0
    %p151 = por %p149, %p150
    %p152 = scmp.ne.s32.totalorder %s140, %s141
    %p153 = scmp.eq.s32.totalorder %s21, 1
    %p154 = por %p152, %p153
    %p156 = scmp.ne.s32.totalorder %s141, %s155
    %p157 = scmp.eq.s32.totalorder %s21, 0
    %p158 = por %p156, %p157
    %s160 = sadd.s32 %s159, 1
    %p163 = scmp.eq.s32.totalorder %s15, 1
    %p164 = scmp.ne.s32.totalorder %s159, %s161
    %p165 = scmp.eq.s32.totalorder %s15, 0
    %p166 = por %p164, %p165
    %p167 = scmp.ne.s32.totalorder %s159, %s161
    %p168 = scmp.eq.s32.totalorder %s20, 1
    %p169 = por %p167, %p168
    %p170 = scmp.ne.s32.totalorder %s161, %s162
    %p171 = scmp.eq.s32.totalorder %s20, 0
    %p172 = por %p170, %p171
    %p173 = scmp.ne.s32.totalorder %s161, %s162
    %p174 = scmp.eq.s32.totalorder %s21, 1
    %p175 = por %p173, %p174
    %p177 = scmp.ne.s32.totalorder %s162, %s176
    %p178 = scmp.eq.s32.totalorder %s21, 0
    %p179 = por %p177, %p178
    %s181 = sadd.s32 %s180, 1
    %p184 = scmp.eq.s32.totalorder %s15, 1
    %p185 = scmp.ne.s32.totalorder %s180, %s182
    %p186 = scmp.eq.s32.totalorder %s15, 0
    %p187 = por %p185, %p186
    %p188 = scmp.ne.s32.totalorder %s180, %s182
    %p189 = scmp.eq.s32.totalorder %s20, 1
    %p190 = por %p188, %p189
    %p191 = scmp.ne.s32.totalorder %s182, %s183
    %p192 = scmp.eq.s32.totalorder %s20, 0
    %p193 = por %p191, %p192
    %p194 = scmp.ne.s32.totalorder %s182, %s183
    %p195 = scmp.eq.s32.totalorder %s21, 1
    %p196 = por %p194, %p195
    %p198 = scmp.ne.s32.totalorder %s183, %s197
    %p199 = scmp.eq.s32.totalorder %s21, 0
    %p200 = por %p198, %p199
    %s202 = sadd.s32 %s201, 1
    %p205 = scmp.eq.s32.totalorder %s15, 1
    %p206 = scmp.ne.s32.totalorder %s201, %s203
    %p207 = scmp.eq.s32.totalorder %s15, 0
    %p208 = por %p206, %p207
    %p209 = scmp.ne.s32.totalorder %s201, %s203
    %p210 = scmp.eq.s32.totalorder %s20, 1
    %p211 = por %p209, %p210
    %p212 = scmp.ne.s32.totalorder %s203, %s204
    %p213 = scmp.eq.s32.totalorder %s20, 0
    %p214 = por %p212, %p213
    %p215 = scmp.ne.s32.totalorder %s203, %s204
    %p216 = scmp.eq.s32.totalorder %s21, 1
    %p217 = por %p215, %p216
    %p219 = scmp.ne.s32.totalorder %s204, %s218
    %p220 = scmp.eq.s32.totalorder %s21, 0
    %p221 = por %p219, %p220
    %s222 = ssub.s32 %s15, %s22
    %p223 = scmp.eq.s32.totalorder %s222, 0
    %s225 = sadd.s32 %s224, 1
    %s226 = scalar_select %p223, %s224, %s225
    %p229 = pneg %p223
    %p230 = scmp.eq.s32.totalorder %s15, 1
    %p231 = por %p229, %p230
    %p232 = scmp.ne.s32.totalorder %s224, %s227
    %p233 = scmp.eq.s32.totalorder %s15, 0
    %p234 = por %p232, %p233
    %p235 = scmp.ne.s32.totalorder %s224, %s227
    %p236 = scmp.eq.s32.totalorder %s20, 1
    %p237 = por %p235, %p236
    %p238 = scmp.ne.s32.totalorder %s227, %s228
    %p239 = scmp.eq.s32.totalorder %s20, 0
    %p240 = por %p238, %p239
    %p241 = scmp.ne.s32.totalorder %s227, %s228
    %p242 = scmp.eq.s32.totalorder %s21, 1
    %p243 = por %p241, %p242
    %p245 = scmp.ne.s32.totalorder %s228, %s244
    %p246 = scmp.eq.s32.totalorder %s21, 0
    %p247 = por %p245, %p246
    %p248 = scmp.le.s32.totalorder 1, %s15
    %p249 = scmp.lt.s32.totalorder %s15, 3
    %p250 = pnand %p248, %p249
    %p251 = pneg %p250
    // Predicated region
    $region9: #{tpu_custom_call.1} parent=5 // pred_check
      _
    $region10: #{tpu_custom_call.1} parent=5 // pred_check_branch
      %253 = sbr.rel (%p250) target = $region12
    $region11: #{tpu_custom_call.1} parent=5 // pred_region
      %s254 = ssub.s32 %s15, 1
      // Predicated region
      $region13: #{tpu_custom_call.1} parent=11 // pred_check
        %p255 = pneg %p88
      $region14: #{tpu_custom_call.1} parent=11 // pred_check_branch
        %257 = sbr.rel (%p255) target = $region16
      $region15: #{tpu_custom_call.1} parent=11 // pred_region
        _
      $region16: #{tpu_custom_call.1} parent=11 // pred_fallthru
        _
      // Predicated region
      $region17: #{tpu_custom_call.1} parent=11 // pred_check
        %p258 = pneg %p109
      $region18: #{tpu_custom_call.1} parent=11 // pred_check_branch
        %260 = sbr.rel (%p258) target = $region20
      $region19: #{tpu_custom_call.1} parent=11 // pred_region
        _
      $region20: #{tpu_custom_call.1} parent=11 // pred_fallthru
        _
      // Predicated region
      $region21: #{tpu_custom_call.1} parent=11 // pred_check
        %p261 = pneg %p130
      $region22: #{tpu_custom_call.1} parent=11 // pred_check_branch
        %263 = sbr.rel (%p261) target = $region24
      $region23: #{tpu_custom_call.1} parent=11 // pred_region
        _
      $region24: #{tpu_custom_call.1} parent=11 // pred_fallthru
        _
      // Predicated region
      $region25: #{tpu_custom_call.1} parent=11 // pred_check
        %p264 = pneg %p151
      $region26: #{tpu_custom_call.1} parent=11 // pred_check_branch
        %266 = sbr.rel (%p264) target = $region28
      $region27: #{tpu_custom_call.1} parent=11 // pred_region
        _
      $region28: #{tpu_custom_call.1} parent=11 // pred_fallthru
        _
      // Predicated region
      $region29: #{tpu_custom_call.1} parent=11 // pred_check
        %p267 = pneg %p172
      $region30: #{tpu_custom_call.1} parent=11 // pred_check_branch
        %269 = sbr.rel (%p267) target = $region32
      $region31: #{tpu_custom_call.1} parent=11 // pred_region
        _
      $region32: #{tpu_custom_call.1} parent=11 // pred_fallthru
        _
      // Predicated region
      $region33: #{tpu_custom_call.1} parent=11 // pred_check
        %p270 = pneg %p193
      $region34: #{tpu_custom_call.1} parent=11 // pred_check_branch
        %272 = sbr.rel (%p270) target = $region36
      $region35: #{tpu_custom_call.1} parent=11 // pred_region
        _
      $region36: #{tpu_custom_call.1} parent=11 // pred_fallthru
        _
      // Predicated region
      $region37: #{tpu_custom_call.1} parent=11 // pred_check
        %p273 = pneg %p214
      $region38: #{tpu_custom_call.1} parent=11 // pred_check_branch
        %275 = sbr.rel (%p273) target = $region40
      $region39: #{tpu_custom_call.1} parent=11 // pred_region
        _
      $region40: #{tpu_custom_call.1} parent=11 // pred_fallthru
        _
    $region12: #{tpu_custom_call.1} parent=5 // pred_fallthru
      _
    %p276 = scmp.lt.s32.totalorder %s15, 2
    // Predicated region
    $region41: #{tpu_custom_call.1} parent=5 // pred_check
      %p277 = pneg %p276
    $region42: #{tpu_custom_call.1} parent=5 // pred_check_branch
      %279 = sbr.rel (%p277) target = $region44
    $region43: #{tpu_custom_call.1} parent=5 // pred_region
      // Predicated region
      $region45: #{tpu_custom_call.1} parent=43 // pred_check
        %p280 = pneg %p35
      $region46: #{tpu_custom_call.1} parent=43 // pred_check_branch
        %282 = sbr.rel (%p280) target = $region48
      $region47: #{tpu_custom_call.1} parent=43 // pred_region
        %p283 = scmp.lt.s32.totalorder %s15, 1
        %s284 = scalar_select %p283, %s15, 1
        %s285 = smul.addr %s284, 16
        %s286 = smul.addr %s285, 4
        %s287 = scalar_lea.vmem %s0, %s286
      $region48: #{tpu_custom_call.1} parent=43 // pred_fallthru
        _
      // Predicated region
      $region49: #{tpu_custom_call.1} parent=43 // pred_check
        %p288 = pneg %p61
      $region50: #{tpu_custom_call.1} parent=43 // pred_check_branch
        %290 = sbr.rel (%p288) target = $region52
      $region51: #{tpu_custom_call.1} parent=43 // pred_region
        %p291 = scmp.lt.s32.totalorder %s15, 1
        %s292 = scalar_select %p291, %s15, 1
        %s293 = smul.addr %s292, 32
        %s294 = smul.addr %s293, 4
        %s295 = scalar_lea.vmem %s1, %s294
      $region52: #{tpu_custom_call.1} parent=43 // pred_fallthru
        _
    $region44: #{tpu_custom_call.1} parent=5 // pred_fallthru
      _
    %p296 = scmp.le.s32.totalorder 1, %s15
    %p297 = scmp.lt.s32.totalorder %s15, 3
    %p298 = pnand %p296, %p297
    %p299 = pneg %p298
    // Predicated region
    $region53: #{tpu_custom_call.1} parent=5 // pred_check
      _
    $region54: #{tpu_custom_call.1} parent=5 // pred_check_branch
      %301 = sbr.rel (%p298) target = $region56
    $region55: #{tpu_custom_call.1} parent=5 // pred_region
      %s302 = ssub.s32 %s15, 1
      %p303 = scmp.lt.s32.totalorder %s20, 1
      %s304 = scalar_select %p303, %s20, 1
      %s305 = smul.addr %s304, 16
      %s306 = smul.addr %s305, 4
      %s307 = scalar_lea.vmem %s0, %s306
      %p308 = pneg %p41
      %p309 = pneg %p38
      %p310 = scmp.lt.s32.totalorder %s20, 1
      %s311 = scalar_select %p310, %s20, 1
      %s312 = smul.addr %s311, 32
      %s313 = smul.addr %s312, 4
      %s314 = scalar_lea.vmem %s1, %s313
      %p315 = pneg %p67
      %p316 = pneg %p64
      %p317 = pneg %p88
      %p318 = pneg %p85
      %p319 = pneg %p109
      %p320 = pneg %p106
      %p321 = pneg %p130
      %p322 = pneg %p127
      %p323 = pneg %p151
      %p324 = pneg %p148
      %p325 = pneg %p172
      %p326 = pneg %p169
      %p327 = pneg %p193
      %p328 = pneg %p190
      %p329 = pneg %p214
      %p330 = pneg %p211
      %p331 = pneg %p240
      %p332 = pneg %p237
      %p333 = scmp.lt.s32.totalorder %s20, 1
      %s334 = scalar_select %p333, %s20, 1
      %s335 = smul.addr %s334, 32
      %s336 = smul.addr %s335, 8
      %s337 = scalar_lea.vmem %s9, %s336
      %p338 = scmp.lt.s32.totalorder %s20, 1
      %s339 = scalar_select %p338, %s20, 1
      %s340 = smul.addr %s339, 16
      %s341 = smul.addr %s340, 4
      %s342 = scalar_lea.vmem %s0, %s341
      %p343 = scmp.lt.s32.totalorder %s20, 1
      %s344 = scalar_select %p343, %s20, 1
      %s345 = smul.addr %s344, 32
      %s346 = smul.addr %s345, 4
      %s347 = scalar_lea.vmem %s1, %s346
      %p348 = scmp.lt.s32.totalorder %s20, 1
      %s349 = scalar_select %p348, %s20, 1
      %s350 = smul.addr %s349, 32
      %s351 = smul.addr %s350, 8
      %s352 = scalar_lea.vmem %s9, %s351
      %v354 = vld [vmem:[%s2] sm:$0xf]
      %v355 = vld [vmem:[%s2 + $0x4] sm:$0xf]
      %v356 = vld [vmem:[%s342] sm:$0xf]
      %v357 = vld [vmem:[%s342 + $0x4] sm:$0xf]
      %v358 = vld [vmem:[%s342 + $0x8] sm:$0xf]
      %v359 = vld [vmem:[%s342 + $0xc] sm:$0xf]
      %v360 = vld [vmem:[%s342 + $0x10] sm:$0xf]
      %v361 = vld [vmem:[%s342 + $0x14] sm:$0xf]
      %v362 = vld [vmem:[%s342 + $0x18] sm:$0xf]
      %v363 = vld [vmem:[%s342 + $0x1c] sm:$0xf]
      %v364 = vld [vmem:[%s342 + $0x20] sm:$0xf]
      %v365 = vld [vmem:[%s342 + $0x24] sm:$0xf]
      %v366 = vld [vmem:[%s342 + $0x28] sm:$0xf]
      %v367 = vld [vmem:[%s342 + $0x2c] sm:$0xf]
      %v368 = vld [vmem:[%s342 + $0x30] sm:$0xf]
      %v369 = vld [vmem:[%s342 + $0x34] sm:$0xf]
      %v370 = vld [vmem:[%s342 + $0x38] sm:$0xf]
      %v371 = vld [vmem:[%s342 + $0x3c] sm:$0xf]
      %v374 = vunpack.c.l.b16 %v354
      %v375 = vunpack.c.l.b16 %v355
      %v376 = vpack.c.b16 %v375, %v374
      %vm377 = vcmask 64512
      %v379 = vsel %vm377, %v376, 0
      %vm381 = vcmask 1043456
      %v383 = vsel %vm381, %v356, 0
      %385 = vmatprep.subr.bf16.mxu0 0
      %386 = vmatpush1.bf16.msra.mxu0 0
      %387 = vmatprep.subr.bf16.mxu0 0
      %388 = vmatpush1.bf16.msra.mxu0 0
      %389 = vmatprep.subr.bf16.mxu0 0
      %390 = vmatpush1.bf16.msra.mxu0 0
      %391 = vmatprep.subr.bf16.mxu0 0
      %392 = vmatpush1.bf16.msra.mxu0 0
      %393 = vmatprep.subr.bf16.mxu0 0
      %394 = vmatpush1.bf16.msra.mxu0 0
      %395 = vmatprep.subr.bf16.mxu0 0
      %396 = vmatpush1.bf16.msra.mxu0 0
      %397 = vmatprep.subr.bf16.mxu0 0
      %398 = vmatpush1.bf16.msra.mxu0 0
      %399 = vmatprep.subr.bf16.mxu0 0
      %400 = vmatpush1.bf16.msra.mxu0 %v383
      %401 = vmatprep.subr.bf16.mxu0 0
      %402 = vmatpush2.bf16.msra.mxu0 0
      %403 = vmatprep.subr.bf16.mxu0 0
      %404 = vmatpush2.bf16.msra.mxu0 0
      %405 = vmatprep.subr.bf16.mxu0 0
      %406 = vmatpush2.bf16.msra.mxu0 0
      %407 = vmatprep.subr.bf16.mxu0 0
      %408 = vmatpush2.bf16.msra.mxu0 0
      %409 = vmatprep.subr.bf16.mxu0 0
      %410 = vmatpush2.bf16.msra.mxu0 0
      %411 = vmatprep.subr.bf16.mxu0 0
      %412 = vmatpush2.bf16.msra.mxu0 0
      %413 = vmatprep.subr.bf16.mxu0 0
      %414 = vmatpush2.bf16.msra.mxu0 0
      %415 = vmatprep.subr.bf16.mxu0 0
      %416 = vmatpush2.bf16.msra.mxu0 0
      %417 = vmatprep.mubr.bf16.mxu0 0
      %418 = vmatmul.mubr.bf16.gmra.mxu0 %v379
      %v419 = vpop.f32.mrf.mxu0
      %v420 = vadd.f32 0.0, %v419
      %v421 = vpop.f32.mrf.mxu0
      %v422 = vpop.f32.mrf.mxu0
      %v423 = vadd.f32 0.0, %v422
      %v424 = vpop.f32.mrf.mxu0
      %425 = vdwg.mxu0
      %v427 = vsel %vm381, %v357, 0
      %429 = vmatprep.subr.bf16.mxu0 0
      %430 = vmatpush1.bf16.msra.mxu0 0
      %431 = vmatprep.subr.bf16.mxu0 0
      %432 = vmatpush1.bf16.msra.mxu0 0
      %433 = vmatprep.subr.bf16.mxu0 0
      %434 = vmatpush1.bf16.msra.mxu0 0
      %435 = vmatprep.subr.bf16.mxu0 0
      %436 = vmatpush1.bf16.msra.mxu0 0
      %437 = vmatprep.subr.bf16.mxu0 0
      %438 = vmatpush1.bf16.msra.mxu0 0
      %439 = vmatprep.subr.bf16.mxu0 0
      %440 = vmatpush1.bf16.msra.mxu0 0
      %441 = vmatprep.subr.bf16.mxu0 0
      %442 = vmatpush1.bf16.msra.mxu0 0
      %443 = vmatprep.subr.bf16.mxu0 0
      %444 = vmatpush1.bf16.msra.mxu0 %v427
      %445 = vmatprep.subr.bf16.mxu0 0
      %446 = vmatpush2.bf16.msra.mxu0 0
      %447 = vmatprep.subr.bf16.mxu0 0
      %448 = vmatpush2.bf16.msra.mxu0 0
      %449 = vmatprep.subr.bf16.mxu0 0
      %450 = vmatpush2.bf16.msra.mxu0 0
      %451 = vmatprep.subr.bf16.mxu0 0
      %452 = vmatpush2.bf16.msra.mxu0 0
      %453 = vmatprep.subr.bf16.mxu0 0
      %454 = vmatpush2.bf16.msra.mxu0 0
      %455 = vmatprep.subr.bf16.mxu0 0
      %456 = vmatpush2.bf16.msra.mxu0 0
      %457 = vmatprep.subr.bf16.mxu0 0
      %458 = vmatpush2.bf16.msra.mxu0 0
      %459 = vmatprep.subr.bf16.mxu0 0
      %460 = vmatpush2.bf16.msra.mxu0 0
      %461 = vmatprep.mubr.bf16.mxu0 0
      %462 = vmatmul.mubr.bf16.gmra.mxu0 %v379
      %v463 = vpop.f32.mrf.mxu0
      %v464 = vadd.f32 0.0, %v463
      %v465 = vpop.f32.mrf.mxu0
      %v466 = vpop.f32.mrf.mxu0
      %v467 = vadd.f32 0.0, %v466
      %v468 = vpop.f32.mrf.mxu0
      %469 = vdwg.mxu0
      %v471 = vsel %vm381, %v358, 0
      %473 = vmatprep.subr.bf16.mxu0 0
      %474 = vmatpush1.bf16.msra.mxu0 0
      %475 = vmatprep.subr.bf16.mxu0 0
      %476 = vmatpush1.bf16.msra.mxu0 0
      %477 = vmatprep.subr.bf16.mxu0 0
      %478 = vmatpush1.bf16.msra.mxu0 0
      %479 = vmatprep.subr.bf16.mxu0 0
      %480 = vmatpush1.bf16.msra.mxu0 0
      %481 = vmatprep.subr.bf16.mxu0 0
      %482 = vmatpush1.bf16.msra.mxu0 0
      %483 = vmatprep.subr.bf16.mxu0 0
      %484 = vmatpush1.bf16.msra.mxu0 0
      %485 = vmatprep.subr.bf16.mxu0 0
      %486 = vmatpush1.bf16.msra.mxu0 0
      %487 = vmatprep.subr.bf16.mxu0 0
      %488 = vmatpush1.bf16.msra.mxu0 %v471
      %489 = vmatprep.subr.bf16.mxu0 0
      %490 = vmatpush2.bf16.msra.mxu0 0
      %491 = vmatprep.subr.bf16.mxu0 0
      %492 = vmatpush2.bf16.msra.mxu0 0
      %493 = vmatprep.subr.bf16.mxu0 0
      %494 = vmatpush2.bf16.msra.mxu0 0
      %495 = vmatprep.subr.bf16.mxu0 0
      %496 = vmatpush2.bf16.msra.mxu0 0
      %497 = vmatprep.subr.bf16.mxu0 0
      %498 = vmatpush2.bf16.msra.mxu0 0
      %499 = vmatprep.subr.bf16.mxu0 0
      %500 = vmatpush2.bf16.msra.mxu0 0
      %501 = vmatprep.subr.bf16.mxu0 0
      %502 = vmatpush2.bf16.msra.mxu0 0
      %503 = vmatprep.subr.bf16.mxu0 0
      %504 = vmatpush2.bf16.msra.mxu0 0
      %505 = vmatprep.mubr.bf16.mxu0 0
      %506 = vmatmul.mubr.bf16.gmra.mxu0 %v379
      %v507 = vpop.f32.mrf.mxu0
      %v508 = vadd.f32 0.0, %v507
      %v509 = vpop.f32.mrf.mxu0
      %v510 = vpop.f32.mrf.mxu0
      %v511 = vadd.f32 0.0, %v510
      %v512 = vpop.f32.mrf.mxu0
      %513 = vdwg.mxu0
      %v515 = vsel %vm381, %v359, 0
      %517 = vmatprep.subr.bf16.mxu0 0
      %518 = vmatpush1.bf16.msra.mxu0 0
      %519 = vmatprep.subr.bf16.mxu0 0
      %520 = vmatpush1.bf16.msra.mxu0 0
      %521 = vmatprep.subr.bf16.mxu0 0
      %522 = vmatpush1.bf16.msra.mxu0 0
      %523 = vmatprep.subr.bf16.mxu0 0
      %524 = vmatpush1.bf16.msra.mxu0 0
      %525 = vmatprep.subr.bf16.mxu0 0
      %526 = vmatpush1.bf16.msra.mxu0 0
      %527 = vmatprep.subr.bf16.mxu0 0
      %528 = vmatpush1.bf16.msra.mxu0 0
      %529 = vmatprep.subr.bf16.mxu0 0
      %530 = vmatpush1.bf16.msra.mxu0 0
      %531 = vmatprep.subr.bf16.mxu0 0
      %532 = vmatpush1.bf16.msra.mxu0 %v515
      %533 = vmatprep.subr.bf16.mxu0 0
      %534 = vmatpush2.bf16.msra.mxu0 0
      %535 = vmatprep.subr.bf16.mxu0 0
      %536 = vmatpush2.bf16.msra.mxu0 0
      %537 = vmatprep.subr.bf16.mxu0 0
      %538 = vmatpush2.bf16.msra.mxu0 0
      %539 = vmatprep.subr.bf16.mxu0 0
      %540 = vmatpush2.bf16.msra.mxu0 0
      %541 = vmatprep.subr.bf16.mxu0 0
      %542 = vmatpush2.bf16.msra.mxu0 0
      %543 = vmatprep.subr.bf16.mxu0 0
      %544 = vmatpush2.bf16.msra.mxu0 0
      %545 = vmatprep.subr.bf16.mxu0 0
      %546 = vmatpush2.bf16.msra.mxu0 0
      %547 = vmatprep.subr.bf16.mxu0 0
      %548 = vmatpush2.bf16.msra.mxu0 0
      %549 = vmatprep.mubr.bf16.mxu0 0
      %550 = vmatmul.mubr.bf16.gmra.mxu0 %v379
      %v551 = vpop.f32.mrf.mxu0
      %v552 = vadd.f32 0.0, %v551
      %v553 = vpop.f32.mrf.mxu0
      %v554 = vpop.f32.mrf.mxu0
      %v555 = vadd.f32 0.0, %v554
      %v556 = vpop.f32.mrf.mxu0
      %557 = vdwg.mxu0
      %v559 = vsel %vm381, %v360, 0
      %561 = vmatprep.subr.bf16.mxu0 0
      %562 = vmatpush1.bf16.msra.mxu0 0
      %563 = vmatprep.subr.bf16.mxu0 0
      %564 = vmatpush1.bf16.msra.mxu0 0
      %565 = vmatprep.subr.bf16.mxu0 0
      %566 = vmatpush1.bf16.msra.mxu0 0
      %567 = vmatprep.subr.bf16.mxu0 0
      %568 = vmatpush1.bf16.msra.mxu0 0
      %569 = vmatprep.subr.bf16.mxu0 0
      %570 = vmatpush1.bf16.msra.mxu0 0
      %571 = vmatprep.subr.bf16.mxu0 0
      %572 = vmatpush1.bf16.msra.mxu0 0
      %573 = vmatprep.subr.bf16.mxu0 0
      %574 = vmatpush1.bf16.msra.mxu0 0
      %575 = vmatprep.subr.bf16.mxu0 0
      %576 = vmatpush1.bf16.msra.mxu0 %v559
      %577 = vmatprep.subr.bf16.mxu0 0
      %578 = vmatpush2.bf16.msra.mxu0 0
      %579 = vmatprep.subr.bf16.mxu0 0
      %580 = vmatpush2.bf16.msra.mxu0 0
      %581 = vmatprep.subr.bf16.mxu0 0
      %582 = vmatpush2.bf16.msra.mxu0 0
      %583 = vmatprep.subr.bf16.mxu0 0
      %584 = vmatpush2.bf16.msra.mxu0 0
      %585 = vmatprep.subr.bf16.mxu0 0
      %586 = vmatpush2.bf16.msra.mxu0 0
      %587 = vmatprep.subr.bf16.mxu0 0
      %588 = vmatpush2.bf16.msra.mxu0 0
      %589 = vmatprep.subr.bf16.mxu0 0
      %590 = vmatpush2.bf16.msra.mxu0 0
      %591 = vmatprep.subr.bf16.mxu0 0
      %592 = vmatpush2.bf16.msra.mxu0 0
      %593 = vmatprep.mubr.bf16.mxu0 0
      %594 = vmatmul.mubr.bf16.gmra.mxu0 %v379
      %v595 = vpop.f32.mrf.mxu0
      %v596 = vadd.f32 0.0, %v595
      %v597 = vpop.f32.mrf.mxu0
      %v598 = vpop.f32.mrf.mxu0
      %v599 = vadd.f32 0.0, %v598
      %v600 = vpop.f32.mrf.mxu0
      %601 = vdwg.mxu0
      %v603 = vsel %vm381, %v361, 0
      %605 = vmatprep.subr.bf16.mxu0 0
      %606 = vmatpush1.bf16.msra.mxu0 0
      %607 = vmatprep.subr.bf16.mxu0 0
      %608 = vmatpush1.bf16.msra.mxu0 0
      %609 = vmatprep.subr.bf16.mxu0 0
      %610 = vmatpush1.bf16.msra.mxu0 0
      %611 = vmatprep.subr.bf16.mxu0 0
      %612 = vmatpush1.bf16.msra.mxu0 0
      %613 = vmatprep.subr.bf16.mxu0 0
      %614 = vmatpush1.bf16.msra.mxu0 0
      %615 = vmatprep.subr.bf16.mxu0 0
      %616 = vmatpush1.bf16.msra.mxu0 0
      %617 = vmatprep.subr.bf16.mxu0 0
      %618 = vmatpush1.bf16.msra.mxu0 0
      %619 = vmatprep.subr.bf16.mxu0 0
      %620 = vmatpush1.bf16.msra.mxu0 %v603
      %621 = vmatprep.subr.bf16.mxu0 0
      %622 = vmatpush2.bf16.msra.mxu0 0
      %623 = vmatprep.subr.bf16.mxu0 0
      %624 = vmatpush2.bf16.msra.mxu0 0
      %625 = vmatprep.subr.bf16.mxu0 0
      %626 = vmatpush2.bf16.msra.mxu0 0
      %627 = vmatprep.subr.bf16.mxu0 0
      %628 = vmatpush2.bf16.msra.mxu0 0
      %629 = vmatprep.subr.bf16.mxu0 0
      %630 = vmatpush2.bf16.msra.mxu0 0
      %631 = vmatprep.subr.bf16.mxu0 0
      %632 = vmatpush2.bf16.msra.mxu0 0
      %633 = vmatprep.subr.bf16.mxu0 0
      %634 = vmatpush2.bf16.msra.mxu0 0
      %635 = vmatprep.subr.bf16.mxu0 0
      %636 = vmatpush2.bf16.msra.mxu0 0
      %637 = vmatprep.mubr.bf16.mxu0 0
      %638 = vmatmul.mubr.bf16.gmra.mxu0 %v379
      %v639 = vpop.f32.mrf.mxu0
      %v640 = vadd.f32 0.0, %v639
      %v641 = vpop.f32.mrf.mxu0
      %v642 = vpop.f32.mrf.mxu0
      %v643 = vadd.f32 0.0, %v642
      %v644 = vpop.f32.mrf.mxu0
      %645 = vdwg.mxu0
      %v647 = vsel %vm381, %v362, 0
      %649 = vmatprep.subr.bf16.mxu0 0
      %650 = vmatpush1.bf16.msra.mxu0 0
      %651 = vmatprep.subr.bf16.mxu0 0
      %652 = vmatpush1.bf16.msra.mxu0 0
      %653 = vmatprep.subr.bf16.mxu0 0
      %654 = vmatpush1.bf16.msra.mxu0 0
      %655 = vmatprep.subr.bf16.mxu0 0
      %656 = vmatpush1.bf16.msra.mxu0 0
      %657 = vmatprep.subr.bf16.mxu0 0
      %658 = vmatpush1.bf16.msra.mxu0 0
      %659 = vmatprep.subr.bf16.mxu0 0
      %660 = vmatpush1.bf16.msra.mxu0 0
      %661 = vmatprep.subr.bf16.mxu0 0
      %662 = vmatpush1.bf16.msra.mxu0 0
      %663 = vmatprep.subr.bf16.mxu0 0
      %664 = vmatpush1.bf16.msra.mxu0 %v647
      %665 = vmatprep.subr.bf16.mxu0 0
      %666 = vmatpush2.bf16.msra.mxu0 0
      %667 = vmatprep.subr.bf16.mxu0 0
      %668 = vmatpush2.bf16.msra.mxu0 0
      %669 = vmatprep.subr.bf16.mxu0 0
      %670 = vmatpush2.bf16.msra.mxu0 0
      %671 = vmatprep.subr.bf16.mxu0 0
      %672 = vmatpush2.bf16.msra.mxu0 0
      %673 = vmatprep.subr.bf16.mxu0 0
      %674 = vmatpush2.bf16.msra.mxu0 0
      %675 = vmatprep.subr.bf16.mxu0 0
      %676 = vmatpush2.bf16.msra.mxu0 0
      %677 = vmatprep.subr.bf16.mxu0 0
      %678 = vmatpush2.bf16.msra.mxu0 0
      %679 = vmatprep.subr.bf16.mxu0 0
      %680 = vmatpush2.bf16.msra.mxu0 0
      %681 = vmatprep.mubr.bf16.mxu0 0
      %682 = vmatmul.mubr.bf16.gmra.mxu0 %v379
      %v683 = vpop.f32.mrf.mxu0
      %v684 = vadd.f32 0.0, %v683
      %v685 = vpop.f32.mrf.mxu0
      %v686 = vpop.f32.mrf.mxu0
      %v687 = vadd.f32 0.0, %v686
      %v688 = vpop.f32.mrf.mxu0
      %689 = vdwg.mxu0
      %v691 = vsel %vm381, %v363, 0
      %693 = vmatprep.subr.bf16.mxu0 0
      %694 = vmatpush1.bf16.msra.mxu0 0
      %695 = vmatprep.subr.bf16.mxu0 0
      %696 = vmatpush1.bf16.msra.mxu0 0
      %697 = vmatprep.subr.bf16.mxu0 0
      %698 = vmatpush1.bf16.msra.mxu0 0
      %699 = vmatprep.subr.bf16.mxu0 0
      %700 = vmatpush1.bf16.msra.mxu0 0
      %701 = vmatprep.subr.bf16.mxu0 0
      %702 = vmatpush1.bf16.msra.mxu0 0
      %703 = vmatprep.subr.bf16.mxu0 0
      %704 = vmatpush1.bf16.msra.mxu0 0
      %705 = vmatprep.subr.bf16.mxu0 0
      %706 = vmatpush1.bf16.msra.mxu0 0
      %707 = vmatprep.subr.bf16.mxu0 0
      %708 = vmatpush1.bf16.msra.mxu0 %v691
      %709 = vmatprep.subr.bf16.mxu0 0
      %710 = vmatpush2.bf16.msra.mxu0 0
      %711 = vmatprep.subr.bf16.mxu0 0
      %712 = vmatpush2.bf16.msra.mxu0 0
      %713 = vmatprep.subr.bf16.mxu0 0
      %714 = vmatpush2.bf16.msra.mxu0 0
      %715 = vmatprep.subr.bf16.mxu0 0
      %716 = vmatpush2.bf16.msra.mxu0 0
      %717 = vmatprep.subr.bf16.mxu0 0
      %718 = vmatpush2.bf16.msra.mxu0 0
      %719 = vmatprep.subr.bf16.mxu0 0
      %720 = vmatpush2.bf16.msra.mxu0 0
      %721 = vmatprep.subr.bf16.mxu0 0
      %722 = vmatpush2.bf16.msra.mxu0 0
      %723 = vmatprep.subr.bf16.mxu0 0
      %724 = vmatpush2.bf16.msra.mxu0 0
      %725 = vmatprep.mubr.bf16.mxu0 0
      %726 = vmatmul.mubr.bf16.gmra.mxu0 %v379
      %v727 = vpop.f32.mrf.mxu0
      %v728 = vadd.f32 0.0, %v727
      %v729 = vpop.f32.mrf.mxu0
      %v730 = vpop.f32.mrf.mxu0
      %v731 = vadd.f32 0.0, %v730
      %v732 = vpop.f32.mrf.mxu0
      %733 = vdwg.mxu0
      %v735 = vsel %vm381, %v364, 0
      %737 = vmatprep.subr.bf16.mxu0 0
      %738 = vmatpush1.bf16.msra.mxu0 0
      %739 = vmatprep.subr.bf16.mxu0 0
      %740 = vmatpush1.bf16.msra.mxu0 0
      %741 = vmatprep.subr.bf16.mxu0 0
      %742 = vmatpush1.bf16.msra.mxu0 0
      %743 = vmatprep.subr.bf16.mxu0 0
      %744 = vmatpush1.bf16.msra.mxu0 0
      %745 = vmatprep.subr.bf16.mxu0 0
      %746 = vmatpush1.bf16.msra.mxu0 0
      %747 = vmatprep.subr.bf16.mxu0 0
      %748 = vmatpush1.bf16.msra.mxu0 0
      %749 = vmatprep.subr.bf16.mxu0 0
      %750 = vmatpush1.bf16.msra.mxu0 0
      %751 = vmatprep.subr.bf16.mxu0 0
      %752 = vmatpush1.bf16.msra.mxu0 %v735
      %753 = vmatprep.subr.bf16.mxu0 0
      %754 = vmatpush2.bf16.msra.mxu0 0
      %755 = vmatprep.subr.bf16.mxu0 0
      %756 = vmatpush2.bf16.msra.mxu0 0
      %757 = vmatprep.subr.bf16.mxu0 0
      %758 = vmatpush2.bf16.msra.mxu0 0
      %759 = vmatprep.subr.bf16.mxu0 0
      %760 = vmatpush2.bf16.msra.mxu0 0
      %761 = vmatprep.subr.bf16.mxu0 0
      %762 = vmatpush2.bf16.msra.mxu0 0
      %763 = vmatprep.subr.bf16.mxu0 0
      %764 = vmatpush2.bf16.msra.mxu0 0
      %765 = vmatprep.subr.bf16.mxu0 0
      %766 = vmatpush2.bf16.msra.mxu0 0
      %767 = vmatprep.subr.bf16.mxu0 0
      %768 = vmatpush2.bf16.msra.mxu0 0
      %769 = vmatprep.mubr.bf16.mxu0 0
      %770 = vmatmul.mubr.bf16.gmra.mxu0 %v379
      %v771 = vpop.f32.mrf.mxu0
      %v772 = vadd.f32 0.0, %v771
      %v773 = vpop.f32.mrf.mxu0
      %v774 = vpop.f32.mrf.mxu0
      %v775 = vadd.f32 0.0, %v774
      %v776 = vpop.f32.mrf.mxu0
      %777 = vdwg.mxu0
      %v779 = vsel %vm381, %v365, 0
      %781 = vmatprep.subr.bf16.mxu0 0
      %782 = vmatpush1.bf16.msra.mxu0 0
      %783 = vmatprep.subr.bf16.mxu0 0
      %784 = vmatpush1.bf16.msra.mxu0 0
      %785 = vmatprep.subr.bf16.mxu0 0
      %786 = vmatpush1.bf16.msra.mxu0 0
      %787 = vmatprep.subr.bf16.mxu0 0
      %788 = vmatpush1.bf16.msra.mxu0 0
      %789 = vmatprep.subr.bf16.mxu0 0
      %790 = vmatpush1.bf16.msra.mxu0 0
      %791 = vmatprep.subr.bf16.mxu0 0
      %792 = vmatpush1.bf16.msra.mxu0 0
      %793 = vmatprep.subr.bf16.mxu0 0
      %794 = vmatpush1.bf16.msra.mxu0 0
      %795 = vmatprep.subr.bf16.mxu0 0
      %796 = vmatpush1.bf16.msra.mxu0 %v779
      %797 = vmatprep.subr.bf16.mxu0 0
      %798 = vmatpush2.bf16.msra.mxu0 0
      %799 = vmatprep.subr.bf16.mxu0 0
      %800 = vmatpush2.bf16.msra.mxu0 0
      %801 = vmatprep.subr.bf16.mxu0 0
      %802 = vmatpush2.bf16.msra.mxu0 0
      %803 = vmatprep.subr.bf16.mxu0 0
      %804 = vmatpush2.bf16.msra.mxu0 0
      %805 = vmatprep.subr.bf16.mxu0 0
      %806 = vmatpush2.bf16.msra.mxu0 0
      %807 = vmatprep.subr.bf16.mxu0 0
      %808 = vmatpush2.bf16.msra.mxu0 0
      %809 = vmatprep.subr.bf16.mxu0 0
      %810 = vmatpush2.bf16.msra.mxu0 0
      %811 = vmatprep.subr.bf16.mxu0 0
      %812 = vmatpush2.bf16.msra.mxu0 0
      %813 = vmatprep.mubr.bf16.mxu0 0
      %814 = vmatmul.mubr.bf16.gmra.mxu0 %v379
      %v815 = vpop.f32.mrf.mxu0
      %v816 = vadd.f32 0.0, %v815
      %v817 = vpop.f32.mrf.mxu0
      %v818 = vpop.f32.mrf.mxu0
      %v819 = vadd.f32 0.0, %v818
      %v820 = vpop.f32.mrf.mxu0
      %821 = vdwg.mxu0
      %v823 = vsel %vm381, %v366, 0
      %825 = vmatprep.subr.bf16.mxu0 0
      %826 = vmatpush1.bf16.msra.mxu0 0
      %827 = vmatprep.subr.bf16.mxu0 0
      %828 = vmatpush1.bf16.msra.mxu0 0
      %829 = vmatprep.subr.bf16.mxu0 0
      %830 = vmatpush1.bf16.msra.mxu0 0
      %831 = vmatprep.subr.bf16.mxu0 0
      %832 = vmatpush1.bf16.msra.mxu0 0
      %833 = vmatprep.subr.bf16.mxu0 0
      %834 = vmatpush1.bf16.msra.mxu0 0
      %835 = vmatprep.subr.bf16.mxu0 0
      %836 = vmatpush1.bf16.msra.mxu0 0
      %837 = vmatprep.subr.bf16.mxu0 0
      %838 = vmatpush1.bf16.msra.mxu0 0
      %839 = vmatprep.subr.bf16.mxu0 0
      %840 = vmatpush1.bf16.msra.mxu0 %v823
      %841 = vmatprep.subr.bf16.mxu0 0
      %842 = vmatpush2.bf16.msra.mxu0 0
      %843 = vmatprep.subr.bf16.mxu0 0
      %844 = vmatpush2.bf16.msra.mxu0 0
      %845 = vmatprep.subr.bf16.mxu0 0
      %846 = vmatpush2.bf16.msra.mxu0 0
      %847 = vmatprep.subr.bf16.mxu0 0
      %848 = vmatpush2.bf16.msra.mxu0 0
      %849 = vmatprep.subr.bf16.mxu0 0
      %850 = vmatpush2.bf16.msra.mxu0 0
      %851 = vmatprep.subr.bf16.mxu0 0
      %852 = vmatpush2.bf16.msra.mxu0 0
      %853 = vmatprep.subr.bf16.mxu0 0
      %854 = vmatpush2.bf16.msra.mxu0 0
      %855 = vmatprep.subr.bf16.mxu0 0
      %856 = vmatpush2.bf16.msra.mxu0 0
      %857 = vmatprep.mubr.bf16.mxu0 0
      %858 = vmatmul.mubr.bf16.gmra.mxu0 %v379
      %v859 = vpop.f32.mrf.mxu0
      %v860 = vadd.f32 0.0, %v859
      %v861 = vpop.f32.mrf.mxu0
      %v862 = vpop.f32.mrf.mxu0
      %v863 = vadd.f32 0.0, %v862
      %v864 = vpop.f32.mrf.mxu0
      %865 = vdwg.mxu0
      %v867 = vsel %vm381, %v367, 0
      %869 = vmatprep.subr.bf16.mxu0 0
      %870 = vmatpush1.bf16.msra.mxu0 0
      %871 = vmatprep.subr.bf16.mxu0 0
      %872 = vmatpush1.bf16.msra.mxu0 0
      %873 = vmatprep.subr.bf16.mxu0 0
      %874 = vmatpush1.bf16.msra.mxu0 0
      %875 = vmatprep.subr.bf16.mxu0 0
      %876 = vmatpush1.bf16.msra.mxu0 0
      %877 = vmatprep.subr.bf16.mxu0 0
      %878 = vmatpush1.bf16.msra.mxu0 0
      %879 = vmatprep.subr.bf16.mxu0 0
      %880 = vmatpush1.bf16.msra.mxu0 0
      %881 = vmatprep.subr.bf16.mxu0 0
      %882 = vmatpush1.bf16.msra.mxu0 0
      %883 = vmatprep.subr.bf16.mxu0 0
      %884 = vmatpush1.bf16.msra.mxu0 %v867
      %885 = vmatprep.subr.bf16.mxu0 0
      %886 = vmatpush2.bf16.msra.mxu0 0
      %887 = vmatprep.subr.bf16.mxu0 0
      %888 = vmatpush2.bf16.msra.mxu0 0
      %889 = vmatprep.subr.bf16.mxu0 0
      %890 = vmatpush2.bf16.msra.mxu0 0
      %891 = vmatprep.subr.bf16.mxu0 0
      %892 = vmatpush2.bf16.msra.mxu0 0
      %893 = vmatprep.subr.bf16.mxu0 0
      %894 = vmatpush2.bf16.msra.mxu0 0
      %895 = vmatprep.subr.bf16.mxu0 0
      %896 = vmatpush2.bf16.msra.mxu0 0
      %897 = vmatprep.subr.bf16.mxu0 0
      %898 = vmatpush2.bf16.msra.mxu0 0
      %899 = vmatprep.subr.bf16.mxu0 0
      %900 = vmatpush2.bf16.msra.mxu0 0
      %901 = vmatprep.mubr.bf16.mxu0 0
      %902 = vmatmul.mubr.bf16.gmra.mxu0 %v379
      %v903 = vpop.f32.mrf.mxu0
      %v904 = vadd.f32 0.0, %v903
      %v905 = vpop.f32.mrf.mxu0
      %v906 = vpop.f32.mrf.mxu0
      %v907 = vadd.f32 0.0, %v906
      %v908 = vpop.f32.mrf.mxu0
      %909 = vdwg.mxu0
      %v911 = vsel %vm381, %v368, 0
      %913 = vmatprep.subr.bf16.mxu0 0
      %914 = vmatpush1.bf16.msra.mxu0 0
      %915 = vmatprep.subr.bf16.mxu0 0
      %916 = vmatpush1.bf16.msra.mxu0 0
      %917 = vmatprep.subr.bf16.mxu0 0
      %918 = vmatpush1.bf16.msra.mxu0 0
      %919 = vmatprep.subr.bf16.mxu0 0
      %920 = vmatpush1.bf16.msra.mxu0 0
      %921 = vmatprep.subr.bf16.mxu0 0
      %922 = vmatpush1.bf16.msra.mxu0 0
      %923 = vmatprep.subr.bf16.mxu0 0
      %924 = vmatpush1.bf16.msra.mxu0 0
      %925 = vmatprep.subr.bf16.mxu0 0
      %926 = vmatpush1.bf16.msra.mxu0 0
      %927 = vmatprep.subr.bf16.mxu0 0
      %928 = vmatpush1.bf16.msra.mxu0 %v911
      %929 = vmatprep.subr.bf16.mxu0 0
      %930 = vmatpush2.bf16.msra.mxu0 0
      %931 = vmatprep.subr.bf16.mxu0 0
      %932 = vmatpush2.bf16.msra.mxu0 0
      %933 = vmatprep.subr.bf16.mxu0 0
      %934 = vmatpush2.bf16.msra.mxu0 0
      %935 = vmatprep.subr.bf16.mxu0 0
      %936 = vmatpush2.bf16.msra.mxu0 0
      %937 = vmatprep.subr.bf16.mxu0 0
      %938 = vmatpush2.bf16.msra.mxu0 0
      %939 = vmatprep.subr.bf16.mxu0 0
      %940 = vmatpush2.bf16.msra.mxu0 0
      %941 = vmatprep.subr.bf16.mxu0 0
      %942 = vmatpush2.bf16.msra.mxu0 0
      %943 = vmatprep.subr.bf16.mxu0 0
      %944 = vmatpush2.bf16.msra.mxu0 0
      %945 = vmatprep.mubr.bf16.mxu0 0
      %946 = vmatmul.mubr.bf16.gmra.mxu0 %v379
      %v947 = vpop.f32.mrf.mxu0
      %v948 = vadd.f32 0.0, %v947
      %v949 = vpop.f32.mrf.mxu0
      %v950 = vpop.f32.mrf.mxu0
      %v951 = vadd.f32 0.0, %v950
      %v952 = vpop.f32.mrf.mxu0
      %953 = vdwg.mxu0
      %v955 = vsel %vm381, %v369, 0
      %957 = vmatprep.subr.bf16.mxu0 0
      %958 = vmatpush1.bf16.msra.mxu0 0
      %959 = vmatprep.subr.bf16.mxu0 0
      %960 = vmatpush1.bf16.msra.mxu0 0
      %961 = vmatprep.subr.bf16.mxu0 0
      %962 = vmatpush1.bf16.msra.mxu0 0
      %963 = vmatprep.subr.bf16.mxu0 0
      %964 = vmatpush1.bf16.msra.mxu0 0
      %965 = vmatprep.subr.bf16.mxu0 0
      %966 = vmatpush1.bf16.msra.mxu0 0
      %967 = vmatprep.subr.bf16.mxu0 0
      %968 = vmatpush1.bf16.msra.mxu0 0
      %969 = vmatprep.subr.bf16.mxu0 0
      %970 = vmatpush1.bf16.msra.mxu0 0
      %971 = vmatprep.subr.bf16.mxu0 0
      %972 = vmatpush1.bf16.msra.mxu0 %v955
      %973 = vmatprep.subr.bf16.mxu0 0
      %974 = vmatpush2.bf16.msra.mxu0 0
      %975 = vmatprep.subr.bf16.mxu0 0
      %976 = vmatpush2.bf16.msra.mxu0 0
      %977 = vmatprep.subr.bf16.mxu0 0
      %978 = vmatpush2.bf16.msra.mxu0 0
      %979 = vmatprep.subr.bf16.mxu0 0
      %980 = vmatpush2.bf16.msra.mxu0 0
      %981 = vmatprep.subr.bf16.mxu0 0
      %982 = vmatpush2.bf16.msra.mxu0 0
      %983 = vmatprep.subr.bf16.mxu0 0
      %984 = vmatpush2.bf16.msra.mxu0 0
      %985 = vmatprep.subr.bf16.mxu0 0
      %986 = vmatpush2.bf16.msra.mxu0 0
      %987 = vmatprep.subr.bf16.mxu0 0
      %988 = vmatpush2.bf16.msra.mxu0 0
      %989 = vmatprep.mubr.bf16.mxu0 0
      %990 = vmatmul.mubr.bf16.gmra.mxu0 %v379
      %v991 = vpop.f32.mrf.mxu0
      %v992 = vadd.f32 0.0, %v991
      %v993 = vpop.f32.mrf.mxu0
      %v994 = vpop.f32.mrf.mxu0
      %v995 = vadd.f32 0.0, %v994
      %v996 = vpop.f32.mrf.mxu0
      %997 = vdwg.mxu0
      %v999 = vsel %vm381, %v370, 0
      %1001 = vmatprep.subr.bf16.mxu0 0
      %1002 = vmatpush1.bf16.msra.mxu0 0
      %1003 = vmatprep.subr.bf16.mxu0 0
      %1004 = vmatpush1.bf16.msra.mxu0 0
      %1005 = vmatprep.subr.bf16.mxu0 0
      %1006 = vmatpush1.bf16.msra.mxu0 0
      %1007 = vmatprep.subr.bf16.mxu0 0
      %1008 = vmatpush1.bf16.msra.mxu0 0
      %1009 = vmatprep.subr.bf16.mxu0 0
      %1010 = vmatpush1.bf16.msra.mxu0 0
      %1011 = vmatprep.subr.bf16.mxu0 0
      %1012 = vmatpush1.bf16.msra.mxu0 0
      %1013 = vmatprep.subr.bf16.mxu0 0
      %1014 = vmatpush1.bf16.msra.mxu0 0
      %1015 = vmatprep.subr.bf16.mxu0 0
      %1016 = vmatpush1.bf16.msra.mxu0 %v999
      %1017 = vmatprep.subr.bf16.mxu0 0
      %1018 = vmatpush2.bf16.msra.mxu0 0
      %1019 = vmatprep.subr.bf16.mxu0 0
      %1020 = vmatpush2.bf16.msra.mxu0 0
      %1021 = vmatprep.subr.bf16.mxu0 0
      %1022 = vmatpush2.bf16.msra.mxu0 0
      %1023 = vmatprep.subr.bf16.mxu0 0
      %1024 = vmatpush2.bf16.msra.mxu0 0
      %1025 = vmatprep.subr.bf16.mxu0 0
      %1026 = vmatpush2.bf16.msra.mxu0 0
      %1027 = vmatprep.subr.bf16.mxu0 0
      %1028 = vmatpush2.bf16.msra.mxu0 0
      %1029 = vmatprep.subr.bf16.mxu0 0
      %1030 = vmatpush2.bf16.msra.mxu0 0
      %1031 = vmatprep.subr.bf16.mxu0 0
      %1032 = vmatpush2.bf16.msra.mxu0 0
      %1033 = vmatprep.mubr.bf16.mxu0 0
      %1034 = vmatmul.mubr.bf16.gmra.mxu0 %v379
      %v1035 = vpop.f32.mrf.mxu0
      %v1036 = vadd.f32 0.0, %v1035
      %v1037 = vpop.f32.mrf.mxu0
      %v1038 = vpop.f32.mrf.mxu0
      %v1039 = vadd.f32 0.0, %v1038
      %v1040 = vpop.f32.mrf.mxu0
      %1041 = vdwg.mxu0
      %v1043 = vsel %vm381, %v371, 0
      %1045 = vmatprep.subr.bf16.mxu0 0
      %1046 = vmatpush1.bf16.msra.mxu0 0
      %1047 = vmatprep.subr.bf16.mxu0 0
      %1048 = vmatpush1.bf16.msra.mxu0 0
      %1049 = vmatprep.subr.bf16.mxu0 0
      %1050 = vmatpush1.bf16.msra.mxu0 0
      %1051 = vmatprep.subr.bf16.mxu0 0
      %1052 = vmatpush1.bf16.msra.mxu0 0
      %1053 = vmatprep.subr.bf16.mxu0 0
      %1054 = vmatpush1.bf16.msra.mxu0 0
      %1055 = vmatprep.subr.bf16.mxu0 0
      %1056 = vmatpush1.bf16.msra.mxu0 0
      %1057 = vmatprep.subr.bf16.mxu0 0
      %1058 = vmatpush1.bf16.msra.mxu0 0
      %1059 = vmatprep.subr.bf16.mxu0 0
      %1060 = vmatpush1.bf16.msra.mxu0 %v1043
      %1061 = vmatprep.subr.bf16.mxu0 0
      %1062 = vmatpush2.bf16.msra.mxu0 0
      %1063 = vmatprep.subr.bf16.mxu0 0
      %1064 = vmatpush2.bf16.msra.mxu0 0
      %1065 = vmatprep.subr.bf16.mxu0 0
      %1066 = vmatpush2.bf16.msra.mxu0 0
      %1067 = vmatprep.subr.bf16.mxu0 0
      %1068 = vmatpush2.bf16.msra.mxu0 0
      %1069 = vmatprep.subr.bf16.mxu0 0
      %1070 = vmatpush2.bf16.msra.mxu0 0
      %1071 = vmatprep.subr.bf16.mxu0 0
      %1072 = vmatpush2.bf16.msra.mxu0 0
      %1073 = vmatprep.subr.bf16.mxu0 0
      %1074 = vmatpush2.bf16.msra.mxu0 0
      %1075 = vmatprep.subr.bf16.mxu0 0
      %1076 = vmatpush2.bf16.msra.mxu0 0
      %1077 = vmatprep.mubr.bf16.mxu0 0
      %1078 = vmatmul.mubr.bf16.gmra.mxu0 %v379
      %v1079 = vpop.f32.mrf.mxu0
      %v1080 = vadd.f32 0.0, %v1079
      %v1081 = vpop.f32.mrf.mxu0
      %v1082 = vpop.f32.mrf.mxu0
      %v1083 = vadd.f32 0.0, %v1082
      %v1084 = vpop.f32.mrf.mxu0
      %1085 = vdwg.mxu0
      %v1086 = vpack.c.bf16 %v423, %v420
      %v1087 = vpack.c.bf16 %v467, %v464
      %v1088 = vpack.c.bf16 %v511, %v508
      %v1089 = vpack.c.bf16 %v555, %v552
      %v1090 = vpack.c.bf16 %v599, %v596
      %v1091 = vpack.c.bf16 %v643, %v640
      %v1092 = vpack.c.bf16 %v687, %v684
      %v1093 = vpack.c.bf16 %v731, %v728
      %v1094 = vpack.c.bf16 %v775, %v772
      %v1095 = vpack.c.bf16 %v819, %v816
      %v1096 = vpack.c.bf16 %v863, %v860
      %v1097 = vpack.c.bf16 %v907, %v904
      %v1098 = vpack.c.bf16 %v951, %v948
      %v1099 = vpack.c.bf16 %v995, %v992
      %v1100 = vpack.c.bf16 %v1039, %v1036
      %v1101 = vpack.c.bf16 %v1083, %v1080
      %v1102 = vld [vmem:[%s347] sm:$0xf]
      %v1103 = vld [vmem:[%s347 + $0x4] sm:$0xf]
      %v1104 = vld [vmem:[%s347 + $0x8] sm:$0xf]
      %v1105 = vld [vmem:[%s347 + $0xc] sm:$0xf]
      %v1106 = vld [vmem:[%s347 + $0x10] sm:$0xf]
      %v1107 = vld [vmem:[%s347 + $0x14] sm:$0xf]
      %v1108 = vld [vmem:[%s347 + $0x18] sm:$0xf]
      %v1109 = vld [vmem:[%s347 + $0x1c] sm:$0xf]
      %v1110 = vld [vmem:[%s347 + $0x20] sm:$0xf]
      %v1111 = vld [vmem:[%s347 + $0x24] sm:$0xf]
      %v1112 = vld [vmem:[%s347 + $0x28] sm:$0xf]
      %v1113 = vld [vmem:[%s347 + $0x2c] sm:$0xf]
      %v1114 = vld [vmem:[%s347 + $0x30] sm:$0xf]
      %v1115 = vld [vmem:[%s347 + $0x34] sm:$0xf]
      %v1116 = vld [vmem:[%s347 + $0x38] sm:$0xf]
      %v1117 = vld [vmem:[%s347 + $0x3c] sm:$0xf]
      %v1118 = vld [vmem:[%s347 + $0x40] sm:$0xf]
      %v1119 = vld [vmem:[%s347 + $0x44] sm:$0xf]
      %v1120 = vld [vmem:[%s347 + $0x48] sm:$0xf]
      %v1121 = vld [vmem:[%s347 + $0x4c] sm:$0xf]
      %v1122 = vld [vmem:[%s347 + $0x50] sm:$0xf]
      %v1123 = vld [vmem:[%s347 + $0x54] sm:$0xf]
      %v1124 = vld [vmem:[%s347 + $0x58] sm:$0xf]
      %v1125 = vld [vmem:[%s347 + $0x5c] sm:$0xf]
      %v1126 = vld [vmem:[%s347 + $0x60] sm:$0xf]
      %v1127 = vld [vmem:[%s347 + $0x64] sm:$0xf]
      %v1128 = vld [vmem:[%s347 + $0x68] sm:$0xf]
      %v1129 = vld [vmem:[%s347 + $0x6c] sm:$0xf]
      %v1130 = vld [vmem:[%s347 + $0x70] sm:$0xf]
      %v1131 = vld [vmem:[%s347 + $0x74] sm:$0xf]
      %v1132 = vld [vmem:[%s347 + $0x78] sm:$0xf]
      %v1133 = vld [vmem:[%s347 + $0x7c] sm:$0xf]
      %v1134 = vld [vmem:[%s3] sm:$0x3]
      %v1135 = vld [vmem:[%s4] sm:$0x3]
      %vm1136 = vcmask 31744
      %v1138 = vsel %vm1136, %v1086, 0
      %v1141 = vsel %vm1136, %v1087, 0
      %v1144 = vsel %vm1136, %v1088, 0
      %v1147 = vsel %vm1136, %v1089, 0
      %v1150 = vsel %vm1136, %v1090, 0
      %v1153 = vsel %vm1136, %v1091, 0
      %v1156 = vsel %vm1136, %v1092, 0
      %v1159 = vsel %vm1136, %v1093, 0
      %v1162 = vsel %vm1136, %v1094, 0
      %v1165 = vsel %vm1136, %v1095, 0
      %v1168 = vsel %vm1136, %v1096, 0
      %v1171 = vsel %vm1136, %v1097, 0
      %v1174 = vsel %vm1136, %v1098, 0
      %v1177 = vsel %vm1136, %v1099, 0
      %v1180 = vsel %vm1136, %v1100, 0
      %v1183 = vsel %vm1136, %v1101, 0
      %vm1185 = vcmask 1041408
      %v1187 = vsel %vm1185, %v1135, 0
      %1189 = vmatprep.subr.bf16.mxu0 0
      %1190 = vmatpush1.bf16.msra.mxu0 0
      %1191 = vmatprep.subr.bf16.mxu0 0
      %1192 = vmatpush1.bf16.msra.mxu0 0
      %1193 = vmatprep.subr.bf16.mxu0 0
      %1194 = vmatpush1.bf16.msra.mxu0 0
      %1195 = vmatprep.subr.bf16.mxu0 0
      %1196 = vmatpush1.bf16.msra.mxu0 0
      %1197 = vmatprep.subr.bf16.mxu0 0
      %1198 = vmatpush1.bf16.msra.mxu0 0
      %1199 = vmatprep.subr.bf16.mxu0 0
      %1200 = vmatpush1.bf16.msra.mxu0 0
      %1201 = vmatprep.subr.bf16.mxu0 0
      %1202 = vmatpush1.bf16.msra.mxu0 0
      %1203 = vmatprep.subr.bf16.mxu0 0
      %1204 = vmatpush1.bf16.msra.mxu0 %v1187
      %1205 = vmatprep.subr.bf16.mxu0 0
      %1206 = vmatpush2.bf16.msra.mxu0 0
      %1207 = vmatprep.subr.bf16.mxu0 0
      %1208 = vmatpush2.bf16.msra.mxu0 0
      %1209 = vmatprep.subr.bf16.mxu0 0
      %1210 = vmatpush2.bf16.msra.mxu0 0
      %1211 = vmatprep.subr.bf16.mxu0 0
      %1212 = vmatpush2.bf16.msra.mxu0 0
      %1213 = vmatprep.subr.bf16.mxu0 0
      %1214 = vmatpush2.bf16.msra.mxu0 0
      %1215 = vmatprep.subr.bf16.mxu0 0
      %1216 = vmatpush2.bf16.msra.mxu0 0
      %1217 = vmatprep.subr.bf16.mxu0 0
      %1218 = vmatpush2.bf16.msra.mxu0 0
      %1219 = vmatprep.subr.bf16.mxu0 0
      %1220 = vmatpush2.bf16.msra.mxu0 0
      %1221 = vmatprep.mubr.bf16.mxu0 0
      %1222 = vmatmul.mubr.bf16.gmra.mxu0 %v1138
      %v1223 = vpop.f32.mrf.mxu0
      %v1224 = vadd.f32 0.0, %v1223
      %v1225 = vpop.f32.mrf.mxu0
      %v1226 = vpop.f32.mrf.mxu0
      %v1227 = vadd.f32 0.0, %v1226
      %v1228 = vpop.f32.mrf.mxu0
      %1229 = vmatprep.mubr.bf16.mxu0 0
      %1230 = vmatmul.mubr.bf16.gmra.mxu0 %v1141
      %v1231 = vpop.f32.mrf.mxu0
      %v1232 = vadd.f32 0.0, %v1231
      %v1233 = vpop.f32.mrf.mxu0
      %v1234 = vpop.f32.mrf.mxu0
      %v1235 = vadd.f32 0.0, %v1234
      %v1236 = vpop.f32.mrf.mxu0
      %1237 = vmatprep.mubr.bf16.mxu0 0
      %1238 = vmatmul.mubr.bf16.gmra.mxu0 %v1144
      %v1239 = vpop.f32.mrf.mxu0
      %v1240 = vadd.f32 0.0, %v1239
      %v1241 = vpop.f32.mrf.mxu0
      %v1242 = vpop.f32.mrf.mxu0
      %v1243 = vadd.f32 0.0, %v1242
      %v1244 = vpop.f32.mrf.mxu0
      %1245 = vmatprep.mubr.bf16.mxu0 0
      %1246 = vmatmul.mubr.bf16.gmra.mxu0 %v1147
      %v1247 = vpop.f32.mrf.mxu0
      %v1248 = vadd.f32 0.0, %v1247
      %v1249 = vpop.f32.mrf.mxu0
      %v1250 = vpop.f32.mrf.mxu0
      %v1251 = vadd.f32 0.0, %v1250
      %v1252 = vpop.f32.mrf.mxu0
      %1253 = vmatprep.mubr.bf16.mxu0 0
      %1254 = vmatmul.mubr.bf16.gmra.mxu0 %v1150
      %v1255 = vpop.f32.mrf.mxu0
      %v1256 = vadd.f32 0.0, %v1255
      %v1257 = vpop.f32.mrf.mxu0
      %v1258 = vpop.f32.mrf.mxu0
      %v1259 = vadd.f32 0.0, %v1258
      %v1260 = vpop.f32.mrf.mxu0
      %1261 = vmatprep.mubr.bf16.mxu0 0
      %1262 = vmatmul.mubr.bf16.gmra.mxu0 %v1153
      %v1263 = vpop.f32.mrf.mxu0
      %v1264 = vadd.f32 0.0, %v1263
      %v1265 = vpop.f32.mrf.mxu0
      %v1266 = vpop.f32.mrf.mxu0
      %v1267 = vadd.f32 0.0, %v1266
      %v1268 = vpop.f32.mrf.mxu0
      %1269 = vmatprep.mubr.bf16.mxu0 0
      %1270 = vmatmul.mubr.bf16.gmra.mxu0 %v1156
      %v1271 = vpop.f32.mrf.mxu0
      %v1272 = vadd.f32 0.0, %v1271
      %v1273 = vpop.f32.mrf.mxu0
      %v1274 = vpop.f32.mrf.mxu0
      %v1275 = vadd.f32 0.0, %v1274
      %v1276 = vpop.f32.mrf.mxu0
      %1277 = vmatprep.mubr.bf16.mxu0 0
      %1278 = vmatmul.mubr.bf16.gmra.mxu0 %v1159
      %v1279 = vpop.f32.mrf.mxu0
      %v1280 = vadd.f32 0.0, %v1279
      %v1281 = vpop.f32.mrf.mxu0
      %v1282 = vpop.f32.mrf.mxu0
      %v1283 = vadd.f32 0.0, %v1282
      %v1284 = vpop.f32.mrf.mxu0
      %1285 = vmatprep.mubr.bf16.mxu0 0
      %1286 = vmatmul.mubr.bf16.gmra.mxu0 %v1162
      %v1287 = vpop.f32.mrf.mxu0
      %v1288 = vadd.f32 0.0, %v1287
      %v1289 = vpop.f32.mrf.mxu0
      %v1290 = vpop.f32.mrf.mxu0
      %v1291 = vadd.f32 0.0, %v1290
      %v1292 = vpop.f32.mrf.mxu0
      %1293 = vmatprep.mubr.bf16.mxu0 0
      %1294 = vmatmul.mubr.bf16.gmra.mxu0 %v1165
      %v1295 = vpop.f32.mrf.mxu0
      %v1296 = vadd.f32 0.0, %v1295
      %v1297 = vpop.f32.mrf.mxu0
      %v1298 = vpop.f32.mrf.mxu0
      %v1299 = vadd.f32 0.0, %v1298
      %v1300 = vpop.f32.mrf.mxu0
      %1301 = vmatprep.mubr.bf16.mxu0 0
      %1302 = vmatmul.mubr.bf16.gmra.mxu0 %v1168
      %v1303 = vpop.f32.mrf.mxu0
      %v1304 = vadd.f32 0.0, %v1303
      %v1305 = vpop.f32.mrf.mxu0
      %v1306 = vpop.f32.mrf.mxu0
      %v1307 = vadd.f32 0.0, %v1306
      %v1308 = vpop.f32.mrf.mxu0
      %1309 = vmatprep.mubr.bf16.mxu0 0
      %1310 = vmatmul.mubr.bf16.gmra.mxu0 %v1171
      %v1311 = vpop.f32.mrf.mxu0
      %v1312 = vadd.f32 0.0, %v1311
      %v1313 = vpop.f32.mrf.mxu0
      %v1314 = vpop.f32.mrf.mxu0
      %v1315 = vadd.f32 0.0, %v1314
      %v1316 = vpop.f32.mrf.mxu0
      %1317 = vmatprep.mubr.bf16.mxu0 0
      %1318 = vmatmul.mubr.bf16.gmra.mxu0 %v1174
      %v1319 = vpop.f32.mrf.mxu0
      %v1320 = vadd.f32 0.0, %v1319
      %v1321 = vpop.f32.mrf.mxu0
      %v1322 = vpop.f32.mrf.mxu0
      %v1323 = vadd.f32 0.0, %v1322
      %v1324 = vpop.f32.mrf.mxu0
      %1325 = vmatprep.mubr.bf16.mxu0 0
      %1326 = vmatmul.mubr.bf16.gmra.mxu0 %v1177
      %v1327 = vpop.f32.mrf.mxu0
      %v1328 = vadd.f32 0.0, %v1327
      %v1329 = vpop.f32.mrf.mxu0
      %v1330 = vpop.f32.mrf.mxu0
      %v1331 = vadd.f32 0.0, %v1330
      %v1332 = vpop.f32.mrf.mxu0
      %1333 = vmatprep.mubr.bf16.mxu0 0
      %1334 = vmatmul.mubr.bf16.gmra.mxu0 %v1180
      %v1335 = vpop.f32.mrf.mxu0
      %v1336 = vadd.f32 0.0, %v1335
      %v1337 = vpop.f32.mrf.mxu0
      %v1338 = vpop.f32.mrf.mxu0
      %v1339 = vadd.f32 0.0, %v1338
      %v1340 = vpop.f32.mrf.mxu0
      %1341 = vmatprep.mubr.bf16.mxu0 0
      %1342 = vmatmul.mubr.bf16.gmra.mxu0 %v1183
      %v1343 = vpop.f32.mrf.mxu0
      %v1344 = vadd.f32 0.0, %v1343
      %v1345 = vpop.f32.mrf.mxu0
      %v1346 = vpop.f32.mrf.mxu0
      %v1347 = vadd.f32 0.0, %v1346
      %v1348 = vpop.f32.mrf.mxu0
      %1349 = vdwg.mxu0
      %v1382 = vunpack.c.l.b16 %v1102
      %v1383 = vunpack.c.l.b16 %v1103
      %v1384 = vunpack.c.l.b16 %v1104
      %v1385 = vunpack.c.l.b16 %v1105
      %v1386 = vunpack.c.l.b16 %v1106
      %v1387 = vunpack.c.l.b16 %v1107
      %v1388 = vunpack.c.l.b16 %v1108
      %v1389 = vunpack.c.l.b16 %v1109
      %v1390 = vunpack.c.l.b16 %v1110
      %v1391 = vunpack.c.l.b16 %v1111
      %v1392 = vunpack.c.l.b16 %v1112
      %v1393 = vunpack.c.l.b16 %v1113
      %v1394 = vunpack.c.l.b16 %v1114
      %v1395 = vunpack.c.l.b16 %v1115
      %v1396 = vunpack.c.l.b16 %v1116
      %v1397 = vunpack.c.l.b16 %v1117
      %v1398 = vunpack.c.l.b16 %v1118
      %v1399 = vunpack.c.l.b16 %v1119
      %v1400 = vunpack.c.l.b16 %v1120
      %v1401 = vunpack.c.l.b16 %v1121
      %v1402 = vunpack.c.l.b16 %v1122
      %v1403 = vunpack.c.l.b16 %v1123
      %v1404 = vunpack.c.l.b16 %v1124
      %v1405 = vunpack.c.l.b16 %v1125
      %v1406 = vunpack.c.l.b16 %v1126
      %v1407 = vunpack.c.l.b16 %v1127
      %v1408 = vunpack.c.l.b16 %v1128
      %v1409 = vunpack.c.l.b16 %v1129
      %v1410 = vunpack.c.l.b16 %v1130
      %v1411 = vunpack.c.l.b16 %v1131
      %v1412 = vunpack.c.l.b16 %v1132
      %v1413 = vunpack.c.l.b16 %v1133
      %v1414 = vpack.c.b16 %v1383, %v1382
      %v1415 = vpack.c.b16 %v1385, %v1384
      %v1416 = vpack.c.b16 %v1387, %v1386
      %v1417 = vpack.c.b16 %v1389, %v1388
      %v1418 = vpack.c.b16 %v1391, %v1390
      %v1419 = vpack.c.b16 %v1393, %v1392
      %v1420 = vpack.c.b16 %v1395, %v1394
      %v1421 = vpack.c.b16 %v1397, %v1396
      %v1422 = vpack.c.b16 %v1399, %v1398
      %v1423 = vpack.c.b16 %v1401, %v1400
      %v1424 = vpack.c.b16 %v1403, %v1402
      %v1425 = vpack.c.b16 %v1405, %v1404
      %v1426 = vpack.c.b16 %v1407, %v1406
      %v1427 = vpack.c.b16 %v1409, %v1408
      %v1428 = vpack.c.b16 %v1411, %v1410
      %v1429 = vpack.c.b16 %v1413, %v1412
      %v1431 = vsel %vm1136, %v1414, 0
      %v1434 = vsel %vm1136, %v1415, 0
      %v1437 = vsel %vm1136, %v1416, 0
      %v1440 = vsel %vm1136, %v1417, 0
      %v1443 = vsel %vm1136, %v1418, 0
      %v1446 = vsel %vm1136, %v1419, 0
      %v1449 = vsel %vm1136, %v1420, 0
      %v1452 = vsel %vm1136, %v1421, 0
      %v1455 = vsel %vm1136, %v1422, 0
      %v1458 = vsel %vm1136, %v1423, 0
      %v1461 = vsel %vm1136, %v1424, 0
      %v1464 = vsel %vm1136, %v1425, 0
      %v1467 = vsel %vm1136, %v1426, 0
      %v1470 = vsel %vm1136, %v1427, 0
      %v1473 = vsel %vm1136, %v1428, 0
      %v1476 = vsel %vm1136, %v1429, 0
      %v1479 = vsel %vm1185, %v1134, 0
      %1481 = vmatprep.subr.bf16.mxu0 0
      %1482 = vmatpush1.bf16.msra.mxu0 0
      %1483 = vmatprep.subr.bf16.mxu0 0
      %1484 = vmatpush1.bf16.msra.mxu0 0
      %1485 = vmatprep.subr.bf16.mxu0 0
      %1486 = vmatpush1.bf16.msra.mxu0 0
      %1487 = vmatprep.subr.bf16.mxu0 0
      %1488 = vmatpush1.bf16.msra.mxu0 0
      %1489 = vmatprep.subr.bf16.mxu0 0
      %1490 = vmatpush1.bf16.msra.mxu0 0
      %1491 = vmatprep.subr.bf16.mxu0 0
      %1492 = vmatpush1.bf16.msra.mxu0 0
      %1493 = vmatprep.subr.bf16.mxu0 0
      %1494 = vmatpush1.bf16.msra.mxu0 0
      %1495 = vmatprep.subr.bf16.mxu0 0
      %1496 = vmatpush1.bf16.msra.mxu0 %v1479
      %1497 = vmatprep.subr.bf16.mxu0 0
      %1498 = vmatpush2.bf16.msra.mxu0 0
      %1499 = vmatprep.subr.bf16.mxu0 0
      %1500 = vmatpush2.bf16.msra.mxu0 0
      %1501 = vmatprep.subr.bf16.mxu0 0
      %1502 = vmatpush2.bf16.msra.mxu0 0
      %1503 = vmatprep.subr.bf16.mxu0 0
      %1504 = vmatpush2.bf16.msra.mxu0 0
      %1505 = vmatprep.subr.bf16.mxu0 0
      %1506 = vmatpush2.bf16.msra.mxu0 0
      %1507 = vmatprep.subr.bf16.mxu0 0
      %1508 = vmatpush2.bf16.msra.mxu0 0
      %1509 = vmatprep.subr.bf16.mxu0 0
      %1510 = vmatpush2.bf16.msra.mxu0 0
      %1511 = vmatprep.subr.bf16.mxu0 0
      %1512 = vmatpush2.bf16.msra.mxu0 0
      %1513 = vmatprep.mubr.bf16.mxu0 0
      %1514 = vmatmul.mubr.bf16.gmra.mxu0 %v1431
      %v1515 = vpop.f32.mrf.mxu0
      %v1516 = vadd.f32 %v1224, %v1515
      %v1517 = vpop.f32.mrf.mxu0
      %v1518 = vpop.f32.mrf.mxu0
      %v1519 = vadd.f32 %v1227, %v1518
      %v1520 = vpop.f32.mrf.mxu0
      %1521 = vmatprep.mubr.bf16.mxu0 0
      %1522 = vmatmul.mubr.bf16.gmra.mxu0 %v1434
      %v1523 = vpop.f32.mrf.mxu0
      %v1524 = vadd.f32 %v1232, %v1523
      %v1525 = vpop.f32.mrf.mxu0
      %v1526 = vpop.f32.mrf.mxu0
      %v1527 = vadd.f32 %v1235, %v1526
      %v1528 = vpop.f32.mrf.mxu0
      %1529 = vmatprep.mubr.bf16.mxu0 0
      %1530 = vmatmul.mubr.bf16.gmra.mxu0 %v1437
      %v1531 = vpop.f32.mrf.mxu0
      %v1532 = vadd.f32 %v1240, %v1531
      %v1533 = vpop.f32.mrf.mxu0
      %v1534 = vpop.f32.mrf.mxu0
      %v1535 = vadd.f32 %v1243, %v1534
      %v1536 = vpop.f32.mrf.mxu0
      %1537 = vmatprep.mubr.bf16.mxu0 0
      %1538 = vmatmul.mubr.bf16.gmra.mxu0 %v1440
      %v1539 = vpop.f32.mrf.mxu0
      %v1540 = vadd.f32 %v1248, %v1539
      %v1541 = vpop.f32.mrf.mxu0
      %v1542 = vpop.f32.mrf.mxu0
      %v1543 = vadd.f32 %v1251, %v1542
      %v1544 = vpop.f32.mrf.mxu0
      %1545 = vmatprep.mubr.bf16.mxu0 0
      %1546 = vmatmul.mubr.bf16.gmra.mxu0 %v1443
      %v1547 = vpop.f32.mrf.mxu0
      %v1548 = vadd.f32 %v1256, %v1547
      %v1549 = vpop.f32.mrf.mxu0
      %v1550 = vpop.f32.mrf.mxu0
      %v1551 = vadd.f32 %v1259, %v1550
      %v1552 = vpop.f32.mrf.mxu0
      %1553 = vmatprep.mubr.bf16.mxu0 0
      %1554 = vmatmul.mubr.bf16.gmra.mxu0 %v1446
      %v1555 = vpop.f32.mrf.mxu0
      %v1556 = vadd.f32 %v1264, %v1555
      %v1557 = vpop.f32.mrf.mxu0
      %v1558 = vpop.f32.mrf.mxu0
      %v1559 = vadd.f32 %v1267, %v1558
      %v1560 = vpop.f32.mrf.mxu0
      %1561 = vmatprep.mubr.bf16.mxu0 0
      %1562 = vmatmul.mubr.bf16.gmra.mxu0 %v1449
      %v1563 = vpop.f32.mrf.mxu0
      %v1564 = vadd.f32 %v1272, %v1563
      %v1565 = vpop.f32.mrf.mxu0
      %v1566 = vpop.f32.mrf.mxu0
      %v1567 = vadd.f32 %v1275, %v1566
      %v1568 = vpop.f32.mrf.mxu0
      %1569 = vmatprep.mubr.bf16.mxu0 0
      %1570 = vmatmul.mubr.bf16.gmra.mxu0 %v1452
      %v1571 = vpop.f32.mrf.mxu0
      %v1572 = vadd.f32 %v1280, %v1571
      %v1573 = vpop.f32.mrf.mxu0
      %v1574 = vpop.f32.mrf.mxu0
      %v1575 = vadd.f32 %v1283, %v1574
      %v1576 = vpop.f32.mrf.mxu0
      %1577 = vmatprep.mubr.bf16.mxu0 0
      %1578 = vmatmul.mubr.bf16.gmra.mxu0 %v1455
      %v1579 = vpop.f32.mrf.mxu0
      %v1580 = vadd.f32 %v1288, %v1579
      %v1581 = vpop.f32.mrf.mxu0
      %v1582 = vpop.f32.mrf.mxu0
      %v1583 = vadd.f32 %v1291, %v1582
      %v1584 = vpop.f32.mrf.mxu0
      %1585 = vmatprep.mubr.bf16.mxu0 0
      %1586 = vmatmul.mubr.bf16.gmra.mxu0 %v1458
      %v1587 = vpop.f32.mrf.mxu0
      %v1588 = vadd.f32 %v1296, %v1587
      %v1589 = vpop.f32.mrf.mxu0
      %v1590 = vpop.f32.mrf.mxu0
      %v1591 = vadd.f32 %v1299, %v1590
      %v1592 = vpop.f32.mrf.mxu0
      %1593 = vmatprep.mubr.bf16.mxu0 0
      %1594 = vmatmul.mubr.bf16.gmra.mxu0 %v1461
      %v1595 = vpop.f32.mrf.mxu0
      %v1596 = vadd.f32 %v1304, %v1595
      %v1597 = vpop.f32.mrf.mxu0
      %v1598 = vpop.f32.mrf.mxu0
      %v1599 = vadd.f32 %v1307, %v1598
      %v1600 = vpop.f32.mrf.mxu0
      %1601 = vmatprep.mubr.bf16.mxu0 0
      %1602 = vmatmul.mubr.bf16.gmra.mxu0 %v1464
      %v1603 = vpop.f32.mrf.mxu0
      %v1604 = vadd.f32 %v1312, %v1603
      %v1605 = vpop.f32.mrf.mxu0
      %v1606 = vpop.f32.mrf.mxu0
      %v1607 = vadd.f32 %v1315, %v1606
      %v1608 = vpop.f32.mrf.mxu0
      %1609 = vmatprep.mubr.bf16.mxu0 0
      %1610 = vmatmul.mubr.bf16.gmra.mxu0 %v1467
      %v1611 = vpop.f32.mrf.mxu0
      %v1612 = vadd.f32 %v1320, %v1611
      %v1613 = vpop.f32.mrf.mxu0
      %v1614 = vpop.f32.mrf.mxu0
      %v1615 = vadd.f32 %v1323, %v1614
      %v1616 = vpop.f32.mrf.mxu0
      %1617 = vmatprep.mubr.bf16.mxu0 0
      %1618 = vmatmul.mubr.bf16.gmra.mxu0 %v1470
      %v1619 = vpop.f32.mrf.mxu0
      %v1620 = vadd.f32 %v1328, %v1619
      %v1621 = vpop.f32.mrf.mxu0
      %v1622 = vpop.f32.mrf.mxu0
      %v1623 = vadd.f32 %v1331, %v1622
      %v1624 = vpop.f32.mrf.mxu0
      %1625 = vmatprep.mubr.bf16.mxu0 0
      %1626 = vmatmul.mubr.bf16.gmra.mxu0 %v1473
      %v1627 = vpop.f32.mrf.mxu0
      %v1628 = vadd.f32 %v1336, %v1627
      %v1629 = vpop.f32.mrf.mxu0
      %v1630 = vpop.f32.mrf.mxu0
      %v1631 = vadd.f32 %v1339, %v1630
      %v1632 = vpop.f32.mrf.mxu0
      %1633 = vmatprep.mubr.bf16.mxu0 0
      %1634 = vmatmul.mubr.bf16.gmra.mxu0 %v1476
      %v1635 = vpop.f32.mrf.mxu0
      %v1636 = vadd.f32 %v1344, %v1635
      %v1637 = vpop.f32.mrf.mxu0
      %v1638 = vpop.f32.mrf.mxu0
      %v1639 = vadd.f32 %v1347, %v1638
      %v1640 = vpop.f32.mrf.mxu0
      %1641 = vdwg.mxu0
      %v1642 = vrot.slane %v1516, 7
      %v1643 = vrot.slane %v1519, 7
      %v1644 = vrot.slane %v1524, 7
      %v1645 = vrot.slane %v1527, 7
      %v1646 = vrot.slane %v1532, 7
      %v1647 = vrot.slane %v1535, 7
      %v1648 = vrot.slane %v1540, 7
      %v1649 = vrot.slane %v1543, 7
      %v1650 = vrot.slane %v1548, 7
      %v1651 = vrot.slane %v1551, 7
      %v1652 = vrot.slane %v1556, 7
      %v1653 = vrot.slane %v1559, 7
      %v1654 = vrot.slane %v1564, 7
      %v1655 = vrot.slane %v1567, 7
      %v1656 = vrot.slane %v1572, 7
      %v1657 = vrot.slane %v1575, 7
      %v1658 = vrot.slane %v1580, 7
      %v1659 = vrot.slane %v1583, 7
      %v1660 = vrot.slane %v1588, 7
      %v1661 = vrot.slane %v1591, 7
      %v1662 = vrot.slane %v1596, 7
      %v1663 = vrot.slane %v1599, 7
      %v1664 = vrot.slane %v1604, 7
      %v1665 = vrot.slane %v1607, 7
      %v1666 = vrot.slane %v1612, 7
      %v1667 = vrot.slane %v1615, 7
      %v1668 = vrot.slane %v1620, 7
      %v1669 = vrot.slane %v1623, 7
      %v1670 = vrot.slane %v1628, 7
      %v1671 = vrot.slane %v1631, 7
      %v1672 = vrot.slane %v1636, 7
      %v1673 = vrot.slane %v1639, 7
      %v1674 = vlaneseq
      %v1675 = vshrl.u32 %v1674, 7
      %vm1676 = vcmp.lt.s32.totalorder %v1675, 1
      %v1677 = vsel %vm1676, %v1672, %v1673
      %v1678 = vsel %vm1676, %v1671, %v1672
      %v1679 = vsel %vm1676, %v1670, %v1671
      %v1680 = vsel %vm1676, %v1669, %v1670
      %v1681 = vsel %vm1676, %v1668, %v1669
      %v1682 = vsel %vm1676, %v1667, %v1668
      %v1683 = vsel %vm1676, %v1666, %v1667
      %v1684 = vsel %vm1676, %v1665, %v1666
      %v1685 = vsel %vm1676, %v1664, %v1665
      %v1686 = vsel %vm1676, %v1663, %v1664
      %v1687 = vsel %vm1676, %v1662, %v1663
      %v1688 = vsel %vm1676, %v1661, %v1662
      %v1689 = vsel %vm1676, %v1660, %v1661
      %v1690 = vsel %vm1676, %v1659, %v1660
      %v1691 = vsel %vm1676, %v1658, %v1659
      %v1692 = vsel %vm1676, %v1657, %v1658
      %v1693 = vsel %vm1676, %v1656, %v1657
      %v1694 = vsel %vm1676, %v1655, %v1656
      %v1695 = vsel %vm1676, %v1654, %v1655
      %v1696 = vsel %vm1676, %v1653, %v1654
      %v1697 = vsel %vm1676, %v1652, %v1653
      %v1698 = vsel %vm1676, %v1651, %v1652
      %v1699 = vsel %vm1676, %v1650, %v1651
      %v1700 = vsel %vm1676, %v1649, %v1650
      %v1701 = vsel %vm1676, %v1648, %v1649
      %v1702 = vsel %vm1676, %v1647, %v1648
      %v1703 = vsel %vm1676, %v1646, %v1647
      %v1704 = vsel %vm1676, %v1645, %v1646
      %v1705 = vsel %vm1676, %v1644, %v1645
      %v1706 = vsel %vm1676, %v1643, %v1644
      %v1707 = vsel %vm1676, %v1642, %v1643
      %v1708 = vsel %vm1676, %v1673, %v1642
      %v1709 = vld [vmem:[%s8] sm:$0xff]
      %v1710 = vld [vmem:[%s8 + $0x8] sm:$0xff]
      %v1711 = vld [vmem:[%s8 + $0x10] sm:$0xff]
      %v1712 = vld [vmem:[%s8 + $0x18] sm:$0xff]
      %v1713 = vld [vmem:[%s8 + $0x20] sm:$0xff]
      %v1714 = vld [vmem:[%s8 + $0x28] sm:$0xff]
      %v1715 = vld [vmem:[%s8 + $0x30] sm:$0xff]
      %v1716 = vld [vmem:[%s8 + $0x38] sm:$0xff]
      %v1717 = vld [vmem:[%s8 + $0x40] sm:$0xff]
      %v1718 = vld [vmem:[%s8 + $0x48] sm:$0xff]
      %v1719 = vld [vmem:[%s8 + $0x50] sm:$0xff]
      %v1720 = vld [vmem:[%s8 + $0x58] sm:$0xff]
      %v1721 = vld [vmem:[%s8 + $0x60] sm:$0xff]
      %v1722 = vld [vmem:[%s8 + $0x68] sm:$0xff]
      %v1723 = vld [vmem:[%s8 + $0x70] sm:$0xff]
      %v1724 = vld [vmem:[%s8 + $0x78] sm:$0xff]
      %v1725 = vld [vmem:[%s8 + $0x80] sm:$0xff]
      %v1726 = vld [vmem:[%s8 + $0x88] sm:$0xff]
      %v1727 = vld [vmem:[%s8 + $0x90] sm:$0xff]
      %v1728 = vld [vmem:[%s8 + $0x98] sm:$0xff]
      %v1729 = vld [vmem:[%s8 + $0xa0] sm:$0xff]
      %v1730 = vld [vmem:[%s8 + $0xa8] sm:$0xff]
      %v1731 = vld [vmem:[%s8 + $0xb0] sm:$0xff]
      %v1732 = vld [vmem:[%s8 + $0xb8] sm:$0xff]
      %v1733 = vld [vmem:[%s8 + $0xc0] sm:$0xff]
      %v1734 = vld [vmem:[%s8 + $0xc8] sm:$0xff]
      %v1735 = vld [vmem:[%s8 + $0xd0] sm:$0xff]
      %v1736 = vld [vmem:[%s8 + $0xd8] sm:$0xff]
      %v1737 = vld [vmem:[%s8 + $0xe0] sm:$0xff]
      %v1738 = vld [vmem:[%s8 + $0xe8] sm:$0xff]
      %v1739 = vld [vmem:[%s8 + $0xf0] sm:$0xff]
      %v1740 = vld [vmem:[%s8 + $0xf8] sm:$0xff]
      %1742 = vset.pattern.permute.xlu0 0
      %1743 = vperm.xlu0 %1742, %v1709
      %v1744 = vpop.permute.xlu0 %1743
      %1747 = vset.pattern.permute.xlu0 0
      %1748 = vperm.xlu0 %1747, %v1710
      %v1749 = vpop.permute.xlu0 %1748
      %1752 = vset.pattern.permute.xlu0 0
      %1753 = vperm.xlu0 %1752, %v1711
      %v1754 = vpop.permute.xlu0 %1753
      %1757 = vset.pattern.permute.xlu0 0
      %1758 = vperm.xlu0 %1757, %v1712
      %v1759 = vpop.permute.xlu0 %1758
      %1762 = vset.pattern.permute.xlu0 0
      %1763 = vperm.xlu0 %1762, %v1713
      %v1764 = vpop.permute.xlu0 %1763
      %1767 = vset.pattern.permute.xlu0 0
      %1768 = vperm.xlu0 %1767, %v1714
      %v1769 = vpop.permute.xlu0 %1768
      %1772 = vset.pattern.permute.xlu0 0
      %1773 = vperm.xlu0 %1772, %v1715
      %v1774 = vpop.permute.xlu0 %1773
      %1777 = vset.pattern.permute.xlu0 0
      %1778 = vperm.xlu0 %1777, %v1716
      %v1779 = vpop.permute.xlu0 %1778
      %1782 = vset.pattern.permute.xlu0 0
      %1783 = vperm.xlu0 %1782, %v1717
      %v1784 = vpop.permute.xlu0 %1783
      %1787 = vset.pattern.permute.xlu0 0
      %1788 = vperm.xlu0 %1787, %v1718
      %v1789 = vpop.permute.xlu0 %1788
      %1792 = vset.pattern.permute.xlu0 0
      %1793 = vperm.xlu0 %1792, %v1719
      %v1794 = vpop.permute.xlu0 %1793
      %1797 = vset.pattern.permute.xlu0 0
      %1798 = vperm.xlu0 %1797, %v1720
      %v1799 = vpop.permute.xlu0 %1798
      %1802 = vset.pattern.permute.xlu0 0
      %1803 = vperm.xlu0 %1802, %v1721
      %v1804 = vpop.permute.xlu0 %1803
      %1807 = vset.pattern.permute.xlu0 0
      %1808 = vperm.xlu0 %1807, %v1722
      %v1809 = vpop.permute.xlu0 %1808
      %1812 = vset.pattern.permute.xlu0 0
      %1813 = vperm.xlu0 %1812, %v1723
      %v1814 = vpop.permute.xlu0 %1813
      %1817 = vset.pattern.permute.xlu0 0
      %1818 = vperm.xlu0 %1817, %v1724
      %v1819 = vpop.permute.xlu0 %1818
      %1822 = vset.pattern.permute.xlu0 0
      %1823 = vperm.xlu0 %1822, %v1725
      %v1824 = vpop.permute.xlu0 %1823
      %1827 = vset.pattern.permute.xlu0 0
      %1828 = vperm.xlu0 %1827, %v1726
      %v1829 = vpop.permute.xlu0 %1828
      %1832 = vset.pattern.permute.xlu0 0
      %1833 = vperm.xlu0 %1832, %v1727
      %v1834 = vpop.permute.xlu0 %1833
      %1837 = vset.pattern.permute.xlu0 0
      %1838 = vperm.xlu0 %1837, %v1728
      %v1839 = vpop.permute.xlu0 %1838
      %1842 = vset.pattern.permute.xlu0 0
      %1843 = vperm.xlu0 %1842, %v1729
      %v1844 = vpop.permute.xlu0 %1843
      %1847 = vset.pattern.permute.xlu0 0
      %1848 = vperm.xlu0 %1847, %v1730
      %v1849 = vpop.permute.xlu0 %1848
      %1852 = vset.pattern.permute.xlu0 0
      %1853 = vperm.xlu0 %1852, %v1731
      %v1854 = vpop.permute.xlu0 %1853
      %1857 = vset.pattern.permute.xlu0 0
      %1858 = vperm.xlu0 %1857, %v1732
      %v1859 = vpop.permute.xlu0 %1858
      %1862 = vset.pattern.permute.xlu0 0
      %1863 = vperm.xlu0 %1862, %v1733
      %v1864 = vpop.permute.xlu0 %1863
      %1867 = vset.pattern.permute.xlu0 0
      %1868 = vperm.xlu0 %1867, %v1734
      %v1869 = vpop.permute.xlu0 %1868
      %1872 = vset.pattern.permute.xlu0 0
      %1873 = vperm.xlu0 %1872, %v1735
      %v1874 = vpop.permute.xlu0 %1873
      %1877 = vset.pattern.permute.xlu0 0
      %1878 = vperm.xlu0 %1877, %v1736
      %v1879 = vpop.permute.xlu0 %1878
      %1882 = vset.pattern.permute.xlu0 0
      %1883 = vperm.xlu0 %1882, %v1737
      %v1884 = vpop.permute.xlu0 %1883
      %1887 = vset.pattern.permute.xlu0 0
      %1888 = vperm.xlu0 %1887, %v1738
      %v1889 = vpop.permute.xlu0 %1888
      %1892 = vset.pattern.permute.xlu0 0
      %1893 = vperm.xlu0 %1892, %v1739
      %v1894 = vpop.permute.xlu0 %1893
      %1897 = vset.pattern.permute.xlu0 0
      %1898 = vperm.xlu0 %1897, %v1740
      %v1899 = vpop.permute.xlu0 %1898
      %v1901 = vmul.f32 %v1678, %v1744
      %v1902 = vmul.f32 %v1677, %v1749
      %v1903 = vmul.f32 %v1708, %v1754
      %v1904 = vmul.f32 %v1707, %v1759
      %v1905 = vmul.f32 %v1706, %v1764
      %v1906 = vmul.f32 %v1705, %v1769
      %v1907 = vmul.f32 %v1704, %v1774
      %v1908 = vmul.f32 %v1703, %v1779
      %v1909 = vmul.f32 %v1702, %v1784
      %v1910 = vmul.f32 %v1701, %v1789
      %v1911 = vmul.f32 %v1700, %v1794
      %v1912 = vmul.f32 %v1699, %v1799
      %v1913 = vmul.f32 %v1698, %v1804
      %v1914 = vmul.f32 %v1697, %v1809
      %v1915 = vmul.f32 %v1696, %v1814
      %v1916 = vmul.f32 %v1695, %v1819
      %v1917 = vmul.f32 %v1694, %v1824
      %v1918 = vmul.f32 %v1693, %v1829
      %v1919 = vmul.f32 %v1692, %v1834
      %v1920 = vmul.f32 %v1691, %v1839
      %v1921 = vmul.f32 %v1690, %v1844
      %v1922 = vmul.f32 %v1689, %v1849
      %v1923 = vmul.f32 %v1688, %v1854
      %v1924 = vmul.f32 %v1687, %v1859
      %v1925 = vmul.f32 %v1686, %v1864
      %v1926 = vmul.f32 %v1685, %v1869
      %v1927 = vmul.f32 %v1684, %v1874
      %v1928 = vmul.f32 %v1683, %v1879
      %v1929 = vmul.f32 %v1682, %v1884
      %v1930 = vmul.f32 %v1681, %v1889
      %v1931 = vmul.f32 %v1680, %v1894
      %v1932 = vmul.f32 %v1679, %v1899
      %v1933 = vadd.f32 %v1901, 0.0
      %v1934 = vadd.f32 %v1902, 0.0
      %v1935 = vadd.f32 %v1903, 0.0
      %v1936 = vadd.f32 %v1904, 0.0
      %v1937 = vadd.f32 %v1905, 0.0
      %v1938 = vadd.f32 %v1906, 0.0
      %v1939 = vadd.f32 %v1907, 0.0
      %v1940 = vadd.f32 %v1908, 0.0
      %v1941 = vadd.f32 %v1909, 0.0
      %v1942 = vadd.f32 %v1910, 0.0
      %v1943 = vadd.f32 %v1911, 0.0
      %v1944 = vadd.f32 %v1912, 0.0
      %v1945 = vadd.f32 %v1913, 0.0
      %v1946 = vadd.f32 %v1914, 0.0
      %v1947 = vadd.f32 %v1915, 0.0
      %v1948 = vadd.f32 %v1916, 0.0
      %v1949 = vadd.f32 %v1917, 0.0
      %v1950 = vadd.f32 %v1918, 0.0
      %v1951 = vadd.f32 %v1919, 0.0
      %v1952 = vadd.f32 %v1920, 0.0
      %v1953 = vadd.f32 %v1921, 0.0
      %v1954 = vadd.f32 %v1922, 0.0
      %v1955 = vadd.f32 %v1923, 0.0
      %v1956 = vadd.f32 %v1924, 0.0
      %v1957 = vadd.f32 %v1925, 0.0
      %v1958 = vadd.f32 %v1926, 0.0
      %v1959 = vadd.f32 %v1927, 0.0
      %v1960 = vadd.f32 %v1928, 0.0
      %v1961 = vadd.f32 %v1929, 0.0
      %v1962 = vadd.f32 %v1930, 0.0
      %v1963 = vadd.f32 %v1931, 0.0
      %v1964 = vadd.f32 %v1932, 0.0
      %s1965 = scalar_lea.vmem %s3, 2
      %v1966 = vld [vmem:[%s1965] sm:$0x3]
      %s1967 = scalar_lea.vmem %s4, 2
      %v1968 = vld [vmem:[%s1967] sm:$0x3]
      %v1970 = vsel %vm1185, %v1968, 0
      %1972 = vmatprep.subr.bf16.mxu0 0
      %1973 = vmatpush1.bf16.msra.mxu0 0
      %1974 = vmatprep.subr.bf16.mxu0 0
      %1975 = vmatpush1.bf16.msra.mxu0 0
      %1976 = vmatprep.subr.bf16.mxu0 0
      %1977 = vmatpush1.bf16.msra.mxu0 0
      %1978 = vmatprep.subr.bf16.mxu0 0
      %1979 = vmatpush1.bf16.msra.mxu0 0
      %1980 = vmatprep.subr.bf16.mxu0 0
      %1981 = vmatpush1.bf16.msra.mxu0 0
      %1982 = vmatprep.subr.bf16.mxu0 0
      %1983 = vmatpush1.bf16.msra.mxu0 0
      %1984 = vmatprep.subr.bf16.mxu0 0
      %1985 = vmatpush1.bf16.msra.mxu0 0
      %1986 = vmatprep.subr.bf16.mxu0 0
      %1987 = vmatpush1.bf16.msra.mxu0 %v1970
      %1988 = vmatprep.subr.bf16.mxu0 0
      %1989 = vmatpush2.bf16.msra.mxu0 0
      %1990 = vmatprep.subr.bf16.mxu0 0
      %1991 = vmatpush2.bf16.msra.mxu0 0
      %1992 = vmatprep.subr.bf16.mxu0 0
      %1993 = vmatpush2.bf16.msra.mxu0 0
      %1994 = vmatprep.subr.bf16.mxu0 0
      %1995 = vmatpush2.bf16.msra.mxu0 0
      %1996 = vmatprep.subr.bf16.mxu0 0
      %1997 = vmatpush2.bf16.msra.mxu0 0
      %1998 = vmatprep.subr.bf16.mxu0 0
      %1999 = vmatpush2.bf16.msra.mxu0 0
      %2000 = vmatprep.subr.bf16.mxu0 0
      %2001 = vmatpush2.bf16.msra.mxu0 0
      %2002 = vmatprep.subr.bf16.mxu0 0
      %2003 = vmatpush2.bf16.msra.mxu0 0
      %2004 = vmatprep.mubr.bf16.mxu0 0
      %2005 = vmatmul.mubr.bf16.gmra.mxu0 %v1138
      %v2006 = vpop.f32.mrf.mxu0
      %v2007 = vadd.f32 0.0, %v2006
      %v2008 = vpop.f32.mrf.mxu0
      %v2009 = vpop.f32.mrf.mxu0
      %v2010 = vadd.f32 0.0, %v2009
      %v2011 = vpop.f32.mrf.mxu0
      %2012 = vmatprep.mubr.bf16.mxu0 0
      %2013 = vmatmul.mubr.bf16.gmra.mxu0 %v1141
      %v2014 = vpop.f32.mrf.mxu0
      %v2015 = vadd.f32 0.0, %v2014
      %v2016 = vpop.f32.mrf.mxu0
      %v2017 = vpop.f32.mrf.mxu0
      %v2018 = vadd.f32 0.0, %v2017
      %v2019 = vpop.f32.mrf.mxu0
      %2020 = vmatprep.mubr.bf16.mxu0 0
      %2021 = vmatmul.mubr.bf16.gmra.mxu0 %v1144
      %v2022 = vpop.f32.mrf.mxu0
      %v2023 = vadd.f32 0.0, %v2022
      %v2024 = vpop.f32.mrf.mxu0
      %v2025 = vpop.f32.mrf.mxu0
      %v2026 = vadd.f32 0.0, %v2025
      %v2027 = vpop.f32.mrf.mxu0
      %2028 = vmatprep.mubr.bf16.mxu0 0
      %2029 = vmatmul.mubr.bf16.gmra.mxu0 %v1147
      %v2030 = vpop.f32.mrf.mxu0
      %v2031 = vadd.f32 0.0, %v2030
      %v2032 = vpop.f32.mrf.mxu0
      %v2033 = vpop.f32.mrf.mxu0
      %v2034 = vadd.f32 0.0, %v2033
      %v2035 = vpop.f32.mrf.mxu0
      %2036 = vmatprep.mubr.bf16.mxu0 0
      %2037 = vmatmul.mubr.bf16.gmra.mxu0 %v1150
      %v2038 = vpop.f32.mrf.mxu0
      %v2039 = vadd.f32 0.0, %v2038
      %v2040 = vpop.f32.mrf.mxu0
      %v2041 = vpop.f32.mrf.mxu0
      %v2042 = vadd.f32 0.0, %v2041
      %v2043 = vpop.f32.mrf.mxu0
      %2044 = vmatprep.mubr.bf16.mxu0 0
      %2045 = vmatmul.mubr.bf16.gmra.mxu0 %v1153
      %v2046 = vpop.f32.mrf.mxu0
      %v2047 = vadd.f32 0.0, %v2046
      %v2048 = vpop.f32.mrf.mxu0
      %v2049 = vpop.f32.mrf.mxu0
      %v2050 = vadd.f32 0.0, %v2049
      %v2051 = vpop.f32.mrf.mxu0
      %2052 = vmatprep.mubr.bf16.mxu0 0
      %2053 = vmatmul.mubr.bf16.gmra.mxu0 %v1156
      %v2054 = vpop.f32.mrf.mxu0
      %v2055 = vadd.f32 0.0, %v2054
      %v2056 = vpop.f32.mrf.mxu0
      %v2057 = vpop.f32.mrf.mxu0
      %v2058 = vadd.f32 0.0, %v2057
      %v2059 = vpop.f32.mrf.mxu0
      %2060 = vmatprep.mubr.bf16.mxu0 0
      %2061 = vmatmul.mubr.bf16.gmra.mxu0 %v1159
      %v2062 = vpop.f32.mrf.mxu0
      %v2063 = vadd.f32 0.0, %v2062
      %v2064 = vpop.f32.mrf.mxu0
      %v2065 = vpop.f32.mrf.mxu0
      %v2066 = vadd.f32 0.0, %v2065
      %v2067 = vpop.f32.mrf.mxu0
      %2068 = vmatprep.mubr.bf16.mxu0 0
      %2069 = vmatmul.mubr.bf16.gmra.mxu0 %v1162
      %v2070 = vpop.f32.mrf.mxu0
      %v2071 = vadd.f32 0.0, %v2070
      %v2072 = vpop.f32.mrf.mxu0
      %v2073 = vpop.f32.mrf.mxu0
      %v2074 = vadd.f32 0.0, %v2073
      %v2075 = vpop.f32.mrf.mxu0
      %2076 = vmatprep.mubr.bf16.mxu0 0
      %2077 = vmatmul.mubr.bf16.gmra.mxu0 %v1165
      %v2078 = vpop.f32.mrf.mxu0
      %v2079 = vadd.f32 0.0, %v2078
      %v2080 = vpop.f32.mrf.mxu0
      %v2081 = vpop.f32.mrf.mxu0
      %v2082 = vadd.f32 0.0, %v2081
      %v2083 = vpop.f32.mrf.mxu0
      %2084 = vmatprep.mubr.bf16.mxu0 0
      %2085 = vmatmul.mubr.bf16.gmra.mxu0 %v1168
      %v2086 = vpop.f32.mrf.mxu0
      %v2087 = vadd.f32 0.0, %v2086
      %v2088 = vpop.f32.mrf.mxu0
      %v2089 = vpop.f32.mrf.mxu0
      %v2090 = vadd.f32 0.0, %v2089
      %v2091 = vpop.f32.mrf.mxu0
      %2092 = vmatprep.mubr.bf16.mxu0 0
      %2093 = vmatmul.mubr.bf16.gmra.mxu0 %v1171
      %v2094 = vpop.f32.mrf.mxu0
      %v2095 = vadd.f32 0.0, %v2094
      %v2096 = vpop.f32.mrf.mxu0
      %v2097 = vpop.f32.mrf.mxu0
      %v2098 = vadd.f32 0.0, %v2097
      %v2099 = vpop.f32.mrf.mxu0
      %2100 = vmatprep.mubr.bf16.mxu0 0
      %2101 = vmatmul.mubr.bf16.gmra.mxu0 %v1174
      %v2102 = vpop.f32.mrf.mxu0
      %v2103 = vadd.f32 0.0, %v2102
      %v2104 = vpop.f32.mrf.mxu0
      %v2105 = vpop.f32.mrf.mxu0
      %v2106 = vadd.f32 0.0, %v2105
      %v2107 = vpop.f32.mrf.mxu0
      %2108 = vmatprep.mubr.bf16.mxu0 0
      %2109 = vmatmul.mubr.bf16.gmra.mxu0 %v1177
      %v2110 = vpop.f32.mrf.mxu0
      %v2111 = vadd.f32 0.0, %v2110
      %v2112 = vpop.f32.mrf.mxu0
      %v2113 = vpop.f32.mrf.mxu0
      %v2114 = vadd.f32 0.0, %v2113
      %v2115 = vpop.f32.mrf.mxu0
      %2116 = vmatprep.mubr.bf16.mxu0 0
      %2117 = vmatmul.mubr.bf16.gmra.mxu0 %v1180
      %v2118 = vpop.f32.mrf.mxu0
      %v2119 = vadd.f32 0.0, %v2118
      %v2120 = vpop.f32.mrf.mxu0
      %v2121 = vpop.f32.mrf.mxu0
      %v2122 = vadd.f32 0.0, %v2121
      %v2123 = vpop.f32.mrf.mxu0
      %2124 = vmatprep.mubr.bf16.mxu0 0
      %2125 = vmatmul.mubr.bf16.gmra.mxu0 %v1183
      %v2126 = vpop.f32.mrf.mxu0
      %v2127 = vadd.f32 0.0, %v2126
      %v2128 = vpop.f32.mrf.mxu0
      %v2129 = vpop.f32.mrf.mxu0
      %v2130 = vadd.f32 0.0, %v2129
      %v2131 = vpop.f32.mrf.mxu0
      %2132 = vdwg.mxu0
      %v2134 = vsel %vm1185, %v1966, 0
      %2136 = vmatprep.subr.bf16.mxu0 0
      %2137 = vmatpush1.bf16.msra.mxu0 0
      %2138 = vmatprep.subr.bf16.mxu0 0
      %2139 = vmatpush1.bf16.msra.mxu0 0
      %2140 = vmatprep.subr.bf16.mxu0 0
      %2141 = vmatpush1.bf16.msra.mxu0 0
      %2142 = vmatprep.subr.bf16.mxu0 0
      %2143 = vmatpush1.bf16.msra.mxu0 0
      %2144 = vmatprep.subr.bf16.mxu0 0
      %2145 = vmatpush1.bf16.msra.mxu0 0
      %2146 = vmatprep.subr.bf16.mxu0 0
      %2147 = vmatpush1.bf16.msra.mxu0 0
      %2148 = vmatprep.subr.bf16.mxu0 0
      %2149 = vmatpush1.bf16.msra.mxu0 0
      %2150 = vmatprep.subr.bf16.mxu0 0
      %2151 = vmatpush1.bf16.msra.mxu0 %v2134
      %2152 = vmatprep.subr.bf16.mxu0 0
      %2153 = vmatpush2.bf16.msra.mxu0 0
      %2154 = vmatprep.subr.bf16.mxu0 0
      %2155 = vmatpush2.bf16.msra.mxu0 0
      %2156 = vmatprep.subr.bf16.mxu0 0
      %2157 = vmatpush2.bf16.msra.mxu0 0
      %2158 = vmatprep.subr.bf16.mxu0 0
      %2159 = vmatpush2.bf16.msra.mxu0 0
      %2160 = vmatprep.subr.bf16.mxu0 0
      %2161 = vmatpush2.bf16.msra.mxu0 0
      %2162 = vmatprep.subr.bf16.mxu0 0
      %2163 = vmatpush2.bf16.msra.mxu0 0
      %2164 = vmatprep.subr.bf16.mxu0 0
      %2165 = vmatpush2.bf16.msra.mxu0 0
      %2166 = vmatprep.subr.bf16.mxu0 0
      %2167 = vmatpush2.bf16.msra.mxu0 0
      %2168 = vmatprep.mubr.bf16.mxu0 0
      %2169 = vmatmul.mubr.bf16.gmra.mxu0 %v1431
      %v2170 = vpop.f32.mrf.mxu0
      %v2171 = vadd.f32 %v2007, %v2170
      %v2172 = vpop.f32.mrf.mxu0
      %v2173 = vpop.f32.mrf.mxu0
      %v2174 = vadd.f32 %v2010, %v2173
      %v2175 = vpop.f32.mrf.mxu0
      %2176 = vmatprep.mubr.bf16.mxu0 0
      %2177 = vmatmul.mubr.bf16.gmra.mxu0 %v1434
      %v2178 = vpop.f32.mrf.mxu0
      %v2179 = vadd.f32 %v2015, %v2178
      %v2180 = vpop.f32.mrf.mxu0
      %v2181 = vpop.f32.mrf.mxu0
      %v2182 = vadd.f32 %v2018, %v2181
      %v2183 = vpop.f32.mrf.mxu0
      %2184 = vmatprep.mubr.bf16.mxu0 0
      %2185 = vmatmul.mubr.bf16.gmra.mxu0 %v1437
      %v2186 = vpop.f32.mrf.mxu0
      %v2187 = vadd.f32 %v2023, %v2186
      %v2188 = vpop.f32.mrf.mxu0
      %v2189 = vpop.f32.mrf.mxu0
      %v2190 = vadd.f32 %v2026, %v2189
      %v2191 = vpop.f32.mrf.mxu0
      %2192 = vmatprep.mubr.bf16.mxu0 0
      %2193 = vmatmul.mubr.bf16.gmra.mxu0 %v1440
      %v2194 = vpop.f32.mrf.mxu0
      %v2195 = vadd.f32 %v2031, %v2194
      %v2196 = vpop.f32.mrf.mxu0
      %v2197 = vpop.f32.mrf.mxu0
      %v2198 = vadd.f32 %v2034, %v2197
      %v2199 = vpop.f32.mrf.mxu0
      %2200 = vmatprep.mubr.bf16.mxu0 0
      %2201 = vmatmul.mubr.bf16.gmra.mxu0 %v1443
      %v2202 = vpop.f32.mrf.mxu0
      %v2203 = vadd.f32 %v2039, %v2202
      %v2204 = vpop.f32.mrf.mxu0
      %v2205 = vpop.f32.mrf.mxu0
      %v2206 = vadd.f32 %v2042, %v2205
      %v2207 = vpop.f32.mrf.mxu0
      %2208 = vmatprep.mubr.bf16.mxu0 0
      %2209 = vmatmul.mubr.bf16.gmra.mxu0 %v1446
      %v2210 = vpop.f32.mrf.mxu0
      %v2211 = vadd.f32 %v2047, %v2210
      %v2212 = vpop.f32.mrf.mxu0
      %v2213 = vpop.f32.mrf.mxu0
      %v2214 = vadd.f32 %v2050, %v2213
      %v2215 = vpop.f32.mrf.mxu0
      %2216 = vmatprep.mubr.bf16.mxu0 0
      %2217 = vmatmul.mubr.bf16.gmra.mxu0 %v1449
      %v2218 = vpop.f32.mrf.mxu0
      %v2219 = vadd.f32 %v2055, %v2218
      %v2220 = vpop.f32.mrf.mxu0
      %v2221 = vpop.f32.mrf.mxu0
      %v2222 = vadd.f32 %v2058, %v2221
      %v2223 = vpop.f32.mrf.mxu0
      %2224 = vmatprep.mubr.bf16.mxu0 0
      %2225 = vmatmul.mubr.bf16.gmra.mxu0 %v1452
      %v2226 = vpop.f32.mrf.mxu0
      %v2227 = vadd.f32 %v2063, %v2226
      %v2228 = vpop.f32.mrf.mxu0
      %v2229 = vpop.f32.mrf.mxu0
      %v2230 = vadd.f32 %v2066, %v2229
      %v2231 = vpop.f32.mrf.mxu0
      %2232 = vmatprep.mubr.bf16.mxu0 0
      %2233 = vmatmul.mubr.bf16.gmra.mxu0 %v1455
      %v2234 = vpop.f32.mrf.mxu0
      %v2235 = vadd.f32 %v2071, %v2234
      %v2236 = vpop.f32.mrf.mxu0
      %v2237 = vpop.f32.mrf.mxu0
      %v2238 = vadd.f32 %v2074, %v2237
      %v2239 = vpop.f32.mrf.mxu0
      %2240 = vmatprep.mubr.bf16.mxu0 0
      %2241 = vmatmul.mubr.bf16.gmra.mxu0 %v1458
      %v2242 = vpop.f32.mrf.mxu0
      %v2243 = vadd.f32 %v2079, %v2242
      %v2244 = vpop.f32.mrf.mxu0
      %v2245 = vpop.f32.mrf.mxu0
      %v2246 = vadd.f32 %v2082, %v2245
      %v2247 = vpop.f32.mrf.mxu0
      %2248 = vmatprep.mubr.bf16.mxu0 0
      %2249 = vmatmul.mubr.bf16.gmra.mxu0 %v1461
      %v2250 = vpop.f32.mrf.mxu0
      %v2251 = vadd.f32 %v2087, %v2250
      %v2252 = vpop.f32.mrf.mxu0
      %v2253 = vpop.f32.mrf.mxu0
      %v2254 = vadd.f32 %v2090, %v2253
      %v2255 = vpop.f32.mrf.mxu0
      %2256 = vmatprep.mubr.bf16.mxu0 0
      %2257 = vmatmul.mubr.bf16.gmra.mxu0 %v1464
      %v2258 = vpop.f32.mrf.mxu0
      %v2259 = vadd.f32 %v2095, %v2258
      %v2260 = vpop.f32.mrf.mxu0
      %v2261 = vpop.f32.mrf.mxu0
      %v2262 = vadd.f32 %v2098, %v2261
      %v2263 = vpop.f32.mrf.mxu0
      %2264 = vmatprep.mubr.bf16.mxu0 0
      %2265 = vmatmul.mubr.bf16.gmra.mxu0 %v1467
      %v2266 = vpop.f32.mrf.mxu0
      %v2267 = vadd.f32 %v2103, %v2266
      %v2268 = vpop.f32.mrf.mxu0
      %v2269 = vpop.f32.mrf.mxu0
      %v2270 = vadd.f32 %v2106, %v2269
      %v2271 = vpop.f32.mrf.mxu0
      %2272 = vmatprep.mubr.bf16.mxu0 0
      %2273 = vmatmul.mubr.bf16.gmra.mxu0 %v1470
      %v2274 = vpop.f32.mrf.mxu0
      %v2275 = vadd.f32 %v2111, %v2274
      %v2276 = vpop.f32.mrf.mxu0
      %v2277 = vpop.f32.mrf.mxu0
      %v2278 = vadd.f32 %v2114, %v2277
      %v2279 = vpop.f32.mrf.mxu0
      %2280 = vmatprep.mubr.bf16.mxu0 0
      %2281 = vmatmul.mubr.bf16.gmra.mxu0 %v1473
      %v2282 = vpop.f32.mrf.mxu0
      %v2283 = vadd.f32 %v2119, %v2282
      %v2284 = vpop.f32.mrf.mxu0
      %v2285 = vpop.f32.mrf.mxu0
      %v2286 = vadd.f32 %v2122, %v2285
      %v2287 = vpop.f32.mrf.mxu0
      %2288 = vmatprep.mubr.bf16.mxu0 0
      %2289 = vmatmul.mubr.bf16.gmra.mxu0 %v1476
      %v2290 = vpop.f32.mrf.mxu0
      %v2291 = vadd.f32 %v2127, %v2290
      %v2292 = vpop.f32.mrf.mxu0
      %v2293 = vpop.f32.mrf.mxu0
      %v2294 = vadd.f32 %v2130, %v2293
      %v2295 = vpop.f32.mrf.mxu0
      %2296 = vdwg.mxu0
      %2297 = vset.pattern.permute.xlu0 1
      %2298 = vperm.xlu0 %2297, %v1709
      %v2299 = vpop.permute.xlu0 %2298
      %2301 = vset.pattern.permute.xlu0 1
      %2302 = vperm.xlu0 %2301, %v1710
      %v2303 = vpop.permute.xlu0 %2302
      %2305 = vset.pattern.permute.xlu0 1
      %2306 = vperm.xlu0 %2305, %v1711
      %v2307 = vpop.permute.xlu0 %2306
      %2309 = vset.pattern.permute.xlu0 1
      %2310 = vperm.xlu0 %2309, %v1712
      %v2311 = vpop.permute.xlu0 %2310
      %2313 = vset.pattern.permute.xlu0 1
      %2314 = vperm.xlu0 %2313, %v1713
      %v2315 = vpop.permute.xlu0 %2314
      %2317 = vset.pattern.permute.xlu0 1
      %2318 = vperm.xlu0 %2317, %v1714
      %v2319 = vpop.permute.xlu0 %2318
      %2321 = vset.pattern.permute.xlu0 1
      %2322 = vperm.xlu0 %2321, %v1715
      %v2323 = vpop.permute.xlu0 %2322
      %2325 = vset.pattern.permute.xlu0 1
      %2326 = vperm.xlu0 %2325, %v1716
      %v2327 = vpop.permute.xlu0 %2326
      %2329 = vset.pattern.permute.xlu0 1
      %2330 = vperm.xlu0 %2329, %v1717
      %v2331 = vpop.permute.xlu0 %2330
      %2333 = vset.pattern.permute.xlu0 1
      %2334 = vperm.xlu0 %2333, %v1718
      %v2335 = vpop.permute.xlu0 %2334
      %2337 = vset.pattern.permute.xlu0 1
      %2338 = vperm.xlu0 %2337, %v1719
      %v2339 = vpop.permute.xlu0 %2338
      %2341 = vset.pattern.permute.xlu0 1
      %2342 = vperm.xlu0 %2341, %v1720
      %v2343 = vpop.permute.xlu0 %2342
      %2345 = vset.pattern.permute.xlu0 1
      %2346 = vperm.xlu0 %2345, %v1721
      %v2347 = vpop.permute.xlu0 %2346
      %2349 = vset.pattern.permute.xlu0 1
      %2350 = vperm.xlu0 %2349, %v1722
      %v2351 = vpop.permute.xlu0 %2350
      %2353 = vset.pattern.permute.xlu0 1
      %2354 = vperm.xlu0 %2353, %v1723
      %v2355 = vpop.permute.xlu0 %2354
      %2357 = vset.pattern.permute.xlu0 1
      %2358 = vperm.xlu0 %2357, %v1724
      %v2359 = vpop.permute.xlu0 %2358
      %2361 = vset.pattern.permute.xlu0 1
      %2362 = vperm.xlu0 %2361, %v1725
      %v2363 = vpop.permute.xlu0 %2362
      %2365 = vset.pattern.permute.xlu0 1
      %2366 = vperm.xlu0 %2365, %v1726
      %v2367 = vpop.permute.xlu0 %2366
      %2369 = vset.pattern.permute.xlu0 1
      %2370 = vperm.xlu0 %2369, %v1727
      %v2371 = vpop.permute.xlu0 %2370
      %2373 = vset.pattern.permute.xlu0 1
      %2374 = vperm.xlu0 %2373, %v1728
      %v2375 = vpop.permute.xlu0 %2374
      %2377 = vset.pattern.permute.xlu0 1
      %2378 = vperm.xlu0 %2377, %v1729
      %v2379 = vpop.permute.xlu0 %2378
      %2381 = vset.pattern.permute.xlu0 1
      %2382 = vperm.xlu0 %2381, %v1730
      %v2383 = vpop.permute.xlu0 %2382
      %2385 = vset.pattern.permute.xlu0 1
      %2386 = vperm.xlu0 %2385, %v1731
      %v2387 = vpop.permute.xlu0 %2386
      %2389 = vset.pattern.permute.xlu0 1
      %2390 = vperm.xlu0 %2389, %v1732
      %v2391 = vpop.permute.xlu0 %2390
      %2393 = vset.pattern.permute.xlu0 1
      %2394 = vperm.xlu0 %2393, %v1733
      %v2395 = vpop.permute.xlu0 %2394
      %2397 = vset.pattern.permute.xlu0 1
      %2398 = vperm.xlu0 %2397, %v1734
      %v2399 = vpop.permute.xlu0 %2398
      %2401 = vset.pattern.permute.xlu0 1
      %2402 = vperm.xlu0 %2401, %v1735
      %v2403 = vpop.permute.xlu0 %2402
      %2405 = vset.pattern.permute.xlu0 1
      %2406 = vperm.xlu0 %2405, %v1736
      %v2407 = vpop.permute.xlu0 %2406
      %2409 = vset.pattern.permute.xlu0 1
      %2410 = vperm.xlu0 %2409, %v1737
      %v2411 = vpop.permute.xlu0 %2410
      %2413 = vset.pattern.permute.xlu0 1
      %2414 = vperm.xlu0 %2413, %v1738
      %v2415 = vpop.permute.xlu0 %2414
      %2417 = vset.pattern.permute.xlu0 1
      %2418 = vperm.xlu0 %2417, %v1739
      %v2419 = vpop.permute.xlu0 %2418
      %2421 = vset.pattern.permute.xlu0 1
      %2422 = vperm.xlu0 %2421, %v1740
      %v2423 = vpop.permute.xlu0 %2422
      %v2425 = vmul.f32 %v2291, %v2299
      %v2426 = vmul.f32 %v2294, %v2303
      %v2427 = vmul.f32 %v2171, %v2307
      %v2428 = vmul.f32 %v2174, %v2311
      %v2429 = vmul.f32 %v2179, %v2315
      %v2430 = vmul.f32 %v2182, %v2319
      %v2431 = vmul.f32 %v2187, %v2323
      %v2432 = vmul.f32 %v2190, %v2327
      %v2433 = vmul.f32 %v2195, %v2331
      %v2434 = vmul.f32 %v2198, %v2335
      %v2435 = vmul.f32 %v2203, %v2339
      %v2436 = vmul.f32 %v2206, %v2343
      %v2437 = vmul.f32 %v2211, %v2347
      %v2438 = vmul.f32 %v2214, %v2351
      %v2439 = vmul.f32 %v2219, %v2355
      %v2440 = vmul.f32 %v2222, %v2359
      %v2441 = vmul.f32 %v2227, %v2363
      %v2442 = vmul.f32 %v2230, %v2367
      %v2443 = vmul.f32 %v2235, %v2371
      %v2444 = vmul.f32 %v2238, %v2375
      %v2445 = vmul.f32 %v2243, %v2379
      %v2446 = vmul.f32 %v2246, %v2383
      %v2447 = vmul.f32 %v2251, %v2387
      %v2448 = vmul.f32 %v2254, %v2391
      %v2449 = vmul.f32 %v2259, %v2395
      %v2450 = vmul.f32 %v2262, %v2399
      %v2451 = vmul.f32 %v2267, %v2403
      %v2452 = vmul.f32 %v2270, %v2407
      %v2453 = vmul.f32 %v2275, %v2411
      %v2454 = vmul.f32 %v2278, %v2415
      %v2455 = vmul.f32 %v2283, %v2419
      %v2456 = vmul.f32 %v2286, %v2423
      %v2457 = vadd.f32 %v1933, %v2425
      %v2458 = vadd.f32 %v1934, %v2426
      %v2459 = vadd.f32 %v1935, %v2427
      %v2460 = vadd.f32 %v1936, %v2428
      %v2461 = vadd.f32 %v1937, %v2429
      %v2462 = vadd.f32 %v1938, %v2430
      %v2463 = vadd.f32 %v1939, %v2431
      %v2464 = vadd.f32 %v1940, %v2432
      %v2465 = vadd.f32 %v1941, %v2433
      %v2466 = vadd.f32 %v1942, %v2434
      %v2467 = vadd.f32 %v1943, %v2435
      %v2468 = vadd.f32 %v1944, %v2436
      %v2469 = vadd.f32 %v1945, %v2437
      %v2470 = vadd.f32 %v1946, %v2438
      %v2471 = vadd.f32 %v1947, %v2439
      %v2472 = vadd.f32 %v1948, %v2440
      %v2473 = vadd.f32 %v1949, %v2441
      %v2474 = vadd.f32 %v1950, %v2442
      %v2475 = vadd.f32 %v1951, %v2443
      %v2476 = vadd.f32 %v1952, %v2444
      %v2477 = vadd.f32 %v1953, %v2445
      %v2478 = vadd.f32 %v1954, %v2446
      %v2479 = vadd.f32 %v1955, %v2447
      %v2480 = vadd.f32 %v1956, %v2448
      %v2481 = vadd.f32 %v1957, %v2449
      %v2482 = vadd.f32 %v1958, %v2450
      %v2483 = vadd.f32 %v1959, %v2451
      %v2484 = vadd.f32 %v1960, %v2452
      %v2485 = vadd.f32 %v1961, %v2453
      %v2486 = vadd.f32 %v1962, %v2454
      %v2487 = vadd.f32 %v1963, %v2455
      %v2488 = vadd.f32 %v1964, %v2456
      %s2489 = scalar_lea.vmem %s3, 4
      %v2490 = vld [vmem:[%s2489] sm:$0x3]
      %s2491 = scalar_lea.vmem %s4, 4
      %v2492 = vld [vmem:[%s2491] sm:$0x3]
      %v2494 = vsel %vm1185, %v2492, 0
      %2496 = vmatprep.subr.bf16.mxu0 0
      %2497 = vmatpush1.bf16.msra.mxu0 0
      %2498 = vmatprep.subr.bf16.mxu0 0
      %2499 = vmatpush1.bf16.msra.mxu0 0
      %2500 = vmatprep.subr.bf16.mxu0 0
      %2501 = vmatpush1.bf16.msra.mxu0 0
      %2502 = vmatprep.subr.bf16.mxu0 0
      %2503 = vmatpush1.bf16.msra.mxu0 0
      %2504 = vmatprep.subr.bf16.mxu0 0
      %2505 = vmatpush1.bf16.msra.mxu0 0
      %2506 = vmatprep.subr.bf16.mxu0 0
      %2507 = vmatpush1.bf16.msra.mxu0 0
      %2508 = vmatprep.subr.bf16.mxu0 0
      %2509 = vmatpush1.bf16.msra.mxu0 0
      %2510 = vmatprep.subr.bf16.mxu0 0
      %2511 = vmatpush1.bf16.msra.mxu0 %v2494
      %2512 = vmatprep.subr.bf16.mxu0 0
      %2513 = vmatpush2.bf16.msra.mxu0 0
      %2514 = vmatprep.subr.bf16.mxu0 0
      %2515 = vmatpush2.bf16.msra.mxu0 0
      %2516 = vmatprep.subr.bf16.mxu0 0
      %2517 = vmatpush2.bf16.msra.mxu0 0
      %2518 = vmatprep.subr.bf16.mxu0 0
      %2519 = vmatpush2.bf16.msra.mxu0 0
      %2520 = vmatprep.subr.bf16.mxu0 0
      %2521 = vmatpush2.bf16.msra.mxu0 0
      %2522 = vmatprep.subr.bf16.mxu0 0
      %2523 = vmatpush2.bf16.msra.mxu0 0
      %2524 = vmatprep.subr.bf16.mxu0 0
      %2525 = vmatpush2.bf16.msra.mxu0 0
      %2526 = vmatprep.subr.bf16.mxu0 0
      %2527 = vmatpush2.bf16.msra.mxu0 0
      %2528 = vmatprep.mubr.bf16.mxu0 0
      %2529 = vmatmul.mubr.bf16.gmra.mxu0 %v1138
      %v2530 = vpop.f32.mrf.mxu0
      %v2531 = vadd.f32 0.0, %v2530
      %v2532 = vpop.f32.mrf.mxu0
      %v2533 = vpop.f32.mrf.mxu0
      %v2534 = vadd.f32 0.0, %v2533
      %v2535 = vpop.f32.mrf.mxu0
      %2536 = vmatprep.mubr.bf16.mxu0 0
      %2537 = vmatmul.mubr.bf16.gmra.mxu0 %v1141
      %v2538 = vpop.f32.mrf.mxu0
      %v2539 = vadd.f32 0.0, %v2538
      %v2540 = vpop.f32.mrf.mxu0
      %v2541 = vpop.f32.mrf.mxu0
      %v2542 = vadd.f32 0.0, %v2541
      %v2543 = vpop.f32.mrf.mxu0
      %2544 = vmatprep.mubr.bf16.mxu0 0
      %2545 = vmatmul.mubr.bf16.gmra.mxu0 %v1144
      %v2546 = vpop.f32.mrf.mxu0
      %v2547 = vadd.f32 0.0, %v2546
      %v2548 = vpop.f32.mrf.mxu0
      %v2549 = vpop.f32.mrf.mxu0
      %v2550 = vadd.f32 0.0, %v2549
      %v2551 = vpop.f32.mrf.mxu0
      %2552 = vmatprep.mubr.bf16.mxu0 0
      %2553 = vmatmul.mubr.bf16.gmra.mxu0 %v1147
      %v2554 = vpop.f32.mrf.mxu0
      %v2555 = vadd.f32 0.0, %v2554
      %v2556 = vpop.f32.mrf.mxu0
      %v2557 = vpop.f32.mrf.mxu0
      %v2558 = vadd.f32 0.0, %v2557
      %v2559 = vpop.f32.mrf.mxu0
      %2560 = vmatprep.mubr.bf16.mxu0 0
      %2561 = vmatmul.mubr.bf16.gmra.mxu0 %v1150
      %v2562 = vpop.f32.mrf.mxu0
      %v2563 = vadd.f32 0.0, %v2562
      %v2564 = vpop.f32.mrf.mxu0
      %v2565 = vpop.f32.mrf.mxu0
      %v2566 = vadd.f32 0.0, %v2565
      %v2567 = vpop.f32.mrf.mxu0
      %2568 = vmatprep.mubr.bf16.mxu0 0
      %2569 = vmatmul.mubr.bf16.gmra.mxu0 %v1153
      %v2570 = vpop.f32.mrf.mxu0
      %v2571 = vadd.f32 0.0, %v2570
      %v2572 = vpop.f32.mrf.mxu0
      %v2573 = vpop.f32.mrf.mxu0
      %v2574 = vadd.f32 0.0, %v2573
      %v2575 = vpop.f32.mrf.mxu0
      %2576 = vmatprep.mubr.bf16.mxu0 0
      %2577 = vmatmul.mubr.bf16.gmra.mxu0 %v1156
      %v2578 = vpop.f32.mrf.mxu0
      %v2579 = vadd.f32 0.0, %v2578
      %v2580 = vpop.f32.mrf.mxu0
      %v2581 = vpop.f32.mrf.mxu0
      %v2582 = vadd.f32 0.0, %v2581
      %v2583 = vpop.f32.mrf.mxu0
      %2584 = vmatprep.mubr.bf16.mxu0 0
      %2585 = vmatmul.mubr.bf16.gmra.mxu0 %v1159
      %v2586 = vpop.f32.mrf.mxu0
      %v2587 = vadd.f32 0.0, %v2586
      %v2588 = vpop.f32.mrf.mxu0
      %v2589 = vpop.f32.mrf.mxu0
      %v2590 = vadd.f32 0.0, %v2589
      %v2591 = vpop.f32.mrf.mxu0
      %2592 = vmatprep.mubr.bf16.mxu0 0
      %2593 = vmatmul.mubr.bf16.gmra.mxu0 %v1162
      %v2594 = vpop.f32.mrf.mxu0
      %v2595 = vadd.f32 0.0, %v2594
      %v2596 = vpop.f32.mrf.mxu0
      %v2597 = vpop.f32.mrf.mxu0
      %v2598 = vadd.f32 0.0, %v2597
      %v2599 = vpop.f32.mrf.mxu0
      %2600 = vmatprep.mubr.bf16.mxu0 0
      %2601 = vmatmul.mubr.bf16.gmra.mxu0 %v1165
      %v2602 = vpop.f32.mrf.mxu0
      %v2603 = vadd.f32 0.0, %v2602
      %v2604 = vpop.f32.mrf.mxu0
      %v2605 = vpop.f32.mrf.mxu0
      %v2606 = vadd.f32 0.0, %v2605
      %v2607 = vpop.f32.mrf.mxu0
      %2608 = vmatprep.mubr.bf16.mxu0 0
      %2609 = vmatmul.mubr.bf16.gmra.mxu0 %v1168
      %v2610 = vpop.f32.mrf.mxu0
      %v2611 = vadd.f32 0.0, %v2610
      %v2612 = vpop.f32.mrf.mxu0
      %v2613 = vpop.f32.mrf.mxu0
      %v2614 = vadd.f32 0.0, %v2613
      %v2615 = vpop.f32.mrf.mxu0
      %2616 = vmatprep.mubr.bf16.mxu0 0
      %2617 = vmatmul.mubr.bf16.gmra.mxu0 %v1171
      %v2618 = vpop.f32.mrf.mxu0
      %v2619 = vadd.f32 0.0, %v2618
      %v2620 = vpop.f32.mrf.mxu0
      %v2621 = vpop.f32.mrf.mxu0
      %v2622 = vadd.f32 0.0, %v2621
      %v2623 = vpop.f32.mrf.mxu0
      %2624 = vmatprep.mubr.bf16.mxu0 0
      %2625 = vmatmul.mubr.bf16.gmra.mxu0 %v1174
      %v2626 = vpop.f32.mrf.mxu0
      %v2627 = vadd.f32 0.0, %v2626
      %v2628 = vpop.f32.mrf.mxu0
      %v2629 = vpop.f32.mrf.mxu0
      %v2630 = vadd.f32 0.0, %v2629
      %v2631 = vpop.f32.mrf.mxu0
      %2632 = vmatprep.mubr.bf16.mxu0 0
      %2633 = vmatmul.mubr.bf16.gmra.mxu0 %v1177
      %v2634 = vpop.f32.mrf.mxu0
      %v2635 = vadd.f32 0.0, %v2634
      %v2636 = vpop.f32.mrf.mxu0
      %v2637 = vpop.f32.mrf.mxu0
      %v2638 = vadd.f32 0.0, %v2637
      %v2639 = vpop.f32.mrf.mxu0
      %2640 = vmatprep.mubr.bf16.mxu0 0
      %2641 = vmatmul.mubr.bf16.gmra.mxu0 %v1180
      %v2642 = vpop.f32.mrf.mxu0
      %v2643 = vadd.f32 0.0, %v2642
      %v2644 = vpop.f32.mrf.mxu0
      %v2645 = vpop.f32.mrf.mxu0
      %v2646 = vadd.f32 0.0, %v2645
      %v2647 = vpop.f32.mrf.mxu0
      %2648 = vmatprep.mubr.bf16.mxu0 0
      %2649 = vmatmul.mubr.bf16.gmra.mxu0 %v1183
      %v2650 = vpop.f32.mrf.mxu0
      %v2651 = vadd.f32 0.0, %v2650
      %v2652 = vpop.f32.mrf.mxu0
      %v2653 = vpop.f32.mrf.mxu0
      %v2654 = vadd.f32 0.0, %v2653
      %v2655 = vpop.f32.mrf.mxu0
      %2656 = vdwg.mxu0
      %v2658 = vsel %vm1185, %v2490, 0
      %2660 = vmatprep.subr.bf16.mxu0 0
      %2661 = vmatpush1.bf16.msra.mxu0 0
      %2662 = vmatprep.subr.bf16.mxu0 0
      %2663 = vmatpush1.bf16.msra.mxu0 0
      %2664 = vmatprep.subr.bf16.mxu0 0
      %2665 = vmatpush1.bf16.msra.mxu0 0
      %2666 = vmatprep.subr.bf16.mxu0 0
      %2667 = vmatpush1.bf16.msra.mxu0 0
      %2668 = vmatprep.subr.bf16.mxu0 0
      %2669 = vmatpush1.bf16.msra.mxu0 0
      %2670 = vmatprep.subr.bf16.mxu0 0
      %2671 = vmatpush1.bf16.msra.mxu0 0
      %2672 = vmatprep.subr.bf16.mxu0 0
      %2673 = vmatpush1.bf16.msra.mxu0 0
      %2674 = vmatprep.subr.bf16.mxu0 0
      %2675 = vmatpush1.bf16.msra.mxu0 %v2658
      %2676 = vmatprep.subr.bf16.mxu0 0
      %2677 = vmatpush2.bf16.msra.mxu0 0
      %2678 = vmatprep.subr.bf16.mxu0 0
      %2679 = vmatpush2.bf16.msra.mxu0 0
      %2680 = vmatprep.subr.bf16.mxu0 0
      %2681 = vmatpush2.bf16.msra.mxu0 0
      %2682 = vmatprep.subr.bf16.mxu0 0
      %2683 = vmatpush2.bf16.msra.mxu0 0
      %2684 = vmatprep.subr.bf16.mxu0 0
      %2685 = vmatpush2.bf16.msra.mxu0 0
      %2686 = vmatprep.subr.bf16.mxu0 0
      %2687 = vmatpush2.bf16.msra.mxu0 0
      %2688 = vmatprep.subr.bf16.mxu0 0
      %2689 = vmatpush2.bf16.msra.mxu0 0
      %2690 = vmatprep.subr.bf16.mxu0 0
      %2691 = vmatpush2.bf16.msra.mxu0 0
      %2692 = vmatprep.mubr.bf16.mxu0 0
      %2693 = vmatmul.mubr.bf16.gmra.mxu0 %v1431
      %v2694 = vpop.f32.mrf.mxu0
      %v2695 = vadd.f32 %v2531, %v2694
      %v2696 = vpop.f32.mrf.mxu0
      %v2697 = vpop.f32.mrf.mxu0
      %v2698 = vadd.f32 %v2534, %v2697
      %v2699 = vpop.f32.mrf.mxu0
      %2700 = vmatprep.mubr.bf16.mxu0 0
      %2701 = vmatmul.mubr.bf16.gmra.mxu0 %v1434
      %v2702 = vpop.f32.mrf.mxu0
      %v2703 = vadd.f32 %v2539, %v2702
      %v2704 = vpop.f32.mrf.mxu0
      %v2705 = vpop.f32.mrf.mxu0
      %v2706 = vadd.f32 %v2542, %v2705
      %v2707 = vpop.f32.mrf.mxu0
      %2708 = vmatprep.mubr.bf16.mxu0 0
      %2709 = vmatmul.mubr.bf16.gmra.mxu0 %v1437
      %v2710 = vpop.f32.mrf.mxu0
      %v2711 = vadd.f32 %v2547, %v2710
      %v2712 = vpop.f32.mrf.mxu0
      %v2713 = vpop.f32.mrf.mxu0
      %v2714 = vadd.f32 %v2550, %v2713
      %v2715 = vpop.f32.mrf.mxu0
      %2716 = vmatprep.mubr.bf16.mxu0 0
      %2717 = vmatmul.mubr.bf16.gmra.mxu0 %v1440
      %v2718 = vpop.f32.mrf.mxu0
      %v2719 = vadd.f32 %v2555, %v2718
      %v2720 = vpop.f32.mrf.mxu0
      %v2721 = vpop.f32.mrf.mxu0
      %v2722 = vadd.f32 %v2558, %v2721
      %v2723 = vpop.f32.mrf.mxu0
      %2724 = vmatprep.mubr.bf16.mxu0 0
      %2725 = vmatmul.mubr.bf16.gmra.mxu0 %v1443
      %v2726 = vpop.f32.mrf.mxu0
      %v2727 = vadd.f32 %v2563, %v2726
      %v2728 = vpop.f32.mrf.mxu0
      %v2729 = vpop.f32.mrf.mxu0
      %v2730 = vadd.f32 %v2566, %v2729
      %v2731 = vpop.f32.mrf.mxu0
      %2732 = vmatprep.mubr.bf16.mxu0 0
      %2733 = vmatmul.mubr.bf16.gmra.mxu0 %v1446
      %v2734 = vpop.f32.mrf.mxu0
      %v2735 = vadd.f32 %v2571, %v2734
      %v2736 = vpop.f32.mrf.mxu0
      %v2737 = vpop.f32.mrf.mxu0
      %v2738 = vadd.f32 %v2574, %v2737
      %v2739 = vpop.f32.mrf.mxu0
      %2740 = vmatprep.mubr.bf16.mxu0 0
      %2741 = vmatmul.mubr.bf16.gmra.mxu0 %v1449
      %v2742 = vpop.f32.mrf.mxu0
      %v2743 = vadd.f32 %v2579, %v2742
      %v2744 = vpop.f32.mrf.mxu0
      %v2745 = vpop.f32.mrf.mxu0
      %v2746 = vadd.f32 %v2582, %v2745
      %v2747 = vpop.f32.mrf.mxu0
      %2748 = vmatprep.mubr.bf16.mxu0 0
      %2749 = vmatmul.mubr.bf16.gmra.mxu0 %v1452
      %v2750 = vpop.f32.mrf.mxu0
      %v2751 = vadd.f32 %v2587, %v2750
      %v2752 = vpop.f32.mrf.mxu0
      %v2753 = vpop.f32.mrf.mxu0
      %v2754 = vadd.f32 %v2590, %v2753
      %v2755 = vpop.f32.mrf.mxu0
      %2756 = vmatprep.mubr.bf16.mxu0 0
      %2757 = vmatmul.mubr.bf16.gmra.mxu0 %v1455
      %v2758 = vpop.f32.mrf.mxu0
      %v2759 = vadd.f32 %v2595, %v2758
      %v2760 = vpop.f32.mrf.mxu0
      %v2761 = vpop.f32.mrf.mxu0
      %v2762 = vadd.f32 %v2598, %v2761
      %v2763 = vpop.f32.mrf.mxu0
      %2764 = vmatprep.mubr.bf16.mxu0 0
      %2765 = vmatmul.mubr.bf16.gmra.mxu0 %v1458
      %v2766 = vpop.f32.mrf.mxu0
      %v2767 = vadd.f32 %v2603, %v2766
      %v2768 = vpop.f32.mrf.mxu0
      %v2769 = vpop.f32.mrf.mxu0
      %v2770 = vadd.f32 %v2606, %v2769
      %v2771 = vpop.f32.mrf.mxu0
      %2772 = vmatprep.mubr.bf16.mxu0 0
      %2773 = vmatmul.mubr.bf16.gmra.mxu0 %v1461
      %v2774 = vpop.f32.mrf.mxu0
      %v2775 = vadd.f32 %v2611, %v2774
      %v2776 = vpop.f32.mrf.mxu0
      %v2777 = vpop.f32.mrf.mxu0
      %v2778 = vadd.f32 %v2614, %v2777
      %v2779 = vpop.f32.mrf.mxu0
      %2780 = vmatprep.mubr.bf16.mxu0 0
      %2781 = vmatmul.mubr.bf16.gmra.mxu0 %v1464
      %v2782 = vpop.f32.mrf.mxu0
      %v2783 = vadd.f32 %v2619, %v2782
      %v2784 = vpop.f32.mrf.mxu0
      %v2785 = vpop.f32.mrf.mxu0
      %v2786 = vadd.f32 %v2622, %v2785
      %v2787 = vpop.f32.mrf.mxu0
      %2788 = vmatprep.mubr.bf16.mxu0 0
      %2789 = vmatmul.mubr.bf16.gmra.mxu0 %v1467
      %v2790 = vpop.f32.mrf.mxu0
      %v2791 = vadd.f32 %v2627, %v2790
      %v2792 = vpop.f32.mrf.mxu0
      %v2793 = vpop.f32.mrf.mxu0
      %v2794 = vadd.f32 %v2630, %v2793
      %v2795 = vpop.f32.mrf.mxu0
      %2796 = vmatprep.mubr.bf16.mxu0 0
      %2797 = vmatmul.mubr.bf16.gmra.mxu0 %v1470
      %v2798 = vpop.f32.mrf.mxu0
      %v2799 = vadd.f32 %v2635, %v2798
      %v2800 = vpop.f32.mrf.mxu0
      %v2801 = vpop.f32.mrf.mxu0
      %v2802 = vadd.f32 %v2638, %v2801
      %v2803 = vpop.f32.mrf.mxu0
      %2804 = vmatprep.mubr.bf16.mxu0 0
      %2805 = vmatmul.mubr.bf16.gmra.mxu0 %v1473
      %v2806 = vpop.f32.mrf.mxu0
      %v2807 = vadd.f32 %v2643, %v2806
      %v2808 = vpop.f32.mrf.mxu0
      %v2809 = vpop.f32.mrf.mxu0
      %v2810 = vadd.f32 %v2646, %v2809
      %v2811 = vpop.f32.mrf.mxu0
      %2812 = vmatprep.mubr.bf16.mxu0 0
      %2813 = vmatmul.mubr.bf16.gmra.mxu0 %v1476
      %v2814 = vpop.f32.mrf.mxu0
      %v2815 = vadd.f32 %v2651, %v2814
      %v2816 = vpop.f32.mrf.mxu0
      %v2817 = vpop.f32.mrf.mxu0
      %v2818 = vadd.f32 %v2654, %v2817
      %v2819 = vpop.f32.mrf.mxu0
      %2820 = vdwg.mxu0
      %v2821 = vrot.slane %v2695, 1
      %v2822 = vrot.slane %v2698, 1
      %v2823 = vrot.slane %v2703, 1
      %v2824 = vrot.slane %v2706, 1
      %v2825 = vrot.slane %v2711, 1
      %v2826 = vrot.slane %v2714, 1
      %v2827 = vrot.slane %v2719, 1
      %v2828 = vrot.slane %v2722, 1
      %v2829 = vrot.slane %v2727, 1
      %v2830 = vrot.slane %v2730, 1
      %v2831 = vrot.slane %v2735, 1
      %v2832 = vrot.slane %v2738, 1
      %v2833 = vrot.slane %v2743, 1
      %v2834 = vrot.slane %v2746, 1
      %v2835 = vrot.slane %v2751, 1
      %v2836 = vrot.slane %v2754, 1
      %v2837 = vrot.slane %v2759, 1
      %v2838 = vrot.slane %v2762, 1
      %v2839 = vrot.slane %v2767, 1
      %v2840 = vrot.slane %v2770, 1
      %v2841 = vrot.slane %v2775, 1
      %v2842 = vrot.slane %v2778, 1
      %v2843 = vrot.slane %v2783, 1
      %v2844 = vrot.slane %v2786, 1
      %v2845 = vrot.slane %v2791, 1
      %v2846 = vrot.slane %v2794, 1
      %v2847 = vrot.slane %v2799, 1
      %v2848 = vrot.slane %v2802, 1
      %v2849 = vrot.slane %v2807, 1
      %v2850 = vrot.slane %v2810, 1
      %v2851 = vrot.slane %v2815, 1
      %v2852 = vrot.slane %v2818, 1
      %vm2853 = vcmp.lt.s32.totalorder %v1675, 7
      %v2854 = vsel %vm2853, %v2851, %v2852
      %v2855 = vsel %vm2853, %v2850, %v2851
      %v2856 = vsel %vm2853, %v2849, %v2850
      %v2857 = vsel %vm2853, %v2848, %v2849
      %v2858 = vsel %vm2853, %v2847, %v2848
      %v2859 = vsel %vm2853, %v2846, %v2847
      %v2860 = vsel %vm2853, %v2845, %v2846
      %v2861 = vsel %vm2853, %v2844, %v2845
      %v2862 = vsel %vm2853, %v2843, %v2844
      %v2863 = vsel %vm2853, %v2842, %v2843
      %v2864 = vsel %vm2853, %v2841, %v2842
      %v2865 = vsel %vm2853, %v2840, %v2841
      %v2866 = vsel %vm2853, %v2839, %v2840
      %v2867 = vsel %vm2853, %v2838, %v2839
      %v2868 = vsel %vm2853, %v2837, %v2838
      %v2869 = vsel %vm2853, %v2836, %v2837
      %v2870 = vsel %vm2853, %v2835, %v2836
      %v2871 = vsel %vm2853, %v2834, %v2835
      %v2872 = vsel %vm2853, %v2833, %v2834
      %v2873 = vsel %vm2853, %v2832, %v2833
      %v2874 = vsel %vm2853, %v2831, %v2832
      %v2875 = vsel %vm2853, %v2830, %v2831
      %v2876 = vsel %vm2853, %v2829, %v2830
      %v2877 = vsel %vm2853, %v2828, %v2829
      %v2878 = vsel %vm2853, %v2827, %v2828
      %v2879 = vsel %vm2853, %v2826, %v2827
      %v2880 = vsel %vm2853, %v2825, %v2826
      %v2881 = vsel %vm2853, %v2824, %v2825
      %v2882 = vsel %vm2853, %v2823, %v2824
      %v2883 = vsel %vm2853, %v2822, %v2823
      %v2884 = vsel %vm2853, %v2821, %v2822
      %v2885 = vsel %vm2853, %v2852, %v2821
      %2886 = vset.pattern.permute.xlu0 2
      %2887 = vperm.xlu0 %2886, %v1709
      %v2888 = vpop.permute.xlu0 %2887
      %2890 = vset.pattern.permute.xlu0 2
      %2891 = vperm.xlu0 %2890, %v1710
      %v2892 = vpop.permute.xlu0 %2891
      %2894 = vset.pattern.permute.xlu0 2
      %2895 = vperm.xlu0 %2894, %v1711
      %v2896 = vpop.permute.xlu0 %2895
      %2898 = vset.pattern.permute.xlu0 2
      %2899 = vperm.xlu0 %2898, %v1712
      %v2900 = vpop.permute.xlu0 %2899
      %2902 = vset.pattern.permute.xlu0 2
      %2903 = vperm.xlu0 %2902, %v1713
      %v2904 = vpop.permute.xlu0 %2903
      %2906 = vset.pattern.permute.xlu0 2
      %2907 = vperm.xlu0 %2906, %v1714
      %v2908 = vpop.permute.xlu0 %2907
      %2910 = vset.pattern.permute.xlu0 2
      %2911 = vperm.xlu0 %2910, %v1715
      %v2912 = vpop.permute.xlu0 %2911
      %2914 = vset.pattern.permute.xlu0 2
      %2915 = vperm.xlu0 %2914, %v1716
      %v2916 = vpop.permute.xlu0 %2915
      %2918 = vset.pattern.permute.xlu0 2
      %2919 = vperm.xlu0 %2918, %v1717
      %v2920 = vpop.permute.xlu0 %2919
      %2922 = vset.pattern.permute.xlu0 2
      %2923 = vperm.xlu0 %2922, %v1718
      %v2924 = vpop.permute.xlu0 %2923
      %2926 = vset.pattern.permute.xlu0 2
      %2927 = vperm.xlu0 %2926, %v1719
      %v2928 = vpop.permute.xlu0 %2927
      %2930 = vset.pattern.permute.xlu0 2
      %2931 = vperm.xlu0 %2930, %v1720
      %v2932 = vpop.permute.xlu0 %2931
      %2934 = vset.pattern.permute.xlu0 2
      %2935 = vperm.xlu0 %2934, %v1721
      %v2936 = vpop.permute.xlu0 %2935
      %2938 = vset.pattern.permute.xlu0 2
      %2939 = vperm.xlu0 %2938, %v1722
      %v2940 = vpop.permute.xlu0 %2939
      %2942 = vset.pattern.permute.xlu0 2
      %2943 = vperm.xlu0 %2942, %v1723
      %v2944 = vpop.permute.xlu0 %2943
      %2946 = vset.pattern.permute.xlu0 2
      %2947 = vperm.xlu0 %2946, %v1724
      %v2948 = vpop.permute.xlu0 %2947
      %2950 = vset.pattern.permute.xlu0 2
      %2951 = vperm.xlu0 %2950, %v1725
      %v2952 = vpop.permute.xlu0 %2951
      %2954 = vset.pattern.permute.xlu0 2
      %2955 = vperm.xlu0 %2954, %v1726
      %v2956 = vpop.permute.xlu0 %2955
      %2958 = vset.pattern.permute.xlu0 2
      %2959 = vperm.xlu0 %2958, %v1727
      %v2960 = vpop.permute.xlu0 %2959
      %2962 = vset.pattern.permute.xlu0 2
      %2963 = vperm.xlu0 %2962, %v1728
      %v2964 = vpop.permute.xlu0 %2963
      %2966 = vset.pattern.permute.xlu0 2
      %2967 = vperm.xlu0 %2966, %v1729
      %v2968 = vpop.permute.xlu0 %2967
      %2970 = vset.pattern.permute.xlu0 2
      %2971 = vperm.xlu0 %2970, %v1730
      %v2972 = vpop.permute.xlu0 %2971
      %2974 = vset.pattern.permute.xlu0 2
      %2975 = vperm.xlu0 %2974, %v1731
      %v2976 = vpop.permute.xlu0 %2975
      %2978 = vset.pattern.permute.xlu0 2
      %2979 = vperm.xlu0 %2978, %v1732
      %v2980 = vpop.permute.xlu0 %2979
      %2982 = vset.pattern.permute.xlu0 2
      %2983 = vperm.xlu0 %2982, %v1733
      %v2984 = vpop.permute.xlu0 %2983
      %2986 = vset.pattern.permute.xlu0 2
      %2987 = vperm.xlu0 %2986, %v1734
      %v2988 = vpop.permute.xlu0 %2987
      %2990 = vset.pattern.permute.xlu0 2
      %2991 = vperm.xlu0 %2990, %v1735
      %v2992 = vpop.permute.xlu0 %2991
      %2994 = vset.pattern.permute.xlu0 2
      %2995 = vperm.xlu0 %2994, %v1736
      %v2996 = vpop.permute.xlu0 %2995
      %2998 = vset.pattern.permute.xlu0 2
      %2999 = vperm.xlu0 %2998, %v1737
      %v3000 = vpop.permute.xlu0 %2999
      %3002 = vset.pattern.permute.xlu0 2
      %3003 = vperm.xlu0 %3002, %v1738
      %v3004 = vpop.permute.xlu0 %3003
      %3006 = vset.pattern.permute.xlu0 2
      %3007 = vperm.xlu0 %3006, %v1739
      %v3008 = vpop.permute.xlu0 %3007
      %3010 = vset.pattern.permute.xlu0 2
      %3011 = vperm.xlu0 %3010, %v1740
      %v3012 = vpop.permute.xlu0 %3011
      %v3014 = vmul.f32 %v2854, %v2888
      %v3015 = vmul.f32 %v2885, %v2892
      %v3016 = vmul.f32 %v2884, %v2896
      %v3017 = vmul.f32 %v2883, %v2900
      %v3018 = vmul.f32 %v2882, %v2904
      %v3019 = vmul.f32 %v2881, %v2908
      %v3020 = vmul.f32 %v2880, %v2912
      %v3021 = vmul.f32 %v2879, %v2916
      %v3022 = vmul.f32 %v2878, %v2920
      %v3023 = vmul.f32 %v2877, %v2924
      %v3024 = vmul.f32 %v2876, %v2928
      %v3025 = vmul.f32 %v2875, %v2932
      %v3026 = vmul.f32 %v2874, %v2936
      %v3027 = vmul.f32 %v2873, %v2940
      %v3028 = vmul.f32 %v2872, %v2944
      %v3029 = vmul.f32 %v2871, %v2948
      %v3030 = vmul.f32 %v2870, %v2952
      %v3031 = vmul.f32 %v2869, %v2956
      %v3032 = vmul.f32 %v2868, %v2960
      %v3033 = vmul.f32 %v2867, %v2964
      %v3034 = vmul.f32 %v2866, %v2968
      %v3035 = vmul.f32 %v2865, %v2972
      %v3036 = vmul.f32 %v2864, %v2976
      %v3037 = vmul.f32 %v2863, %v2980
      %v3038 = vmul.f32 %v2862, %v2984
      %v3039 = vmul.f32 %v2861, %v2988
      %v3040 = vmul.f32 %v2860, %v2992
      %v3041 = vmul.f32 %v2859, %v2996
      %v3042 = vmul.f32 %v2858, %v3000
      %v3043 = vmul.f32 %v2857, %v3004
      %v3044 = vmul.f32 %v2856, %v3008
      %v3045 = vmul.f32 %v2855, %v3012
      %v3046 = vadd.f32 %v2457, %v3014
      %v3047 = vadd.f32 %v2458, %v3015
      %v3048 = vadd.f32 %v2459, %v3016
      %v3049 = vadd.f32 %v2460, %v3017
      %v3050 = vadd.f32 %v2461, %v3018
      %v3051 = vadd.f32 %v2462, %v3019
      %v3052 = vadd.f32 %v2463, %v3020
      %v3053 = vadd.f32 %v2464, %v3021
      %v3054 = vadd.f32 %v2465, %v3022
      %v3055 = vadd.f32 %v2466, %v3023
      %v3056 = vadd.f32 %v2467, %v3024
      %v3057 = vadd.f32 %v2468, %v3025
      %v3058 = vadd.f32 %v2469, %v3026
      %v3059 = vadd.f32 %v2470, %v3027
      %v3060 = vadd.f32 %v2471, %v3028
      %v3061 = vadd.f32 %v2472, %v3029
      %v3062 = vadd.f32 %v2473, %v3030
      %v3063 = vadd.f32 %v2474, %v3031
      %v3064 = vadd.f32 %v2475, %v3032
      %v3065 = vadd.f32 %v2476, %v3033
      %v3066 = vadd.f32 %v2477, %v3034
      %v3067 = vadd.f32 %v2478, %v3035
      %v3068 = vadd.f32 %v2479, %v3036
      %v3069 = vadd.f32 %v2480, %v3037
      %v3070 = vadd.f32 %v2481, %v3038
      %v3071 = vadd.f32 %v2482, %v3039
      %v3072 = vadd.f32 %v2483, %v3040
      %v3073 = vadd.f32 %v2484, %v3041
      %v3074 = vadd.f32 %v2485, %v3042
      %v3075 = vadd.f32 %v2486, %v3043
      %v3076 = vadd.f32 %v2487, %v3044
      %v3077 = vadd.f32 %v2488, %v3045
      %s3078 = scalar_lea.vmem %s3, 6
      %v3079 = vld [vmem:[%s3078] sm:$0x3]
      %s3080 = scalar_lea.vmem %s4, 6
      %v3081 = vld [vmem:[%s3080] sm:$0x3]
      %v3083 = vsel %vm1185, %v3081, 0
      %3085 = vmatprep.subr.bf16.mxu0 0
      %3086 = vmatpush1.bf16.msra.mxu0 0
      %3087 = vmatprep.subr.bf16.mxu0 0
      %3088 = vmatpush1.bf16.msra.mxu0 0
      %3089 = vmatprep.subr.bf16.mxu0 0
      %3090 = vmatpush1.bf16.msra.mxu0 0
      %3091 = vmatprep.subr.bf16.mxu0 0
      %3092 = vmatpush1.bf16.msra.mxu0 0
      %3093 = vmatprep.subr.bf16.mxu0 0
      %3094 = vmatpush1.bf16.msra.mxu0 0
      %3095 = vmatprep.subr.bf16.mxu0 0
      %3096 = vmatpush1.bf16.msra.mxu0 0
      %3097 = vmatprep.subr.bf16.mxu0 0
      %3098 = vmatpush1.bf16.msra.mxu0 0
      %3099 = vmatprep.subr.bf16.mxu0 0
      %3100 = vmatpush1.bf16.msra.mxu0 %v3083
      %3101 = vmatprep.subr.bf16.mxu0 0
      %3102 = vmatpush2.bf16.msra.mxu0 0
      %3103 = vmatprep.subr.bf16.mxu0 0
      %3104 = vmatpush2.bf16.msra.mxu0 0
      %3105 = vmatprep.subr.bf16.mxu0 0
      %3106 = vmatpush2.bf16.msra.mxu0 0
      %3107 = vmatprep.subr.bf16.mxu0 0
      %3108 = vmatpush2.bf16.msra.mxu0 0
      %3109 = vmatprep.subr.bf16.mxu0 0
      %3110 = vmatpush2.bf16.msra.mxu0 0
      %3111 = vmatprep.subr.bf16.mxu0 0
      %3112 = vmatpush2.bf16.msra.mxu0 0
      %3113 = vmatprep.subr.bf16.mxu0 0
      %3114 = vmatpush2.bf16.msra.mxu0 0
      %3115 = vmatprep.subr.bf16.mxu0 0
      %3116 = vmatpush2.bf16.msra.mxu0 0
      %3117 = vmatprep.mubr.bf16.mxu0 0
      %3118 = vmatmul.mubr.bf16.gmra.mxu0 %v1138
      %v3119 = vpop.f32.mrf.mxu0
      %v3120 = vadd.f32 0.0, %v3119
      %v3121 = vpop.f32.mrf.mxu0
      %v3122 = vpop.f32.mrf.mxu0
      %v3123 = vadd.f32 0.0, %v3122
      %v3124 = vpop.f32.mrf.mxu0
      %3125 = vmatprep.mubr.bf16.mxu0 0
      %3126 = vmatmul.mubr.bf16.gmra.mxu0 %v1141
      %v3127 = vpop.f32.mrf.mxu0
      %v3128 = vadd.f32 0.0, %v3127
      %v3129 = vpop.f32.mrf.mxu0
      %v3130 = vpop.f32.mrf.mxu0
      %v3131 = vadd.f32 0.0, %v3130
      %v3132 = vpop.f32.mrf.mxu0
      %3133 = vmatprep.mubr.bf16.mxu0 0
      %3134 = vmatmul.mubr.bf16.gmra.mxu0 %v1144
      %v3135 = vpop.f32.mrf.mxu0
      %v3136 = vadd.f32 0.0, %v3135
      %v3137 = vpop.f32.mrf.mxu0
      %v3138 = vpop.f32.mrf.mxu0
      %v3139 = vadd.f32 0.0, %v3138
      %v3140 = vpop.f32.mrf.mxu0
      %3141 = vmatprep.mubr.bf16.mxu0 0
      %3142 = vmatmul.mubr.bf16.gmra.mxu0 %v1147
      %v3143 = vpop.f32.mrf.mxu0
      %v3144 = vadd.f32 0.0, %v3143
      %v3145 = vpop.f32.mrf.mxu0
      %v3146 = vpop.f32.mrf.mxu0
      %v3147 = vadd.f32 0.0, %v3146
      %v3148 = vpop.f32.mrf.mxu0
      %3149 = vmatprep.mubr.bf16.mxu0 0
      %3150 = vmatmul.mubr.bf16.gmra.mxu0 %v1150
      %v3151 = vpop.f32.mrf.mxu0
      %v3152 = vadd.f32 0.0, %v3151
      %v3153 = vpop.f32.mrf.mxu0
      %v3154 = vpop.f32.mrf.mxu0
      %v3155 = vadd.f32 0.0, %v3154
      %v3156 = vpop.f32.mrf.mxu0
      %3157 = vmatprep.mubr.bf16.mxu0 0
      %3158 = vmatmul.mubr.bf16.gmra.mxu0 %v1153
      %v3159 = vpop.f32.mrf.mxu0
      %v3160 = vadd.f32 0.0, %v3159
      %v3161 = vpop.f32.mrf.mxu0
      %v3162 = vpop.f32.mrf.mxu0
      %v3163 = vadd.f32 0.0, %v3162
      %v3164 = vpop.f32.mrf.mxu0
      %3165 = vmatprep.mubr.bf16.mxu0 0
      %3166 = vmatmul.mubr.bf16.gmra.mxu0 %v1156
      %v3167 = vpop.f32.mrf.mxu0
      %v3168 = vadd.f32 0.0, %v3167
      %v3169 = vpop.f32.mrf.mxu0
      %v3170 = vpop.f32.mrf.mxu0
      %v3171 = vadd.f32 0.0, %v3170
      %v3172 = vpop.f32.mrf.mxu0
      %3173 = vmatprep.mubr.bf16.mxu0 0
      %3174 = vmatmul.mubr.bf16.gmra.mxu0 %v1159
      %v3175 = vpop.f32.mrf.mxu0
      %v3176 = vadd.f32 0.0, %v3175
      %v3177 = vpop.f32.mrf.mxu0
      %v3178 = vpop.f32.mrf.mxu0
      %v3179 = vadd.f32 0.0, %v3178
      %v3180 = vpop.f32.mrf.mxu0
      %3181 = vmatprep.mubr.bf16.mxu0 0
      %3182 = vmatmul.mubr.bf16.gmra.mxu0 %v1162
      %v3183 = vpop.f32.mrf.mxu0
      %v3184 = vadd.f32 0.0, %v3183
      %v3185 = vpop.f32.mrf.mxu0
      %v3186 = vpop.f32.mrf.mxu0
      %v3187 = vadd.f32 0.0, %v3186
      %v3188 = vpop.f32.mrf.mxu0
      %3189 = vmatprep.mubr.bf16.mxu0 0
      %3190 = vmatmul.mubr.bf16.gmra.mxu0 %v1165
      %v3191 = vpop.f32.mrf.mxu0
      %v3192 = vadd.f32 0.0, %v3191
      %v3193 = vpop.f32.mrf.mxu0
      %v3194 = vpop.f32.mrf.mxu0
      %v3195 = vadd.f32 0.0, %v3194
      %v3196 = vpop.f32.mrf.mxu0
      %3197 = vmatprep.mubr.bf16.mxu0 0
      %3198 = vmatmul.mubr.bf16.gmra.mxu0 %v1168
      %v3199 = vpop.f32.mrf.mxu0
      %v3200 = vadd.f32 0.0, %v3199
      %v3201 = vpop.f32.mrf.mxu0
      %v3202 = vpop.f32.mrf.mxu0
      %v3203 = vadd.f32 0.0, %v3202
      %v3204 = vpop.f32.mrf.mxu0
      %3205 = vmatprep.mubr.bf16.mxu0 0
      %3206 = vmatmul.mubr.bf16.gmra.mxu0 %v1171
      %v3207 = vpop.f32.mrf.mxu0
      %v3208 = vadd.f32 0.0, %v3207
      %v3209 = vpop.f32.mrf.mxu0
      %v3210 = vpop.f32.mrf.mxu0
      %v3211 = vadd.f32 0.0, %v3210
      %v3212 = vpop.f32.mrf.mxu0
      %3213 = vmatprep.mubr.bf16.mxu0 0
      %3214 = vmatmul.mubr.bf16.gmra.mxu0 %v1174
      %v3215 = vpop.f32.mrf.mxu0
      %v3216 = vadd.f32 0.0, %v3215
      %v3217 = vpop.f32.mrf.mxu0
      %v3218 = vpop.f32.mrf.mxu0
      %v3219 = vadd.f32 0.0, %v3218
      %v3220 = vpop.f32.mrf.mxu0
      %3221 = vmatprep.mubr.bf16.mxu0 0
      %3222 = vmatmul.mubr.bf16.gmra.mxu0 %v1177
      %v3223 = vpop.f32.mrf.mxu0
      %v3224 = vadd.f32 0.0, %v3223
      %v3225 = vpop.f32.mrf.mxu0
      %v3226 = vpop.f32.mrf.mxu0
      %v3227 = vadd.f32 0.0, %v3226
      %v3228 = vpop.f32.mrf.mxu0
      %3229 = vmatprep.mubr.bf16.mxu0 0
      %3230 = vmatmul.mubr.bf16.gmra.mxu0 %v1180
      %v3231 = vpop.f32.mrf.mxu0
      %v3232 = vadd.f32 0.0, %v3231
      %v3233 = vpop.f32.mrf.mxu0
      %v3234 = vpop.f32.mrf.mxu0
      %v3235 = vadd.f32 0.0, %v3234
      %v3236 = vpop.f32.mrf.mxu0
      %3237 = vmatprep.mubr.bf16.mxu0 0
      %3238 = vmatmul.mubr.bf16.gmra.mxu0 %v1183
      %v3239 = vpop.f32.mrf.mxu0
      %v3240 = vadd.f32 0.0, %v3239
      %v3241 = vpop.f32.mrf.mxu0
      %v3242 = vpop.f32.mrf.mxu0
      %v3243 = vadd.f32 0.0, %v3242
      %v3244 = vpop.f32.mrf.mxu0
      %3245 = vdwg.mxu0
      %v3247 = vsel %vm1185, %v3079, 0
      %3249 = vmatprep.subr.bf16.mxu0 0
      %3250 = vmatpush1.bf16.msra.mxu0 0
      %3251 = vmatprep.subr.bf16.mxu0 0
      %3252 = vmatpush1.bf16.msra.mxu0 0
      %3253 = vmatprep.subr.bf16.mxu0 0
      %3254 = vmatpush1.bf16.msra.mxu0 0
      %3255 = vmatprep.subr.bf16.mxu0 0
      %3256 = vmatpush1.bf16.msra.mxu0 0
      %3257 = vmatprep.subr.bf16.mxu0 0
      %3258 = vmatpush1.bf16.msra.mxu0 0
      %3259 = vmatprep.subr.bf16.mxu0 0
      %3260 = vmatpush1.bf16.msra.mxu0 0
      %3261 = vmatprep.subr.bf16.mxu0 0
      %3262 = vmatpush1.bf16.msra.mxu0 0
      %3263 = vmatprep.subr.bf16.mxu0 0
      %3264 = vmatpush1.bf16.msra.mxu0 %v3247
      %3265 = vmatprep.subr.bf16.mxu0 0
      %3266 = vmatpush2.bf16.msra.mxu0 0
      %3267 = vmatprep.subr.bf16.mxu0 0
      %3268 = vmatpush2.bf16.msra.mxu0 0
      %3269 = vmatprep.subr.bf16.mxu0 0
      %3270 = vmatpush2.bf16.msra.mxu0 0
      %3271 = vmatprep.subr.bf16.mxu0 0
      %3272 = vmatpush2.bf16.msra.mxu0 0
      %3273 = vmatprep.subr.bf16.mxu0 0
      %3274 = vmatpush2.bf16.msra.mxu0 0
      %3275 = vmatprep.subr.bf16.mxu0 0
      %3276 = vmatpush2.bf16.msra.mxu0 0
      %3277 = vmatprep.subr.bf16.mxu0 0
      %3278 = vmatpush2.bf16.msra.mxu0 0
      %3279 = vmatprep.subr.bf16.mxu0 0
      %3280 = vmatpush2.bf16.msra.mxu0 0
      %3281 = vmatprep.mubr.bf16.mxu0 0
      %3282 = vmatmul.mubr.bf16.gmra.mxu0 %v1431
      %v3283 = vpop.f32.mrf.mxu0
      %v3284 = vadd.f32 %v3120, %v3283
      %v3285 = vpop.f32.mrf.mxu0
      %v3286 = vpop.f32.mrf.mxu0
      %v3287 = vadd.f32 %v3123, %v3286
      %v3288 = vpop.f32.mrf.mxu0
      %3289 = vmatprep.mubr.bf16.mxu0 0
      %3290 = vmatmul.mubr.bf16.gmra.mxu0 %v1434
      %v3291 = vpop.f32.mrf.mxu0
      %v3292 = vadd.f32 %v3128, %v3291
      %v3293 = vpop.f32.mrf.mxu0
      %v3294 = vpop.f32.mrf.mxu0
      %v3295 = vadd.f32 %v3131, %v3294
      %v3296 = vpop.f32.mrf.mxu0
      %3297 = vmatprep.mubr.bf16.mxu0 0
      %3298 = vmatmul.mubr.bf16.gmra.mxu0 %v1437
      %v3299 = vpop.f32.mrf.mxu0
      %v3300 = vadd.f32 %v3136, %v3299
      %v3301 = vpop.f32.mrf.mxu0
      %v3302 = vpop.f32.mrf.mxu0
      %v3303 = vadd.f32 %v3139, %v3302
      %v3304 = vpop.f32.mrf.mxu0
      %3305 = vmatprep.mubr.bf16.mxu0 0
      %3306 = vmatmul.mubr.bf16.gmra.mxu0 %v1440
      %v3307 = vpop.f32.mrf.mxu0
      %v3308 = vadd.f32 %v3144, %v3307
      %v3309 = vpop.f32.mrf.mxu0
      %v3310 = vpop.f32.mrf.mxu0
      %v3311 = vadd.f32 %v3147, %v3310
      %v3312 = vpop.f32.mrf.mxu0
      %3313 = vmatprep.mubr.bf16.mxu0 0
      %3314 = vmatmul.mubr.bf16.gmra.mxu0 %v1443
      %v3315 = vpop.f32.mrf.mxu0
      %v3316 = vadd.f32 %v3152, %v3315
      %v3317 = vpop.f32.mrf.mxu0
      %v3318 = vpop.f32.mrf.mxu0
      %v3319 = vadd.f32 %v3155, %v3318
      %v3320 = vpop.f32.mrf.mxu0
      %3321 = vmatprep.mubr.bf16.mxu0 0
      %3322 = vmatmul.mubr.bf16.gmra.mxu0 %v1446
      %v3323 = vpop.f32.mrf.mxu0
      %v3324 = vadd.f32 %v3160, %v3323
      %v3325 = vpop.f32.mrf.mxu0
      %v3326 = vpop.f32.mrf.mxu0
      %v3327 = vadd.f32 %v3163, %v3326
      %v3328 = vpop.f32.mrf.mxu0
      %3329 = vmatprep.mubr.bf16.mxu0 0
      %3330 = vmatmul.mubr.bf16.gmra.mxu0 %v1449
      %v3331 = vpop.f32.mrf.mxu0
      %v3332 = vadd.f32 %v3168, %v3331
      %v3333 = vpop.f32.mrf.mxu0
      %v3334 = vpop.f32.mrf.mxu0
      %v3335 = vadd.f32 %v3171, %v3334
      %v3336 = vpop.f32.mrf.mxu0
      %3337 = vmatprep.mubr.bf16.mxu0 0
      %3338 = vmatmul.mubr.bf16.gmra.mxu0 %v1452
      %v3339 = vpop.f32.mrf.mxu0
      %v3340 = vadd.f32 %v3176, %v3339
      %v3341 = vpop.f32.mrf.mxu0
      %v3342 = vpop.f32.mrf.mxu0
      %v3343 = vadd.f32 %v3179, %v3342
      %v3344 = vpop.f32.mrf.mxu0
      %3345 = vmatprep.mubr.bf16.mxu0 0
      %3346 = vmatmul.mubr.bf16.gmra.mxu0 %v1455
      %v3347 = vpop.f32.mrf.mxu0
      %v3348 = vadd.f32 %v3184, %v3347
      %v3349 = vpop.f32.mrf.mxu0
      %v3350 = vpop.f32.mrf.mxu0
      %v3351 = vadd.f32 %v3187, %v3350
      %v3352 = vpop.f32.mrf.mxu0
      %3353 = vmatprep.mubr.bf16.mxu0 0
      %3354 = vmatmul.mubr.bf16.gmra.mxu0 %v1458
      %v3355 = vpop.f32.mrf.mxu0
      %v3356 = vadd.f32 %v3192, %v3355
      %v3357 = vpop.f32.mrf.mxu0
      %v3358 = vpop.f32.mrf.mxu0
      %v3359 = vadd.f32 %v3195, %v3358
      %v3360 = vpop.f32.mrf.mxu0
      %3361 = vmatprep.mubr.bf16.mxu0 0
      %3362 = vmatmul.mubr.bf16.gmra.mxu0 %v1461
      %v3363 = vpop.f32.mrf.mxu0
      %v3364 = vadd.f32 %v3200, %v3363
      %v3365 = vpop.f32.mrf.mxu0
      %v3366 = vpop.f32.mrf.mxu0
      %v3367 = vadd.f32 %v3203, %v3366
      %v3368 = vpop.f32.mrf.mxu0
      %3369 = vmatprep.mubr.bf16.mxu0 0
      %3370 = vmatmul.mubr.bf16.gmra.mxu0 %v1464
      %v3371 = vpop.f32.mrf.mxu0
      %v3372 = vadd.f32 %v3208, %v3371
      %v3373 = vpop.f32.mrf.mxu0
      %v3374 = vpop.f32.mrf.mxu0
      %v3375 = vadd.f32 %v3211, %v3374
      %v3376 = vpop.f32.mrf.mxu0
      %3377 = vmatprep.mubr.bf16.mxu0 0
      %3378 = vmatmul.mubr.bf16.gmra.mxu0 %v1467
      %v3379 = vpop.f32.mrf.mxu0
      %v3380 = vadd.f32 %v3216, %v3379
      %v3381 = vpop.f32.mrf.mxu0
      %v3382 = vpop.f32.mrf.mxu0
      %v3383 = vadd.f32 %v3219, %v3382
      %v3384 = vpop.f32.mrf.mxu0
      %3385 = vmatprep.mubr.bf16.mxu0 0
      %3386 = vmatmul.mubr.bf16.gmra.mxu0 %v1470
      %v3387 = vpop.f32.mrf.mxu0
      %v3388 = vadd.f32 %v3224, %v3387
      %v3389 = vpop.f32.mrf.mxu0
      %v3390 = vpop.f32.mrf.mxu0
      %v3391 = vadd.f32 %v3227, %v3390
      %v3392 = vpop.f32.mrf.mxu0
      %3393 = vmatprep.mubr.bf16.mxu0 0
      %3394 = vmatmul.mubr.bf16.gmra.mxu0 %v1473
      %v3395 = vpop.f32.mrf.mxu0
      %v3396 = vadd.f32 %v3232, %v3395
      %v3397 = vpop.f32.mrf.mxu0
      %v3398 = vpop.f32.mrf.mxu0
      %v3399 = vadd.f32 %v3235, %v3398
      %v3400 = vpop.f32.mrf.mxu0
      %3401 = vmatprep.mubr.bf16.mxu0 0
      %3402 = vmatmul.mubr.bf16.gmra.mxu0 %v1476
      %v3403 = vpop.f32.mrf.mxu0
      %v3404 = vadd.f32 %v3240, %v3403
      %v3405 = vpop.f32.mrf.mxu0
      %v3406 = vpop.f32.mrf.mxu0
      %v3407 = vadd.f32 %v3243, %v3406
      %v3408 = vpop.f32.mrf.mxu0
      %3409 = vdwg.mxu0
      %v3410 = vrot.slane %v3284, 7
      %v3411 = vrot.slane %v3287, 7
      %v3412 = vrot.slane %v3292, 7
      %v3413 = vrot.slane %v3295, 7
      %v3414 = vrot.slane %v3300, 7
      %v3415 = vrot.slane %v3303, 7
      %v3416 = vrot.slane %v3308, 7
      %v3417 = vrot.slane %v3311, 7
      %v3418 = vrot.slane %v3316, 7
      %v3419 = vrot.slane %v3319, 7
      %v3420 = vrot.slane %v3324, 7
      %v3421 = vrot.slane %v3327, 7
      %v3422 = vrot.slane %v3332, 7
      %v3423 = vrot.slane %v3335, 7
      %v3424 = vrot.slane %v3340, 7
      %v3425 = vrot.slane %v3343, 7
      %v3426 = vrot.slane %v3348, 7
      %v3427 = vrot.slane %v3351, 7
      %v3428 = vrot.slane %v3356, 7
      %v3429 = vrot.slane %v3359, 7
      %v3430 = vrot.slane %v3364, 7
      %v3431 = vrot.slane %v3367, 7
      %v3432 = vrot.slane %v3372, 7
      %v3433 = vrot.slane %v3375, 7
      %v3434 = vrot.slane %v3380, 7
      %v3435 = vrot.slane %v3383, 7
      %v3436 = vrot.slane %v3388, 7
      %v3437 = vrot.slane %v3391, 7
      %v3438 = vrot.slane %v3396, 7
      %v3439 = vrot.slane %v3399, 7
      %v3440 = vrot.slane %v3404, 7
      %v3441 = vrot.slane %v3407, 7
      %v3442 = vsel %vm1676, %v3440, %v3441
      %v3443 = vsel %vm1676, %v3439, %v3440
      %v3444 = vsel %vm1676, %v3438, %v3439
      %v3445 = vsel %vm1676, %v3437, %v3438
      %v3446 = vsel %vm1676, %v3436, %v3437
      %v3447 = vsel %vm1676, %v3435, %v3436
      %v3448 = vsel %vm1676, %v3434, %v3435
      %v3449 = vsel %vm1676, %v3433, %v3434
      %v3450 = vsel %vm1676, %v3432, %v3433
      %v3451 = vsel %vm1676, %v3431, %v3432
      %v3452 = vsel %vm1676, %v3430, %v3431
      %v3453 = vsel %vm1676, %v3429, %v3430
      %v3454 = vsel %vm1676, %v3428, %v3429
      %v3455 = vsel %vm1676, %v3427, %v3428
      %v3456 = vsel %vm1676, %v3426, %v3427
      %v3457 = vsel %vm1676, %v3425, %v3426
      %v3458 = vsel %vm1676, %v3424, %v3425
      %v3459 = vsel %vm1676, %v3423, %v3424
      %v3460 = vsel %vm1676, %v3422, %v3423
      %v3461 = vsel %vm1676, %v3421, %v3422
      %v3462 = vsel %vm1676, %v3420, %v3421
      %v3463 = vsel %vm1676, %v3419, %v3420
      %v3464 = vsel %vm1676, %v3418, %v3419
      %v3465 = vsel %vm1676, %v3417, %v3418
      %v3466 = vsel %vm1676, %v3416, %v3417
      %v3467 = vsel %vm1676, %v3415, %v3416
      %v3468 = vsel %vm1676, %v3414, %v3415
      %v3469 = vsel %vm1676, %v3413, %v3414
      %v3470 = vsel %vm1676, %v3412, %v3413
      %v3471 = vsel %vm1676, %v3411, %v3412
      %v3472 = vsel %vm1676, %v3410, %v3411
      %v3473 = vsel %vm1676, %v3441, %v3410
      %3474 = vset.pattern.permute.xlu0 3
      %3475 = vperm.xlu0 %3474, %v1709
      %v3476 = vpop.permute.xlu0 %3475
      %3478 = vset.pattern.permute.xlu0 3
      %3479 = vperm.xlu0 %3478, %v1710
      %v3480 = vpop.permute.xlu0 %3479
      %3482 = vset.pattern.permute.xlu0 3
      %3483 = vperm.xlu0 %3482, %v1711
      %v3484 = vpop.permute.xlu0 %3483
      %3486 = vset.pattern.permute.xlu0 3
      %3487 = vperm.xlu0 %3486, %v1712
      %v3488 = vpop.permute.xlu0 %3487
      %3490 = vset.pattern.permute.xlu0 3
      %3491 = vperm.xlu0 %3490, %v1713
      %v3492 = vpop.permute.xlu0 %3491
      %3494 = vset.pattern.permute.xlu0 3
      %3495 = vperm.xlu0 %3494, %v1714
      %v3496 = vpop.permute.xlu0 %3495
      %3498 = vset.pattern.permute.xlu0 3
      %3499 = vperm.xlu0 %3498, %v1715
      %v3500 = vpop.permute.xlu0 %3499
      %3502 = vset.pattern.permute.xlu0 3
      %3503 = vperm.xlu0 %3502, %v1716
      %v3504 = vpop.permute.xlu0 %3503
      %3506 = vset.pattern.permute.xlu0 3
      %3507 = vperm.xlu0 %3506, %v1717
      %v3508 = vpop.permute.xlu0 %3507
      %3510 = vset.pattern.permute.xlu0 3
      %3511 = vperm.xlu0 %3510, %v1718
      %v3512 = vpop.permute.xlu0 %3511
      %3514 = vset.pattern.permute.xlu0 3
      %3515 = vperm.xlu0 %3514, %v1719
      %v3516 = vpop.permute.xlu0 %3515
      %3518 = vset.pattern.permute.xlu0 3
      %3519 = vperm.xlu0 %3518, %v1720
      %v3520 = vpop.permute.xlu0 %3519
      %3522 = vset.pattern.permute.xlu0 3
      %3523 = vperm.xlu0 %3522, %v1721
      %v3524 = vpop.permute.xlu0 %3523
      %3526 = vset.pattern.permute.xlu0 3
      %3527 = vperm.xlu0 %3526, %v1722
      %v3528 = vpop.permute.xlu0 %3527
      %3530 = vset.pattern.permute.xlu0 3
      %3531 = vperm.xlu0 %3530, %v1723
      %v3532 = vpop.permute.xlu0 %3531
      %3534 = vset.pattern.permute.xlu0 3
      %3535 = vperm.xlu0 %3534, %v1724
      %v3536 = vpop.permute.xlu0 %3535
      %3538 = vset.pattern.permute.xlu0 3
      %3539 = vperm.xlu0 %3538, %v1725
      %v3540 = vpop.permute.xlu0 %3539
      %3542 = vset.pattern.permute.xlu0 3
      %3543 = vperm.xlu0 %3542, %v1726
      %v3544 = vpop.permute.xlu0 %3543
      %3546 = vset.pattern.permute.xlu0 3
      %3547 = vperm.xlu0 %3546, %v1727
      %v3548 = vpop.permute.xlu0 %3547
      %3550 = vset.pattern.permute.xlu0 3
      %3551 = vperm.xlu0 %3550, %v1728
      %v3552 = vpop.permute.xlu0 %3551
      %3554 = vset.pattern.permute.xlu0 3
      %3555 = vperm.xlu0 %3554, %v1729
      %v3556 = vpop.permute.xlu0 %3555
      %3558 = vset.pattern.permute.xlu0 3
      %3559 = vperm.xlu0 %3558, %v1730
      %v3560 = vpop.permute.xlu0 %3559
      %3562 = vset.pattern.permute.xlu0 3
      %3563 = vperm.xlu0 %3562, %v1731
      %v3564 = vpop.permute.xlu0 %3563
      %3566 = vset.pattern.permute.xlu0 3
      %3567 = vperm.xlu0 %3566, %v1732
      %v3568 = vpop.permute.xlu0 %3567
      %3570 = vset.pattern.permute.xlu0 3
      %3571 = vperm.xlu0 %3570, %v1733
      %v3572 = vpop.permute.xlu0 %3571
      %3574 = vset.pattern.permute.xlu0 3
      %3575 = vperm.xlu0 %3574, %v1734
      %v3576 = vpop.permute.xlu0 %3575
      %3578 = vset.pattern.permute.xlu0 3
      %3579 = vperm.xlu0 %3578, %v1735
      %v3580 = vpop.permute.xlu0 %3579
      %3582 = vset.pattern.permute.xlu0 3
      %3583 = vperm.xlu0 %3582, %v1736
      %v3584 = vpop.permute.xlu0 %3583
      %3586 = vset.pattern.permute.xlu0 3
      %3587 = vperm.xlu0 %3586, %v1737
      %v3588 = vpop.permute.xlu0 %3587
      %3590 = vset.pattern.permute.xlu0 3
      %3591 = vperm.xlu0 %3590, %v1738
      %v3592 = vpop.permute.xlu0 %3591
      %3594 = vset.pattern.permute.xlu0 3
      %3595 = vperm.xlu0 %3594, %v1739
      %v3596 = vpop.permute.xlu0 %3595
      %3598 = vset.pattern.permute.xlu0 3
      %3599 = vperm.xlu0 %3598, %v1740
      %v3600 = vpop.permute.xlu0 %3599
      %v3602 = vmul.f32 %v3473, %v3476
      %v3603 = vmul.f32 %v3472, %v3480
      %v3604 = vmul.f32 %v3471, %v3484
      %v3605 = vmul.f32 %v3470, %v3488
      %v3606 = vmul.f32 %v3469, %v3492
      %v3607 = vmul.f32 %v3468, %v3496
      %v3608 = vmul.f32 %v3467, %v3500
      %v3609 = vmul.f32 %v3466, %v3504
      %v3610 = vmul.f32 %v3465, %v3508
      %v3611 = vmul.f32 %v3464, %v3512
      %v3612 = vmul.f32 %v3463, %v3516
      %v3613 = vmul.f32 %v3462, %v3520
      %v3614 = vmul.f32 %v3461, %v3524
      %v3615 = vmul.f32 %v3460, %v3528
      %v3616 = vmul.f32 %v3459, %v3532
      %v3617 = vmul.f32 %v3458, %v3536
      %v3618 = vmul.f32 %v3457, %v3540
      %v3619 = vmul.f32 %v3456, %v3544
      %v3620 = vmul.f32 %v3455, %v3548
      %v3621 = vmul.f32 %v3454, %v3552
      %v3622 = vmul.f32 %v3453, %v3556
      %v3623 = vmul.f32 %v3452, %v3560
      %v3624 = vmul.f32 %v3451, %v3564
      %v3625 = vmul.f32 %v3450, %v3568
      %v3626 = vmul.f32 %v3449, %v3572
      %v3627 = vmul.f32 %v3448, %v3576
      %v3628 = vmul.f32 %v3447, %v3580
      %v3629 = vmul.f32 %v3446, %v3584
      %v3630 = vmul.f32 %v3445, %v3588
      %v3631 = vmul.f32 %v3444, %v3592
      %v3632 = vmul.f32 %v3443, %v3596
      %v3633 = vmul.f32 %v3442, %v3600
      %v3634 = vadd.f32 %v3046, %v3602
      %v3635 = vadd.f32 %v3047, %v3603
      %v3636 = vadd.f32 %v3048, %v3604
      %v3637 = vadd.f32 %v3049, %v3605
      %v3638 = vadd.f32 %v3050, %v3606
      %v3639 = vadd.f32 %v3051, %v3607
      %v3640 = vadd.f32 %v3052, %v3608
      %v3641 = vadd.f32 %v3053, %v3609
      %v3642 = vadd.f32 %v3054, %v3610
      %v3643 = vadd.f32 %v3055, %v3611
      %v3644 = vadd.f32 %v3056, %v3612
      %v3645 = vadd.f32 %v3057, %v3613
      %v3646 = vadd.f32 %v3058, %v3614
      %v3647 = vadd.f32 %v3059, %v3615
      %v3648 = vadd.f32 %v3060, %v3616
      %v3649 = vadd.f32 %v3061, %v3617
      %v3650 = vadd.f32 %v3062, %v3618
      %v3651 = vadd.f32 %v3063, %v3619
      %v3652 = vadd.f32 %v3064, %v3620
      %v3653 = vadd.f32 %v3065, %v3621
      %v3654 = vadd.f32 %v3066, %v3622
      %v3655 = vadd.f32 %v3067, %v3623
      %v3656 = vadd.f32 %v3068, %v3624
      %v3657 = vadd.f32 %v3069, %v3625
      %v3658 = vadd.f32 %v3070, %v3626
      %v3659 = vadd.f32 %v3071, %v3627
      %v3660 = vadd.f32 %v3072, %v3628
      %v3661 = vadd.f32 %v3073, %v3629
      %v3662 = vadd.f32 %v3074, %v3630
      %v3663 = vadd.f32 %v3075, %v3631
      %v3664 = vadd.f32 %v3076, %v3632
      %v3665 = vadd.f32 %v3077, %v3633
      %s3666 = scalar_lea.vmem %s3, 8
      %v3667 = vld [vmem:[%s3666] sm:$0x3]
      %s3668 = scalar_lea.vmem %s4, 8
      %v3669 = vld [vmem:[%s3668] sm:$0x3]
      %v3671 = vsel %vm1185, %v3669, 0
      %3673 = vmatprep.subr.bf16.mxu0 0
      %3674 = vmatpush1.bf16.msra.mxu0 0
      %3675 = vmatprep.subr.bf16.mxu0 0
      %3676 = vmatpush1.bf16.msra.mxu0 0
      %3677 = vmatprep.subr.bf16.mxu0 0
      %3678 = vmatpush1.bf16.msra.mxu0 0
      %3679 = vmatprep.subr.bf16.mxu0 0
      %3680 = vmatpush1.bf16.msra.mxu0 0
      %3681 = vmatprep.subr.bf16.mxu0 0
      %3682 = vmatpush1.bf16.msra.mxu0 0
      %3683 = vmatprep.subr.bf16.mxu0 0
      %3684 = vmatpush1.bf16.msra.mxu0 0
      %3685 = vmatprep.subr.bf16.mxu0 0
      %3686 = vmatpush1.bf16.msra.mxu0 0
      %3687 = vmatprep.subr.bf16.mxu0 0
      %3688 = vmatpush1.bf16.msra.mxu0 %v3671
      %3689 = vmatprep.subr.bf16.mxu0 0
      %3690 = vmatpush2.bf16.msra.mxu0 0
      %3691 = vmatprep.subr.bf16.mxu0 0
      %3692 = vmatpush2.bf16.msra.mxu0 0
      %3693 = vmatprep.subr.bf16.mxu0 0
      %3694 = vmatpush2.bf16.msra.mxu0 0
      %3695 = vmatprep.subr.bf16.mxu0 0
      %3696 = vmatpush2.bf16.msra.mxu0 0
      %3697 = vmatprep.subr.bf16.mxu0 0
      %3698 = vmatpush2.bf16.msra.mxu0 0
      %3699 = vmatprep.subr.bf16.mxu0 0
      %3700 = vmatpush2.bf16.msra.mxu0 0
      %3701 = vmatprep.subr.bf16.mxu0 0
      %3702 = vmatpush2.bf16.msra.mxu0 0
      %3703 = vmatprep.subr.bf16.mxu0 0
      %3704 = vmatpush2.bf16.msra.mxu0 0
      %3705 = vmatprep.mubr.bf16.mxu0 0
      %3706 = vmatmul.mubr.bf16.gmra.mxu0 %v1138
      %v3707 = vpop.f32.mrf.mxu0
      %v3708 = vadd.f32 0.0, %v3707
      %v3709 = vpop.f32.mrf.mxu0
      %v3710 = vpop.f32.mrf.mxu0
      %v3711 = vadd.f32 0.0, %v3710
      %v3712 = vpop.f32.mrf.mxu0
      %3713 = vmatprep.mubr.bf16.mxu0 0
      %3714 = vmatmul.mubr.bf16.gmra.mxu0 %v1141
      %v3715 = vpop.f32.mrf.mxu0
      %v3716 = vadd.f32 0.0, %v3715
      %v3717 = vpop.f32.mrf.mxu0
      %v3718 = vpop.f32.mrf.mxu0
      %v3719 = vadd.f32 0.0, %v3718
      %v3720 = vpop.f32.mrf.mxu0
      %3721 = vmatprep.mubr.bf16.mxu0 0
      %3722 = vmatmul.mubr.bf16.gmra.mxu0 %v1144
      %v3723 = vpop.f32.mrf.mxu0
      %v3724 = vadd.f32 0.0, %v3723
      %v3725 = vpop.f32.mrf.mxu0
      %v3726 = vpop.f32.mrf.mxu0
      %v3727 = vadd.f32 0.0, %v3726
      %v3728 = vpop.f32.mrf.mxu0
      %3729 = vmatprep.mubr.bf16.mxu0 0
      %3730 = vmatmul.mubr.bf16.gmra.mxu0 %v1147
      %v3731 = vpop.f32.mrf.mxu0
      %v3732 = vadd.f32 0.0, %v3731
      %v3733 = vpop.f32.mrf.mxu0
      %v3734 = vpop.f32.mrf.mxu0
      %v3735 = vadd.f32 0.0, %v3734
      %v3736 = vpop.f32.mrf.mxu0
      %3737 = vmatprep.mubr.bf16.mxu0 0
      %3738 = vmatmul.mubr.bf16.gmra.mxu0 %v1150
      %v3739 = vpop.f32.mrf.mxu0
      %v3740 = vadd.f32 0.0, %v3739
      %v3741 = vpop.f32.mrf.mxu0
      %v3742 = vpop.f32.mrf.mxu0
      %v3743 = vadd.f32 0.0, %v3742
      %v3744 = vpop.f32.mrf.mxu0
      %3745 = vmatprep.mubr.bf16.mxu0 0
      %3746 = vmatmul.mubr.bf16.gmra.mxu0 %v1153
      %v3747 = vpop.f32.mrf.mxu0
      %v3748 = vadd.f32 0.0, %v3747
      %v3749 = vpop.f32.mrf.mxu0
      %v3750 = vpop.f32.mrf.mxu0
      %v3751 = vadd.f32 0.0, %v3750
      %v3752 = vpop.f32.mrf.mxu0
      %3753 = vmatprep.mubr.bf16.mxu0 0
      %3754 = vmatmul.mubr.bf16.gmra.mxu0 %v1156
      %v3755 = vpop.f32.mrf.mxu0
      %v3756 = vadd.f32 0.0, %v3755
      %v3757 = vpop.f32.mrf.mxu0
      %v3758 = vpop.f32.mrf.mxu0
      %v3759 = vadd.f32 0.0, %v3758
      %v3760 = vpop.f32.mrf.mxu0
      %3761 = vmatprep.mubr.bf16.mxu0 0
      %3762 = vmatmul.mubr.bf16.gmra.mxu0 %v1159
      %v3763 = vpop.f32.mrf.mxu0
      %v3764 = vadd.f32 0.0, %v3763
      %v3765 = vpop.f32.mrf.mxu0
      %v3766 = vpop.f32.mrf.mxu0
      %v3767 = vadd.f32 0.0, %v3766
      %v3768 = vpop.f32.mrf.mxu0
      %3769 = vmatprep.mubr.bf16.mxu0 0
      %3770 = vmatmul.mubr.bf16.gmra.mxu0 %v1162
      %v3771 = vpop.f32.mrf.mxu0
      %v3772 = vadd.f32 0.0, %v3771
      %v3773 = vpop.f32.mrf.mxu0
      %v3774 = vpop.f32.mrf.mxu0
      %v3775 = vadd.f32 0.0, %v3774
      %v3776 = vpop.f32.mrf.mxu0
      %3777 = vmatprep.mubr.bf16.mxu0 0
      %3778 = vmatmul.mubr.bf16.gmra.mxu0 %v1165
      %v3779 = vpop.f32.mrf.mxu0
      %v3780 = vadd.f32 0.0, %v3779
      %v3781 = vpop.f32.mrf.mxu0
      %v3782 = vpop.f32.mrf.mxu0
      %v3783 = vadd.f32 0.0, %v3782
      %v3784 = vpop.f32.mrf.mxu0
      %3785 = vmatprep.mubr.bf16.mxu0 0
      %3786 = vmatmul.mubr.bf16.gmra.mxu0 %v1168
      %v3787 = vpop.f32.mrf.mxu0
      %v3788 = vadd.f32 0.0, %v3787
      %v3789 = vpop.f32.mrf.mxu0
      %v3790 = vpop.f32.mrf.mxu0
      %v3791 = vadd.f32 0.0, %v3790
      %v3792 = vpop.f32.mrf.mxu0
      %3793 = vmatprep.mubr.bf16.mxu0 0
      %3794 = vmatmul.mubr.bf16.gmra.mxu0 %v1171
      %v3795 = vpop.f32.mrf.mxu0
      %v3796 = vadd.f32 0.0, %v3795
      %v3797 = vpop.f32.mrf.mxu0
      %v3798 = vpop.f32.mrf.mxu0
      %v3799 = vadd.f32 0.0, %v3798
      %v3800 = vpop.f32.mrf.mxu0
      %3801 = vmatprep.mubr.bf16.mxu0 0
      %3802 = vmatmul.mubr.bf16.gmra.mxu0 %v1174
      %v3803 = vpop.f32.mrf.mxu0
      %v3804 = vadd.f32 0.0, %v3803
      %v3805 = vpop.f32.mrf.mxu0
      %v3806 = vpop.f32.mrf.mxu0
      %v3807 = vadd.f32 0.0, %v3806
      %v3808 = vpop.f32.mrf.mxu0
      %3809 = vmatprep.mubr.bf16.mxu0 0
      %3810 = vmatmul.mubr.bf16.gmra.mxu0 %v1177
      %v3811 = vpop.f32.mrf.mxu0
      %v3812 = vadd.f32 0.0, %v3811
      %v3813 = vpop.f32.mrf.mxu0
      %v3814 = vpop.f32.mrf.mxu0
      %v3815 = vadd.f32 0.0, %v3814
      %v3816 = vpop.f32.mrf.mxu0
      %3817 = vmatprep.mubr.bf16.mxu0 0
      %3818 = vmatmul.mubr.bf16.gmra.mxu0 %v1180
      %v3819 = vpop.f32.mrf.mxu0
      %v3820 = vadd.f32 0.0, %v3819
      %v3821 = vpop.f32.mrf.mxu0
      %v3822 = vpop.f32.mrf.mxu0
      %v3823 = vadd.f32 0.0, %v3822
      %v3824 = vpop.f32.mrf.mxu0
      %3825 = vmatprep.mubr.bf16.mxu0 0
      %3826 = vmatmul.mubr.bf16.gmra.mxu0 %v1183
      %v3827 = vpop.f32.mrf.mxu0
      %v3828 = vadd.f32 0.0, %v3827
      %v3829 = vpop.f32.mrf.mxu0
      %v3830 = vpop.f32.mrf.mxu0
      %v3831 = vadd.f32 0.0, %v3830
      %v3832 = vpop.f32.mrf.mxu0
      %3833 = vdwg.mxu0
      %v3835 = vsel %vm1185, %v3667, 0
      %3837 = vmatprep.subr.bf16.mxu0 0
      %3838 = vmatpush1.bf16.msra.mxu0 0
      %3839 = vmatprep.subr.bf16.mxu0 0
      %3840 = vmatpush1.bf16.msra.mxu0 0
      %3841 = vmatprep.subr.bf16.mxu0 0
      %3842 = vmatpush1.bf16.msra.mxu0 0
      %3843 = vmatprep.subr.bf16.mxu0 0
      %3844 = vmatpush1.bf16.msra.mxu0 0
      %3845 = vmatprep.subr.bf16.mxu0 0
      %3846 = vmatpush1.bf16.msra.mxu0 0
      %3847 = vmatprep.subr.bf16.mxu0 0
      %3848 = vmatpush1.bf16.msra.mxu0 0
      %3849 = vmatprep.subr.bf16.mxu0 0
      %3850 = vmatpush1.bf16.msra.mxu0 0
      %3851 = vmatprep.subr.bf16.mxu0 0
      %3852 = vmatpush1.bf16.msra.mxu0 %v3835
      %3853 = vmatprep.subr.bf16.mxu0 0
      %3854 = vmatpush2.bf16.msra.mxu0 0
      %3855 = vmatprep.subr.bf16.mxu0 0
      %3856 = vmatpush2.bf16.msra.mxu0 0
      %3857 = vmatprep.subr.bf16.mxu0 0
      %3858 = vmatpush2.bf16.msra.mxu0 0
      %3859 = vmatprep.subr.bf16.mxu0 0
      %3860 = vmatpush2.bf16.msra.mxu0 0
      %3861 = vmatprep.subr.bf16.mxu0 0
      %3862 = vmatpush2.bf16.msra.mxu0 0
      %3863 = vmatprep.subr.bf16.mxu0 0
      %3864 = vmatpush2.bf16.msra.mxu0 0
      %3865 = vmatprep.subr.bf16.mxu0 0
      %3866 = vmatpush2.bf16.msra.mxu0 0
      %3867 = vmatprep.subr.bf16.mxu0 0
      %3868 = vmatpush2.bf16.msra.mxu0 0
      %3869 = vmatprep.mubr.bf16.mxu0 0
      %3870 = vmatmul.mubr.bf16.gmra.mxu0 %v1431
      %v3871 = vpop.f32.mrf.mxu0
      %v3872 = vadd.f32 %v3708, %v3871
      %v3873 = vpop.f32.mrf.mxu0
      %v3874 = vpop.f32.mrf.mxu0
      %v3875 = vadd.f32 %v3711, %v3874
      %v3876 = vpop.f32.mrf.mxu0
      %3877 = vmatprep.mubr.bf16.mxu0 0
      %3878 = vmatmul.mubr.bf16.gmra.mxu0 %v1434
      %v3879 = vpop.f32.mrf.mxu0
      %v3880 = vadd.f32 %v3716, %v3879
      %v3881 = vpop.f32.mrf.mxu0
      %v3882 = vpop.f32.mrf.mxu0
      %v3883 = vadd.f32 %v3719, %v3882
      %v3884 = vpop.f32.mrf.mxu0
      %3885 = vmatprep.mubr.bf16.mxu0 0
      %3886 = vmatmul.mubr.bf16.gmra.mxu0 %v1437
      %v3887 = vpop.f32.mrf.mxu0
      %v3888 = vadd.f32 %v3724, %v3887
      %v3889 = vpop.f32.mrf.mxu0
      %v3890 = vpop.f32.mrf.mxu0
      %v3891 = vadd.f32 %v3727, %v3890
      %v3892 = vpop.f32.mrf.mxu0
      %3893 = vmatprep.mubr.bf16.mxu0 0
      %3894 = vmatmul.mubr.bf16.gmra.mxu0 %v1440
      %v3895 = vpop.f32.mrf.mxu0
      %v3896 = vadd.f32 %v3732, %v3895
      %v3897 = vpop.f32.mrf.mxu0
      %v3898 = vpop.f32.mrf.mxu0
      %v3899 = vadd.f32 %v3735, %v3898
      %v3900 = vpop.f32.mrf.mxu0
      %3901 = vmatprep.mubr.bf16.mxu0 0
      %3902 = vmatmul.mubr.bf16.gmra.mxu0 %v1443
      %v3903 = vpop.f32.mrf.mxu0
      %v3904 = vadd.f32 %v3740, %v3903
      %v3905 = vpop.f32.mrf.mxu0
      %v3906 = vpop.f32.mrf.mxu0
      %v3907 = vadd.f32 %v3743, %v3906
      %v3908 = vpop.f32.mrf.mxu0
      %3909 = vmatprep.mubr.bf16.mxu0 0
      %3910 = vmatmul.mubr.bf16.gmra.mxu0 %v1446
      %v3911 = vpop.f32.mrf.mxu0
      %v3912 = vadd.f32 %v3748, %v3911
      %v3913 = vpop.f32.mrf.mxu0
      %v3914 = vpop.f32.mrf.mxu0
      %v3915 = vadd.f32 %v3751, %v3914
      %v3916 = vpop.f32.mrf.mxu0
      %3917 = vmatprep.mubr.bf16.mxu0 0
      %3918 = vmatmul.mubr.bf16.gmra.mxu0 %v1449
      %v3919 = vpop.f32.mrf.mxu0
      %v3920 = vadd.f32 %v3756, %v3919
      %v3921 = vpop.f32.mrf.mxu0
      %v3922 = vpop.f32.mrf.mxu0
      %v3923 = vadd.f32 %v3759, %v3922
      %v3924 = vpop.f32.mrf.mxu0
      %3925 = vmatprep.mubr.bf16.mxu0 0
      %3926 = vmatmul.mubr.bf16.gmra.mxu0 %v1452
      %v3927 = vpop.f32.mrf.mxu0
      %v3928 = vadd.f32 %v3764, %v3927
      %v3929 = vpop.f32.mrf.mxu0
      %v3930 = vpop.f32.mrf.mxu0
      %v3931 = vadd.f32 %v3767, %v3930
      %v3932 = vpop.f32.mrf.mxu0
      %3933 = vmatprep.mubr.bf16.mxu0 0
      %3934 = vmatmul.mubr.bf16.gmra.mxu0 %v1455
      %v3935 = vpop.f32.mrf.mxu0
      %v3936 = vadd.f32 %v3772, %v3935
      %v3937 = vpop.f32.mrf.mxu0
      %v3938 = vpop.f32.mrf.mxu0
      %v3939 = vadd.f32 %v3775, %v3938
      %v3940 = vpop.f32.mrf.mxu0
      %3941 = vmatprep.mubr.bf16.mxu0 0
      %3942 = vmatmul.mubr.bf16.gmra.mxu0 %v1458
      %v3943 = vpop.f32.mrf.mxu0
      %v3944 = vadd.f32 %v3780, %v3943
      %v3945 = vpop.f32.mrf.mxu0
      %v3946 = vpop.f32.mrf.mxu0
      %v3947 = vadd.f32 %v3783, %v3946
      %v3948 = vpop.f32.mrf.mxu0
      %3949 = vmatprep.mubr.bf16.mxu0 0
      %3950 = vmatmul.mubr.bf16.gmra.mxu0 %v1461
      %v3951 = vpop.f32.mrf.mxu0
      %v3952 = vadd.f32 %v3788, %v3951
      %v3953 = vpop.f32.mrf.mxu0
      %v3954 = vpop.f32.mrf.mxu0
      %v3955 = vadd.f32 %v3791, %v3954
      %v3956 = vpop.f32.mrf.mxu0
      %3957 = vmatprep.mubr.bf16.mxu0 0
      %3958 = vmatmul.mubr.bf16.gmra.mxu0 %v1464
      %v3959 = vpop.f32.mrf.mxu0
      %v3960 = vadd.f32 %v3796, %v3959
      %v3961 = vpop.f32.mrf.mxu0
      %v3962 = vpop.f32.mrf.mxu0
      %v3963 = vadd.f32 %v3799, %v3962
      %v3964 = vpop.f32.mrf.mxu0
      %3965 = vmatprep.mubr.bf16.mxu0 0
      %3966 = vmatmul.mubr.bf16.gmra.mxu0 %v1467
      %v3967 = vpop.f32.mrf.mxu0
      %v3968 = vadd.f32 %v3804, %v3967
      %v3969 = vpop.f32.mrf.mxu0
      %v3970 = vpop.f32.mrf.mxu0
      %v3971 = vadd.f32 %v3807, %v3970
      %v3972 = vpop.f32.mrf.mxu0
      %3973 = vmatprep.mubr.bf16.mxu0 0
      %3974 = vmatmul.mubr.bf16.gmra.mxu0 %v1470
      %v3975 = vpop.f32.mrf.mxu0
      %v3976 = vadd.f32 %v3812, %v3975
      %v3977 = vpop.f32.mrf.mxu0
      %v3978 = vpop.f32.mrf.mxu0
      %v3979 = vadd.f32 %v3815, %v3978
      %v3980 = vpop.f32.mrf.mxu0
      %3981 = vmatprep.mubr.bf16.mxu0 0
      %3982 = vmatmul.mubr.bf16.gmra.mxu0 %v1473
      %v3983 = vpop.f32.mrf.mxu0
      %v3984 = vadd.f32 %v3820, %v3983
      %v3985 = vpop.f32.mrf.mxu0
      %v3986 = vpop.f32.mrf.mxu0
      %v3987 = vadd.f32 %v3823, %v3986
      %v3988 = vpop.f32.mrf.mxu0
      %3989 = vmatprep.mubr.bf16.mxu0 0
      %3990 = vmatmul.mubr.bf16.gmra.mxu0 %v1476
      %v3991 = vpop.f32.mrf.mxu0
      %v3992 = vadd.f32 %v3828, %v3991
      %v3993 = vpop.f32.mrf.mxu0
      %v3994 = vpop.f32.mrf.mxu0
      %v3995 = vadd.f32 %v3831, %v3994
      %v3996 = vpop.f32.mrf.mxu0
      %3997 = vdwg.mxu0
      %v3998 = vadd.f32 %v3634, %v3872
      %v3999 = vadd.f32 %v3635, %v3875
      %v4000 = vadd.f32 %v3636, %v3880
      %v4001 = vadd.f32 %v3637, %v3883
      %v4002 = vadd.f32 %v3638, %v3888
      %v4003 = vadd.f32 %v3639, %v3891
      %v4004 = vadd.f32 %v3640, %v3896
      %v4005 = vadd.f32 %v3641, %v3899
      %v4006 = vadd.f32 %v3642, %v3904
      %v4007 = vadd.f32 %v3643, %v3907
      %v4008 = vadd.f32 %v3644, %v3912
      %v4009 = vadd.f32 %v3645, %v3915
      %v4010 = vadd.f32 %v3646, %v3920
      %v4011 = vadd.f32 %v3647, %v3923
      %v4012 = vadd.f32 %v3648, %v3928
      %v4013 = vadd.f32 %v3649, %v3931
      %v4014 = vadd.f32 %v3650, %v3936
      %v4015 = vadd.f32 %v3651, %v3939
      %v4016 = vadd.f32 %v3652, %v3944
      %v4017 = vadd.f32 %v3653, %v3947
      %v4018 = vadd.f32 %v3654, %v3952
      %v4019 = vadd.f32 %v3655, %v3955
      %v4020 = vadd.f32 %v3656, %v3960
      %v4021 = vadd.f32 %v3657, %v3963
      %v4022 = vadd.f32 %v3658, %v3968
      %v4023 = vadd.f32 %v3659, %v3971
      %v4024 = vadd.f32 %v3660, %v3976
      %v4025 = vadd.f32 %v3661, %v3979
      %v4026 = vadd.f32 %v3662, %v3984
      %v4027 = vadd.f32 %v3663, %v3987
      %v4028 = vadd.f32 %v3664, %v3992
      %v4029 = vadd.f32 %v3665, %v3995
      %s4030 = scalar_lea.vmem %s3, 10
      %v4031 = vld [vmem:[%s4030] sm:$0x3]
      %s4032 = scalar_lea.vmem %s4, 10
      %v4033 = vld [vmem:[%s4032] sm:$0x3]
      %v4035 = vsel %vm1185, %v4033, 0
      %4037 = vmatprep.subr.bf16.mxu0 0
      %4038 = vmatpush1.bf16.msra.mxu0 0
      %4039 = vmatprep.subr.bf16.mxu0 0
      %4040 = vmatpush1.bf16.msra.mxu0 0
      %4041 = vmatprep.subr.bf16.mxu0 0
      %4042 = vmatpush1.bf16.msra.mxu0 0
      %4043 = vmatprep.subr.bf16.mxu0 0
      %4044 = vmatpush1.bf16.msra.mxu0 0
      %4045 = vmatprep.subr.bf16.mxu0 0
      %4046 = vmatpush1.bf16.msra.mxu0 0
      %4047 = vmatprep.subr.bf16.mxu0 0
      %4048 = vmatpush1.bf16.msra.mxu0 0
      %4049 = vmatprep.subr.bf16.mxu0 0
      %4050 = vmatpush1.bf16.msra.mxu0 0
      %4051 = vmatprep.subr.bf16.mxu0 0
      %4052 = vmatpush1.bf16.msra.mxu0 %v4035
      %4053 = vmatprep.subr.bf16.mxu0 0
      %4054 = vmatpush2.bf16.msra.mxu0 0
      %4055 = vmatprep.subr.bf16.mxu0 0
      %4056 = vmatpush2.bf16.msra.mxu0 0
      %4057 = vmatprep.subr.bf16.mxu0 0
      %4058 = vmatpush2.bf16.msra.mxu0 0
      %4059 = vmatprep.subr.bf16.mxu0 0
      %4060 = vmatpush2.bf16.msra.mxu0 0
      %4061 = vmatprep.subr.bf16.mxu0 0
      %4062 = vmatpush2.bf16.msra.mxu0 0
      %4063 = vmatprep.subr.bf16.mxu0 0
      %4064 = vmatpush2.bf16.msra.mxu0 0
      %4065 = vmatprep.subr.bf16.mxu0 0
      %4066 = vmatpush2.bf16.msra.mxu0 0
      %4067 = vmatprep.subr.bf16.mxu0 0
      %4068 = vmatpush2.bf16.msra.mxu0 0
      %4069 = vmatprep.mubr.bf16.mxu0 0
      %4070 = vmatmul.mubr.bf16.gmra.mxu0 %v1138
      %v4071 = vpop.f32.mrf.mxu0
      %v4072 = vadd.f32 0.0, %v4071
      %v4073 = vpop.f32.mrf.mxu0
      %v4074 = vpop.f32.mrf.mxu0
      %v4075 = vadd.f32 0.0, %v4074
      %v4076 = vpop.f32.mrf.mxu0
      %4077 = vmatprep.mubr.bf16.mxu0 0
      %4078 = vmatmul.mubr.bf16.gmra.mxu0 %v1141
      %v4079 = vpop.f32.mrf.mxu0
      %v4080 = vadd.f32 0.0, %v4079
      %v4081 = vpop.f32.mrf.mxu0
      %v4082 = vpop.f32.mrf.mxu0
      %v4083 = vadd.f32 0.0, %v4082
      %v4084 = vpop.f32.mrf.mxu0
      %4085 = vmatprep.mubr.bf16.mxu0 0
      %4086 = vmatmul.mubr.bf16.gmra.mxu0 %v1144
      %v4087 = vpop.f32.mrf.mxu0
      %v4088 = vadd.f32 0.0, %v4087
      %v4089 = vpop.f32.mrf.mxu0
      %v4090 = vpop.f32.mrf.mxu0
      %v4091 = vadd.f32 0.0, %v4090
      %v4092 = vpop.f32.mrf.mxu0
      %4093 = vmatprep.mubr.bf16.mxu0 0
      %4094 = vmatmul.mubr.bf16.gmra.mxu0 %v1147
      %v4095 = vpop.f32.mrf.mxu0
      %v4096 = vadd.f32 0.0, %v4095
      %v4097 = vpop.f32.mrf.mxu0
      %v4098 = vpop.f32.mrf.mxu0
      %v4099 = vadd.f32 0.0, %v4098
      %v4100 = vpop.f32.mrf.mxu0
      %4101 = vmatprep.mubr.bf16.mxu0 0
      %4102 = vmatmul.mubr.bf16.gmra.mxu0 %v1150
      %v4103 = vpop.f32.mrf.mxu0
      %v4104 = vadd.f32 0.0, %v4103
      %v4105 = vpop.f32.mrf.mxu0
      %v4106 = vpop.f32.mrf.mxu0
      %v4107 = vadd.f32 0.0, %v4106
      %v4108 = vpop.f32.mrf.mxu0
      %4109 = vmatprep.mubr.bf16.mxu0 0
      %4110 = vmatmul.mubr.bf16.gmra.mxu0 %v1153
      %v4111 = vpop.f32.mrf.mxu0
      %v4112 = vadd.f32 0.0, %v4111
      %v4113 = vpop.f32.mrf.mxu0
      %v4114 = vpop.f32.mrf.mxu0
      %v4115 = vadd.f32 0.0, %v4114
      %v4116 = vpop.f32.mrf.mxu0
      %4117 = vmatprep.mubr.bf16.mxu0 0
      %4118 = vmatmul.mubr.bf16.gmra.mxu0 %v1156
      %v4119 = vpop.f32.mrf.mxu0
      %v4120 = vadd.f32 0.0, %v4119
      %v4121 = vpop.f32.mrf.mxu0
      %v4122 = vpop.f32.mrf.mxu0
      %v4123 = vadd.f32 0.0, %v4122
      %v4124 = vpop.f32.mrf.mxu0
      %4125 = vmatprep.mubr.bf16.mxu0 0
      %4126 = vmatmul.mubr.bf16.gmra.mxu0 %v1159
      %v4127 = vpop.f32.mrf.mxu0
      %v4128 = vadd.f32 0.0, %v4127
      %v4129 = vpop.f32.mrf.mxu0
      %v4130 = vpop.f32.mrf.mxu0
      %v4131 = vadd.f32 0.0, %v4130
      %v4132 = vpop.f32.mrf.mxu0
      %4133 = vmatprep.mubr.bf16.mxu0 0
      %4134 = vmatmul.mubr.bf16.gmra.mxu0 %v1162
      %v4135 = vpop.f32.mrf.mxu0
      %v4136 = vadd.f32 0.0, %v4135
      %v4137 = vpop.f32.mrf.mxu0
      %v4138 = vpop.f32.mrf.mxu0
      %v4139 = vadd.f32 0.0, %v4138
      %v4140 = vpop.f32.mrf.mxu0
      %4141 = vmatprep.mubr.bf16.mxu0 0
      %4142 = vmatmul.mubr.bf16.gmra.mxu0 %v1165
      %v4143 = vpop.f32.mrf.mxu0
      %v4144 = vadd.f32 0.0, %v4143
      %v4145 = vpop.f32.mrf.mxu0
      %v4146 = vpop.f32.mrf.mxu0
      %v4147 = vadd.f32 0.0, %v4146
      %v4148 = vpop.f32.mrf.mxu0
      %4149 = vmatprep.mubr.bf16.mxu0 0
      %4150 = vmatmul.mubr.bf16.gmra.mxu0 %v1168
      %v4151 = vpop.f32.mrf.mxu0
      %v4152 = vadd.f32 0.0, %v4151
      %v4153 = vpop.f32.mrf.mxu0
      %v4154 = vpop.f32.mrf.mxu0
      %v4155 = vadd.f32 0.0, %v4154
      %v4156 = vpop.f32.mrf.mxu0
      %4157 = vmatprep.mubr.bf16.mxu0 0
      %4158 = vmatmul.mubr.bf16.gmra.mxu0 %v1171
      %v4159 = vpop.f32.mrf.mxu0
      %v4160 = vadd.f32 0.0, %v4159
      %v4161 = vpop.f32.mrf.mxu0
      %v4162 = vpop.f32.mrf.mxu0
      %v4163 = vadd.f32 0.0, %v4162
      %v4164 = vpop.f32.mrf.mxu0
      %4165 = vmatprep.mubr.bf16.mxu0 0
      %4166 = vmatmul.mubr.bf16.gmra.mxu0 %v1174
      %v4167 = vpop.f32.mrf.mxu0
      %v4168 = vadd.f32 0.0, %v4167
      %v4169 = vpop.f32.mrf.mxu0
      %v4170 = vpop.f32.mrf.mxu0
      %v4171 = vadd.f32 0.0, %v4170
      %v4172 = vpop.f32.mrf.mxu0
      %4173 = vmatprep.mubr.bf16.mxu0 0
      %4174 = vmatmul.mubr.bf16.gmra.mxu0 %v1177
      %v4175 = vpop.f32.mrf.mxu0
      %v4176 = vadd.f32 0.0, %v4175
      %v4177 = vpop.f32.mrf.mxu0
      %v4178 = vpop.f32.mrf.mxu0
      %v4179 = vadd.f32 0.0, %v4178
      %v4180 = vpop.f32.mrf.mxu0
      %4181 = vmatprep.mubr.bf16.mxu0 0
      %4182 = vmatmul.mubr.bf16.gmra.mxu0 %v1180
      %v4183 = vpop.f32.mrf.mxu0
      %v4184 = vadd.f32 0.0, %v4183
      %v4185 = vpop.f32.mrf.mxu0
      %v4186 = vpop.f32.mrf.mxu0
      %v4187 = vadd.f32 0.0, %v4186
      %v4188 = vpop.f32.mrf.mxu0
      %4189 = vmatprep.mubr.bf16.mxu0 0
      %4190 = vmatmul.mubr.bf16.gmra.mxu0 %v1183
      %v4191 = vpop.f32.mrf.mxu0
      %v4192 = vadd.f32 0.0, %v4191
      %v4193 = vpop.f32.mrf.mxu0
      %v4194 = vpop.f32.mrf.mxu0
      %v4195 = vadd.f32 0.0, %v4194
      %v4196 = vpop.f32.mrf.mxu0
      %4197 = vdwg.mxu0
      %v4199 = vsel %vm1185, %v4031, 0
      %4201 = vmatprep.subr.bf16.mxu0 0
      %4202 = vmatpush1.bf16.msra.mxu0 0
      %4203 = vmatprep.subr.bf16.mxu0 0
      %4204 = vmatpush1.bf16.msra.mxu0 0
      %4205 = vmatprep.subr.bf16.mxu0 0
      %4206 = vmatpush1.bf16.msra.mxu0 0
      %4207 = vmatprep.subr.bf16.mxu0 0
      %4208 = vmatpush1.bf16.msra.mxu0 0
      %4209 = vmatprep.subr.bf16.mxu0 0
      %4210 = vmatpush1.bf16.msra.mxu0 0
      %4211 = vmatprep.subr.bf16.mxu0 0
      %4212 = vmatpush1.bf16.msra.mxu0 0
      %4213 = vmatprep.subr.bf16.mxu0 0
      %4214 = vmatpush1.bf16.msra.mxu0 0
      %4215 = vmatprep.subr.bf16.mxu0 0
      %4216 = vmatpush1.bf16.msra.mxu0 %v4199
      %4217 = vmatprep.subr.bf16.mxu0 0
      %4218 = vmatpush2.bf16.msra.mxu0 0
      %4219 = vmatprep.subr.bf16.mxu0 0
      %4220 = vmatpush2.bf16.msra.mxu0 0
      %4221 = vmatprep.subr.bf16.mxu0 0
      %4222 = vmatpush2.bf16.msra.mxu0 0
      %4223 = vmatprep.subr.bf16.mxu0 0
      %4224 = vmatpush2.bf16.msra.mxu0 0
      %4225 = vmatprep.subr.bf16.mxu0 0
      %4226 = vmatpush2.bf16.msra.mxu0 0
      %4227 = vmatprep.subr.bf16.mxu0 0
      %4228 = vmatpush2.bf16.msra.mxu0 0
      %4229 = vmatprep.subr.bf16.mxu0 0
      %4230 = vmatpush2.bf16.msra.mxu0 0
      %4231 = vmatprep.subr.bf16.mxu0 0
      %4232 = vmatpush2.bf16.msra.mxu0 0
      %4233 = vmatprep.mubr.bf16.mxu0 0
      %4234 = vmatmul.mubr.bf16.gmra.mxu0 %v1431
      %v4235 = vpop.f32.mrf.mxu0
      %v4236 = vadd.f32 %v4072, %v4235
      %v4237 = vpop.f32.mrf.mxu0
      %v4238 = vpop.f32.mrf.mxu0
      %v4239 = vadd.f32 %v4075, %v4238
      %v4240 = vpop.f32.mrf.mxu0
      %4241 = vmatprep.mubr.bf16.mxu0 0
      %4242 = vmatmul.mubr.bf16.gmra.mxu0 %v1434
      %v4243 = vpop.f32.mrf.mxu0
      %v4244 = vadd.f32 %v4080, %v4243
      %v4245 = vpop.f32.mrf.mxu0
      %v4246 = vpop.f32.mrf.mxu0
      %v4247 = vadd.f32 %v4083, %v4246
      %v4248 = vpop.f32.mrf.mxu0
      %4249 = vmatprep.mubr.bf16.mxu0 0
      %4250 = vmatmul.mubr.bf16.gmra.mxu0 %v1437
      %v4251 = vpop.f32.mrf.mxu0
      %v4252 = vadd.f32 %v4088, %v4251
      %v4253 = vpop.f32.mrf.mxu0
      %v4254 = vpop.f32.mrf.mxu0
      %v4255 = vadd.f32 %v4091, %v4254
      %v4256 = vpop.f32.mrf.mxu0
      %4257 = vmatprep.mubr.bf16.mxu0 0
      %4258 = vmatmul.mubr.bf16.gmra.mxu0 %v1440
      %v4259 = vpop.f32.mrf.mxu0
      %v4260 = vadd.f32 %v4096, %v4259
      %v4261 = vpop.f32.mrf.mxu0
      %v4262 = vpop.f32.mrf.mxu0
      %v4263 = vadd.f32 %v4099, %v4262
      %v4264 = vpop.f32.mrf.mxu0
      %4265 = vmatprep.mubr.bf16.mxu0 0
      %4266 = vmatmul.mubr.bf16.gmra.mxu0 %v1443
      %v4267 = vpop.f32.mrf.mxu0
      %v4268 = vadd.f32 %v4104, %v4267
      %v4269 = vpop.f32.mrf.mxu0
      %v4270 = vpop.f32.mrf.mxu0
      %v4271 = vadd.f32 %v4107, %v4270
      %v4272 = vpop.f32.mrf.mxu0
      %4273 = vmatprep.mubr.bf16.mxu0 0
      %4274 = vmatmul.mubr.bf16.gmra.mxu0 %v1446
      %v4275 = vpop.f32.mrf.mxu0
      %v4276 = vadd.f32 %v4112, %v4275
      %v4277 = vpop.f32.mrf.mxu0
      %v4278 = vpop.f32.mrf.mxu0
      %v4279 = vadd.f32 %v4115, %v4278
      %v4280 = vpop.f32.mrf.mxu0
      %4281 = vmatprep.mubr.bf16.mxu0 0
      %4282 = vmatmul.mubr.bf16.gmra.mxu0 %v1449
      %v4283 = vpop.f32.mrf.mxu0
      %v4284 = vadd.f32 %v4120, %v4283
      %v4285 = vpop.f32.mrf.mxu0
      %v4286 = vpop.f32.mrf.mxu0
      %v4287 = vadd.f32 %v4123, %v4286
      %v4288 = vpop.f32.mrf.mxu0
      %4289 = vmatprep.mubr.bf16.mxu0 0
      %4290 = vmatmul.mubr.bf16.gmra.mxu0 %v1452
      %v4291 = vpop.f32.mrf.mxu0
      %v4292 = vadd.f32 %v4128, %v4291
      %v4293 = vpop.f32.mrf.mxu0
      %v4294 = vpop.f32.mrf.mxu0
      %v4295 = vadd.f32 %v4131, %v4294
      %v4296 = vpop.f32.mrf.mxu0
      %4297 = vmatprep.mubr.bf16.mxu0 0
      %4298 = vmatmul.mubr.bf16.gmra.mxu0 %v1455
      %v4299 = vpop.f32.mrf.mxu0
      %v4300 = vadd.f32 %v4136, %v4299
      %v4301 = vpop.f32.mrf.mxu0
      %v4302 = vpop.f32.mrf.mxu0
      %v4303 = vadd.f32 %v4139, %v4302
      %v4304 = vpop.f32.mrf.mxu0
      %4305 = vmatprep.mubr.bf16.mxu0 0
      %4306 = vmatmul.mubr.bf16.gmra.mxu0 %v1458
      %v4307 = vpop.f32.mrf.mxu0
      %v4308 = vadd.f32 %v4144, %v4307
      %v4309 = vpop.f32.mrf.mxu0
      %v4310 = vpop.f32.mrf.mxu0
      %v4311 = vadd.f32 %v4147, %v4310
      %v4312 = vpop.f32.mrf.mxu0
      %4313 = vmatprep.mubr.bf16.mxu0 0
      %4314 = vmatmul.mubr.bf16.gmra.mxu0 %v1461
      %v4315 = vpop.f32.mrf.mxu0
      %v4316 = vadd.f32 %v4152, %v4315
      %v4317 = vpop.f32.mrf.mxu0
      %v4318 = vpop.f32.mrf.mxu0
      %v4319 = vadd.f32 %v4155, %v4318
      %v4320 = vpop.f32.mrf.mxu0
      %4321 = vmatprep.mubr.bf16.mxu0 0
      %4322 = vmatmul.mubr.bf16.gmra.mxu0 %v1464
      %v4323 = vpop.f32.mrf.mxu0
      %v4324 = vadd.f32 %v4160, %v4323
      %v4325 = vpop.f32.mrf.mxu0
      %v4326 = vpop.f32.mrf.mxu0
      %v4327 = vadd.f32 %v4163, %v4326
      %v4328 = vpop.f32.mrf.mxu0
      %4329 = vmatprep.mubr.bf16.mxu0 0
      %4330 = vmatmul.mubr.bf16.gmra.mxu0 %v1467
      %v4331 = vpop.f32.mrf.mxu0
      %v4332 = vadd.f32 %v4168, %v4331
      %v4333 = vpop.f32.mrf.mxu0
      %v4334 = vpop.f32.mrf.mxu0
      %v4335 = vadd.f32 %v4171, %v4334
      %v4336 = vpop.f32.mrf.mxu0
      %4337 = vmatprep.mubr.bf16.mxu0 0
      %4338 = vmatmul.mubr.bf16.gmra.mxu0 %v1470
      %v4339 = vpop.f32.mrf.mxu0
      %v4340 = vadd.f32 %v4176, %v4339
      %v4341 = vpop.f32.mrf.mxu0
      %v4342 = vpop.f32.mrf.mxu0
      %v4343 = vadd.f32 %v4179, %v4342
      %v4344 = vpop.f32.mrf.mxu0
      %4345 = vmatprep.mubr.bf16.mxu0 0
      %4346 = vmatmul.mubr.bf16.gmra.mxu0 %v1473
      %v4347 = vpop.f32.mrf.mxu0
      %v4348 = vadd.f32 %v4184, %v4347
      %v4349 = vpop.f32.mrf.mxu0
      %v4350 = vpop.f32.mrf.mxu0
      %v4351 = vadd.f32 %v4187, %v4350
      %v4352 = vpop.f32.mrf.mxu0
      %4353 = vmatprep.mubr.bf16.mxu0 0
      %4354 = vmatmul.mubr.bf16.gmra.mxu0 %v1476
      %v4355 = vpop.f32.mrf.mxu0
      %v4356 = vadd.f32 %v4192, %v4355
      %v4357 = vpop.f32.mrf.mxu0
      %v4358 = vpop.f32.mrf.mxu0
      %v4359 = vadd.f32 %v4195, %v4358
      %v4360 = vpop.f32.mrf.mxu0
      %4361 = vdwg.mxu0
      %v4362 = vrot.slane %v4236, 1
      %v4363 = vrot.slane %v4239, 1
      %v4364 = vrot.slane %v4244, 1
      %v4365 = vrot.slane %v4247, 1
      %v4366 = vrot.slane %v4252, 1
      %v4367 = vrot.slane %v4255, 1
      %v4368 = vrot.slane %v4260, 1
      %v4369 = vrot.slane %v4263, 1
      %v4370 = vrot.slane %v4268, 1
      %v4371 = vrot.slane %v4271, 1
      %v4372 = vrot.slane %v4276, 1
      %v4373 = vrot.slane %v4279, 1
      %v4374 = vrot.slane %v4284, 1
      %v4375 = vrot.slane %v4287, 1
      %v4376 = vrot.slane %v4292, 1
      %v4377 = vrot.slane %v4295, 1
      %v4378 = vrot.slane %v4300, 1
      %v4379 = vrot.slane %v4303, 1
      %v4380 = vrot.slane %v4308, 1
      %v4381 = vrot.slane %v4311, 1
      %v4382 = vrot.slane %v4316, 1
      %v4383 = vrot.slane %v4319, 1
      %v4384 = vrot.slane %v4324, 1
      %v4385 = vrot.slane %v4327, 1
      %v4386 = vrot.slane %v4332, 1
      %v4387 = vrot.slane %v4335, 1
      %v4388 = vrot.slane %v4340, 1
      %v4389 = vrot.slane %v4343, 1
      %v4390 = vrot.slane %v4348, 1
      %v4391 = vrot.slane %v4351, 1
      %v4392 = vrot.slane %v4356, 1
      %v4393 = vrot.slane %v4359, 1
      %v4394 = vsel %vm2853, %v4392, %v4393
      %v4395 = vsel %vm2853, %v4391, %v4392
      %v4396 = vsel %vm2853, %v4390, %v4391
      %v4397 = vsel %vm2853, %v4389, %v4390
      %v4398 = vsel %vm2853, %v4388, %v4389
      %v4399 = vsel %vm2853, %v4387, %v4388
      %v4400 = vsel %vm2853, %v4386, %v4387
      %v4401 = vsel %vm2853, %v4385, %v4386
      %v4402 = vsel %vm2853, %v4384, %v4385
      %v4403 = vsel %vm2853, %v4383, %v4384
      %v4404 = vsel %vm2853, %v4382, %v4383
      %v4405 = vsel %vm2853, %v4381, %v4382
      %v4406 = vsel %vm2853, %v4380, %v4381
      %v4407 = vsel %vm2853, %v4379, %v4380
      %v4408 = vsel %vm2853, %v4378, %v4379
      %v4409 = vsel %vm2853, %v4377, %v4378
      %v4410 = vsel %vm2853, %v4376, %v4377
      %v4411 = vsel %vm2853, %v4375, %v4376
      %v4412 = vsel %vm2853, %v4374, %v4375
      %v4413 = vsel %vm2853, %v4373, %v4374
      %v4414 = vsel %vm2853, %v4372, %v4373
      %v4415 = vsel %vm2853, %v4371, %v4372
      %v4416 = vsel %vm2853, %v4370, %v4371
      %v4417 = vsel %vm2853, %v4369, %v4370
      %v4418 = vsel %vm2853, %v4368, %v4369
      %v4419 = vsel %vm2853, %v4367, %v4368
      %v4420 = vsel %vm2853, %v4366, %v4367
      %v4421 = vsel %vm2853, %v4365, %v4366
      %v4422 = vsel %vm2853, %v4364, %v4365
      %v4423 = vsel %vm2853, %v4363, %v4364
      %v4424 = vsel %vm2853, %v4362, %v4363
      %v4425 = vsel %vm2853, %v4393, %v4362
      %4426 = vset.pattern.permute.xlu0 5
      %4427 = vperm.xlu0 %4426, %v1709
      %v4428 = vpop.permute.xlu0 %4427
      %4430 = vset.pattern.permute.xlu0 5
      %4431 = vperm.xlu0 %4430, %v1710
      %v4432 = vpop.permute.xlu0 %4431
      %4434 = vset.pattern.permute.xlu0 5
      %4435 = vperm.xlu0 %4434, %v1711
      %v4436 = vpop.permute.xlu0 %4435
      %4438 = vset.pattern.permute.xlu0 5
      %4439 = vperm.xlu0 %4438, %v1712
      %v4440 = vpop.permute.xlu0 %4439
      %4442 = vset.pattern.permute.xlu0 5
      %4443 = vperm.xlu0 %4442, %v1713
      %v4444 = vpop.permute.xlu0 %4443
      %4446 = vset.pattern.permute.xlu0 5
      %4447 = vperm.xlu0 %4446, %v1714
      %v4448 = vpop.permute.xlu0 %4447
      %4450 = vset.pattern.permute.xlu0 5
      %4451 = vperm.xlu0 %4450, %v1715
      %v4452 = vpop.permute.xlu0 %4451
      %4454 = vset.pattern.permute.xlu0 5
      %4455 = vperm.xlu0 %4454, %v1716
      %v4456 = vpop.permute.xlu0 %4455
      %4458 = vset.pattern.permute.xlu0 5
      %4459 = vperm.xlu0 %4458, %v1717
      %v4460 = vpop.permute.xlu0 %4459
      %4462 = vset.pattern.permute.xlu0 5
      %4463 = vperm.xlu0 %4462, %v1718
      %v4464 = vpop.permute.xlu0 %4463
      %4466 = vset.pattern.permute.xlu0 5
      %4467 = vperm.xlu0 %4466, %v1719
      %v4468 = vpop.permute.xlu0 %4467
      %4470 = vset.pattern.permute.xlu0 5
      %4471 = vperm.xlu0 %4470, %v1720
      %v4472 = vpop.permute.xlu0 %4471
      %4474 = vset.pattern.permute.xlu0 5
      %4475 = vperm.xlu0 %4474, %v1721
      %v4476 = vpop.permute.xlu0 %4475
      %4478 = vset.pattern.permute.xlu0 5
      %4479 = vperm.xlu0 %4478, %v1722
      %v4480 = vpop.permute.xlu0 %4479
      %4482 = vset.pattern.permute.xlu0 5
      %4483 = vperm.xlu0 %4482, %v1723
      %v4484 = vpop.permute.xlu0 %4483
      %4486 = vset.pattern.permute.xlu0 5
      %4487 = vperm.xlu0 %4486, %v1724
      %v4488 = vpop.permute.xlu0 %4487
      %4490 = vset.pattern.permute.xlu0 5
      %4491 = vperm.xlu0 %4490, %v1725
      %v4492 = vpop.permute.xlu0 %4491
      %4494 = vset.pattern.permute.xlu0 5
      %4495 = vperm.xlu0 %4494, %v1726
      %v4496 = vpop.permute.xlu0 %4495
      %4498 = vset.pattern.permute.xlu0 5
      %4499 = vperm.xlu0 %4498, %v1727
      %v4500 = vpop.permute.xlu0 %4499
      %4502 = vset.pattern.permute.xlu0 5
      %4503 = vperm.xlu0 %4502, %v1728
      %v4504 = vpop.permute.xlu0 %4503
      %4506 = vset.pattern.permute.xlu0 5
      %4507 = vperm.xlu0 %4506, %v1729
      %v4508 = vpop.permute.xlu0 %4507
      %4510 = vset.pattern.permute.xlu0 5
      %4511 = vperm.xlu0 %4510, %v1730
      %v4512 = vpop.permute.xlu0 %4511
      %4514 = vset.pattern.permute.xlu0 5
      %4515 = vperm.xlu0 %4514, %v1731
      %v4516 = vpop.permute.xlu0 %4515
      %4518 = vset.pattern.permute.xlu0 5
      %4519 = vperm.xlu0 %4518, %v1732
      %v4520 = vpop.permute.xlu0 %4519
      %4522 = vset.pattern.permute.xlu0 5
      %4523 = vperm.xlu0 %4522, %v1733
      %v4524 = vpop.permute.xlu0 %4523
      %4526 = vset.pattern.permute.xlu0 5
      %4527 = vperm.xlu0 %4526, %v1734
      %v4528 = vpop.permute.xlu0 %4527
      %4530 = vset.pattern.permute.xlu0 5
      %4531 = vperm.xlu0 %4530, %v1735
      %v4532 = vpop.permute.xlu0 %4531
      %4534 = vset.pattern.permute.xlu0 5
      %4535 = vperm.xlu0 %4534, %v1736
      %v4536 = vpop.permute.xlu0 %4535
      %4538 = vset.pattern.permute.xlu0 5
      %4539 = vperm.xlu0 %4538, %v1737
      %v4540 = vpop.permute.xlu0 %4539
      %4542 = vset.pattern.permute.xlu0 5
      %4543 = vperm.xlu0 %4542, %v1738
      %v4544 = vpop.permute.xlu0 %4543
      %4546 = vset.pattern.permute.xlu0 5
      %4547 = vperm.xlu0 %4546, %v1739
      %v4548 = vpop.permute.xlu0 %4547
      %4550 = vset.pattern.permute.xlu0 5
      %4551 = vperm.xlu0 %4550, %v1740
      %v4552 = vpop.permute.xlu0 %4551
      %v4554 = vmul.f32 %v4424, %v4428
      %v4555 = vmul.f32 %v4423, %v4432
      %v4556 = vmul.f32 %v4422, %v4436
      %v4557 = vmul.f32 %v4421, %v4440
      %v4558 = vmul.f32 %v4420, %v4444
      %v4559 = vmul.f32 %v4419, %v4448
      %v4560 = vmul.f32 %v4418, %v4452
      %v4561 = vmul.f32 %v4417, %v4456
      %v4562 = vmul.f32 %v4416, %v4460
      %v4563 = vmul.f32 %v4415, %v4464
      %v4564 = vmul.f32 %v4414, %v4468
      %v4565 = vmul.f32 %v4413, %v4472
      %v4566 = vmul.f32 %v4412, %v4476
      %v4567 = vmul.f32 %v4411, %v4480
      %v4568 = vmul.f32 %v4410, %v4484
      %v4569 = vmul.f32 %v4409, %v4488
      %v4570 = vmul.f32 %v4408, %v4492
      %v4571 = vmul.f32 %v4407, %v4496
      %v4572 = vmul.f32 %v4406, %v4500
      %v4573 = vmul.f32 %v4405, %v4504
      %v4574 = vmul.f32 %v4404, %v4508
      %v4575 = vmul.f32 %v4403, %v4512
      %v4576 = vmul.f32 %v4402, %v4516
      %v4577 = vmul.f32 %v4401, %v4520
      %v4578 = vmul.f32 %v4400, %v4524
      %v4579 = vmul.f32 %v4399, %v4528
      %v4580 = vmul.f32 %v4398, %v4532
      %v4581 = vmul.f32 %v4397, %v4536
      %v4582 = vmul.f32 %v4396, %v4540
      %v4583 = vmul.f32 %v4395, %v4544
      %v4584 = vmul.f32 %v4394, %v4548
      %v4585 = vmul.f32 %v4425, %v4552
      %v4586 = vadd.f32 %v3998, %v4554
      %v4587 = vadd.f32 %v3999, %v4555
      %v4588 = vadd.f32 %v4000, %v4556
      %v4589 = vadd.f32 %v4001, %v4557
      %v4590 = vadd.f32 %v4002, %v4558
      %v4591 = vadd.f32 %v4003, %v4559
      %v4592 = vadd.f32 %v4004, %v4560
      %v4593 = vadd.f32 %v4005, %v4561
      %v4594 = vadd.f32 %v4006, %v4562
      %v4595 = vadd.f32 %v4007, %v4563
      %v4596 = vadd.f32 %v4008, %v4564
      %v4597 = vadd.f32 %v4009, %v4565
      %v4598 = vadd.f32 %v4010, %v4566
      %v4599 = vadd.f32 %v4011, %v4567
      %v4600 = vadd.f32 %v4012, %v4568
      %v4601 = vadd.f32 %v4013, %v4569
      %v4602 = vadd.f32 %v4014, %v4570
      %v4603 = vadd.f32 %v4015, %v4571
      %v4604 = vadd.f32 %v4016, %v4572
      %v4605 = vadd.f32 %v4017, %v4573
      %v4606 = vadd.f32 %v4018, %v4574
      %v4607 = vadd.f32 %v4019, %v4575
      %v4608 = vadd.f32 %v4020, %v4576
      %v4609 = vadd.f32 %v4021, %v4577
      %v4610 = vadd.f32 %v4022, %v4578
      %v4611 = vadd.f32 %v4023, %v4579
      %v4612 = vadd.f32 %v4024, %v4580
      %v4613 = vadd.f32 %v4025, %v4581
      %v4614 = vadd.f32 %v4026, %v4582
      %v4615 = vadd.f32 %v4027, %v4583
      %v4616 = vadd.f32 %v4028, %v4584
      %v4617 = vadd.f32 %v4029, %v4585
      %s4618 = scalar_lea.vmem %s3, 12
      %v4619 = vld [vmem:[%s4618] sm:$0x3]
      %s4620 = scalar_lea.vmem %s4, 12
      %v4621 = vld [vmem:[%s4620] sm:$0x3]
      %v4623 = vsel %vm1185, %v4621, 0
      %4625 = vmatprep.subr.bf16.mxu0 0
      %4626 = vmatpush1.bf16.msra.mxu0 0
      %4627 = vmatprep.subr.bf16.mxu0 0
      %4628 = vmatpush1.bf16.msra.mxu0 0
      %4629 = vmatprep.subr.bf16.mxu0 0
      %4630 = vmatpush1.bf16.msra.mxu0 0
      %4631 = vmatprep.subr.bf16.mxu0 0
      %4632 = vmatpush1.bf16.msra.mxu0 0
      %4633 = vmatprep.subr.bf16.mxu0 0
      %4634 = vmatpush1.bf16.msra.mxu0 0
      %4635 = vmatprep.subr.bf16.mxu0 0
      %4636 = vmatpush1.bf16.msra.mxu0 0
      %4637 = vmatprep.subr.bf16.mxu0 0
      %4638 = vmatpush1.bf16.msra.mxu0 0
      %4639 = vmatprep.subr.bf16.mxu0 0
      %4640 = vmatpush1.bf16.msra.mxu0 %v4623
      %4641 = vmatprep.subr.bf16.mxu0 0
      %4642 = vmatpush2.bf16.msra.mxu0 0
      %4643 = vmatprep.subr.bf16.mxu0 0
      %4644 = vmatpush2.bf16.msra.mxu0 0
      %4645 = vmatprep.subr.bf16.mxu0 0
      %4646 = vmatpush2.bf16.msra.mxu0 0
      %4647 = vmatprep.subr.bf16.mxu0 0
      %4648 = vmatpush2.bf16.msra.mxu0 0
      %4649 = vmatprep.subr.bf16.mxu0 0
      %4650 = vmatpush2.bf16.msra.mxu0 0
      %4651 = vmatprep.subr.bf16.mxu0 0
      %4652 = vmatpush2.bf16.msra.mxu0 0
      %4653 = vmatprep.subr.bf16.mxu0 0
      %4654 = vmatpush2.bf16.msra.mxu0 0
      %4655 = vmatprep.subr.bf16.mxu0 0
      %4656 = vmatpush2.bf16.msra.mxu0 0
      %4657 = vmatprep.mubr.bf16.mxu0 0
      %4658 = vmatmul.mubr.bf16.gmra.mxu0 %v1138
      %v4659 = vpop.f32.mrf.mxu0
      %v4660 = vadd.f32 0.0, %v4659
      %v4661 = vpop.f32.mrf.mxu0
      %v4662 = vpop.f32.mrf.mxu0
      %v4663 = vadd.f32 0.0, %v4662
      %v4664 = vpop.f32.mrf.mxu0
      %4665 = vmatprep.mubr.bf16.mxu0 0
      %4666 = vmatmul.mubr.bf16.gmra.mxu0 %v1141
      %v4667 = vpop.f32.mrf.mxu0
      %v4668 = vadd.f32 0.0, %v4667
      %v4669 = vpop.f32.mrf.mxu0
      %v4670 = vpop.f32.mrf.mxu0
      %v4671 = vadd.f32 0.0, %v4670
      %v4672 = vpop.f32.mrf.mxu0
      %4673 = vmatprep.mubr.bf16.mxu0 0
      %4674 = vmatmul.mubr.bf16.gmra.mxu0 %v1144
      %v4675 = vpop.f32.mrf.mxu0
      %v4676 = vadd.f32 0.0, %v4675
      %v4677 = vpop.f32.mrf.mxu0
      %v4678 = vpop.f32.mrf.mxu0
      %v4679 = vadd.f32 0.0, %v4678
      %v4680 = vpop.f32.mrf.mxu0
      %4681 = vmatprep.mubr.bf16.mxu0 0
      %4682 = vmatmul.mubr.bf16.gmra.mxu0 %v1147
      %v4683 = vpop.f32.mrf.mxu0
      %v4684 = vadd.f32 0.0, %v4683
      %v4685 = vpop.f32.mrf.mxu0
      %v4686 = vpop.f32.mrf.mxu0
      %v4687 = vadd.f32 0.0, %v4686
      %v4688 = vpop.f32.mrf.mxu0
      %4689 = vmatprep.mubr.bf16.mxu0 0
      %4690 = vmatmul.mubr.bf16.gmra.mxu0 %v1150
      %v4691 = vpop.f32.mrf.mxu0
      %v4692 = vadd.f32 0.0, %v4691
      %v4693 = vpop.f32.mrf.mxu0
      %v4694 = vpop.f32.mrf.mxu0
      %v4695 = vadd.f32 0.0, %v4694
      %v4696 = vpop.f32.mrf.mxu0
      %4697 = vmatprep.mubr.bf16.mxu0 0
      %4698 = vmatmul.mubr.bf16.gmra.mxu0 %v1153
      %v4699 = vpop.f32.mrf.mxu0
      %v4700 = vadd.f32 0.0, %v4699
      %v4701 = vpop.f32.mrf.mxu0
      %v4702 = vpop.f32.mrf.mxu0
      %v4703 = vadd.f32 0.0, %v4702
      %v4704 = vpop.f32.mrf.mxu0
      %4705 = vmatprep.mubr.bf16.mxu0 0
      %4706 = vmatmul.mubr.bf16.gmra.mxu0 %v1156
      %v4707 = vpop.f32.mrf.mxu0
      %v4708 = vadd.f32 0.0, %v4707
      %v4709 = vpop.f32.mrf.mxu0
      %v4710 = vpop.f32.mrf.mxu0
      %v4711 = vadd.f32 0.0, %v4710
      %v4712 = vpop.f32.mrf.mxu0
      %4713 = vmatprep.mubr.bf16.mxu0 0
      %4714 = vmatmul.mubr.bf16.gmra.mxu0 %v1159
      %v4715 = vpop.f32.mrf.mxu0
      %v4716 = vadd.f32 0.0, %v4715
      %v4717 = vpop.f32.mrf.mxu0
      %v4718 = vpop.f32.mrf.mxu0
      %v4719 = vadd.f32 0.0, %v4718
      %v4720 = vpop.f32.mrf.mxu0
      %4721 = vmatprep.mubr.bf16.mxu0 0
      %4722 = vmatmul.mubr.bf16.gmra.mxu0 %v1162
      %v4723 = vpop.f32.mrf.mxu0
      %v4724 = vadd.f32 0.0, %v4723
      %v4725 = vpop.f32.mrf.mxu0
      %v4726 = vpop.f32.mrf.mxu0
      %v4727 = vadd.f32 0.0, %v4726
      %v4728 = vpop.f32.mrf.mxu0
      %4729 = vmatprep.mubr.bf16.mxu0 0
      %4730 = vmatmul.mubr.bf16.gmra.mxu0 %v1165
      %v4731 = vpop.f32.mrf.mxu0
      %v4732 = vadd.f32 0.0, %v4731
      %v4733 = vpop.f32.mrf.mxu0
      %v4734 = vpop.f32.mrf.mxu0
      %v4735 = vadd.f32 0.0, %v4734
      %v4736 = vpop.f32.mrf.mxu0
      %4737 = vmatprep.mubr.bf16.mxu0 0
      %4738 = vmatmul.mubr.bf16.gmra.mxu0 %v1168
      %v4739 = vpop.f32.mrf.mxu0
      %v4740 = vadd.f32 0.0, %v4739
      %v4741 = vpop.f32.mrf.mxu0
      %v4742 = vpop.f32.mrf.mxu0
      %v4743 = vadd.f32 0.0, %v4742
      %v4744 = vpop.f32.mrf.mxu0
      %4745 = vmatprep.mubr.bf16.mxu0 0
      %4746 = vmatmul.mubr.bf16.gmra.mxu0 %v1171
      %v4747 = vpop.f32.mrf.mxu0
      %v4748 = vadd.f32 0.0, %v4747
      %v4749 = vpop.f32.mrf.mxu0
      %v4750 = vpop.f32.mrf.mxu0
      %v4751 = vadd.f32 0.0, %v4750
      %v4752 = vpop.f32.mrf.mxu0
      %4753 = vmatprep.mubr.bf16.mxu0 0
      %4754 = vmatmul.mubr.bf16.gmra.mxu0 %v1174
      %v4755 = vpop.f32.mrf.mxu0
      %v4756 = vadd.f32 0.0, %v4755
      %v4757 = vpop.f32.mrf.mxu0
      %v4758 = vpop.f32.mrf.mxu0
      %v4759 = vadd.f32 0.0, %v4758
      %v4760 = vpop.f32.mrf.mxu0
      %4761 = vmatprep.mubr.bf16.mxu0 0
      %4762 = vmatmul.mubr.bf16.gmra.mxu0 %v1177
      %v4763 = vpop.f32.mrf.mxu0
      %v4764 = vadd.f32 0.0, %v4763
      %v4765 = vpop.f32.mrf.mxu0
      %v4766 = vpop.f32.mrf.mxu0
      %v4767 = vadd.f32 0.0, %v4766
      %v4768 = vpop.f32.mrf.mxu0
      %4769 = vmatprep.mubr.bf16.mxu0 0
      %4770 = vmatmul.mubr.bf16.gmra.mxu0 %v1180
      %v4771 = vpop.f32.mrf.mxu0
      %v4772 = vadd.f32 0.0, %v4771
      %v4773 = vpop.f32.mrf.mxu0
      %v4774 = vpop.f32.mrf.mxu0
      %v4775 = vadd.f32 0.0, %v4774
      %v4776 = vpop.f32.mrf.mxu0
      %4777 = vmatprep.mubr.bf16.mxu0 0
      %4778 = vmatmul.mubr.bf16.gmra.mxu0 %v1183
      %v4779 = vpop.f32.mrf.mxu0
      %v4780 = vadd.f32 0.0, %v4779
      %v4781 = vpop.f32.mrf.mxu0
      %v4782 = vpop.f32.mrf.mxu0
      %v4783 = vadd.f32 0.0, %v4782
      %v4784 = vpop.f32.mrf.mxu0
      %4785 = vdwg.mxu0
      %v4787 = vsel %vm1185, %v4619, 0
      %4789 = vmatprep.subr.bf16.mxu0 0
      %4790 = vmatpush1.bf16.msra.mxu0 0
      %4791 = vmatprep.subr.bf16.mxu0 0
      %4792 = vmatpush1.bf16.msra.mxu0 0
      %4793 = vmatprep.subr.bf16.mxu0 0
      %4794 = vmatpush1.bf16.msra.mxu0 0
      %4795 = vmatprep.subr.bf16.mxu0 0
      %4796 = vmatpush1.bf16.msra.mxu0 0
      %4797 = vmatprep.subr.bf16.mxu0 0
      %4798 = vmatpush1.bf16.msra.mxu0 0
      %4799 = vmatprep.subr.bf16.mxu0 0
      %4800 = vmatpush1.bf16.msra.mxu0 0
      %4801 = vmatprep.subr.bf16.mxu0 0
      %4802 = vmatpush1.bf16.msra.mxu0 0
      %4803 = vmatprep.subr.bf16.mxu0 0
      %4804 = vmatpush1.bf16.msra.mxu0 %v4787
      %4805 = vmatprep.subr.bf16.mxu0 0
      %4806 = vmatpush2.bf16.msra.mxu0 0
      %4807 = vmatprep.subr.bf16.mxu0 0
      %4808 = vmatpush2.bf16.msra.mxu0 0
      %4809 = vmatprep.subr.bf16.mxu0 0
      %4810 = vmatpush2.bf16.msra.mxu0 0
      %4811 = vmatprep.subr.bf16.mxu0 0
      %4812 = vmatpush2.bf16.msra.mxu0 0
      %4813 = vmatprep.subr.bf16.mxu0 0
      %4814 = vmatpush2.bf16.msra.mxu0 0
      %4815 = vmatprep.subr.bf16.mxu0 0
      %4816 = vmatpush2.bf16.msra.mxu0 0
      %4817 = vmatprep.subr.bf16.mxu0 0
      %4818 = vmatpush2.bf16.msra.mxu0 0
      %4819 = vmatprep.subr.bf16.mxu0 0
      %4820 = vmatpush2.bf16.msra.mxu0 0
      %4821 = vmatprep.mubr.bf16.mxu0 0
      %4822 = vmatmul.mubr.bf16.gmra.mxu0 %v1431
      %v4823 = vpop.f32.mrf.mxu0
      %v4824 = vadd.f32 %v4660, %v4823
      %v4825 = vpop.f32.mrf.mxu0
      %v4826 = vpop.f32.mrf.mxu0
      %v4827 = vadd.f32 %v4663, %v4826
      %v4828 = vpop.f32.mrf.mxu0
      %4829 = vmatprep.mubr.bf16.mxu0 0
      %4830 = vmatmul.mubr.bf16.gmra.mxu0 %v1434
      %v4831 = vpop.f32.mrf.mxu0
      %v4832 = vadd.f32 %v4668, %v4831
      %v4833 = vpop.f32.mrf.mxu0
      %v4834 = vpop.f32.mrf.mxu0
      %v4835 = vadd.f32 %v4671, %v4834
      %v4836 = vpop.f32.mrf.mxu0
      %4837 = vmatprep.mubr.bf16.mxu0 0
      %4838 = vmatmul.mubr.bf16.gmra.mxu0 %v1437
      %v4839 = vpop.f32.mrf.mxu0
      %v4840 = vadd.f32 %v4676, %v4839
      %v4841 = vpop.f32.mrf.mxu0
      %v4842 = vpop.f32.mrf.mxu0
      %v4843 = vadd.f32 %v4679, %v4842
      %v4844 = vpop.f32.mrf.mxu0
      %4845 = vmatprep.mubr.bf16.mxu0 0
      %4846 = vmatmul.mubr.bf16.gmra.mxu0 %v1440
      %v4847 = vpop.f32.mrf.mxu0
      %v4848 = vadd.f32 %v4684, %v4847
      %v4849 = vpop.f32.mrf.mxu0
      %v4850 = vpop.f32.mrf.mxu0
      %v4851 = vadd.f32 %v4687, %v4850
      %v4852 = vpop.f32.mrf.mxu0
      %4853 = vmatprep.mubr.bf16.mxu0 0
      %4854 = vmatmul.mubr.bf16.gmra.mxu0 %v1443
      %v4855 = vpop.f32.mrf.mxu0
      %v4856 = vadd.f32 %v4692, %v4855
      %v4857 = vpop.f32.mrf.mxu0
      %v4858 = vpop.f32.mrf.mxu0
      %v4859 = vadd.f32 %v4695, %v4858
      %v4860 = vpop.f32.mrf.mxu0
      %4861 = vmatprep.mubr.bf16.mxu0 0
      %4862 = vmatmul.mubr.bf16.gmra.mxu0 %v1446
      %v4863 = vpop.f32.mrf.mxu0
      %v4864 = vadd.f32 %v4700, %v4863
      %v4865 = vpop.f32.mrf.mxu0
      %v4866 = vpop.f32.mrf.mxu0
      %v4867 = vadd.f32 %v4703, %v4866
      %v4868 = vpop.f32.mrf.mxu0
      %4869 = vmatprep.mubr.bf16.mxu0 0
      %4870 = vmatmul.mubr.bf16.gmra.mxu0 %v1449
      %v4871 = vpop.f32.mrf.mxu0
      %v4872 = vadd.f32 %v4708, %v4871
      %v4873 = vpop.f32.mrf.mxu0
      %v4874 = vpop.f32.mrf.mxu0
      %v4875 = vadd.f32 %v4711, %v4874
      %v4876 = vpop.f32.mrf.mxu0
      %4877 = vmatprep.mubr.bf16.mxu0 0
      %4878 = vmatmul.mubr.bf16.gmra.mxu0 %v1452
      %v4879 = vpop.f32.mrf.mxu0
      %v4880 = vadd.f32 %v4716, %v4879
      %v4881 = vpop.f32.mrf.mxu0
      %v4882 = vpop.f32.mrf.mxu0
      %v4883 = vadd.f32 %v4719, %v4882
      %v4884 = vpop.f32.mrf.mxu0
      %4885 = vmatprep.mubr.bf16.mxu0 0
      %4886 = vmatmul.mubr.bf16.gmra.mxu0 %v1455
      %v4887 = vpop.f32.mrf.mxu0
      %v4888 = vadd.f32 %v4724, %v4887
      %v4889 = vpop.f32.mrf.mxu0
      %v4890 = vpop.f32.mrf.mxu0
      %v4891 = vadd.f32 %v4727, %v4890
      %v4892 = vpop.f32.mrf.mxu0
      %4893 = vmatprep.mubr.bf16.mxu0 0
      %4894 = vmatmul.mubr.bf16.gmra.mxu0 %v1458
      %v4895 = vpop.f32.mrf.mxu0
      %v4896 = vadd.f32 %v4732, %v4895
      %v4897 = vpop.f32.mrf.mxu0
      %v4898 = vpop.f32.mrf.mxu0
      %v4899 = vadd.f32 %v4735, %v4898
      %v4900 = vpop.f32.mrf.mxu0
      %4901 = vmatprep.mubr.bf16.mxu0 0
      %4902 = vmatmul.mubr.bf16.gmra.mxu0 %v1461
      %v4903 = vpop.f32.mrf.mxu0
      %v4904 = vadd.f32 %v4740, %v4903
      %v4905 = vpop.f32.mrf.mxu0
      %v4906 = vpop.f32.mrf.mxu0
      %v4907 = vadd.f32 %v4743, %v4906
      %v4908 = vpop.f32.mrf.mxu0
      %4909 = vmatprep.mubr.bf16.mxu0 0
      %4910 = vmatmul.mubr.bf16.gmra.mxu0 %v1464
      %v4911 = vpop.f32.mrf.mxu0
      %v4912 = vadd.f32 %v4748, %v4911
      %v4913 = vpop.f32.mrf.mxu0
      %v4914 = vpop.f32.mrf.mxu0
      %v4915 = vadd.f32 %v4751, %v4914
      %v4916 = vpop.f32.mrf.mxu0
      %4917 = vmatprep.mubr.bf16.mxu0 0
      %4918 = vmatmul.mubr.bf16.gmra.mxu0 %v1467
      %v4919 = vpop.f32.mrf.mxu0
      %v4920 = vadd.f32 %v4756, %v4919
      %v4921 = vpop.f32.mrf.mxu0
      %v4922 = vpop.f32.mrf.mxu0
      %v4923 = vadd.f32 %v4759, %v4922
      %v4924 = vpop.f32.mrf.mxu0
      %4925 = vmatprep.mubr.bf16.mxu0 0
      %4926 = vmatmul.mubr.bf16.gmra.mxu0 %v1470
      %v4927 = vpop.f32.mrf.mxu0
      %v4928 = vadd.f32 %v4764, %v4927
      %v4929 = vpop.f32.mrf.mxu0
      %v4930 = vpop.f32.mrf.mxu0
      %v4931 = vadd.f32 %v4767, %v4930
      %v4932 = vpop.f32.mrf.mxu0
      %4933 = vmatprep.mubr.bf16.mxu0 0
      %4934 = vmatmul.mubr.bf16.gmra.mxu0 %v1473
      %v4935 = vpop.f32.mrf.mxu0
      %v4936 = vadd.f32 %v4772, %v4935
      %v4937 = vpop.f32.mrf.mxu0
      %v4938 = vpop.f32.mrf.mxu0
      %v4939 = vadd.f32 %v4775, %v4938
      %v4940 = vpop.f32.mrf.mxu0
      %4941 = vmatprep.mubr.bf16.mxu0 0
      %4942 = vmatmul.mubr.bf16.gmra.mxu0 %v1476
      %v4943 = vpop.f32.mrf.mxu0
      %v4944 = vadd.f32 %v4780, %v4943
      %v4945 = vpop.f32.mrf.mxu0
      %v4946 = vpop.f32.mrf.mxu0
      %v4947 = vadd.f32 %v4783, %v4946
      %v4948 = vpop.f32.mrf.mxu0
      %4949 = vdwg.mxu0
      %v4950 = vrot.slane %v4824, 7
      %v4951 = vrot.slane %v4827, 7
      %v4952 = vrot.slane %v4832, 7
      %v4953 = vrot.slane %v4835, 7
      %v4954 = vrot.slane %v4840, 7
      %v4955 = vrot.slane %v4843, 7
      %v4956 = vrot.slane %v4848, 7
      %v4957 = vrot.slane %v4851, 7
      %v4958 = vrot.slane %v4856, 7
      %v4959 = vrot.slane %v4859, 7
      %v4960 = vrot.slane %v4864, 7
      %v4961 = vrot.slane %v4867, 7
      %v4962 = vrot.slane %v4872, 7
      %v4963 = vrot.slane %v4875, 7
      %v4964 = vrot.slane %v4880, 7
      %v4965 = vrot.slane %v4883, 7
      %v4966 = vrot.slane %v4888, 7
      %v4967 = vrot.slane %v4891, 7
      %v4968 = vrot.slane %v4896, 7
      %v4969 = vrot.slane %v4899, 7
      %v4970 = vrot.slane %v4904, 7
      %v4971 = vrot.slane %v4907, 7
      %v4972 = vrot.slane %v4912, 7
      %v4973 = vrot.slane %v4915, 7
      %v4974 = vrot.slane %v4920, 7
      %v4975 = vrot.slane %v4923, 7
      %v4976 = vrot.slane %v4928, 7
      %v4977 = vrot.slane %v4931, 7
      %v4978 = vrot.slane %v4936, 7
      %v4979 = vrot.slane %v4939, 7
      %v4980 = vrot.slane %v4944, 7
      %v4981 = vrot.slane %v4947, 7
      %v4982 = vsel %vm1676, %v4980, %v4981
      %v4983 = vsel %vm1676, %v4979, %v4980
      %v4984 = vsel %vm1676, %v4978, %v4979
      %v4985 = vsel %vm1676, %v4977, %v4978
      %v4986 = vsel %vm1676, %v4976, %v4977
      %v4987 = vsel %vm1676, %v4975, %v4976
      %v4988 = vsel %vm1676, %v4974, %v4975
      %v4989 = vsel %vm1676, %v4973, %v4974
      %v4990 = vsel %vm1676, %v4972, %v4973
      %v4991 = vsel %vm1676, %v4971, %v4972
      %v4992 = vsel %vm1676, %v4970, %v4971
      %v4993 = vsel %vm1676, %v4969, %v4970
      %v4994 = vsel %vm1676, %v4968, %v4969
      %v4995 = vsel %vm1676, %v4967, %v4968
      %v4996 = vsel %vm1676, %v4966, %v4967
      %v4997 = vsel %vm1676, %v4965, %v4966
      %v4998 = vsel %vm1676, %v4964, %v4965
      %v4999 = vsel %vm1676, %v4963, %v4964
      %v5000 = vsel %vm1676, %v4962, %v4963
      %v5001 = vsel %vm1676, %v4961, %v4962
      %v5002 = vsel %vm1676, %v4960, %v4961
      %v5003 = vsel %vm1676, %v4959, %v4960
      %v5004 = vsel %vm1676, %v4958, %v4959
      %v5005 = vsel %vm1676, %v4957, %v4958
      %v5006 = vsel %vm1676, %v4956, %v4957
      %v5007 = vsel %vm1676, %v4955, %v4956
      %v5008 = vsel %vm1676, %v4954, %v4955
      %v5009 = vsel %vm1676, %v4953, %v4954
      %v5010 = vsel %vm1676, %v4952, %v4953
      %v5011 = vsel %vm1676, %v4951, %v4952
      %v5012 = vsel %vm1676, %v4950, %v4951
      %v5013 = vsel %vm1676, %v4981, %v4950
      %5014 = vset.pattern.permute.xlu0 6
      %5015 = vperm.xlu0 %5014, %v1709
      %v5016 = vpop.permute.xlu0 %5015
      %5018 = vset.pattern.permute.xlu0 6
      %5019 = vperm.xlu0 %5018, %v1710
      %v5020 = vpop.permute.xlu0 %5019
      %5022 = vset.pattern.permute.xlu0 6
      %5023 = vperm.xlu0 %5022, %v1711
      %v5024 = vpop.permute.xlu0 %5023
      %5026 = vset.pattern.permute.xlu0 6
      %5027 = vperm.xlu0 %5026, %v1712
      %v5028 = vpop.permute.xlu0 %5027
      %5030 = vset.pattern.permute.xlu0 6
      %5031 = vperm.xlu0 %5030, %v1713
      %v5032 = vpop.permute.xlu0 %5031
      %5034 = vset.pattern.permute.xlu0 6
      %5035 = vperm.xlu0 %5034, %v1714
      %v5036 = vpop.permute.xlu0 %5035
      %5038 = vset.pattern.permute.xlu0 6
      %5039 = vperm.xlu0 %5038, %v1715
      %v5040 = vpop.permute.xlu0 %5039
      %5042 = vset.pattern.permute.xlu0 6
      %5043 = vperm.xlu0 %5042, %v1716
      %v5044 = vpop.permute.xlu0 %5043
      %5046 = vset.pattern.permute.xlu0 6
      %5047 = vperm.xlu0 %5046, %v1717
      %v5048 = vpop.permute.xlu0 %5047
      %5050 = vset.pattern.permute.xlu0 6
      %5051 = vperm.xlu0 %5050, %v1718
      %v5052 = vpop.permute.xlu0 %5051
      %5054 = vset.pattern.permute.xlu0 6
      %5055 = vperm.xlu0 %5054, %v1719
      %v5056 = vpop.permute.xlu0 %5055
      %5058 = vset.pattern.permute.xlu0 6
      %5059 = vperm.xlu0 %5058, %v1720
      %v5060 = vpop.permute.xlu0 %5059
      %5062 = vset.pattern.permute.xlu0 6
      %5063 = vperm.xlu0 %5062, %v1721
      %v5064 = vpop.permute.xlu0 %5063
      %5066 = vset.pattern.permute.xlu0 6
      %5067 = vperm.xlu0 %5066, %v1722
      %v5068 = vpop.permute.xlu0 %5067
      %5070 = vset.pattern.permute.xlu0 6
      %5071 = vperm.xlu0 %5070, %v1723
      %v5072 = vpop.permute.xlu0 %5071
      %5074 = vset.pattern.permute.xlu0 6
      %5075 = vperm.xlu0 %5074, %v1724
      %v5076 = vpop.permute.xlu0 %5075
      %5078 = vset.pattern.permute.xlu0 6
      %5079 = vperm.xlu0 %5078, %v1725
      %v5080 = vpop.permute.xlu0 %5079
      %5082 = vset.pattern.permute.xlu0 6
      %5083 = vperm.xlu0 %5082, %v1726
      %v5084 = vpop.permute.xlu0 %5083
      %5086 = vset.pattern.permute.xlu0 6
      %5087 = vperm.xlu0 %5086, %v1727
      %v5088 = vpop.permute.xlu0 %5087
      %5090 = vset.pattern.permute.xlu0 6
      %5091 = vperm.xlu0 %5090, %v1728
      %v5092 = vpop.permute.xlu0 %5091
      %5094 = vset.pattern.permute.xlu0 6
      %5095 = vperm.xlu0 %5094, %v1729
      %v5096 = vpop.permute.xlu0 %5095
      %5098 = vset.pattern.permute.xlu0 6
      %5099 = vperm.xlu0 %5098, %v1730
      %v5100 = vpop.permute.xlu0 %5099
      %5102 = vset.pattern.permute.xlu0 6
      %5103 = vperm.xlu0 %5102, %v1731
      %v5104 = vpop.permute.xlu0 %5103
      %5106 = vset.pattern.permute.xlu0 6
      %5107 = vperm.xlu0 %5106, %v1732
      %v5108 = vpop.permute.xlu0 %5107
      %5110 = vset.pattern.permute.xlu0 6
      %5111 = vperm.xlu0 %5110, %v1733
      %v5112 = vpop.permute.xlu0 %5111
      %5114 = vset.pattern.permute.xlu0 6
      %5115 = vperm.xlu0 %5114, %v1734
      %v5116 = vpop.permute.xlu0 %5115
      %5118 = vset.pattern.permute.xlu0 6
      %5119 = vperm.xlu0 %5118, %v1735
      %v5120 = vpop.permute.xlu0 %5119
      %5122 = vset.pattern.permute.xlu0 6
      %5123 = vperm.xlu0 %5122, %v1736
      %v5124 = vpop.permute.xlu0 %5123
      %5126 = vset.pattern.permute.xlu0 6
      %5127 = vperm.xlu0 %5126, %v1737
      %v5128 = vpop.permute.xlu0 %5127
      %5130 = vset.pattern.permute.xlu0 6
      %5131 = vperm.xlu0 %5130, %v1738
      %v5132 = vpop.permute.xlu0 %5131
      %5134 = vset.pattern.permute.xlu0 6
      %5135 = vperm.xlu0 %5134, %v1739
      %v5136 = vpop.permute.xlu0 %5135
      %5138 = vset.pattern.permute.xlu0 6
      %5139 = vperm.xlu0 %5138, %v1740
      %v5140 = vpop.permute.xlu0 %5139
      %v5142 = vmul.f32 %v5011, %v5016
      %v5143 = vmul.f32 %v5010, %v5020
      %v5144 = vmul.f32 %v5009, %v5024
      %v5145 = vmul.f32 %v5008, %v5028
      %v5146 = vmul.f32 %v5007, %v5032
      %v5147 = vmul.f32 %v5006, %v5036
      %v5148 = vmul.f32 %v5005, %v5040
      %v5149 = vmul.f32 %v5004, %v5044
      %v5150 = vmul.f32 %v5003, %v5048
      %v5151 = vmul.f32 %v5002, %v5052
      %v5152 = vmul.f32 %v5001, %v5056
      %v5153 = vmul.f32 %v5000, %v5060
      %v5154 = vmul.f32 %v4999, %v5064
      %v5155 = vmul.f32 %v4998, %v5068
      %v5156 = vmul.f32 %v4997, %v5072
      %v5157 = vmul.f32 %v4996, %v5076
      %v5158 = vmul.f32 %v4995, %v5080
      %v5159 = vmul.f32 %v4994, %v5084
      %v5160 = vmul.f32 %v4993, %v5088
      %v5161 = vmul.f32 %v4992, %v5092
      %v5162 = vmul.f32 %v4991, %v5096
      %v5163 = vmul.f32 %v4990, %v5100
      %v5164 = vmul.f32 %v4989, %v5104
      %v5165 = vmul.f32 %v4988, %v5108
      %v5166 = vmul.f32 %v4987, %v5112
      %v5167 = vmul.f32 %v4986, %v5116
      %v5168 = vmul.f32 %v4985, %v5120
      %v5169 = vmul.f32 %v4984, %v5124
      %v5170 = vmul.f32 %v4983, %v5128
      %v5171 = vmul.f32 %v4982, %v5132
      %v5172 = vmul.f32 %v5013, %v5136
      %v5173 = vmul.f32 %v5012, %v5140
      %v5174 = vadd.f32 %v4586, %v5142
      %v5175 = vadd.f32 %v4587, %v5143
      %v5176 = vadd.f32 %v4588, %v5144
      %v5177 = vadd.f32 %v4589, %v5145
      %v5178 = vadd.f32 %v4590, %v5146
      %v5179 = vadd.f32 %v4591, %v5147
      %v5180 = vadd.f32 %v4592, %v5148
      %v5181 = vadd.f32 %v4593, %v5149
      %v5182 = vadd.f32 %v4594, %v5150
      %v5183 = vadd.f32 %v4595, %v5151
      %v5184 = vadd.f32 %v4596, %v5152
      %v5185 = vadd.f32 %v4597, %v5153
      %v5186 = vadd.f32 %v4598, %v5154
      %v5187 = vadd.f32 %v4599, %v5155
      %v5188 = vadd.f32 %v4600, %v5156
      %v5189 = vadd.f32 %v4601, %v5157
      %v5190 = vadd.f32 %v4602, %v5158
      %v5191 = vadd.f32 %v4603, %v5159
      %v5192 = vadd.f32 %v4604, %v5160
      %v5193 = vadd.f32 %v4605, %v5161
      %v5194 = vadd.f32 %v4606, %v5162
      %v5195 = vadd.f32 %v4607, %v5163
      %v5196 = vadd.f32 %v4608, %v5164
      %v5197 = vadd.f32 %v4609, %v5165
      %v5198 = vadd.f32 %v4610, %v5166
      %v5199 = vadd.f32 %v4611, %v5167
      %v5200 = vadd.f32 %v4612, %v5168
      %v5201 = vadd.f32 %v4613, %v5169
      %v5202 = vadd.f32 %v4614, %v5170
      %v5203 = vadd.f32 %v4615, %v5171
      %v5204 = vadd.f32 %v4616, %v5172
      %v5205 = vadd.f32 %v4617, %v5173
      %s5206 = scalar_lea.vmem %s3, 14
      %v5207 = vld [vmem:[%s5206] sm:$0x3]
      %s5208 = scalar_lea.vmem %s4, 14
      %v5209 = vld [vmem:[%s5208] sm:$0x3]
      %v5211 = vsel %vm1185, %v5209, 0
      %5213 = vmatprep.subr.bf16.mxu0 0
      %5214 = vmatpush1.bf16.msra.mxu0 0
      %5215 = vmatprep.subr.bf16.mxu0 0
      %5216 = vmatpush1.bf16.msra.mxu0 0
      %5217 = vmatprep.subr.bf16.mxu0 0
      %5218 = vmatpush1.bf16.msra.mxu0 0
      %5219 = vmatprep.subr.bf16.mxu0 0
      %5220 = vmatpush1.bf16.msra.mxu0 0
      %5221 = vmatprep.subr.bf16.mxu0 0
      %5222 = vmatpush1.bf16.msra.mxu0 0
      %5223 = vmatprep.subr.bf16.mxu0 0
      %5224 = vmatpush1.bf16.msra.mxu0 0
      %5225 = vmatprep.subr.bf16.mxu0 0
      %5226 = vmatpush1.bf16.msra.mxu0 0
      %5227 = vmatprep.subr.bf16.mxu0 0
      %5228 = vmatpush1.bf16.msra.mxu0 %v5211
      %5229 = vmatprep.subr.bf16.mxu0 0
      %5230 = vmatpush2.bf16.msra.mxu0 0
      %5231 = vmatprep.subr.bf16.mxu0 0
      %5232 = vmatpush2.bf16.msra.mxu0 0
      %5233 = vmatprep.subr.bf16.mxu0 0
      %5234 = vmatpush2.bf16.msra.mxu0 0
      %5235 = vmatprep.subr.bf16.mxu0 0
      %5236 = vmatpush2.bf16.msra.mxu0 0
      %5237 = vmatprep.subr.bf16.mxu0 0
      %5238 = vmatpush2.bf16.msra.mxu0 0
      %5239 = vmatprep.subr.bf16.mxu0 0
      %5240 = vmatpush2.bf16.msra.mxu0 0
      %5241 = vmatprep.subr.bf16.mxu0 0
      %5242 = vmatpush2.bf16.msra.mxu0 0
      %5243 = vmatprep.subr.bf16.mxu0 0
      %5244 = vmatpush2.bf16.msra.mxu0 0
      %5245 = vmatprep.mubr.bf16.mxu0 0
      %5246 = vmatmul.mubr.bf16.gmra.mxu0 %v1138
      %v5247 = vpop.f32.mrf.mxu0
      %v5248 = vadd.f32 0.0, %v5247
      %v5249 = vpop.f32.mrf.mxu0
      %v5250 = vpop.f32.mrf.mxu0
      %v5251 = vadd.f32 0.0, %v5250
      %v5252 = vpop.f32.mrf.mxu0
      %5253 = vmatprep.mubr.bf16.mxu0 0
      %5254 = vmatmul.mubr.bf16.gmra.mxu0 %v1141
      %v5255 = vpop.f32.mrf.mxu0
      %v5256 = vadd.f32 0.0, %v5255
      %v5257 = vpop.f32.mrf.mxu0
      %v5258 = vpop.f32.mrf.mxu0
      %v5259 = vadd.f32 0.0, %v5258
      %v5260 = vpop.f32.mrf.mxu0
      %5261 = vmatprep.mubr.bf16.mxu0 0
      %5262 = vmatmul.mubr.bf16.gmra.mxu0 %v1144
      %v5263 = vpop.f32.mrf.mxu0
      %v5264 = vadd.f32 0.0, %v5263
      %v5265 = vpop.f32.mrf.mxu0
      %v5266 = vpop.f32.mrf.mxu0
      %v5267 = vadd.f32 0.0, %v5266
      %v5268 = vpop.f32.mrf.mxu0
      %5269 = vmatprep.mubr.bf16.mxu0 0
      %5270 = vmatmul.mubr.bf16.gmra.mxu0 %v1147
      %v5271 = vpop.f32.mrf.mxu0
      %v5272 = vadd.f32 0.0, %v5271
      %v5273 = vpop.f32.mrf.mxu0
      %v5274 = vpop.f32.mrf.mxu0
      %v5275 = vadd.f32 0.0, %v5274
      %v5276 = vpop.f32.mrf.mxu0
      %5277 = vmatprep.mubr.bf16.mxu0 0
      %5278 = vmatmul.mubr.bf16.gmra.mxu0 %v1150
      %v5279 = vpop.f32.mrf.mxu0
      %v5280 = vadd.f32 0.0, %v5279
      %v5281 = vpop.f32.mrf.mxu0
      %v5282 = vpop.f32.mrf.mxu0
      %v5283 = vadd.f32 0.0, %v5282
      %v5284 = vpop.f32.mrf.mxu0
      %5285 = vmatprep.mubr.bf16.mxu0 0
      %5286 = vmatmul.mubr.bf16.gmra.mxu0 %v1153
      %v5287 = vpop.f32.mrf.mxu0
      %v5288 = vadd.f32 0.0, %v5287
      %v5289 = vpop.f32.mrf.mxu0
      %v5290 = vpop.f32.mrf.mxu0
      %v5291 = vadd.f32 0.0, %v5290
      %v5292 = vpop.f32.mrf.mxu0
      %5293 = vmatprep.mubr.bf16.mxu0 0
      %5294 = vmatmul.mubr.bf16.gmra.mxu0 %v1156
      %v5295 = vpop.f32.mrf.mxu0
      %v5296 = vadd.f32 0.0, %v5295
      %v5297 = vpop.f32.mrf.mxu0
      %v5298 = vpop.f32.mrf.mxu0
      %v5299 = vadd.f32 0.0, %v5298
      %v5300 = vpop.f32.mrf.mxu0
      %5301 = vmatprep.mubr.bf16.mxu0 0
      %5302 = vmatmul.mubr.bf16.gmra.mxu0 %v1159
      %v5303 = vpop.f32.mrf.mxu0
      %v5304 = vadd.f32 0.0, %v5303
      %v5305 = vpop.f32.mrf.mxu0
      %v5306 = vpop.f32.mrf.mxu0
      %v5307 = vadd.f32 0.0, %v5306
      %v5308 = vpop.f32.mrf.mxu0
      %5309 = vmatprep.mubr.bf16.mxu0 0
      %5310 = vmatmul.mubr.bf16.gmra.mxu0 %v1162
      %v5311 = vpop.f32.mrf.mxu0
      %v5312 = vadd.f32 0.0, %v5311
      %v5313 = vpop.f32.mrf.mxu0
      %v5314 = vpop.f32.mrf.mxu0
      %v5315 = vadd.f32 0.0, %v5314
      %v5316 = vpop.f32.mrf.mxu0
      %5317 = vmatprep.mubr.bf16.mxu0 0
      %5318 = vmatmul.mubr.bf16.gmra.mxu0 %v1165
      %v5319 = vpop.f32.mrf.mxu0
      %v5320 = vadd.f32 0.0, %v5319
      %v5321 = vpop.f32.mrf.mxu0
      %v5322 = vpop.f32.mrf.mxu0
      %v5323 = vadd.f32 0.0, %v5322
      %v5324 = vpop.f32.mrf.mxu0
      %5325 = vmatprep.mubr.bf16.mxu0 0
      %5326 = vmatmul.mubr.bf16.gmra.mxu0 %v1168
      %v5327 = vpop.f32.mrf.mxu0
      %v5328 = vadd.f32 0.0, %v5327
      %v5329 = vpop.f32.mrf.mxu0
      %v5330 = vpop.f32.mrf.mxu0
      %v5331 = vadd.f32 0.0, %v5330
      %v5332 = vpop.f32.mrf.mxu0
      %5333 = vmatprep.mubr.bf16.mxu0 0
      %5334 = vmatmul.mubr.bf16.gmra.mxu0 %v1171
      %v5335 = vpop.f32.mrf.mxu0
      %v5336 = vadd.f32 0.0, %v5335
      %v5337 = vpop.f32.mrf.mxu0
      %v5338 = vpop.f32.mrf.mxu0
      %v5339 = vadd.f32 0.0, %v5338
      %v5340 = vpop.f32.mrf.mxu0
      %5341 = vmatprep.mubr.bf16.mxu0 0
      %5342 = vmatmul.mubr.bf16.gmra.mxu0 %v1174
      %v5343 = vpop.f32.mrf.mxu0
      %v5344 = vadd.f32 0.0, %v5343
      %v5345 = vpop.f32.mrf.mxu0
      %v5346 = vpop.f32.mrf.mxu0
      %v5347 = vadd.f32 0.0, %v5346
      %v5348 = vpop.f32.mrf.mxu0
      %5349 = vmatprep.mubr.bf16.mxu0 0
      %5350 = vmatmul.mubr.bf16.gmra.mxu0 %v1177
      %v5351 = vpop.f32.mrf.mxu0
      %v5352 = vadd.f32 0.0, %v5351
      %v5353 = vpop.f32.mrf.mxu0
      %v5354 = vpop.f32.mrf.mxu0
      %v5355 = vadd.f32 0.0, %v5354
      %v5356 = vpop.f32.mrf.mxu0
      %5357 = vmatprep.mubr.bf16.mxu0 0
      %5358 = vmatmul.mubr.bf16.gmra.mxu0 %v1180
      %v5359 = vpop.f32.mrf.mxu0
      %v5360 = vadd.f32 0.0, %v5359
      %v5361 = vpop.f32.mrf.mxu0
      %v5362 = vpop.f32.mrf.mxu0
      %v5363 = vadd.f32 0.0, %v5362
      %v5364 = vpop.f32.mrf.mxu0
      %5365 = vmatprep.mubr.bf16.mxu0 0
      %5366 = vmatmul.mubr.bf16.gmra.mxu0 %v1183
      %v5367 = vpop.f32.mrf.mxu0
      %v5368 = vadd.f32 0.0, %v5367
      %v5369 = vpop.f32.mrf.mxu0
      %v5370 = vpop.f32.mrf.mxu0
      %v5371 = vadd.f32 0.0, %v5370
      %v5372 = vpop.f32.mrf.mxu0
      %5373 = vdwg.mxu0
      %v5375 = vsel %vm1185, %v5207, 0
      %5377 = vmatprep.subr.bf16.mxu0 0
      %5378 = vmatpush1.bf16.msra.mxu0 0
      %5379 = vmatprep.subr.bf16.mxu0 0
      %5380 = vmatpush1.bf16.msra.mxu0 0
      %5381 = vmatprep.subr.bf16.mxu0 0
      %5382 = vmatpush1.bf16.msra.mxu0 0
      %5383 = vmatprep.subr.bf16.mxu0 0
      %5384 = vmatpush1.bf16.msra.mxu0 0
      %5385 = vmatprep.subr.bf16.mxu0 0
      %5386 = vmatpush1.bf16.msra.mxu0 0
      %5387 = vmatprep.subr.bf16.mxu0 0
      %5388 = vmatpush1.bf16.msra.mxu0 0
      %5389 = vmatprep.subr.bf16.mxu0 0
      %5390 = vmatpush1.bf16.msra.mxu0 0
      %5391 = vmatprep.subr.bf16.mxu0 0
      %5392 = vmatpush1.bf16.msra.mxu0 %v5375
      %5393 = vmatprep.subr.bf16.mxu0 0
      %5394 = vmatpush2.bf16.msra.mxu0 0
      %5395 = vmatprep.subr.bf16.mxu0 0
      %5396 = vmatpush2.bf16.msra.mxu0 0
      %5397 = vmatprep.subr.bf16.mxu0 0
      %5398 = vmatpush2.bf16.msra.mxu0 0
      %5399 = vmatprep.subr.bf16.mxu0 0
      %5400 = vmatpush2.bf16.msra.mxu0 0
      %5401 = vmatprep.subr.bf16.mxu0 0
      %5402 = vmatpush2.bf16.msra.mxu0 0
      %5403 = vmatprep.subr.bf16.mxu0 0
      %5404 = vmatpush2.bf16.msra.mxu0 0
      %5405 = vmatprep.subr.bf16.mxu0 0
      %5406 = vmatpush2.bf16.msra.mxu0 0
      %5407 = vmatprep.subr.bf16.mxu0 0
      %5408 = vmatpush2.bf16.msra.mxu0 0
      %5409 = vmatprep.mubr.bf16.mxu0 0
      %5410 = vmatmul.mubr.bf16.gmra.mxu0 %v1431
      %v5411 = vpop.f32.mrf.mxu0
      %v5412 = vadd.f32 %v5248, %v5411
      %v5413 = vpop.f32.mrf.mxu0
      %v5414 = vpop.f32.mrf.mxu0
      %v5415 = vadd.f32 %v5251, %v5414
      %v5416 = vpop.f32.mrf.mxu0
      %5417 = vmatprep.mubr.bf16.mxu0 0
      %5418 = vmatmul.mubr.bf16.gmra.mxu0 %v1434
      %v5419 = vpop.f32.mrf.mxu0
      %v5420 = vadd.f32 %v5256, %v5419
      %v5421 = vpop.f32.mrf.mxu0
      %v5422 = vpop.f32.mrf.mxu0
      %v5423 = vadd.f32 %v5259, %v5422
      %v5424 = vpop.f32.mrf.mxu0
      %5425 = vmatprep.mubr.bf16.mxu0 0
      %5426 = vmatmul.mubr.bf16.gmra.mxu0 %v1437
      %v5427 = vpop.f32.mrf.mxu0
      %v5428 = vadd.f32 %v5264, %v5427
      %v5429 = vpop.f32.mrf.mxu0
      %v5430 = vpop.f32.mrf.mxu0
      %v5431 = vadd.f32 %v5267, %v5430
      %v5432 = vpop.f32.mrf.mxu0
      %5433 = vmatprep.mubr.bf16.mxu0 0
      %5434 = vmatmul.mubr.bf16.gmra.mxu0 %v1440
      %v5435 = vpop.f32.mrf.mxu0
      %v5436 = vadd.f32 %v5272, %v5435
      %v5437 = vpop.f32.mrf.mxu0
      %v5438 = vpop.f32.mrf.mxu0
      %v5439 = vadd.f32 %v5275, %v5438
      %v5440 = vpop.f32.mrf.mxu0
      %5441 = vmatprep.mubr.bf16.mxu0 0
      %5442 = vmatmul.mubr.bf16.gmra.mxu0 %v1443
      %v5443 = vpop.f32.mrf.mxu0
      %v5444 = vadd.f32 %v5280, %v5443
      %v5445 = vpop.f32.mrf.mxu0
      %v5446 = vpop.f32.mrf.mxu0
      %v5447 = vadd.f32 %v5283, %v5446
      %v5448 = vpop.f32.mrf.mxu0
      %5449 = vmatprep.mubr.bf16.mxu0 0
      %5450 = vmatmul.mubr.bf16.gmra.mxu0 %v1446
      %v5451 = vpop.f32.mrf.mxu0
      %v5452 = vadd.f32 %v5288, %v5451
      %v5453 = vpop.f32.mrf.mxu0
      %v5454 = vpop.f32.mrf.mxu0
      %v5455 = vadd.f32 %v5291, %v5454
      %v5456 = vpop.f32.mrf.mxu0
      %5457 = vmatprep.mubr.bf16.mxu0 0
      %5458 = vmatmul.mubr.bf16.gmra.mxu0 %v1449
      %v5459 = vpop.f32.mrf.mxu0
      %v5460 = vadd.f32 %v5296, %v5459
      %v5461 = vpop.f32.mrf.mxu0
      %v5462 = vpop.f32.mrf.mxu0
      %v5463 = vadd.f32 %v5299, %v5462
      %v5464 = vpop.f32.mrf.mxu0
      %5465 = vmatprep.mubr.bf16.mxu0 0
      %5466 = vmatmul.mubr.bf16.gmra.mxu0 %v1452
      %v5467 = vpop.f32.mrf.mxu0
      %v5468 = vadd.f32 %v5304, %v5467
      %v5469 = vpop.f32.mrf.mxu0
      %v5470 = vpop.f32.mrf.mxu0
      %v5471 = vadd.f32 %v5307, %v5470
      %v5472 = vpop.f32.mrf.mxu0
      %5473 = vmatprep.mubr.bf16.mxu0 0
      %5474 = vmatmul.mubr.bf16.gmra.mxu0 %v1455
      %v5475 = vpop.f32.mrf.mxu0
      %v5476 = vadd.f32 %v5312, %v5475
      %v5477 = vpop.f32.mrf.mxu0
      %v5478 = vpop.f32.mrf.mxu0
      %v5479 = vadd.f32 %v5315, %v5478
      %v5480 = vpop.f32.mrf.mxu0
      %5481 = vmatprep.mubr.bf16.mxu0 0
      %5482 = vmatmul.mubr.bf16.gmra.mxu0 %v1458
      %v5483 = vpop.f32.mrf.mxu0
      %v5484 = vadd.f32 %v5320, %v5483
      %v5485 = vpop.f32.mrf.mxu0
      %v5486 = vpop.f32.mrf.mxu0
      %v5487 = vadd.f32 %v5323, %v5486
      %v5488 = vpop.f32.mrf.mxu0
      %5489 = vmatprep.mubr.bf16.mxu0 0
      %5490 = vmatmul.mubr.bf16.gmra.mxu0 %v1461
      %v5491 = vpop.f32.mrf.mxu0
      %v5492 = vadd.f32 %v5328, %v5491
      %v5493 = vpop.f32.mrf.mxu0
      %v5494 = vpop.f32.mrf.mxu0
      %v5495 = vadd.f32 %v5331, %v5494
      %v5496 = vpop.f32.mrf.mxu0
      %5497 = vmatprep.mubr.bf16.mxu0 0
      %5498 = vmatmul.mubr.bf16.gmra.mxu0 %v1464
      %v5499 = vpop.f32.mrf.mxu0
      %v5500 = vadd.f32 %v5336, %v5499
      %v5501 = vpop.f32.mrf.mxu0
      %v5502 = vpop.f32.mrf.mxu0
      %v5503 = vadd.f32 %v5339, %v5502
      %v5504 = vpop.f32.mrf.mxu0
      %5505 = vmatprep.mubr.bf16.mxu0 0
      %5506 = vmatmul.mubr.bf16.gmra.mxu0 %v1467
      %v5507 = vpop.f32.mrf.mxu0
      %v5508 = vadd.f32 %v5344, %v5507
      %v5509 = vpop.f32.mrf.mxu0
      %v5510 = vpop.f32.mrf.mxu0
      %v5511 = vadd.f32 %v5347, %v5510
      %v5512 = vpop.f32.mrf.mxu0
      %5513 = vmatprep.mubr.bf16.mxu0 0
      %5514 = vmatmul.mubr.bf16.gmra.mxu0 %v1470
      %v5515 = vpop.f32.mrf.mxu0
      %v5516 = vadd.f32 %v5352, %v5515
      %v5517 = vpop.f32.mrf.mxu0
      %v5518 = vpop.f32.mrf.mxu0
      %v5519 = vadd.f32 %v5355, %v5518
      %v5520 = vpop.f32.mrf.mxu0
      %5521 = vmatprep.mubr.bf16.mxu0 0
      %5522 = vmatmul.mubr.bf16.gmra.mxu0 %v1473
      %v5523 = vpop.f32.mrf.mxu0
      %v5524 = vadd.f32 %v5360, %v5523
      %v5525 = vpop.f32.mrf.mxu0
      %v5526 = vpop.f32.mrf.mxu0
      %v5527 = vadd.f32 %v5363, %v5526
      %v5528 = vpop.f32.mrf.mxu0
      %5529 = vmatprep.mubr.bf16.mxu0 0
      %5530 = vmatmul.mubr.bf16.gmra.mxu0 %v1476
      %v5531 = vpop.f32.mrf.mxu0
      %v5532 = vadd.f32 %v5368, %v5531
      %v5533 = vpop.f32.mrf.mxu0
      %v5534 = vpop.f32.mrf.mxu0
      %v5535 = vadd.f32 %v5371, %v5534
      %v5536 = vpop.f32.mrf.mxu0
      %5537 = vdwg.mxu0
      %5538 = vset.pattern.permute.xlu0 7
      %5539 = vperm.xlu0 %5538, %v1709
      %v5540 = vpop.permute.xlu0 %5539
      %5542 = vset.pattern.permute.xlu0 7
      %5543 = vperm.xlu0 %5542, %v1710
      %v5544 = vpop.permute.xlu0 %5543
      %5546 = vset.pattern.permute.xlu0 7
      %5547 = vperm.xlu0 %5546, %v1711
      %v5548 = vpop.permute.xlu0 %5547
      %5550 = vset.pattern.permute.xlu0 7
      %5551 = vperm.xlu0 %5550, %v1712
      %v5552 = vpop.permute.xlu0 %5551
      %5554 = vset.pattern.permute.xlu0 7
      %5555 = vperm.xlu0 %5554, %v1713
      %v5556 = vpop.permute.xlu0 %5555
      %5558 = vset.pattern.permute.xlu0 7
      %5559 = vperm.xlu0 %5558, %v1714
      %v5560 = vpop.permute.xlu0 %5559
      %5562 = vset.pattern.permute.xlu0 7
      %5563 = vperm.xlu0 %5562, %v1715
      %v5564 = vpop.permute.xlu0 %5563
      %5566 = vset.pattern.permute.xlu0 7
      %5567 = vperm.xlu0 %5566, %v1716
      %v5568 = vpop.permute.xlu0 %5567
      %5570 = vset.pattern.permute.xlu0 7
      %5571 = vperm.xlu0 %5570, %v1717
      %v5572 = vpop.permute.xlu0 %5571
      %5574 = vset.pattern.permute.xlu0 7
      %5575 = vperm.xlu0 %5574, %v1718
      %v5576 = vpop.permute.xlu0 %5575
      %5578 = vset.pattern.permute.xlu0 7
      %5579 = vperm.xlu0 %5578, %v1719
      %v5580 = vpop.permute.xlu0 %5579
      %5582 = vset.pattern.permute.xlu0 7
      %5583 = vperm.xlu0 %5582, %v1720
      %v5584 = vpop.permute.xlu0 %5583
      %5586 = vset.pattern.permute.xlu0 7
      %5587 = vperm.xlu0 %5586, %v1721
      %v5588 = vpop.permute.xlu0 %5587
      %5590 = vset.pattern.permute.xlu0 7
      %5591 = vperm.xlu0 %5590, %v1722
      %v5592 = vpop.permute.xlu0 %5591
      %5594 = vset.pattern.permute.xlu0 7
      %5595 = vperm.xlu0 %5594, %v1723
      %v5596 = vpop.permute.xlu0 %5595
      %5598 = vset.pattern.permute.xlu0 7
      %5599 = vperm.xlu0 %5598, %v1724
      %v5600 = vpop.permute.xlu0 %5599
      %5602 = vset.pattern.permute.xlu0 7
      %5603 = vperm.xlu0 %5602, %v1725
      %v5604 = vpop.permute.xlu0 %5603
      %5606 = vset.pattern.permute.xlu0 7
      %5607 = vperm.xlu0 %5606, %v1726
      %v5608 = vpop.permute.xlu0 %5607
      %5610 = vset.pattern.permute.xlu0 7
      %5611 = vperm.xlu0 %5610, %v1727
      %v5612 = vpop.permute.xlu0 %5611
      %5614 = vset.pattern.permute.xlu0 7
      %5615 = vperm.xlu0 %5614, %v1728
      %v5616 = vpop.permute.xlu0 %5615
      %5618 = vset.pattern.permute.xlu0 7
      %5619 = vperm.xlu0 %5618, %v1729
      %v5620 = vpop.permute.xlu0 %5619
      %5622 = vset.pattern.permute.xlu0 7
      %5623 = vperm.xlu0 %5622, %v1730
      %v5624 = vpop.permute.xlu0 %5623
      %5626 = vset.pattern.permute.xlu0 7
      %5627 = vperm.xlu0 %5626, %v1731
      %v5628 = vpop.permute.xlu0 %5627
      %5630 = vset.pattern.permute.xlu0 7
      %5631 = vperm.xlu0 %5630, %v1732
      %v5632 = vpop.permute.xlu0 %5631
      %5634 = vset.pattern.permute.xlu0 7
      %5635 = vperm.xlu0 %5634, %v1733
      %v5636 = vpop.permute.xlu0 %5635
      %5638 = vset.pattern.permute.xlu0 7
      %5639 = vperm.xlu0 %5638, %v1734
      %v5640 = vpop.permute.xlu0 %5639
      %5642 = vset.pattern.permute.xlu0 7
      %5643 = vperm.xlu0 %5642, %v1735
      %v5644 = vpop.permute.xlu0 %5643
      %5646 = vset.pattern.permute.xlu0 7
      %5647 = vperm.xlu0 %5646, %v1736
      %v5648 = vpop.permute.xlu0 %5647
      %5650 = vset.pattern.permute.xlu0 7
      %5651 = vperm.xlu0 %5650, %v1737
      %v5652 = vpop.permute.xlu0 %5651
      %5654 = vset.pattern.permute.xlu0 7
      %5655 = vperm.xlu0 %5654, %v1738
      %v5656 = vpop.permute.xlu0 %5655
      %5658 = vset.pattern.permute.xlu0 7
      %5659 = vperm.xlu0 %5658, %v1739
      %v5660 = vpop.permute.xlu0 %5659
      %5662 = vset.pattern.permute.xlu0 7
      %5663 = vperm.xlu0 %5662, %v1740
      %v5664 = vpop.permute.xlu0 %5663
      %v5666 = vmul.f32 %v5420, %v5540
      %v5667 = vmul.f32 %v5423, %v5544
      %v5668 = vmul.f32 %v5428, %v5548
      %v5669 = vmul.f32 %v5431, %v5552
      %v5670 = vmul.f32 %v5436, %v5556
      %v5671 = vmul.f32 %v5439, %v5560
      %v5672 = vmul.f32 %v5444, %v5564
      %v5673 = vmul.f32 %v5447, %v5568
      %v5674 = vmul.f32 %v5452, %v5572
      %v5675 = vmul.f32 %v5455, %v5576
      %v5676 = vmul.f32 %v5460, %v5580
      %v5677 = vmul.f32 %v5463, %v5584
      %v5678 = vmul.f32 %v5468, %v5588
      %v5679 = vmul.f32 %v5471, %v5592
      %v5680 = vmul.f32 %v5476, %v5596
      %v5681 = vmul.f32 %v5479, %v5600
      %v5682 = vmul.f32 %v5484, %v5604
      %v5683 = vmul.f32 %v5487, %v5608
      %v5684 = vmul.f32 %v5492, %v5612
      %v5685 = vmul.f32 %v5495, %v5616
      %v5686 = vmul.f32 %v5500, %v5620
      %v5687 = vmul.f32 %v5503, %v5624
      %v5688 = vmul.f32 %v5508, %v5628
      %v5689 = vmul.f32 %v5511, %v5632
      %v5690 = vmul.f32 %v5516, %v5636
      %v5691 = vmul.f32 %v5519, %v5640
      %v5692 = vmul.f32 %v5524, %v5644
      %v5693 = vmul.f32 %v5527, %v5648
      %v5694 = vmul.f32 %v5532, %v5652
      %v5695 = vmul.f32 %v5535, %v5656
      %v5696 = vmul.f32 %v5412, %v5660
      %v5697 = vmul.f32 %v5415, %v5664
      %v5698 = vadd.f32 %v5174, %v5666
      %v5699 = vadd.f32 %v5175, %v5667
      %v5700 = vadd.f32 %v5176, %v5668
      %v5701 = vadd.f32 %v5177, %v5669
      %v5702 = vadd.f32 %v5178, %v5670
      %v5703 = vadd.f32 %v5179, %v5671
      %v5704 = vadd.f32 %v5180, %v5672
      %v5705 = vadd.f32 %v5181, %v5673
      %v5706 = vadd.f32 %v5182, %v5674
      %v5707 = vadd.f32 %v5183, %v5675
      %v5708 = vadd.f32 %v5184, %v5676
      %v5709 = vadd.f32 %v5185, %v5677
      %v5710 = vadd.f32 %v5186, %v5678
      %v5711 = vadd.f32 %v5187, %v5679
      %v5712 = vadd.f32 %v5188, %v5680
      %v5713 = vadd.f32 %v5189, %v5681
      %v5714 = vadd.f32 %v5190, %v5682
      %v5715 = vadd.f32 %v5191, %v5683
      %v5716 = vadd.f32 %v5192, %v5684
      %v5717 = vadd.f32 %v5193, %v5685
      %v5718 = vadd.f32 %v5194, %v5686
      %v5719 = vadd.f32 %v5195, %v5687
      %v5720 = vadd.f32 %v5196, %v5688
      %v5721 = vadd.f32 %v5197, %v5689
      %v5722 = vadd.f32 %v5198, %v5690
      %v5723 = vadd.f32 %v5199, %v5691
      %v5724 = vadd.f32 %v5200, %v5692
      %v5725 = vadd.f32 %v5201, %v5693
      %v5726 = vadd.f32 %v5202, %v5694
      %v5727 = vadd.f32 %v5203, %v5695
      %v5728 = vadd.f32 %v5204, %v5696
      %v5729 = vadd.f32 %v5205, %v5697
      %s5730 = scalar_lea.vmem %s3, 16
      %v5731 = vld [vmem:[%s5730] sm:$0x3]
      %s5732 = scalar_lea.vmem %s4, 16
      %v5733 = vld [vmem:[%s5732] sm:$0x3]
      %v5735 = vsel %vm1185, %v5733, 0
      %5737 = vmatprep.subr.bf16.mxu0 0
      %5738 = vmatpush1.bf16.msra.mxu0 0
      %5739 = vmatprep.subr.bf16.mxu0 0
      %5740 = vmatpush1.bf16.msra.mxu0 0
      %5741 = vmatprep.subr.bf16.mxu0 0
      %5742 = vmatpush1.bf16.msra.mxu0 0
      %5743 = vmatprep.subr.bf16.mxu0 0
      %5744 = vmatpush1.bf16.msra.mxu0 0
      %5745 = vmatprep.subr.bf16.mxu0 0
      %5746 = vmatpush1.bf16.msra.mxu0 0
      %5747 = vmatprep.subr.bf16.mxu0 0
      %5748 = vmatpush1.bf16.msra.mxu0 0
      %5749 = vmatprep.subr.bf16.mxu0 0
      %5750 = vmatpush1.bf16.msra.mxu0 0
      %5751 = vmatprep.subr.bf16.mxu0 0
      %5752 = vmatpush1.bf16.msra.mxu0 %v5735
      %5753 = vmatprep.subr.bf16.mxu0 0
      %5754 = vmatpush2.bf16.msra.mxu0 0
      %5755 = vmatprep.subr.bf16.mxu0 0
      %5756 = vmatpush2.bf16.msra.mxu0 0
      %5757 = vmatprep.subr.bf16.mxu0 0
      %5758 = vmatpush2.bf16.msra.mxu0 0
      %5759 = vmatprep.subr.bf16.mxu0 0
      %5760 = vmatpush2.bf16.msra.mxu0 0
      %5761 = vmatprep.subr.bf16.mxu0 0
      %5762 = vmatpush2.bf16.msra.mxu0 0
      %5763 = vmatprep.subr.bf16.mxu0 0
      %5764 = vmatpush2.bf16.msra.mxu0 0
      %5765 = vmatprep.subr.bf16.mxu0 0
      %5766 = vmatpush2.bf16.msra.mxu0 0
      %5767 = vmatprep.subr.bf16.mxu0 0
      %5768 = vmatpush2.bf16.msra.mxu0 0
      %5769 = vmatprep.mubr.bf16.mxu0 0
      %5770 = vmatmul.mubr.bf16.gmra.mxu0 %v1138
      %v5771 = vpop.f32.mrf.mxu0
      %v5772 = vadd.f32 0.0, %v5771
      %v5773 = vpop.f32.mrf.mxu0
      %v5774 = vpop.f32.mrf.mxu0
      %v5775 = vadd.f32 0.0, %v5774
      %v5776 = vpop.f32.mrf.mxu0
      %5777 = vmatprep.mubr.bf16.mxu0 0
      %5778 = vmatmul.mubr.bf16.gmra.mxu0 %v1141
      %v5779 = vpop.f32.mrf.mxu0
      %v5780 = vadd.f32 0.0, %v5779
      %v5781 = vpop.f32.mrf.mxu0
      %v5782 = vpop.f32.mrf.mxu0
      %v5783 = vadd.f32 0.0, %v5782
      %v5784 = vpop.f32.mrf.mxu0
      %5785 = vmatprep.mubr.bf16.mxu0 0
      %5786 = vmatmul.mubr.bf16.gmra.mxu0 %v1144
      %v5787 = vpop.f32.mrf.mxu0
      %v5788 = vadd.f32 0.0, %v5787
      %v5789 = vpop.f32.mrf.mxu0
      %v5790 = vpop.f32.mrf.mxu0
      %v5791 = vadd.f32 0.0, %v5790
      %v5792 = vpop.f32.mrf.mxu0
      %5793 = vmatprep.mubr.bf16.mxu0 0
      %5794 = vmatmul.mubr.bf16.gmra.mxu0 %v1147
      %v5795 = vpop.f32.mrf.mxu0
      %v5796 = vadd.f32 0.0, %v5795
      %v5797 = vpop.f32.mrf.mxu0
      %v5798 = vpop.f32.mrf.mxu0
      %v5799 = vadd.f32 0.0, %v5798
      %v5800 = vpop.f32.mrf.mxu0
      %5801 = vmatprep.mubr.bf16.mxu0 0
      %5802 = vmatmul.mubr.bf16.gmra.mxu0 %v1150
      %v5803 = vpop.f32.mrf.mxu0
      %v5804 = vadd.f32 0.0, %v5803
      %v5805 = vpop.f32.mrf.mxu0
      %v5806 = vpop.f32.mrf.mxu0
      %v5807 = vadd.f32 0.0, %v5806
      %v5808 = vpop.f32.mrf.mxu0
      %5809 = vmatprep.mubr.bf16.mxu0 0
      %5810 = vmatmul.mubr.bf16.gmra.mxu0 %v1153
      %v5811 = vpop.f32.mrf.mxu0
      %v5812 = vadd.f32 0.0, %v5811
      %v5813 = vpop.f32.mrf.mxu0
      %v5814 = vpop.f32.mrf.mxu0
      %v5815 = vadd.f32 0.0, %v5814
      %v5816 = vpop.f32.mrf.mxu0
      %5817 = vmatprep.mubr.bf16.mxu0 0
      %5818 = vmatmul.mubr.bf16.gmra.mxu0 %v1156
      %v5819 = vpop.f32.mrf.mxu0
      %v5820 = vadd.f32 0.0, %v5819
      %v5821 = vpop.f32.mrf.mxu0
      %v5822 = vpop.f32.mrf.mxu0
      %v5823 = vadd.f32 0.0, %v5822
      %v5824 = vpop.f32.mrf.mxu0
      %5825 = vmatprep.mubr.bf16.mxu0 0
      %5826 = vmatmul.mubr.bf16.gmra.mxu0 %v1159
      %v5827 = vpop.f32.mrf.mxu0
      %v5828 = vadd.f32 0.0, %v5827
      %v5829 = vpop.f32.mrf.mxu0
      %v5830 = vpop.f32.mrf.mxu0
      %v5831 = vadd.f32 0.0, %v5830
      %v5832 = vpop.f32.mrf.mxu0
      %5833 = vmatprep.mubr.bf16.mxu0 0
      %5834 = vmatmul.mubr.bf16.gmra.mxu0 %v1162
      %v5835 = vpop.f32.mrf.mxu0
      %v5836 = vadd.f32 0.0, %v5835
      %v5837 = vpop.f32.mrf.mxu0
      %v5838 = vpop.f32.mrf.mxu0
      %v5839 = vadd.f32 0.0, %v5838
      %v5840 = vpop.f32.mrf.mxu0
      %5841 = vmatprep.mubr.bf16.mxu0 0
      %5842 = vmatmul.mubr.bf16.gmra.mxu0 %v1165
      %v5843 = vpop.f32.mrf.mxu0
      %v5844 = vadd.f32 0.0, %v5843
      %v5845 = vpop.f32.mrf.mxu0
      %v5846 = vpop.f32.mrf.mxu0
      %v5847 = vadd.f32 0.0, %v5846
      %v5848 = vpop.f32.mrf.mxu0
      %5849 = vmatprep.mubr.bf16.mxu0 0
      %5850 = vmatmul.mubr.bf16.gmra.mxu0 %v1168
      %v5851 = vpop.f32.mrf.mxu0
      %v5852 = vadd.f32 0.0, %v5851
      %v5853 = vpop.f32.mrf.mxu0
      %v5854 = vpop.f32.mrf.mxu0
      %v5855 = vadd.f32 0.0, %v5854
      %v5856 = vpop.f32.mrf.mxu0
      %5857 = vmatprep.mubr.bf16.mxu0 0
      %5858 = vmatmul.mubr.bf16.gmra.mxu0 %v1171
      %v5859 = vpop.f32.mrf.mxu0
      %v5860 = vadd.f32 0.0, %v5859
      %v5861 = vpop.f32.mrf.mxu0
      %v5862 = vpop.f32.mrf.mxu0
      %v5863 = vadd.f32 0.0, %v5862
      %v5864 = vpop.f32.mrf.mxu0
      %5865 = vmatprep.mubr.bf16.mxu0 0
      %5866 = vmatmul.mubr.bf16.gmra.mxu0 %v1174
      %v5867 = vpop.f32.mrf.mxu0
      %v5868 = vadd.f32 0.0, %v5867
      %v5869 = vpop.f32.mrf.mxu0
      %v5870 = vpop.f32.mrf.mxu0
      %v5871 = vadd.f32 0.0, %v5870
      %v5872 = vpop.f32.mrf.mxu0
      %5873 = vmatprep.mubr.bf16.mxu0 0
      %5874 = vmatmul.mubr.bf16.gmra.mxu0 %v1177
      %v5875 = vpop.f32.mrf.mxu0
      %v5876 = vadd.f32 0.0, %v5875
      %v5877 = vpop.f32.mrf.mxu0
      %v5878 = vpop.f32.mrf.mxu0
      %v5879 = vadd.f32 0.0, %v5878
      %v5880 = vpop.f32.mrf.mxu0
      %5881 = vmatprep.mubr.bf16.mxu0 0
      %5882 = vmatmul.mubr.bf16.gmra.mxu0 %v1180
      %v5883 = vpop.f32.mrf.mxu0
      %v5884 = vadd.f32 0.0, %v5883
      %v5885 = vpop.f32.mrf.mxu0
      %v5886 = vpop.f32.mrf.mxu0
      %v5887 = vadd.f32 0.0, %v5886
      %v5888 = vpop.f32.mrf.mxu0
      %5889 = vmatprep.mubr.bf16.mxu0 0
      %5890 = vmatmul.mubr.bf16.gmra.mxu0 %v1183
      %v5891 = vpop.f32.mrf.mxu0
      %v5892 = vadd.f32 0.0, %v5891
      %v5893 = vpop.f32.mrf.mxu0
      %v5894 = vpop.f32.mrf.mxu0
      %v5895 = vadd.f32 0.0, %v5894
      %v5896 = vpop.f32.mrf.mxu0
      %5897 = vdwg.mxu0
      %v5899 = vsel %vm1185, %v5731, 0
      %5901 = vmatprep.subr.bf16.mxu0 0
      %5902 = vmatpush1.bf16.msra.mxu0 0
      %5903 = vmatprep.subr.bf16.mxu0 0
      %5904 = vmatpush1.bf16.msra.mxu0 0
      %5905 = vmatprep.subr.bf16.mxu0 0
      %5906 = vmatpush1.bf16.msra.mxu0 0
      %5907 = vmatprep.subr.bf16.mxu0 0
      %5908 = vmatpush1.bf16.msra.mxu0 0
      %5909 = vmatprep.subr.bf16.mxu0 0
      %5910 = vmatpush1.bf16.msra.mxu0 0
      %5911 = vmatprep.subr.bf16.mxu0 0
      %5912 = vmatpush1.bf16.msra.mxu0 0
      %5913 = vmatprep.subr.bf16.mxu0 0
      %5914 = vmatpush1.bf16.msra.mxu0 0
      %5915 = vmatprep.subr.bf16.mxu0 0
      %5916 = vmatpush1.bf16.msra.mxu0 %v5899
      %5917 = vmatprep.subr.bf16.mxu0 0
      %5918 = vmatpush2.bf16.msra.mxu0 0
      %5919 = vmatprep.subr.bf16.mxu0 0
      %5920 = vmatpush2.bf16.msra.mxu0 0
      %5921 = vmatprep.subr.bf16.mxu0 0
      %5922 = vmatpush2.bf16.msra.mxu0 0
      %5923 = vmatprep.subr.bf16.mxu0 0
      %5924 = vmatpush2.bf16.msra.mxu0 0
      %5925 = vmatprep.subr.bf16.mxu0 0
      %5926 = vmatpush2.bf16.msra.mxu0 0
      %5927 = vmatprep.subr.bf16.mxu0 0
      %5928 = vmatpush2.bf16.msra.mxu0 0
      %5929 = vmatprep.subr.bf16.mxu0 0
      %5930 = vmatpush2.bf16.msra.mxu0 0
      %5931 = vmatprep.subr.bf16.mxu0 0
      %5932 = vmatpush2.bf16.msra.mxu0 0
      %5933 = vmatprep.mubr.bf16.mxu0 0
      %5934 = vmatmul.mubr.bf16.gmra.mxu0 %v1431
      %v5935 = vpop.f32.mrf.mxu0
      %v5936 = vadd.f32 %v5772, %v5935
      %v5937 = vpop.f32.mrf.mxu0
      %v5938 = vpop.f32.mrf.mxu0
      %v5939 = vadd.f32 %v5775, %v5938
      %v5940 = vpop.f32.mrf.mxu0
      %5941 = vmatprep.mubr.bf16.mxu0 0
      %5942 = vmatmul.mubr.bf16.gmra.mxu0 %v1434
      %v5943 = vpop.f32.mrf.mxu0
      %v5944 = vadd.f32 %v5780, %v5943
      %v5945 = vpop.f32.mrf.mxu0
      %v5946 = vpop.f32.mrf.mxu0
      %v5947 = vadd.f32 %v5783, %v5946
      %v5948 = vpop.f32.mrf.mxu0
      %5949 = vmatprep.mubr.bf16.mxu0 0
      %5950 = vmatmul.mubr.bf16.gmra.mxu0 %v1437
      %v5951 = vpop.f32.mrf.mxu0
      %v5952 = vadd.f32 %v5788, %v5951
      %v5953 = vpop.f32.mrf.mxu0
      %v5954 = vpop.f32.mrf.mxu0
      %v5955 = vadd.f32 %v5791, %v5954
      %v5956 = vpop.f32.mrf.mxu0
      %5957 = vmatprep.mubr.bf16.mxu0 0
      %5958 = vmatmul.mubr.bf16.gmra.mxu0 %v1440
      %v5959 = vpop.f32.mrf.mxu0
      %v5960 = vadd.f32 %v5796, %v5959
      %v5961 = vpop.f32.mrf.mxu0
      %v5962 = vpop.f32.mrf.mxu0
      %v5963 = vadd.f32 %v5799, %v5962
      %v5964 = vpop.f32.mrf.mxu0
      %5965 = vmatprep.mubr.bf16.mxu0 0
      %5966 = vmatmul.mubr.bf16.gmra.mxu0 %v1443
      %v5967 = vpop.f32.mrf.mxu0
      %v5968 = vadd.f32 %v5804, %v5967
      %v5969 = vpop.f32.mrf.mxu0
      %v5970 = vpop.f32.mrf.mxu0
      %v5971 = vadd.f32 %v5807, %v5970
      %v5972 = vpop.f32.mrf.mxu0
      %5973 = vmatprep.mubr.bf16.mxu0 0
      %5974 = vmatmul.mubr.bf16.gmra.mxu0 %v1446
      %v5975 = vpop.f32.mrf.mxu0
      %v5976 = vadd.f32 %v5812, %v5975
      %v5977 = vpop.f32.mrf.mxu0
      %v5978 = vpop.f32.mrf.mxu0
      %v5979 = vadd.f32 %v5815, %v5978
      %v5980 = vpop.f32.mrf.mxu0
      %5981 = vmatprep.mubr.bf16.mxu0 0
      %5982 = vmatmul.mubr.bf16.gmra.mxu0 %v1449
      %v5983 = vpop.f32.mrf.mxu0
      %v5984 = vadd.f32 %v5820, %v5983
      %v5985 = vpop.f32.mrf.mxu0
      %v5986 = vpop.f32.mrf.mxu0
      %v5987 = vadd.f32 %v5823, %v5986
      %v5988 = vpop.f32.mrf.mxu0
      %5989 = vmatprep.mubr.bf16.mxu0 0
      %5990 = vmatmul.mubr.bf16.gmra.mxu0 %v1452
      %v5991 = vpop.f32.mrf.mxu0
      %v5992 = vadd.f32 %v5828, %v5991
      %v5993 = vpop.f32.mrf.mxu0
      %v5994 = vpop.f32.mrf.mxu0
      %v5995 = vadd.f32 %v5831, %v5994
      %v5996 = vpop.f32.mrf.mxu0
      %5997 = vmatprep.mubr.bf16.mxu0 0
      %5998 = vmatmul.mubr.bf16.gmra.mxu0 %v1455
      %v5999 = vpop.f32.mrf.mxu0
      %v6000 = vadd.f32 %v5836, %v5999
      %v6001 = vpop.f32.mrf.mxu0
      %v6002 = vpop.f32.mrf.mxu0
      %v6003 = vadd.f32 %v5839, %v6002
      %v6004 = vpop.f32.mrf.mxu0
      %6005 = vmatprep.mubr.bf16.mxu0 0
      %6006 = vmatmul.mubr.bf16.gmra.mxu0 %v1458
      %v6007 = vpop.f32.mrf.mxu0
      %v6008 = vadd.f32 %v5844, %v6007
      %v6009 = vpop.f32.mrf.mxu0
      %v6010 = vpop.f32.mrf.mxu0
      %v6011 = vadd.f32 %v5847, %v6010
      %v6012 = vpop.f32.mrf.mxu0
      %6013 = vmatprep.mubr.bf16.mxu0 0
      %6014 = vmatmul.mubr.bf16.gmra.mxu0 %v1461
      %v6015 = vpop.f32.mrf.mxu0
      %v6016 = vadd.f32 %v5852, %v6015
      %v6017 = vpop.f32.mrf.mxu0
      %v6018 = vpop.f32.mrf.mxu0
      %v6019 = vadd.f32 %v5855, %v6018
      %v6020 = vpop.f32.mrf.mxu0
      %6021 = vmatprep.mubr.bf16.mxu0 0
      %6022 = vmatmul.mubr.bf16.gmra.mxu0 %v1464
      %v6023 = vpop.f32.mrf.mxu0
      %v6024 = vadd.f32 %v5860, %v6023
      %v6025 = vpop.f32.mrf.mxu0
      %v6026 = vpop.f32.mrf.mxu0
      %v6027 = vadd.f32 %v5863, %v6026
      %v6028 = vpop.f32.mrf.mxu0
      %6029 = vmatprep.mubr.bf16.mxu0 0
      %6030 = vmatmul.mubr.bf16.gmra.mxu0 %v1467
      %v6031 = vpop.f32.mrf.mxu0
      %v6032 = vadd.f32 %v5868, %v6031
      %v6033 = vpop.f32.mrf.mxu0
      %v6034 = vpop.f32.mrf.mxu0
      %v6035 = vadd.f32 %v5871, %v6034
      %v6036 = vpop.f32.mrf.mxu0
      %6037 = vmatprep.mubr.bf16.mxu0 0
      %6038 = vmatmul.mubr.bf16.gmra.mxu0 %v1470
      %v6039 = vpop.f32.mrf.mxu0
      %v6040 = vadd.f32 %v5876, %v6039
      %v6041 = vpop.f32.mrf.mxu0
      %v6042 = vpop.f32.mrf.mxu0
      %v6043 = vadd.f32 %v5879, %v6042
      %v6044 = vpop.f32.mrf.mxu0
      %6045 = vmatprep.mubr.bf16.mxu0 0
      %6046 = vmatmul.mubr.bf16.gmra.mxu0 %v1473
      %v6047 = vpop.f32.mrf.mxu0
      %v6048 = vadd.f32 %v5884, %v6047
      %v6049 = vpop.f32.mrf.mxu0
      %v6050 = vpop.f32.mrf.mxu0
      %v6051 = vadd.f32 %v5887, %v6050
      %v6052 = vpop.f32.mrf.mxu0
      %6053 = vmatprep.mubr.bf16.mxu0 0
      %6054 = vmatmul.mubr.bf16.gmra.mxu0 %v1476
      %v6055 = vpop.f32.mrf.mxu0
      %v6056 = vadd.f32 %v5892, %v6055
      %v6057 = vpop.f32.mrf.mxu0
      %v6058 = vpop.f32.mrf.mxu0
      %v6059 = vadd.f32 %v5895, %v6058
      %v6060 = vpop.f32.mrf.mxu0
      %6061 = vdwg.mxu0
      %v6062 = vrot.slane %v5936, 1
      %v6063 = vrot.slane %v5939, 1
      %v6064 = vrot.slane %v5944, 1
      %v6065 = vrot.slane %v5947, 1
      %v6066 = vrot.slane %v5952, 1
      %v6067 = vrot.slane %v5955, 1
      %v6068 = vrot.slane %v5960, 1
      %v6069 = vrot.slane %v5963, 1
      %v6070 = vrot.slane %v5968, 1
      %v6071 = vrot.slane %v5971, 1
      %v6072 = vrot.slane %v5976, 1
      %v6073 = vrot.slane %v5979, 1
      %v6074 = vrot.slane %v5984, 1
      %v6075 = vrot.slane %v5987, 1
      %v6076 = vrot.slane %v5992, 1
      %v6077 = vrot.slane %v5995, 1
      %v6078 = vrot.slane %v6000, 1
      %v6079 = vrot.slane %v6003, 1
      %v6080 = vrot.slane %v6008, 1
      %v6081 = vrot.slane %v6011, 1
      %v6082 = vrot.slane %v6016, 1
      %v6083 = vrot.slane %v6019, 1
      %v6084 = vrot.slane %v6024, 1
      %v6085 = vrot.slane %v6027, 1
      %v6086 = vrot.slane %v6032, 1
      %v6087 = vrot.slane %v6035, 1
      %v6088 = vrot.slane %v6040, 1
      %v6089 = vrot.slane %v6043, 1
      %v6090 = vrot.slane %v6048, 1
      %v6091 = vrot.slane %v6051, 1
      %v6092 = vrot.slane %v6056, 1
      %v6093 = vrot.slane %v6059, 1
      %v6094 = vsel %vm2853, %v6092, %v6093
      %v6095 = vsel %vm2853, %v6091, %v6092
      %v6096 = vsel %vm2853, %v6090, %v6091
      %v6097 = vsel %vm2853, %v6089, %v6090
      %v6098 = vsel %vm2853, %v6088, %v6089
      %v6099 = vsel %vm2853, %v6087, %v6088
      %v6100 = vsel %vm2853, %v6086, %v6087
      %v6101 = vsel %vm2853, %v6085, %v6086
      %v6102 = vsel %vm2853, %v6084, %v6085
      %v6103 = vsel %vm2853, %v6083, %v6084
      %v6104 = vsel %vm2853, %v6082, %v6083
      %v6105 = vsel %vm2853, %v6081, %v6082
      %v6106 = vsel %vm2853, %v6080, %v6081
      %v6107 = vsel %vm2853, %v6079, %v6080
      %v6108 = vsel %vm2853, %v6078, %v6079
      %v6109 = vsel %vm2853, %v6077, %v6078
      %v6110 = vsel %vm2853, %v6076, %v6077
      %v6111 = vsel %vm2853, %v6075, %v6076
      %v6112 = vsel %vm2853, %v6074, %v6075
      %v6113 = vsel %vm2853, %v6073, %v6074
      %v6114 = vsel %vm2853, %v6072, %v6073
      %v6115 = vsel %vm2853, %v6071, %v6072
      %v6116 = vsel %vm2853, %v6070, %v6071
      %v6117 = vsel %vm2853, %v6069, %v6070
      %v6118 = vsel %vm2853, %v6068, %v6069
      %v6119 = vsel %vm2853, %v6067, %v6068
      %v6120 = vsel %vm2853, %v6066, %v6067
      %v6121 = vsel %vm2853, %v6065, %v6066
      %v6122 = vsel %vm2853, %v6064, %v6065
      %v6123 = vsel %vm2853, %v6063, %v6064
      %v6124 = vsel %vm2853, %v6062, %v6063
      %v6125 = vsel %vm2853, %v6093, %v6062
      %6126 = vset.pattern.permute.xlu0 8
      %6127 = vperm.xlu0 %6126, %v1709
      %v6128 = vpop.permute.xlu0 %6127
      %6130 = vset.pattern.permute.xlu0 8
      %6131 = vperm.xlu0 %6130, %v1710
      %v6132 = vpop.permute.xlu0 %6131
      %6134 = vset.pattern.permute.xlu0 8
      %6135 = vperm.xlu0 %6134, %v1711
      %v6136 = vpop.permute.xlu0 %6135
      %6138 = vset.pattern.permute.xlu0 8
      %6139 = vperm.xlu0 %6138, %v1712
      %v6140 = vpop.permute.xlu0 %6139
      %6142 = vset.pattern.permute.xlu0 8
      %6143 = vperm.xlu0 %6142, %v1713
      %v6144 = vpop.permute.xlu0 %6143
      %6146 = vset.pattern.permute.xlu0 8
      %6147 = vperm.xlu0 %6146, %v1714
      %v6148 = vpop.permute.xlu0 %6147
      %6150 = vset.pattern.permute.xlu0 8
      %6151 = vperm.xlu0 %6150, %v1715
      %v6152 = vpop.permute.xlu0 %6151
      %6154 = vset.pattern.permute.xlu0 8
      %6155 = vperm.xlu0 %6154, %v1716
      %v6156 = vpop.permute.xlu0 %6155
      %6158 = vset.pattern.permute.xlu0 8
      %6159 = vperm.xlu0 %6158, %v1717
      %v6160 = vpop.permute.xlu0 %6159
      %6162 = vset.pattern.permute.xlu0 8
      %6163 = vperm.xlu0 %6162, %v1718
      %v6164 = vpop.permute.xlu0 %6163
      %6166 = vset.pattern.permute.xlu0 8
      %6167 = vperm.xlu0 %6166, %v1719
      %v6168 = vpop.permute.xlu0 %6167
      %6170 = vset.pattern.permute.xlu0 8
      %6171 = vperm.xlu0 %6170, %v1720
      %v6172 = vpop.permute.xlu0 %6171
      %6174 = vset.pattern.permute.xlu0 8
      %6175 = vperm.xlu0 %6174, %v1721
      %v6176 = vpop.permute.xlu0 %6175
      %6178 = vset.pattern.permute.xlu0 8
      %6179 = vperm.xlu0 %6178, %v1722
      %v6180 = vpop.permute.xlu0 %6179
      %6182 = vset.pattern.permute.xlu0 8
      %6183 = vperm.xlu0 %6182, %v1723
      %v6184 = vpop.permute.xlu0 %6183
      %6186 = vset.pattern.permute.xlu0 8
      %6187 = vperm.xlu0 %6186, %v1724
      %v6188 = vpop.permute.xlu0 %6187
      %6190 = vset.pattern.permute.xlu0 8
      %6191 = vperm.xlu0 %6190, %v1725
      %v6192 = vpop.permute.xlu0 %6191
      %6194 = vset.pattern.permute.xlu0 8
      %6195 = vperm.xlu0 %6194, %v1726
      %v6196 = vpop.permute.xlu0 %6195
      %6198 = vset.pattern.permute.xlu0 8
      %6199 = vperm.xlu0 %6198, %v1727
      %v6200 = vpop.permute.xlu0 %6199
      %6202 = vset.pattern.permute.xlu0 8
      %6203 = vperm.xlu0 %6202, %v1728
      %v6204 = vpop.permute.xlu0 %6203
      %6206 = vset.pattern.permute.xlu0 8
      %6207 = vperm.xlu0 %6206, %v1729
      %v6208 = vpop.permute.xlu0 %6207
      %6210 = vset.pattern.permute.xlu0 8
      %6211 = vperm.xlu0 %6210, %v1730
      %v6212 = vpop.permute.xlu0 %6211
      %6214 = vset.pattern.permute.xlu0 8
      %6215 = vperm.xlu0 %6214, %v1731
      %v6216 = vpop.permute.xlu0 %6215
      %6218 = vset.pattern.permute.xlu0 8
      %6219 = vperm.xlu0 %6218, %v1732
      %v6220 = vpop.permute.xlu0 %6219
      %6222 = vset.pattern.permute.xlu0 8
      %6223 = vperm.xlu0 %6222, %v1733
      %v6224 = vpop.permute.xlu0 %6223
      %6226 = vset.pattern.permute.xlu0 8
      %6227 = vperm.xlu0 %6226, %v1734
      %v6228 = vpop.permute.xlu0 %6227
      %6230 = vset.pattern.permute.xlu0 8
      %6231 = vperm.xlu0 %6230, %v1735
      %v6232 = vpop.permute.xlu0 %6231
      %6234 = vset.pattern.permute.xlu0 8
      %6235 = vperm.xlu0 %6234, %v1736
      %v6236 = vpop.permute.xlu0 %6235
      %6238 = vset.pattern.permute.xlu0 8
      %6239 = vperm.xlu0 %6238, %v1737
      %v6240 = vpop.permute.xlu0 %6239
      %6242 = vset.pattern.permute.xlu0 8
      %6243 = vperm.xlu0 %6242, %v1738
      %v6244 = vpop.permute.xlu0 %6243
      %6246 = vset.pattern.permute.xlu0 8
      %6247 = vperm.xlu0 %6246, %v1739
      %v6248 = vpop.permute.xlu0 %6247
      %6250 = vset.pattern.permute.xlu0 8
      %6251 = vperm.xlu0 %6250, %v1740
      %v6252 = vpop.permute.xlu0 %6251
      %v6254 = vmul.f32 %v6122, %v6128
      %v6255 = vmul.f32 %v6121, %v6132
      %v6256 = vmul.f32 %v6120, %v6136
      %v6257 = vmul.f32 %v6119, %v6140
      %v6258 = vmul.f32 %v6118, %v6144
      %v6259 = vmul.f32 %v6117, %v6148
      %v6260 = vmul.f32 %v6116, %v6152
      %v6261 = vmul.f32 %v6115, %v6156
      %v6262 = vmul.f32 %v6114, %v6160
      %v6263 = vmul.f32 %v6113, %v6164
      %v6264 = vmul.f32 %v6112, %v6168
      %v6265 = vmul.f32 %v6111, %v6172
      %v6266 = vmul.f32 %v6110, %v6176
      %v6267 = vmul.f32 %v6109, %v6180
      %v6268 = vmul.f32 %v6108, %v6184
      %v6269 = vmul.f32 %v6107, %v6188
      %v6270 = vmul.f32 %v6106, %v6192
      %v6271 = vmul.f32 %v6105, %v6196
      %v6272 = vmul.f32 %v6104, %v6200
      %v6273 = vmul.f32 %v6103, %v6204
      %v6274 = vmul.f32 %v6102, %v6208
      %v6275 = vmul.f32 %v6101, %v6212
      %v6276 = vmul.f32 %v6100, %v6216
      %v6277 = vmul.f32 %v6099, %v6220
      %v6278 = vmul.f32 %v6098, %v6224
      %v6279 = vmul.f32 %v6097, %v6228
      %v6280 = vmul.f32 %v6096, %v6232
      %v6281 = vmul.f32 %v6095, %v6236
      %v6282 = vmul.f32 %v6094, %v6240
      %v6283 = vmul.f32 %v6125, %v6244
      %v6284 = vmul.f32 %v6124, %v6248
      %v6285 = vmul.f32 %v6123, %v6252
      %v6286 = vadd.f32 %v5698, %v6254
      %v6287 = vadd.f32 %v5699, %v6255
      %v6288 = vadd.f32 %v5700, %v6256
      %v6289 = vadd.f32 %v5701, %v6257
      %v6290 = vadd.f32 %v5702, %v6258
      %v6291 = vadd.f32 %v5703, %v6259
      %v6292 = vadd.f32 %v5704, %v6260
      %v6293 = vadd.f32 %v5705, %v6261
      %v6294 = vadd.f32 %v5706, %v6262
      %v6295 = vadd.f32 %v5707, %v6263
      %v6296 = vadd.f32 %v5708, %v6264
      %v6297 = vadd.f32 %v5709, %v6265
      %v6298 = vadd.f32 %v5710, %v6266
      %v6299 = vadd.f32 %v5711, %v6267
      %v6300 = vadd.f32 %v5712, %v6268
      %v6301 = vadd.f32 %v5713, %v6269
      %v6302 = vadd.f32 %v5714, %v6270
      %v6303 = vadd.f32 %v5715, %v6271
      %v6304 = vadd.f32 %v5716, %v6272
      %v6305 = vadd.f32 %v5717, %v6273
      %v6306 = vadd.f32 %v5718, %v6274
      %v6307 = vadd.f32 %v5719, %v6275
      %v6308 = vadd.f32 %v5720, %v6276
      %v6309 = vadd.f32 %v5721, %v6277
      %v6310 = vadd.f32 %v5722, %v6278
      %v6311 = vadd.f32 %v5723, %v6279
      %v6312 = vadd.f32 %v5724, %v6280
      %v6313 = vadd.f32 %v5725, %v6281
      %v6314 = vadd.f32 %v5726, %v6282
      %v6315 = vadd.f32 %v5727, %v6283
      %v6316 = vadd.f32 %v5728, %v6284
      %v6317 = vadd.f32 %v5729, %v6285
      %v6318 = vld [vmem:[%s5] sm:$0x1]
      %v6320 = vlaneseq
      %v6321 = vshrl.u32 %v6320, 7
      %v6322 = vsub.s32 0, %v6321
      %v6323 = vrot.slane %v6318, %v6322
      %v6325 = vadd.f32 %v6286, %v6323
      %v6326 = vadd.f32 %v6287, %v6323
      %v6327 = vadd.f32 %v6288, %v6323
      %v6328 = vadd.f32 %v6289, %v6323
      %v6329 = vadd.f32 %v6290, %v6323
      %v6330 = vadd.f32 %v6291, %v6323
      %v6331 = vadd.f32 %v6292, %v6323
      %v6332 = vadd.f32 %v6293, %v6323
      %v6333 = vadd.f32 %v6294, %v6323
      %v6334 = vadd.f32 %v6295, %v6323
      %v6335 = vadd.f32 %v6296, %v6323
      %v6336 = vadd.f32 %v6297, %v6323
      %v6337 = vadd.f32 %v6298, %v6323
      %v6338 = vadd.f32 %v6299, %v6323
      %v6339 = vadd.f32 %v6300, %v6323
      %v6340 = vadd.f32 %v6301, %v6323
      %v6341 = vadd.f32 %v6302, %v6323
      %v6342 = vadd.f32 %v6303, %v6323
      %v6343 = vadd.f32 %v6304, %v6323
      %v6344 = vadd.f32 %v6305, %v6323
      %v6345 = vadd.f32 %v6306, %v6323
      %v6346 = vadd.f32 %v6307, %v6323
      %v6347 = vadd.f32 %v6308, %v6323
      %v6348 = vadd.f32 %v6309, %v6323
      %v6349 = vadd.f32 %v6310, %v6323
      %v6350 = vadd.f32 %v6311, %v6323
      %v6351 = vadd.f32 %v6312, %v6323
      %v6352 = vadd.f32 %v6313, %v6323
      %v6353 = vadd.f32 %v6314, %v6323
      %v6354 = vadd.f32 %v6315, %v6323
      %v6355 = vadd.f32 %v6316, %v6323
      %v6356 = vadd.f32 %v6317, %v6323
      %v6357 = vmax.f32 %v6325, 0.0
      %v6358 = vmax.f32 %v6326, 0.0
      %v6359 = vmax.f32 %v6327, 0.0
      %v6360 = vmax.f32 %v6328, 0.0
      %v6361 = vmax.f32 %v6329, 0.0
      %v6362 = vmax.f32 %v6330, 0.0
      %v6363 = vmax.f32 %v6331, 0.0
      %v6364 = vmax.f32 %v6332, 0.0
      %v6365 = vmax.f32 %v6333, 0.0
      %v6366 = vmax.f32 %v6334, 0.0
      %v6367 = vmax.f32 %v6335, 0.0
      %v6368 = vmax.f32 %v6336, 0.0
      %v6369 = vmax.f32 %v6337, 0.0
      %v6370 = vmax.f32 %v6338, 0.0
      %v6371 = vmax.f32 %v6339, 0.0
      %v6372 = vmax.f32 %v6340, 0.0
      %v6373 = vmax.f32 %v6341, 0.0
      %v6374 = vmax.f32 %v6342, 0.0
      %v6375 = vmax.f32 %v6343, 0.0
      %v6376 = vmax.f32 %v6344, 0.0
      %v6377 = vmax.f32 %v6345, 0.0
      %v6378 = vmax.f32 %v6346, 0.0
      %v6379 = vmax.f32 %v6347, 0.0
      %v6380 = vmax.f32 %v6348, 0.0
      %v6381 = vmax.f32 %v6349, 0.0
      %v6382 = vmax.f32 %v6350, 0.0
      %v6383 = vmax.f32 %v6351, 0.0
      %v6384 = vmax.f32 %v6352, 0.0
      %v6385 = vmax.f32 %v6353, 0.0
      %v6386 = vmax.f32 %v6354, 0.0
      %v6387 = vmax.f32 %v6355, 0.0
      %v6388 = vmax.f32 %v6356, 0.0
      %v6389 = vpack.c.bf16 %v6358, %v6357
      %v6390 = vpack.c.bf16 %v6360, %v6359
      %v6391 = vpack.c.bf16 %v6362, %v6361
      %v6392 = vpack.c.bf16 %v6364, %v6363
      %v6393 = vpack.c.bf16 %v6366, %v6365
      %v6394 = vpack.c.bf16 %v6368, %v6367
      %v6395 = vpack.c.bf16 %v6370, %v6369
      %v6396 = vpack.c.bf16 %v6372, %v6371
      %v6397 = vpack.c.bf16 %v6374, %v6373
      %v6398 = vpack.c.bf16 %v6376, %v6375
      %v6399 = vpack.c.bf16 %v6378, %v6377
      %v6400 = vpack.c.bf16 %v6380, %v6379
      %v6401 = vpack.c.bf16 %v6382, %v6381
      %v6402 = vpack.c.bf16 %v6384, %v6383
      %v6403 = vpack.c.bf16 %v6386, %v6385
      %v6404 = vpack.c.bf16 %v6388, %v6387
      %v6405 = vld [vmem:[%s6] sm:$0x3]
      %v6407 = vsel %vm1136, %v6389, 0
      %v6410 = vsel %vm1136, %v6390, 0
      %v6413 = vsel %vm1136, %v6391, 0
      %v6416 = vsel %vm1136, %v6392, 0
      %v6419 = vsel %vm1136, %v6393, 0
      %v6422 = vsel %vm1136, %v6394, 0
      %v6425 = vsel %vm1136, %v6395, 0
      %v6428 = vsel %vm1136, %v6396, 0
      %v6431 = vsel %vm1136, %v6397, 0
      %v6434 = vsel %vm1136, %v6398, 0
      %v6437 = vsel %vm1136, %v6399, 0
      %v6440 = vsel %vm1136, %v6400, 0
      %v6443 = vsel %vm1136, %v6401, 0
      %v6446 = vsel %vm1136, %v6402, 0
      %v6449 = vsel %vm1136, %v6403, 0
      %v6452 = vsel %vm1136, %v6404, 0
      %v6455 = vsel %vm1185, %v6405, 0
      %6457 = vmatprep.subr.bf16.mxu0 0
      %6458 = vmatpush1.bf16.msra.mxu0 0
      %6459 = vmatprep.subr.bf16.mxu0 0
      %6460 = vmatpush1.bf16.msra.mxu0 0
      %6461 = vmatprep.subr.bf16.mxu0 0
      %6462 = vmatpush1.bf16.msra.mxu0 0
      %6463 = vmatprep.subr.bf16.mxu0 0
      %6464 = vmatpush1.bf16.msra.mxu0 0
      %6465 = vmatprep.subr.bf16.mxu0 0
      %6466 = vmatpush1.bf16.msra.mxu0 0
      %6467 = vmatprep.subr.bf16.mxu0 0
      %6468 = vmatpush1.bf16.msra.mxu0 0
      %6469 = vmatprep.subr.bf16.mxu0 0
      %6470 = vmatpush1.bf16.msra.mxu0 0
      %6471 = vmatprep.subr.bf16.mxu0 0
      %6472 = vmatpush1.bf16.msra.mxu0 %v6455
      %6473 = vmatprep.subr.bf16.mxu0 0
      %6474 = vmatpush2.bf16.msra.mxu0 0
      %6475 = vmatprep.subr.bf16.mxu0 0
      %6476 = vmatpush2.bf16.msra.mxu0 0
      %6477 = vmatprep.subr.bf16.mxu0 0
      %6478 = vmatpush2.bf16.msra.mxu0 0
      %6479 = vmatprep.subr.bf16.mxu0 0
      %6480 = vmatpush2.bf16.msra.mxu0 0
      %6481 = vmatprep.subr.bf16.mxu0 0
      %6482 = vmatpush2.bf16.msra.mxu0 0
      %6483 = vmatprep.subr.bf16.mxu0 0
      %6484 = vmatpush2.bf16.msra.mxu0 0
      %6485 = vmatprep.subr.bf16.mxu0 0
      %6486 = vmatpush2.bf16.msra.mxu0 0
      %6487 = vmatprep.subr.bf16.mxu0 0
      %6488 = vmatpush2.bf16.msra.mxu0 0
      %6489 = vmatprep.mubr.bf16.mxu0 0
      %6490 = vmatmul.mubr.bf16.gmra.mxu0 %v6407
      %v6491 = vpop.f32.mrf.mxu0
      %v6492 = vadd.f32 0.0, %v6491
      %v6493 = vpop.f32.mrf.mxu0
      %v6494 = vpop.f32.mrf.mxu0
      %v6495 = vadd.f32 0.0, %v6494
      %v6496 = vpop.f32.mrf.mxu0
      %6497 = vmatprep.mubr.bf16.mxu0 0
      %6498 = vmatmul.mubr.bf16.gmra.mxu0 %v6410
      %v6499 = vpop.f32.mrf.mxu0
      %v6500 = vadd.f32 0.0, %v6499
      %v6501 = vpop.f32.mrf.mxu0
      %v6502 = vpop.f32.mrf.mxu0
      %v6503 = vadd.f32 0.0, %v6502
      %v6504 = vpop.f32.mrf.mxu0
      %6505 = vmatprep.mubr.bf16.mxu0 0
      %6506 = vmatmul.mubr.bf16.gmra.mxu0 %v6413
      %v6507 = vpop.f32.mrf.mxu0
      %v6508 = vadd.f32 0.0, %v6507
      %v6509 = vpop.f32.mrf.mxu0
      %v6510 = vpop.f32.mrf.mxu0
      %v6511 = vadd.f32 0.0, %v6510
      %v6512 = vpop.f32.mrf.mxu0
      %6513 = vmatprep.mubr.bf16.mxu0 0
      %6514 = vmatmul.mubr.bf16.gmra.mxu0 %v6416
      %v6515 = vpop.f32.mrf.mxu0
      %v6516 = vadd.f32 0.0, %v6515
      %v6517 = vpop.f32.mrf.mxu0
      %v6518 = vpop.f32.mrf.mxu0
      %v6519 = vadd.f32 0.0, %v6518
      %v6520 = vpop.f32.mrf.mxu0
      %6521 = vmatprep.mubr.bf16.mxu0 0
      %6522 = vmatmul.mubr.bf16.gmra.mxu0 %v6419
      %v6523 = vpop.f32.mrf.mxu0
      %v6524 = vadd.f32 0.0, %v6523
      %v6525 = vpop.f32.mrf.mxu0
      %v6526 = vpop.f32.mrf.mxu0
      %v6527 = vadd.f32 0.0, %v6526
      %v6528 = vpop.f32.mrf.mxu0
      %6529 = vmatprep.mubr.bf16.mxu0 0
      %6530 = vmatmul.mubr.bf16.gmra.mxu0 %v6422
      %v6531 = vpop.f32.mrf.mxu0
      %v6532 = vadd.f32 0.0, %v6531
      %v6533 = vpop.f32.mrf.mxu0
      %v6534 = vpop.f32.mrf.mxu0
      %v6535 = vadd.f32 0.0, %v6534
      %v6536 = vpop.f32.mrf.mxu0
      %6537 = vmatprep.mubr.bf16.mxu0 0
      %6538 = vmatmul.mubr.bf16.gmra.mxu0 %v6425
      %v6539 = vpop.f32.mrf.mxu0
      %v6540 = vadd.f32 0.0, %v6539
      %v6541 = vpop.f32.mrf.mxu0
      %v6542 = vpop.f32.mrf.mxu0
      %v6543 = vadd.f32 0.0, %v6542
      %v6544 = vpop.f32.mrf.mxu0
      %6545 = vmatprep.mubr.bf16.mxu0 0
      %6546 = vmatmul.mubr.bf16.gmra.mxu0 %v6428
      %v6547 = vpop.f32.mrf.mxu0
      %v6548 = vadd.f32 0.0, %v6547
      %v6549 = vpop.f32.mrf.mxu0
      %v6550 = vpop.f32.mrf.mxu0
      %v6551 = vadd.f32 0.0, %v6550
      %v6552 = vpop.f32.mrf.mxu0
      %6553 = vmatprep.mubr.bf16.mxu0 0
      %6554 = vmatmul.mubr.bf16.gmra.mxu0 %v6431
      %v6555 = vpop.f32.mrf.mxu0
      %v6556 = vadd.f32 0.0, %v6555
      %v6557 = vpop.f32.mrf.mxu0
      %v6558 = vpop.f32.mrf.mxu0
      %v6559 = vadd.f32 0.0, %v6558
      %v6560 = vpop.f32.mrf.mxu0
      %6561 = vmatprep.mubr.bf16.mxu0 0
      %6562 = vmatmul.mubr.bf16.gmra.mxu0 %v6434
      %v6563 = vpop.f32.mrf.mxu0
      %v6564 = vadd.f32 0.0, %v6563
      %v6565 = vpop.f32.mrf.mxu0
      %v6566 = vpop.f32.mrf.mxu0
      %v6567 = vadd.f32 0.0, %v6566
      %v6568 = vpop.f32.mrf.mxu0
      %6569 = vmatprep.mubr.bf16.mxu0 0
      %6570 = vmatmul.mubr.bf16.gmra.mxu0 %v6437
      %v6571 = vpop.f32.mrf.mxu0
      %v6572 = vadd.f32 0.0, %v6571
      %v6573 = vpop.f32.mrf.mxu0
      %v6574 = vpop.f32.mrf.mxu0
      %v6575 = vadd.f32 0.0, %v6574
      %v6576 = vpop.f32.mrf.mxu0
      %6577 = vmatprep.mubr.bf16.mxu0 0
      %6578 = vmatmul.mubr.bf16.gmra.mxu0 %v6440
      %v6579 = vpop.f32.mrf.mxu0
      %v6580 = vadd.f32 0.0, %v6579
      %v6581 = vpop.f32.mrf.mxu0
      %v6582 = vpop.f32.mrf.mxu0
      %v6583 = vadd.f32 0.0, %v6582
      %v6584 = vpop.f32.mrf.mxu0
      %6585 = vmatprep.mubr.bf16.mxu0 0
      %6586 = vmatmul.mubr.bf16.gmra.mxu0 %v6443
      %v6587 = vpop.f32.mrf.mxu0
      %v6588 = vadd.f32 0.0, %v6587
      %v6589 = vpop.f32.mrf.mxu0
      %v6590 = vpop.f32.mrf.mxu0
      %v6591 = vadd.f32 0.0, %v6590
      %v6592 = vpop.f32.mrf.mxu0
      %6593 = vmatprep.mubr.bf16.mxu0 0
      %6594 = vmatmul.mubr.bf16.gmra.mxu0 %v6446
      %v6595 = vpop.f32.mrf.mxu0
      %v6596 = vadd.f32 0.0, %v6595
      %v6597 = vpop.f32.mrf.mxu0
      %v6598 = vpop.f32.mrf.mxu0
      %v6599 = vadd.f32 0.0, %v6598
      %v6600 = vpop.f32.mrf.mxu0
      %6601 = vmatprep.mubr.bf16.mxu0 0
      %6602 = vmatmul.mubr.bf16.gmra.mxu0 %v6449
      %v6603 = vpop.f32.mrf.mxu0
      %v6604 = vadd.f32 0.0, %v6603
      %v6605 = vpop.f32.mrf.mxu0
      %v6606 = vpop.f32.mrf.mxu0
      %v6607 = vadd.f32 0.0, %v6606
      %v6608 = vpop.f32.mrf.mxu0
      %6609 = vmatprep.mubr.bf16.mxu0 0
      %6610 = vmatmul.mubr.bf16.gmra.mxu0 %v6452
      %v6611 = vpop.f32.mrf.mxu0
      %v6612 = vadd.f32 0.0, %v6611
      %v6613 = vpop.f32.mrf.mxu0
      %v6614 = vpop.f32.mrf.mxu0
      %v6615 = vadd.f32 0.0, %v6614
      %v6616 = vpop.f32.mrf.mxu0
      %6617 = vdwg.mxu0
      %v6618 = vrot.slane %v6492, 7
      %v6619 = vrot.slane %v6495, 7
      %v6620 = vrot.slane %v6500, 7
      %v6621 = vrot.slane %v6503, 7
      %v6622 = vrot.slane %v6508, 7
      %v6623 = vrot.slane %v6511, 7
      %v6624 = vrot.slane %v6516, 7
      %v6625 = vrot.slane %v6519, 7
      %v6626 = vrot.slane %v6524, 7
      %v6627 = vrot.slane %v6527, 7
      %v6628 = vrot.slane %v6532, 7
      %v6629 = vrot.slane %v6535, 7
      %v6630 = vrot.slane %v6540, 7
      %v6631 = vrot.slane %v6543, 7
      %v6632 = vrot.slane %v6548, 7
      %v6633 = vrot.slane %v6551, 7
      %v6634 = vrot.slane %v6556, 7
      %v6635 = vrot.slane %v6559, 7
      %v6636 = vrot.slane %v6564, 7
      %v6637 = vrot.slane %v6567, 7
      %v6638 = vrot.slane %v6572, 7
      %v6639 = vrot.slane %v6575, 7
      %v6640 = vrot.slane %v6580, 7
      %v6641 = vrot.slane %v6583, 7
      %v6642 = vrot.slane %v6588, 7
      %v6643 = vrot.slane %v6591, 7
      %v6644 = vrot.slane %v6596, 7
      %v6645 = vrot.slane %v6599, 7
      %v6646 = vrot.slane %v6604, 7
      %v6647 = vrot.slane %v6607, 7
      %v6648 = vrot.slane %v6612, 7
      %v6649 = vrot.slane %v6615, 7
      %v6650 = vsel %vm1676, %v6648, %v6649
      %v6651 = vsel %vm1676, %v6647, %v6648
      %v6652 = vsel %vm1676, %v6646, %v6647
      %v6653 = vsel %vm1676, %v6645, %v6646
      %v6654 = vsel %vm1676, %v6644, %v6645
      %v6655 = vsel %vm1676, %v6643, %v6644
      %v6656 = vsel %vm1676, %v6642, %v6643
      %v6657 = vsel %vm1676, %v6641, %v6642
      %v6658 = vsel %vm1676, %v6640, %v6641
      %v6659 = vsel %vm1676, %v6639, %v6640
      %v6660 = vsel %vm1676, %v6638, %v6639
      %v6661 = vsel %vm1676, %v6637, %v6638
      %v6662 = vsel %vm1676, %v6636, %v6637
      %v6663 = vsel %vm1676, %v6635, %v6636
      %v6664 = vsel %vm1676, %v6634, %v6635
      %v6665 = vsel %vm1676, %v6633, %v6634
      %v6666 = vsel %vm1676, %v6632, %v6633
      %v6667 = vsel %vm1676, %v6631, %v6632
      %v6668 = vsel %vm1676, %v6630, %v6631
      %v6669 = vsel %vm1676, %v6629, %v6630
      %v6670 = vsel %vm1676, %v6628, %v6629
      %v6671 = vsel %vm1676, %v6627, %v6628
      %v6672 = vsel %vm1676, %v6626, %v6627
      %v6673 = vsel %vm1676, %v6625, %v6626
      %v6674 = vsel %vm1676, %v6624, %v6625
      %v6675 = vsel %vm1676, %v6623, %v6624
      %v6676 = vsel %vm1676, %v6622, %v6623
      %v6677 = vsel %vm1676, %v6621, %v6622
      %v6678 = vsel %vm1676, %v6620, %v6621
      %v6679 = vsel %vm1676, %v6619, %v6620
      %v6680 = vsel %vm1676, %v6618, %v6619
      %v6681 = vsel %vm1676, %v6649, %v6618
      %v6682 = vmul.f32 %v6651, %v1744
      %v6683 = vmul.f32 %v6650, %v1749
      %v6684 = vmul.f32 %v6681, %v1754
      %v6685 = vmul.f32 %v6680, %v1759
      %v6686 = vmul.f32 %v6679, %v1764
      %v6687 = vmul.f32 %v6678, %v1769
      %v6688 = vmul.f32 %v6677, %v1774
      %v6689 = vmul.f32 %v6676, %v1779
      %v6690 = vmul.f32 %v6675, %v1784
      %v6691 = vmul.f32 %v6674, %v1789
      %v6692 = vmul.f32 %v6673, %v1794
      %v6693 = vmul.f32 %v6672, %v1799
      %v6694 = vmul.f32 %v6671, %v1804
      %v6695 = vmul.f32 %v6670, %v1809
      %v6696 = vmul.f32 %v6669, %v1814
      %v6697 = vmul.f32 %v6668, %v1819
      %v6698 = vmul.f32 %v6667, %v1824
      %v6699 = vmul.f32 %v6666, %v1829
      %v6700 = vmul.f32 %v6665, %v1834
      %v6701 = vmul.f32 %v6664, %v1839
      %v6702 = vmul.f32 %v6663, %v1844
      %v6703 = vmul.f32 %v6662, %v1849
      %v6704 = vmul.f32 %v6661, %v1854
      %v6705 = vmul.f32 %v6660, %v1859
      %v6706 = vmul.f32 %v6659, %v1864
      %v6707 = vmul.f32 %v6658, %v1869
      %v6708 = vmul.f32 %v6657, %v1874
      %v6709 = vmul.f32 %v6656, %v1879
      %v6710 = vmul.f32 %v6655, %v1884
      %v6711 = vmul.f32 %v6654, %v1889
      %v6712 = vmul.f32 %v6653, %v1894
      %v6713 = vmul.f32 %v6652, %v1899
      %v6714 = vadd.f32 %v6682, 0.0
      %v6715 = vadd.f32 %v6683, 0.0
      %v6716 = vadd.f32 %v6684, 0.0
      %v6717 = vadd.f32 %v6685, 0.0
      %v6718 = vadd.f32 %v6686, 0.0
      %v6719 = vadd.f32 %v6687, 0.0
      %v6720 = vadd.f32 %v6688, 0.0
      %v6721 = vadd.f32 %v6689, 0.0
      %v6722 = vadd.f32 %v6690, 0.0
      %v6723 = vadd.f32 %v6691, 0.0
      %v6724 = vadd.f32 %v6692, 0.0
      %v6725 = vadd.f32 %v6693, 0.0
      %v6726 = vadd.f32 %v6694, 0.0
      %v6727 = vadd.f32 %v6695, 0.0
      %v6728 = vadd.f32 %v6696, 0.0
      %v6729 = vadd.f32 %v6697, 0.0
      %v6730 = vadd.f32 %v6698, 0.0
      %v6731 = vadd.f32 %v6699, 0.0
      %v6732 = vadd.f32 %v6700, 0.0
      %v6733 = vadd.f32 %v6701, 0.0
      %v6734 = vadd.f32 %v6702, 0.0
      %v6735 = vadd.f32 %v6703, 0.0
      %v6736 = vadd.f32 %v6704, 0.0
      %v6737 = vadd.f32 %v6705, 0.0
      %v6738 = vadd.f32 %v6706, 0.0
      %v6739 = vadd.f32 %v6707, 0.0
      %v6740 = vadd.f32 %v6708, 0.0
      %v6741 = vadd.f32 %v6709, 0.0
      %v6742 = vadd.f32 %v6710, 0.0
      %v6743 = vadd.f32 %v6711, 0.0
      %v6744 = vadd.f32 %v6712, 0.0
      %v6745 = vadd.f32 %v6713, 0.0
      %s6746 = scalar_lea.vmem %s6, 2
      %v6747 = vld [vmem:[%s6746] sm:$0x3]
      %v6749 = vsel %vm1185, %v6747, 0
      %6751 = vmatprep.subr.bf16.mxu0 0
      %6752 = vmatpush1.bf16.msra.mxu0 0
      %6753 = vmatprep.subr.bf16.mxu0 0
      %6754 = vmatpush1.bf16.msra.mxu0 0
      %6755 = vmatprep.subr.bf16.mxu0 0
      %6756 = vmatpush1.bf16.msra.mxu0 0
      %6757 = vmatprep.subr.bf16.mxu0 0
      %6758 = vmatpush1.bf16.msra.mxu0 0
      %6759 = vmatprep.subr.bf16.mxu0 0
      %6760 = vmatpush1.bf16.msra.mxu0 0
      %6761 = vmatprep.subr.bf16.mxu0 0
      %6762 = vmatpush1.bf16.msra.mxu0 0
      %6763 = vmatprep.subr.bf16.mxu0 0
      %6764 = vmatpush1.bf16.msra.mxu0 0
      %6765 = vmatprep.subr.bf16.mxu0 0
      %6766 = vmatpush1.bf16.msra.mxu0 %v6749
      %6767 = vmatprep.subr.bf16.mxu0 0
      %6768 = vmatpush2.bf16.msra.mxu0 0
      %6769 = vmatprep.subr.bf16.mxu0 0
      %6770 = vmatpush2.bf16.msra.mxu0 0
      %6771 = vmatprep.subr.bf16.mxu0 0
      %6772 = vmatpush2.bf16.msra.mxu0 0
      %6773 = vmatprep.subr.bf16.mxu0 0
      %6774 = vmatpush2.bf16.msra.mxu0 0
      %6775 = vmatprep.subr.bf16.mxu0 0
      %6776 = vmatpush2.bf16.msra.mxu0 0
      %6777 = vmatprep.subr.bf16.mxu0 0
      %6778 = vmatpush2.bf16.msra.mxu0 0
      %6779 = vmatprep.subr.bf16.mxu0 0
      %6780 = vmatpush2.bf16.msra.mxu0 0
      %6781 = vmatprep.subr.bf16.mxu0 0
      %6782 = vmatpush2.bf16.msra.mxu0 0
      %6783 = vmatprep.mubr.bf16.mxu0 0
      %6784 = vmatmul.mubr.bf16.gmra.mxu0 %v6407
      %v6785 = vpop.f32.mrf.mxu0
      %v6786 = vadd.f32 0.0, %v6785
      %v6787 = vpop.f32.mrf.mxu0
      %v6788 = vpop.f32.mrf.mxu0
      %v6789 = vadd.f32 0.0, %v6788
      %v6790 = vpop.f32.mrf.mxu0
      %6791 = vmatprep.mubr.bf16.mxu0 0
      %6792 = vmatmul.mubr.bf16.gmra.mxu0 %v6410
      %v6793 = vpop.f32.mrf.mxu0
      %v6794 = vadd.f32 0.0, %v6793
      %v6795 = vpop.f32.mrf.mxu0
      %v6796 = vpop.f32.mrf.mxu0
      %v6797 = vadd.f32 0.0, %v6796
      %v6798 = vpop.f32.mrf.mxu0
      %6799 = vmatprep.mubr.bf16.mxu0 0
      %6800 = vmatmul.mubr.bf16.gmra.mxu0 %v6413
      %v6801 = vpop.f32.mrf.mxu0
      %v6802 = vadd.f32 0.0, %v6801
      %v6803 = vpop.f32.mrf.mxu0
      %v6804 = vpop.f32.mrf.mxu0
      %v6805 = vadd.f32 0.0, %v6804
      %v6806 = vpop.f32.mrf.mxu0
      %6807 = vmatprep.mubr.bf16.mxu0 0
      %6808 = vmatmul.mubr.bf16.gmra.mxu0 %v6416
      %v6809 = vpop.f32.mrf.mxu0
      %v6810 = vadd.f32 0.0, %v6809
      %v6811 = vpop.f32.mrf.mxu0
      %v6812 = vpop.f32.mrf.mxu0
      %v6813 = vadd.f32 0.0, %v6812
      %v6814 = vpop.f32.mrf.mxu0
      %6815 = vmatprep.mubr.bf16.mxu0 0
      %6816 = vmatmul.mubr.bf16.gmra.mxu0 %v6419
      %v6817 = vpop.f32.mrf.mxu0
      %v6818 = vadd.f32 0.0, %v6817
      %v6819 = vpop.f32.mrf.mxu0
      %v6820 = vpop.f32.mrf.mxu0
      %v6821 = vadd.f32 0.0, %v6820
      %v6822 = vpop.f32.mrf.mxu0
      %6823 = vmatprep.mubr.bf16.mxu0 0
      %6824 = vmatmul.mubr.bf16.gmra.mxu0 %v6422
      %v6825 = vpop.f32.mrf.mxu0
      %v6826 = vadd.f32 0.0, %v6825
      %v6827 = vpop.f32.mrf.mxu0
      %v6828 = vpop.f32.mrf.mxu0
      %v6829 = vadd.f32 0.0, %v6828
      %v6830 = vpop.f32.mrf.mxu0
      %6831 = vmatprep.mubr.bf16.mxu0 0
      %6832 = vmatmul.mubr.bf16.gmra.mxu0 %v6425
      %v6833 = vpop.f32.mrf.mxu0
      %v6834 = vadd.f32 0.0, %v6833
      %v6835 = vpop.f32.mrf.mxu0
      %v6836 = vpop.f32.mrf.mxu0
      %v6837 = vadd.f32 0.0, %v6836
      %v6838 = vpop.f32.mrf.mxu0
      %6839 = vmatprep.mubr.bf16.mxu0 0
      %6840 = vmatmul.mubr.bf16.gmra.mxu0 %v6428
      %v6841 = vpop.f32.mrf.mxu0
      %v6842 = vadd.f32 0.0, %v6841
      %v6843 = vpop.f32.mrf.mxu0
      %v6844 = vpop.f32.mrf.mxu0
      %v6845 = vadd.f32 0.0, %v6844
      %v6846 = vpop.f32.mrf.mxu0
      %6847 = vmatprep.mubr.bf16.mxu0 0
      %6848 = vmatmul.mubr.bf16.gmra.mxu0 %v6431
      %v6849 = vpop.f32.mrf.mxu0
      %v6850 = vadd.f32 0.0, %v6849
      %v6851 = vpop.f32.mrf.mxu0
      %v6852 = vpop.f32.mrf.mxu0
      %v6853 = vadd.f32 0.0, %v6852
      %v6854 = vpop.f32.mrf.mxu0
      %6855 = vmatprep.mubr.bf16.mxu0 0
      %6856 = vmatmul.mubr.bf16.gmra.mxu0 %v6434
      %v6857 = vpop.f32.mrf.mxu0
      %v6858 = vadd.f32 0.0, %v6857
      %v6859 = vpop.f32.mrf.mxu0
      %v6860 = vpop.f32.mrf.mxu0
      %v6861 = vadd.f32 0.0, %v6860
      %v6862 = vpop.f32.mrf.mxu0
      %6863 = vmatprep.mubr.bf16.mxu0 0
      %6864 = vmatmul.mubr.bf16.gmra.mxu0 %v6437
      %v6865 = vpop.f32.mrf.mxu0
      %v6866 = vadd.f32 0.0, %v6865
      %v6867 = vpop.f32.mrf.mxu0
      %v6868 = vpop.f32.mrf.mxu0
      %v6869 = vadd.f32 0.0, %v6868
      %v6870 = vpop.f32.mrf.mxu0
      %6871 = vmatprep.mubr.bf16.mxu0 0
      %6872 = vmatmul.mubr.bf16.gmra.mxu0 %v6440
      %v6873 = vpop.f32.mrf.mxu0
      %v6874 = vadd.f32 0.0, %v6873
      %v6875 = vpop.f32.mrf.mxu0
      %v6876 = vpop.f32.mrf.mxu0
      %v6877 = vadd.f32 0.0, %v6876
      %v6878 = vpop.f32.mrf.mxu0
      %6879 = vmatprep.mubr.bf16.mxu0 0
      %6880 = vmatmul.mubr.bf16.gmra.mxu0 %v6443
      %v6881 = vpop.f32.mrf.mxu0
      %v6882 = vadd.f32 0.0, %v6881
      %v6883 = vpop.f32.mrf.mxu0
      %v6884 = vpop.f32.mrf.mxu0
      %v6885 = vadd.f32 0.0, %v6884
      %v6886 = vpop.f32.mrf.mxu0
      %6887 = vmatprep.mubr.bf16.mxu0 0
      %6888 = vmatmul.mubr.bf16.gmra.mxu0 %v6446
      %v6889 = vpop.f32.mrf.mxu0
      %v6890 = vadd.f32 0.0, %v6889
      %v6891 = vpop.f32.mrf.mxu0
      %v6892 = vpop.f32.mrf.mxu0
      %v6893 = vadd.f32 0.0, %v6892
      %v6894 = vpop.f32.mrf.mxu0
      %6895 = vmatprep.mubr.bf16.mxu0 0
      %6896 = vmatmul.mubr.bf16.gmra.mxu0 %v6449
      %v6897 = vpop.f32.mrf.mxu0
      %v6898 = vadd.f32 0.0, %v6897
      %v6899 = vpop.f32.mrf.mxu0
      %v6900 = vpop.f32.mrf.mxu0
      %v6901 = vadd.f32 0.0, %v6900
      %v6902 = vpop.f32.mrf.mxu0
      %6903 = vmatprep.mubr.bf16.mxu0 0
      %6904 = vmatmul.mubr.bf16.gmra.mxu0 %v6452
      %v6905 = vpop.f32.mrf.mxu0
      %v6906 = vadd.f32 0.0, %v6905
      %v6907 = vpop.f32.mrf.mxu0
      %v6908 = vpop.f32.mrf.mxu0
      %v6909 = vadd.f32 0.0, %v6908
      %v6910 = vpop.f32.mrf.mxu0
      %6911 = vdwg.mxu0
      %v6912 = vmul.f32 %v6906, %v2299
      %v6913 = vmul.f32 %v6909, %v2303
      %v6914 = vmul.f32 %v6786, %v2307
      %v6915 = vmul.f32 %v6789, %v2311
      %v6916 = vmul.f32 %v6794, %v2315
      %v6917 = vmul.f32 %v6797, %v2319
      %v6918 = vmul.f32 %v6802, %v2323
      %v6919 = vmul.f32 %v6805, %v2327
      %v6920 = vmul.f32 %v6810, %v2331
      %v6921 = vmul.f32 %v6813, %v2335
      %v6922 = vmul.f32 %v6818, %v2339
      %v6923 = vmul.f32 %v6821, %v2343
      %v6924 = vmul.f32 %v6826, %v2347
      %v6925 = vmul.f32 %v6829, %v2351
      %v6926 = vmul.f32 %v6834, %v2355
      %v6927 = vmul.f32 %v6837, %v2359
      %v6928 = vmul.f32 %v6842, %v2363
      %v6929 = vmul.f32 %v6845, %v2367
      %v6930 = vmul.f32 %v6850, %v2371
      %v6931 = vmul.f32 %v6853, %v2375
      %v6932 = vmul.f32 %v6858, %v2379
      %v6933 = vmul.f32 %v6861, %v2383
      %v6934 = vmul.f32 %v6866, %v2387
      %v6935 = vmul.f32 %v6869, %v2391
      %v6936 = vmul.f32 %v6874, %v2395
      %v6937 = vmul.f32 %v6877, %v2399
      %v6938 = vmul.f32 %v6882, %v2403
      %v6939 = vmul.f32 %v6885, %v2407
      %v6940 = vmul.f32 %v6890, %v2411
      %v6941 = vmul.f32 %v6893, %v2415
      %v6942 = vmul.f32 %v6898, %v2419
      %v6943 = vmul.f32 %v6901, %v2423
      %v6944 = vadd.f32 %v6714, %v6912
      %v6945 = vadd.f32 %v6715, %v6913
      %v6946 = vadd.f32 %v6716, %v6914
      %v6947 = vadd.f32 %v6717, %v6915
      %v6948 = vadd.f32 %v6718, %v6916
      %v6949 = vadd.f32 %v6719, %v6917
      %v6950 = vadd.f32 %v6720, %v6918
      %v6951 = vadd.f32 %v6721, %v6919
      %v6952 = vadd.f32 %v6722, %v6920
      %v6953 = vadd.f32 %v6723, %v6921
      %v6954 = vadd.f32 %v6724, %v6922
      %v6955 = vadd.f32 %v6725, %v6923
      %v6956 = vadd.f32 %v6726, %v6924
      %v6957 = vadd.f32 %v6727, %v6925
      %v6958 = vadd.f32 %v6728, %v6926
      %v6959 = vadd.f32 %v6729, %v6927
      %v6960 = vadd.f32 %v6730, %v6928
      %v6961 = vadd.f32 %v6731, %v6929
      %v6962 = vadd.f32 %v6732, %v6930
      %v6963 = vadd.f32 %v6733, %v6931
      %v6964 = vadd.f32 %v6734, %v6932
      %v6965 = vadd.f32 %v6735, %v6933
      %v6966 = vadd.f32 %v6736, %v6934
      %v6967 = vadd.f32 %v6737, %v6935
      %v6968 = vadd.f32 %v6738, %v6936
      %v6969 = vadd.f32 %v6739, %v6937
      %v6970 = vadd.f32 %v6740, %v6938
      %v6971 = vadd.f32 %v6741, %v6939
      %v6972 = vadd.f32 %v6742, %v6940
      %v6973 = vadd.f32 %v6743, %v6941
      %v6974 = vadd.f32 %v6744, %v6942
      %v6975 = vadd.f32 %v6745, %v6943
      %s6976 = scalar_lea.vmem %s6, 4
      %v6977 = vld [vmem:[%s6976] sm:$0x3]
      %v6979 = vsel %vm1185, %v6977, 0
      %6981 = vmatprep.subr.bf16.mxu0 0
      %6982 = vmatpush1.bf16.msra.mxu0 0
      %6983 = vmatprep.subr.bf16.mxu0 0
      %6984 = vmatpush1.bf16.msra.mxu0 0
      %6985 = vmatprep.subr.bf16.mxu0 0
      %6986 = vmatpush1.bf16.msra.mxu0 0
      %6987 = vmatprep.subr.bf16.mxu0 0
      %6988 = vmatpush1.bf16.msra.mxu0 0
      %6989 = vmatprep.subr.bf16.mxu0 0
      %6990 = vmatpush1.bf16.msra.mxu0 0
      %6991 = vmatprep.subr.bf16.mxu0 0
      %6992 = vmatpush1.bf16.msra.mxu0 0
      %6993 = vmatprep.subr.bf16.mxu0 0
      %6994 = vmatpush1.bf16.msra.mxu0 0
      %6995 = vmatprep.subr.bf16.mxu0 0
      %6996 = vmatpush1.bf16.msra.mxu0 %v6979
      %6997 = vmatprep.subr.bf16.mxu0 0
      %6998 = vmatpush2.bf16.msra.mxu0 0
      %6999 = vmatprep.subr.bf16.mxu0 0
      %7000 = vmatpush2.bf16.msra.mxu0 0
      %7001 = vmatprep.subr.bf16.mxu0 0
      %7002 = vmatpush2.bf16.msra.mxu0 0
      %7003 = vmatprep.subr.bf16.mxu0 0
      %7004 = vmatpush2.bf16.msra.mxu0 0
      %7005 = vmatprep.subr.bf16.mxu0 0
      %7006 = vmatpush2.bf16.msra.mxu0 0
      %7007 = vmatprep.subr.bf16.mxu0 0
      %7008 = vmatpush2.bf16.msra.mxu0 0
      %7009 = vmatprep.subr.bf16.mxu0 0
      %7010 = vmatpush2.bf16.msra.mxu0 0
      %7011 = vmatprep.subr.bf16.mxu0 0
      %7012 = vmatpush2.bf16.msra.mxu0 0
      %7013 = vmatprep.mubr.bf16.mxu0 0
      %7014 = vmatmul.mubr.bf16.gmra.mxu0 %v6407
      %v7015 = vpop.f32.mrf.mxu0
      %v7016 = vadd.f32 0.0, %v7015
      %v7017 = vpop.f32.mrf.mxu0
      %v7018 = vpop.f32.mrf.mxu0
      %v7019 = vadd.f32 0.0, %v7018
      %v7020 = vpop.f32.mrf.mxu0
      %7021 = vmatprep.mubr.bf16.mxu0 0
      %7022 = vmatmul.mubr.bf16.gmra.mxu0 %v6410
      %v7023 = vpop.f32.mrf.mxu0
      %v7024 = vadd.f32 0.0, %v7023
      %v7025 = vpop.f32.mrf.mxu0
      %v7026 = vpop.f32.mrf.mxu0
      %v7027 = vadd.f32 0.0, %v7026
      %v7028 = vpop.f32.mrf.mxu0
      %7029 = vmatprep.mubr.bf16.mxu0 0
      %7030 = vmatmul.mubr.bf16.gmra.mxu0 %v6413
      %v7031 = vpop.f32.mrf.mxu0
      %v7032 = vadd.f32 0.0, %v7031
      %v7033 = vpop.f32.mrf.mxu0
      %v7034 = vpop.f32.mrf.mxu0
      %v7035 = vadd.f32 0.0, %v7034
      %v7036 = vpop.f32.mrf.mxu0
      %7037 = vmatprep.mubr.bf16.mxu0 0
      %7038 = vmatmul.mubr.bf16.gmra.mxu0 %v6416
      %v7039 = vpop.f32.mrf.mxu0
      %v7040 = vadd.f32 0.0, %v7039
      %v7041 = vpop.f32.mrf.mxu0
      %v7042 = vpop.f32.mrf.mxu0
      %v7043 = vadd.f32 0.0, %v7042
      %v7044 = vpop.f32.mrf.mxu0
      %7045 = vmatprep.mubr.bf16.mxu0 0
      %7046 = vmatmul.mubr.bf16.gmra.mxu0 %v6419
      %v7047 = vpop.f32.mrf.mxu0
      %v7048 = vadd.f32 0.0, %v7047
      %v7049 = vpop.f32.mrf.mxu0
      %v7050 = vpop.f32.mrf.mxu0
      %v7051 = vadd.f32 0.0, %v7050
      %v7052 = vpop.f32.mrf.mxu0
      %7053 = vmatprep.mubr.bf16.mxu0 0
      %7054 = vmatmul.mubr.bf16.gmra.mxu0 %v6422
      %v7055 = vpop.f32.mrf.mxu0
      %v7056 = vadd.f32 0.0, %v7055
      %v7057 = vpop.f32.mrf.mxu0
      %v7058 = vpop.f32.mrf.mxu0
      %v7059 = vadd.f32 0.0, %v7058
      %v7060 = vpop.f32.mrf.mxu0
      %7061 = vmatprep.mubr.bf16.mxu0 0
      %7062 = vmatmul.mubr.bf16.gmra.mxu0 %v6425
      %v7063 = vpop.f32.mrf.mxu0
      %v7064 = vadd.f32 0.0, %v7063
      %v7065 = vpop.f32.mrf.mxu0
      %v7066 = vpop.f32.mrf.mxu0
      %v7067 = vadd.f32 0.0, %v7066
      %v7068 = vpop.f32.mrf.mxu0
      %7069 = vmatprep.mubr.bf16.mxu0 0
      %7070 = vmatmul.mubr.bf16.gmra.mxu0 %v6428
      %v7071 = vpop.f32.mrf.mxu0
      %v7072 = vadd.f32 0.0, %v7071
      %v7073 = vpop.f32.mrf.mxu0
      %v7074 = vpop.f32.mrf.mxu0
      %v7075 = vadd.f32 0.0, %v7074
      %v7076 = vpop.f32.mrf.mxu0
      %7077 = vmatprep.mubr.bf16.mxu0 0
      %7078 = vmatmul.mubr.bf16.gmra.mxu0 %v6431
      %v7079 = vpop.f32.mrf.mxu0
      %v7080 = vadd.f32 0.0, %v7079
      %v7081 = vpop.f32.mrf.mxu0
      %v7082 = vpop.f32.mrf.mxu0
      %v7083 = vadd.f32 0.0, %v7082
      %v7084 = vpop.f32.mrf.mxu0
      %7085 = vmatprep.mubr.bf16.mxu0 0
      %7086 = vmatmul.mubr.bf16.gmra.mxu0 %v6434
      %v7087 = vpop.f32.mrf.mxu0
      %v7088 = vadd.f32 0.0, %v7087
      %v7089 = vpop.f32.mrf.mxu0
      %v7090 = vpop.f32.mrf.mxu0
      %v7091 = vadd.f32 0.0, %v7090
      %v7092 = vpop.f32.mrf.mxu0
      %7093 = vmatprep.mubr.bf16.mxu0 0
      %7094 = vmatmul.mubr.bf16.gmra.mxu0 %v6437
      %v7095 = vpop.f32.mrf.mxu0
      %v7096 = vadd.f32 0.0, %v7095
      %v7097 = vpop.f32.mrf.mxu0
      %v7098 = vpop.f32.mrf.mxu0
      %v7099 = vadd.f32 0.0, %v7098
      %v7100 = vpop.f32.mrf.mxu0
      %7101 = vmatprep.mubr.bf16.mxu0 0
      %7102 = vmatmul.mubr.bf16.gmra.mxu0 %v6440
      %v7103 = vpop.f32.mrf.mxu0
      %v7104 = vadd.f32 0.0, %v7103
      %v7105 = vpop.f32.mrf.mxu0
      %v7106 = vpop.f32.mrf.mxu0
      %v7107 = vadd.f32 0.0, %v7106
      %v7108 = vpop.f32.mrf.mxu0
      %7109 = vmatprep.mubr.bf16.mxu0 0
      %7110 = vmatmul.mubr.bf16.gmra.mxu0 %v6443
      %v7111 = vpop.f32.mrf.mxu0
      %v7112 = vadd.f32 0.0, %v7111
      %v7113 = vpop.f32.mrf.mxu0
      %v7114 = vpop.f32.mrf.mxu0
      %v7115 = vadd.f32 0.0, %v7114
      %v7116 = vpop.f32.mrf.mxu0
      %7117 = vmatprep.mubr.bf16.mxu0 0
      %7118 = vmatmul.mubr.bf16.gmra.mxu0 %v6446
      %v7119 = vpop.f32.mrf.mxu0
      %v7120 = vadd.f32 0.0, %v7119
      %v7121 = vpop.f32.mrf.mxu0
      %v7122 = vpop.f32.mrf.mxu0
      %v7123 = vadd.f32 0.0, %v7122
      %v7124 = vpop.f32.mrf.mxu0
      %7125 = vmatprep.mubr.bf16.mxu0 0
      %7126 = vmatmul.mubr.bf16.gmra.mxu0 %v6449
      %v7127 = vpop.f32.mrf.mxu0
      %v7128 = vadd.f32 0.0, %v7127
      %v7129 = vpop.f32.mrf.mxu0
      %v7130 = vpop.f32.mrf.mxu0
      %v7131 = vadd.f32 0.0, %v7130
      %v7132 = vpop.f32.mrf.mxu0
      %7133 = vmatprep.mubr.bf16.mxu0 0
      %7134 = vmatmul.mubr.bf16.gmra.mxu0 %v6452
      %v7135 = vpop.f32.mrf.mxu0
      %v7136 = vadd.f32 0.0, %v7135
      %v7137 = vpop.f32.mrf.mxu0
      %v7138 = vpop.f32.mrf.mxu0
      %v7139 = vadd.f32 0.0, %v7138
      %v7140 = vpop.f32.mrf.mxu0
      %7141 = vdwg.mxu0
      %v7142 = vrot.slane %v7016, 1
      %v7143 = vrot.slane %v7019, 1
      %v7144 = vrot.slane %v7024, 1
      %v7145 = vrot.slane %v7027, 1
      %v7146 = vrot.slane %v7032, 1
      %v7147 = vrot.slane %v7035, 1
      %v7148 = vrot.slane %v7040, 1
      %v7149 = vrot.slane %v7043, 1
      %v7150 = vrot.slane %v7048, 1
      %v7151 = vrot.slane %v7051, 1
      %v7152 = vrot.slane %v7056, 1
      %v7153 = vrot.slane %v7059, 1
      %v7154 = vrot.slane %v7064, 1
      %v7155 = vrot.slane %v7067, 1
      %v7156 = vrot.slane %v7072, 1
      %v7157 = vrot.slane %v7075, 1
      %v7158 = vrot.slane %v7080, 1
      %v7159 = vrot.slane %v7083, 1
      %v7160 = vrot.slane %v7088, 1
      %v7161 = vrot.slane %v7091, 1
      %v7162 = vrot.slane %v7096, 1
      %v7163 = vrot.slane %v7099, 1
      %v7164 = vrot.slane %v7104, 1
      %v7165 = vrot.slane %v7107, 1
      %v7166 = vrot.slane %v7112, 1
      %v7167 = vrot.slane %v7115, 1
      %v7168 = vrot.slane %v7120, 1
      %v7169 = vrot.slane %v7123, 1
      %v7170 = vrot.slane %v7128, 1
      %v7171 = vrot.slane %v7131, 1
      %v7172 = vrot.slane %v7136, 1
      %v7173 = vrot.slane %v7139, 1
      %v7174 = vsel %vm2853, %v7172, %v7173
      %v7175 = vsel %vm2853, %v7171, %v7172
      %v7176 = vsel %vm2853, %v7170, %v7171
      %v7177 = vsel %vm2853, %v7169, %v7170
      %v7178 = vsel %vm2853, %v7168, %v7169
      %v7179 = vsel %vm2853, %v7167, %v7168
      %v7180 = vsel %vm2853, %v7166, %v7167
      %v7181 = vsel %vm2853, %v7165, %v7166
      %v7182 = vsel %vm2853, %v7164, %v7165
      %v7183 = vsel %vm2853, %v7163, %v7164
      %v7184 = vsel %vm2853, %v7162, %v7163
      %v7185 = vsel %vm2853, %v7161, %v7162
      %v7186 = vsel %vm2853, %v7160, %v7161
      %v7187 = vsel %vm2853, %v7159, %v7160
      %v7188 = vsel %vm2853, %v7158, %v7159
      %v7189 = vsel %vm2853, %v7157, %v7158
      %v7190 = vsel %vm2853, %v7156, %v7157
      %v7191 = vsel %vm2853, %v7155, %v7156
      %v7192 = vsel %vm2853, %v7154, %v7155
      %v7193 = vsel %vm2853, %v7153, %v7154
      %v7194 = vsel %vm2853, %v7152, %v7153
      %v7195 = vsel %vm2853, %v7151, %v7152
      %v7196 = vsel %vm2853, %v7150, %v7151
      %v7197 = vsel %vm2853, %v7149, %v7150
      %v7198 = vsel %vm2853, %v7148, %v7149
      %v7199 = vsel %vm2853, %v7147, %v7148
      %v7200 = vsel %vm2853, %v7146, %v7147
      %v7201 = vsel %vm2853, %v7145, %v7146
      %v7202 = vsel %vm2853, %v7144, %v7145
      %v7203 = vsel %vm2853, %v7143, %v7144
      %v7204 = vsel %vm2853, %v7142, %v7143
      %v7205 = vsel %vm2853, %v7173, %v7142
      %v7206 = vmul.f32 %v7174, %v2888
      %v7207 = vmul.f32 %v7205, %v2892
      %v7208 = vmul.f32 %v7204, %v2896
      %v7209 = vmul.f32 %v7203, %v2900
      %v7210 = vmul.f32 %v7202, %v2904
      %v7211 = vmul.f32 %v7201, %v2908
      %v7212 = vmul.f32 %v7200, %v2912
      %v7213 = vmul.f32 %v7199, %v2916
      %v7214 = vmul.f32 %v7198, %v2920
      %v7215 = vmul.f32 %v7197, %v2924
      %v7216 = vmul.f32 %v7196, %v2928
      %v7217 = vmul.f32 %v7195, %v2932
      %v7218 = vmul.f32 %v7194, %v2936
      %v7219 = vmul.f32 %v7193, %v2940
      %v7220 = vmul.f32 %v7192, %v2944
      %v7221 = vmul.f32 %v7191, %v2948
      %v7222 = vmul.f32 %v7190, %v2952
      %v7223 = vmul.f32 %v7189, %v2956
      %v7224 = vmul.f32 %v7188, %v2960
      %v7225 = vmul.f32 %v7187, %v2964
      %v7226 = vmul.f32 %v7186, %v2968
      %v7227 = vmul.f32 %v7185, %v2972
      %v7228 = vmul.f32 %v7184, %v2976
      %v7229 = vmul.f32 %v7183, %v2980
      %v7230 = vmul.f32 %v7182, %v2984
      %v7231 = vmul.f32 %v7181, %v2988
      %v7232 = vmul.f32 %v7180, %v2992
      %v7233 = vmul.f32 %v7179, %v2996
      %v7234 = vmul.f32 %v7178, %v3000
      %v7235 = vmul.f32 %v7177, %v3004
      %v7236 = vmul.f32 %v7176, %v3008
      %v7237 = vmul.f32 %v7175, %v3012
      %v7238 = vadd.f32 %v6944, %v7206
      %v7239 = vadd.f32 %v6945, %v7207
      %v7240 = vadd.f32 %v6946, %v7208
      %v7241 = vadd.f32 %v6947, %v7209
      %v7242 = vadd.f32 %v6948, %v7210
      %v7243 = vadd.f32 %v6949, %v7211
      %v7244 = vadd.f32 %v6950, %v7212
      %v7245 = vadd.f32 %v6951, %v7213
      %v7246 = vadd.f32 %v6952, %v7214
      %v7247 = vadd.f32 %v6953, %v7215
      %v7248 = vadd.f32 %v6954, %v7216
      %v7249 = vadd.f32 %v6955, %v7217
      %v7250 = vadd.f32 %v6956, %v7218
      %v7251 = vadd.f32 %v6957, %v7219
      %v7252 = vadd.f32 %v6958, %v7220
      %v7253 = vadd.f32 %v6959, %v7221
      %v7254 = vadd.f32 %v6960, %v7222
      %v7255 = vadd.f32 %v6961, %v7223
      %v7256 = vadd.f32 %v6962, %v7224
      %v7257 = vadd.f32 %v6963, %v7225
      %v7258 = vadd.f32 %v6964, %v7226
      %v7259 = vadd.f32 %v6965, %v7227
      %v7260 = vadd.f32 %v6966, %v7228
      %v7261 = vadd.f32 %v6967, %v7229
      %v7262 = vadd.f32 %v6968, %v7230
      %v7263 = vadd.f32 %v6969, %v7231
      %v7264 = vadd.f32 %v6970, %v7232
      %v7265 = vadd.f32 %v6971, %v7233
      %v7266 = vadd.f32 %v6972, %v7234
      %v7267 = vadd.f32 %v6973, %v7235
      %v7268 = vadd.f32 %v6974, %v7236
      %v7269 = vadd.f32 %v6975, %v7237
      %s7270 = scalar_lea.vmem %s6, 6
      %v7271 = vld [vmem:[%s7270] sm:$0x3]
      %v7273 = vsel %vm1185, %v7271, 0
      %7275 = vmatprep.subr.bf16.mxu0 0
      %7276 = vmatpush1.bf16.msra.mxu0 0
      %7277 = vmatprep.subr.bf16.mxu0 0
      %7278 = vmatpush1.bf16.msra.mxu0 0
      %7279 = vmatprep.subr.bf16.mxu0 0
      %7280 = vmatpush1.bf16.msra.mxu0 0
      %7281 = vmatprep.subr.bf16.mxu0 0
      %7282 = vmatpush1.bf16.msra.mxu0 0
      %7283 = vmatprep.subr.bf16.mxu0 0
      %7284 = vmatpush1.bf16.msra.mxu0 0
      %7285 = vmatprep.subr.bf16.mxu0 0
      %7286 = vmatpush1.bf16.msra.mxu0 0
      %7287 = vmatprep.subr.bf16.mxu0 0
      %7288 = vmatpush1.bf16.msra.mxu0 0
      %7289 = vmatprep.subr.bf16.mxu0 0
      %7290 = vmatpush1.bf16.msra.mxu0 %v7273
      %7291 = vmatprep.subr.bf16.mxu0 0
      %7292 = vmatpush2.bf16.msra.mxu0 0
      %7293 = vmatprep.subr.bf16.mxu0 0
      %7294 = vmatpush2.bf16.msra.mxu0 0
      %7295 = vmatprep.subr.bf16.mxu0 0
      %7296 = vmatpush2.bf16.msra.mxu0 0
      %7297 = vmatprep.subr.bf16.mxu0 0
      %7298 = vmatpush2.bf16.msra.mxu0 0
      %7299 = vmatprep.subr.bf16.mxu0 0
      %7300 = vmatpush2.bf16.msra.mxu0 0
      %7301 = vmatprep.subr.bf16.mxu0 0
      %7302 = vmatpush2.bf16.msra.mxu0 0
      %7303 = vmatprep.subr.bf16.mxu0 0
      %7304 = vmatpush2.bf16.msra.mxu0 0
      %7305 = vmatprep.subr.bf16.mxu0 0
      %7306 = vmatpush2.bf16.msra.mxu0 0
      %7307 = vmatprep.mubr.bf16.mxu0 0
      %7308 = vmatmul.mubr.bf16.gmra.mxu0 %v6407
      %v7309 = vpop.f32.mrf.mxu0
      %v7310 = vadd.f32 0.0, %v7309
      %v7311 = vpop.f32.mrf.mxu0
      %v7312 = vpop.f32.mrf.mxu0
      %v7313 = vadd.f32 0.0, %v7312
      %v7314 = vpop.f32.mrf.mxu0
      %7315 = vmatprep.mubr.bf16.mxu0 0
      %7316 = vmatmul.mubr.bf16.gmra.mxu0 %v6410
      %v7317 = vpop.f32.mrf.mxu0
      %v7318 = vadd.f32 0.0, %v7317
      %v7319 = vpop.f32.mrf.mxu0
      %v7320 = vpop.f32.mrf.mxu0
      %v7321 = vadd.f32 0.0, %v7320
      %v7322 = vpop.f32.mrf.mxu0
      %7323 = vmatprep.mubr.bf16.mxu0 0
      %7324 = vmatmul.mubr.bf16.gmra.mxu0 %v6413
      %v7325 = vpop.f32.mrf.mxu0
      %v7326 = vadd.f32 0.0, %v7325
      %v7327 = vpop.f32.mrf.mxu0
      %v7328 = vpop.f32.mrf.mxu0
      %v7329 = vadd.f32 0.0, %v7328
      %v7330 = vpop.f32.mrf.mxu0
      %7331 = vmatprep.mubr.bf16.mxu0 0
      %7332 = vmatmul.mubr.bf16.gmra.mxu0 %v6416
      %v7333 = vpop.f32.mrf.mxu0
      %v7334 = vadd.f32 0.0, %v7333
      %v7335 = vpop.f32.mrf.mxu0
      %v7336 = vpop.f32.mrf.mxu0
      %v7337 = vadd.f32 0.0, %v7336
      %v7338 = vpop.f32.mrf.mxu0
      %7339 = vmatprep.mubr.bf16.mxu0 0
      %7340 = vmatmul.mubr.bf16.gmra.mxu0 %v6419
      %v7341 = vpop.f32.mrf.mxu0
      %v7342 = vadd.f32 0.0, %v7341
      %v7343 = vpop.f32.mrf.mxu0
      %v7344 = vpop.f32.mrf.mxu0
      %v7345 = vadd.f32 0.0, %v7344
      %v7346 = vpop.f32.mrf.mxu0
      %7347 = vmatprep.mubr.bf16.mxu0 0
      %7348 = vmatmul.mubr.bf16.gmra.mxu0 %v6422
      %v7349 = vpop.f32.mrf.mxu0
      %v7350 = vadd.f32 0.0, %v7349
      %v7351 = vpop.f32.mrf.mxu0
      %v7352 = vpop.f32.mrf.mxu0
      %v7353 = vadd.f32 0.0, %v7352
      %v7354 = vpop.f32.mrf.mxu0
      %7355 = vmatprep.mubr.bf16.mxu0 0
      %7356 = vmatmul.mubr.bf16.gmra.mxu0 %v6425
      %v7357 = vpop.f32.mrf.mxu0
      %v7358 = vadd.f32 0.0, %v7357
      %v7359 = vpop.f32.mrf.mxu0
      %v7360 = vpop.f32.mrf.mxu0
      %v7361 = vadd.f32 0.0, %v7360
      %v7362 = vpop.f32.mrf.mxu0
      %7363 = vmatprep.mubr.bf16.mxu0 0
      %7364 = vmatmul.mubr.bf16.gmra.mxu0 %v6428
      %v7365 = vpop.f32.mrf.mxu0
      %v7366 = vadd.f32 0.0, %v7365
      %v7367 = vpop.f32.mrf.mxu0
      %v7368 = vpop.f32.mrf.mxu0
      %v7369 = vadd.f32 0.0, %v7368
      %v7370 = vpop.f32.mrf.mxu0
      %7371 = vmatprep.mubr.bf16.mxu0 0
      %7372 = vmatmul.mubr.bf16.gmra.mxu0 %v6431
      %v7373 = vpop.f32.mrf.mxu0
      %v7374 = vadd.f32 0.0, %v7373
      %v7375 = vpop.f32.mrf.mxu0
      %v7376 = vpop.f32.mrf.mxu0
      %v7377 = vadd.f32 0.0, %v7376
      %v7378 = vpop.f32.mrf.mxu0
      %7379 = vmatprep.mubr.bf16.mxu0 0
      %7380 = vmatmul.mubr.bf16.gmra.mxu0 %v6434
      %v7381 = vpop.f32.mrf.mxu0
      %v7382 = vadd.f32 0.0, %v7381
      %v7383 = vpop.f32.mrf.mxu0
      %v7384 = vpop.f32.mrf.mxu0
      %v7385 = vadd.f32 0.0, %v7384
      %v7386 = vpop.f32.mrf.mxu0
      %7387 = vmatprep.mubr.bf16.mxu0 0
      %7388 = vmatmul.mubr.bf16.gmra.mxu0 %v6437
      %v7389 = vpop.f32.mrf.mxu0
      %v7390 = vadd.f32 0.0, %v7389
      %v7391 = vpop.f32.mrf.mxu0
      %v7392 = vpop.f32.mrf.mxu0
      %v7393 = vadd.f32 0.0, %v7392
      %v7394 = vpop.f32.mrf.mxu0
      %7395 = vmatprep.mubr.bf16.mxu0 0
      %7396 = vmatmul.mubr.bf16.gmra.mxu0 %v6440
      %v7397 = vpop.f32.mrf.mxu0
      %v7398 = vadd.f32 0.0, %v7397
      %v7399 = vpop.f32.mrf.mxu0
      %v7400 = vpop.f32.mrf.mxu0
      %v7401 = vadd.f32 0.0, %v7400
      %v7402 = vpop.f32.mrf.mxu0
      %7403 = vmatprep.mubr.bf16.mxu0 0
      %7404 = vmatmul.mubr.bf16.gmra.mxu0 %v6443
      %v7405 = vpop.f32.mrf.mxu0
      %v7406 = vadd.f32 0.0, %v7405
      %v7407 = vpop.f32.mrf.mxu0
      %v7408 = vpop.f32.mrf.mxu0
      %v7409 = vadd.f32 0.0, %v7408
      %v7410 = vpop.f32.mrf.mxu0
      %7411 = vmatprep.mubr.bf16.mxu0 0
      %7412 = vmatmul.mubr.bf16.gmra.mxu0 %v6446
      %v7413 = vpop.f32.mrf.mxu0
      %v7414 = vadd.f32 0.0, %v7413
      %v7415 = vpop.f32.mrf.mxu0
      %v7416 = vpop.f32.mrf.mxu0
      %v7417 = vadd.f32 0.0, %v7416
      %v7418 = vpop.f32.mrf.mxu0
      %7419 = vmatprep.mubr.bf16.mxu0 0
      %7420 = vmatmul.mubr.bf16.gmra.mxu0 %v6449
      %v7421 = vpop.f32.mrf.mxu0
      %v7422 = vadd.f32 0.0, %v7421
      %v7423 = vpop.f32.mrf.mxu0
      %v7424 = vpop.f32.mrf.mxu0
      %v7425 = vadd.f32 0.0, %v7424
      %v7426 = vpop.f32.mrf.mxu0
      %7427 = vmatprep.mubr.bf16.mxu0 0
      %7428 = vmatmul.mubr.bf16.gmra.mxu0 %v6452
      %v7429 = vpop.f32.mrf.mxu0
      %v7430 = vadd.f32 0.0, %v7429
      %v7431 = vpop.f32.mrf.mxu0
      %v7432 = vpop.f32.mrf.mxu0
      %v7433 = vadd.f32 0.0, %v7432
      %v7434 = vpop.f32.mrf.mxu0
      %7435 = vdwg.mxu0
      %v7436 = vrot.slane %v7310, 7
      %v7437 = vrot.slane %v7313, 7
      %v7438 = vrot.slane %v7318, 7
      %v7439 = vrot.slane %v7321, 7
      %v7440 = vrot.slane %v7326, 7
      %v7441 = vrot.slane %v7329, 7
      %v7442 = vrot.slane %v7334, 7
      %v7443 = vrot.slane %v7337, 7
      %v7444 = vrot.slane %v7342, 7
      %v7445 = vrot.slane %v7345, 7
      %v7446 = vrot.slane %v7350, 7
      %v7447 = vrot.slane %v7353, 7
      %v7448 = vrot.slane %v7358, 7
      %v7449 = vrot.slane %v7361, 7
      %v7450 = vrot.slane %v7366, 7
      %v7451 = vrot.slane %v7369, 7
      %v7452 = vrot.slane %v7374, 7
      %v7453 = vrot.slane %v7377, 7
      %v7454 = vrot.slane %v7382, 7
      %v7455 = vrot.slane %v7385, 7
      %v7456 = vrot.slane %v7390, 7
      %v7457 = vrot.slane %v7393, 7
      %v7458 = vrot.slane %v7398, 7
      %v7459 = vrot.slane %v7401, 7
      %v7460 = vrot.slane %v7406, 7
      %v7461 = vrot.slane %v7409, 7
      %v7462 = vrot.slane %v7414, 7
      %v7463 = vrot.slane %v7417, 7
      %v7464 = vrot.slane %v7422, 7
      %v7465 = vrot.slane %v7425, 7
      %v7466 = vrot.slane %v7430, 7
      %v7467 = vrot.slane %v7433, 7
      %v7468 = vsel %vm1676, %v7466, %v7467
      %v7469 = vsel %vm1676, %v7465, %v7466
      %v7470 = vsel %vm1676, %v7464, %v7465
      %v7471 = vsel %vm1676, %v7463, %v7464
      %v7472 = vsel %vm1676, %v7462, %v7463
      %v7473 = vsel %vm1676, %v7461, %v7462
      %v7474 = vsel %vm1676, %v7460, %v7461
      %v7475 = vsel %vm1676, %v7459, %v7460
      %v7476 = vsel %vm1676, %v7458, %v7459
      %v7477 = vsel %vm1676, %v7457, %v7458
      %v7478 = vsel %vm1676, %v7456, %v7457
      %v7479 = vsel %vm1676, %v7455, %v7456
      %v7480 = vsel %vm1676, %v7454, %v7455
      %v7481 = vsel %vm1676, %v7453, %v7454
      %v7482 = vsel %vm1676, %v7452, %v7453
      %v7483 = vsel %vm1676, %v7451, %v7452
      %v7484 = vsel %vm1676, %v7450, %v7451
      %v7485 = vsel %vm1676, %v7449, %v7450
      %v7486 = vsel %vm1676, %v7448, %v7449
      %v7487 = vsel %vm1676, %v7447, %v7448
      %v7488 = vsel %vm1676, %v7446, %v7447
      %v7489 = vsel %vm1676, %v7445, %v7446
      %v7490 = vsel %vm1676, %v7444, %v7445
      %v7491 = vsel %vm1676, %v7443, %v7444
      %v7492 = vsel %vm1676, %v7442, %v7443
      %v7493 = vsel %vm1676, %v7441, %v7442
      %v7494 = vsel %vm1676, %v7440, %v7441
      %v7495 = vsel %vm1676, %v7439, %v7440
      %v7496 = vsel %vm1676, %v7438, %v7439
      %v7497 = vsel %vm1676, %v7437, %v7438
      %v7498 = vsel %vm1676, %v7436, %v7437
      %v7499 = vsel %vm1676, %v7467, %v7436
      %v7500 = vmul.f32 %v7499, %v3476
      %v7501 = vmul.f32 %v7498, %v3480
      %v7502 = vmul.f32 %v7497, %v3484
      %v7503 = vmul.f32 %v7496, %v3488
      %v7504 = vmul.f32 %v7495, %v3492
      %v7505 = vmul.f32 %v7494, %v3496
      %v7506 = vmul.f32 %v7493, %v3500
      %v7507 = vmul.f32 %v7492, %v3504
      %v7508 = vmul.f32 %v7491, %v3508
      %v7509 = vmul.f32 %v7490, %v3512
      %v7510 = vmul.f32 %v7489, %v3516
      %v7511 = vmul.f32 %v7488, %v3520
      %v7512 = vmul.f32 %v7487, %v3524
      %v7513 = vmul.f32 %v7486, %v3528
      %v7514 = vmul.f32 %v7485, %v3532
      %v7515 = vmul.f32 %v7484, %v3536
      %v7516 = vmul.f32 %v7483, %v3540
      %v7517 = vmul.f32 %v7482, %v3544
      %v7518 = vmul.f32 %v7481, %v3548
      %v7519 = vmul.f32 %v7480, %v3552
      %v7520 = vmul.f32 %v7479, %v3556
      %v7521 = vmul.f32 %v7478, %v3560
      %v7522 = vmul.f32 %v7477, %v3564
      %v7523 = vmul.f32 %v7476, %v3568
      %v7524 = vmul.f32 %v7475, %v3572
      %v7525 = vmul.f32 %v7474, %v3576
      %v7526 = vmul.f32 %v7473, %v3580
      %v7527 = vmul.f32 %v7472, %v3584
      %v7528 = vmul.f32 %v7471, %v3588
      %v7529 = vmul.f32 %v7470, %v3592
      %v7530 = vmul.f32 %v7469, %v3596
      %v7531 = vmul.f32 %v7468, %v3600
      %v7532 = vadd.f32 %v7238, %v7500
      %v7533 = vadd.f32 %v7239, %v7501
      %v7534 = vadd.f32 %v7240, %v7502
      %v7535 = vadd.f32 %v7241, %v7503
      %v7536 = vadd.f32 %v7242, %v7504
      %v7537 = vadd.f32 %v7243, %v7505
      %v7538 = vadd.f32 %v7244, %v7506
      %v7539 = vadd.f32 %v7245, %v7507
      %v7540 = vadd.f32 %v7246, %v7508
      %v7541 = vadd.f32 %v7247, %v7509
      %v7542 = vadd.f32 %v7248, %v7510
      %v7543 = vadd.f32 %v7249, %v7511
      %v7544 = vadd.f32 %v7250, %v7512
      %v7545 = vadd.f32 %v7251, %v7513
      %v7546 = vadd.f32 %v7252, %v7514
      %v7547 = vadd.f32 %v7253, %v7515
      %v7548 = vadd.f32 %v7254, %v7516
      %v7549 = vadd.f32 %v7255, %v7517
      %v7550 = vadd.f32 %v7256, %v7518
      %v7551 = vadd.f32 %v7257, %v7519
      %v7552 = vadd.f32 %v7258, %v7520
      %v7553 = vadd.f32 %v7259, %v7521
      %v7554 = vadd.f32 %v7260, %v7522
      %v7555 = vadd.f32 %v7261, %v7523
      %v7556 = vadd.f32 %v7262, %v7524
      %v7557 = vadd.f32 %v7263, %v7525
      %v7558 = vadd.f32 %v7264, %v7526
      %v7559 = vadd.f32 %v7265, %v7527
      %v7560 = vadd.f32 %v7266, %v7528
      %v7561 = vadd.f32 %v7267, %v7529
      %v7562 = vadd.f32 %v7268, %v7530
      %v7563 = vadd.f32 %v7269, %v7531
      %s7564 = scalar_lea.vmem %s6, 8
      %v7565 = vld [vmem:[%s7564] sm:$0x3]
      %v7567 = vsel %vm1185, %v7565, 0
      %7569 = vmatprep.subr.bf16.mxu0 0
      %7570 = vmatpush1.bf16.msra.mxu0 0
      %7571 = vmatprep.subr.bf16.mxu0 0
      %7572 = vmatpush1.bf16.msra.mxu0 0
      %7573 = vmatprep.subr.bf16.mxu0 0
      %7574 = vmatpush1.bf16.msra.mxu0 0
      %7575 = vmatprep.subr.bf16.mxu0 0
      %7576 = vmatpush1.bf16.msra.mxu0 0
      %7577 = vmatprep.subr.bf16.mxu0 0
      %7578 = vmatpush1.bf16.msra.mxu0 0
      %7579 = vmatprep.subr.bf16.mxu0 0
      %7580 = vmatpush1.bf16.msra.mxu0 0
      %7581 = vmatprep.subr.bf16.mxu0 0
      %7582 = vmatpush1.bf16.msra.mxu0 0
      %7583 = vmatprep.subr.bf16.mxu0 0
      %7584 = vmatpush1.bf16.msra.mxu0 %v7567
      %7585 = vmatprep.subr.bf16.mxu0 0
      %7586 = vmatpush2.bf16.msra.mxu0 0
      %7587 = vmatprep.subr.bf16.mxu0 0
      %7588 = vmatpush2.bf16.msra.mxu0 0
      %7589 = vmatprep.subr.bf16.mxu0 0
      %7590 = vmatpush2.bf16.msra.mxu0 0
      %7591 = vmatprep.subr.bf16.mxu0 0
      %7592 = vmatpush2.bf16.msra.mxu0 0
      %7593 = vmatprep.subr.bf16.mxu0 0
      %7594 = vmatpush2.bf16.msra.mxu0 0
      %7595 = vmatprep.subr.bf16.mxu0 0
      %7596 = vmatpush2.bf16.msra.mxu0 0
      %7597 = vmatprep.subr.bf16.mxu0 0
      %7598 = vmatpush2.bf16.msra.mxu0 0
      %7599 = vmatprep.subr.bf16.mxu0 0
      %7600 = vmatpush2.bf16.msra.mxu0 0
      %7601 = vmatprep.mubr.bf16.mxu0 0
      %7602 = vmatmul.mubr.bf16.gmra.mxu0 %v6407
      %v7603 = vpop.f32.mrf.mxu0
      %v7604 = vadd.f32 0.0, %v7603
      %v7605 = vpop.f32.mrf.mxu0
      %v7606 = vpop.f32.mrf.mxu0
      %v7607 = vadd.f32 0.0, %v7606
      %v7608 = vpop.f32.mrf.mxu0
      %7609 = vmatprep.mubr.bf16.mxu0 0
      %7610 = vmatmul.mubr.bf16.gmra.mxu0 %v6410
      %v7611 = vpop.f32.mrf.mxu0
      %v7612 = vadd.f32 0.0, %v7611
      %v7613 = vpop.f32.mrf.mxu0
      %v7614 = vpop.f32.mrf.mxu0
      %v7615 = vadd.f32 0.0, %v7614
      %v7616 = vpop.f32.mrf.mxu0
      %7617 = vmatprep.mubr.bf16.mxu0 0
      %7618 = vmatmul.mubr.bf16.gmra.mxu0 %v6413
      %v7619 = vpop.f32.mrf.mxu0
      %v7620 = vadd.f32 0.0, %v7619
      %v7621 = vpop.f32.mrf.mxu0
      %v7622 = vpop.f32.mrf.mxu0
      %v7623 = vadd.f32 0.0, %v7622
      %v7624 = vpop.f32.mrf.mxu0
      %7625 = vmatprep.mubr.bf16.mxu0 0
      %7626 = vmatmul.mubr.bf16.gmra.mxu0 %v6416
      %v7627 = vpop.f32.mrf.mxu0
      %v7628 = vadd.f32 0.0, %v7627
      %v7629 = vpop.f32.mrf.mxu0
      %v7630 = vpop.f32.mrf.mxu0
      %v7631 = vadd.f32 0.0, %v7630
      %v7632 = vpop.f32.mrf.mxu0
      %7633 = vmatprep.mubr.bf16.mxu0 0
      %7634 = vmatmul.mubr.bf16.gmra.mxu0 %v6419
      %v7635 = vpop.f32.mrf.mxu0
      %v7636 = vadd.f32 0.0, %v7635
      %v7637 = vpop.f32.mrf.mxu0
      %v7638 = vpop.f32.mrf.mxu0
      %v7639 = vadd.f32 0.0, %v7638
      %v7640 = vpop.f32.mrf.mxu0
      %7641 = vmatprep.mubr.bf16.mxu0 0
      %7642 = vmatmul.mubr.bf16.gmra.mxu0 %v6422
      %v7643 = vpop.f32.mrf.mxu0
      %v7644 = vadd.f32 0.0, %v7643
      %v7645 = vpop.f32.mrf.mxu0
      %v7646 = vpop.f32.mrf.mxu0
      %v7647 = vadd.f32 0.0, %v7646
      %v7648 = vpop.f32.mrf.mxu0
      %7649 = vmatprep.mubr.bf16.mxu0 0
      %7650 = vmatmul.mubr.bf16.gmra.mxu0 %v6425
      %v7651 = vpop.f32.mrf.mxu0
      %v7652 = vadd.f32 0.0, %v7651
      %v7653 = vpop.f32.mrf.mxu0
      %v7654 = vpop.f32.mrf.mxu0
      %v7655 = vadd.f32 0.0, %v7654
      %v7656 = vpop.f32.mrf.mxu0
      %7657 = vmatprep.mubr.bf16.mxu0 0
      %7658 = vmatmul.mubr.bf16.gmra.mxu0 %v6428
      %v7659 = vpop.f32.mrf.mxu0
      %v7660 = vadd.f32 0.0, %v7659
      %v7661 = vpop.f32.mrf.mxu0
      %v7662 = vpop.f32.mrf.mxu0
      %v7663 = vadd.f32 0.0, %v7662
      %v7664 = vpop.f32.mrf.mxu0
      %7665 = vmatprep.mubr.bf16.mxu0 0
      %7666 = vmatmul.mubr.bf16.gmra.mxu0 %v6431
      %v7667 = vpop.f32.mrf.mxu0
      %v7668 = vadd.f32 0.0, %v7667
      %v7669 = vpop.f32.mrf.mxu0
      %v7670 = vpop.f32.mrf.mxu0
      %v7671 = vadd.f32 0.0, %v7670
      %v7672 = vpop.f32.mrf.mxu0
      %7673 = vmatprep.mubr.bf16.mxu0 0
      %7674 = vmatmul.mubr.bf16.gmra.mxu0 %v6434
      %v7675 = vpop.f32.mrf.mxu0
      %v7676 = vadd.f32 0.0, %v7675
      %v7677 = vpop.f32.mrf.mxu0
      %v7678 = vpop.f32.mrf.mxu0
      %v7679 = vadd.f32 0.0, %v7678
      %v7680 = vpop.f32.mrf.mxu0
      %7681 = vmatprep.mubr.bf16.mxu0 0
      %7682 = vmatmul.mubr.bf16.gmra.mxu0 %v6437
      %v7683 = vpop.f32.mrf.mxu0
      %v7684 = vadd.f32 0.0, %v7683
      %v7685 = vpop.f32.mrf.mxu0
      %v7686 = vpop.f32.mrf.mxu0
      %v7687 = vadd.f32 0.0, %v7686
      %v7688 = vpop.f32.mrf.mxu0
      %7689 = vmatprep.mubr.bf16.mxu0 0
      %7690 = vmatmul.mubr.bf16.gmra.mxu0 %v6440
      %v7691 = vpop.f32.mrf.mxu0
      %v7692 = vadd.f32 0.0, %v7691
      %v7693 = vpop.f32.mrf.mxu0
      %v7694 = vpop.f32.mrf.mxu0
      %v7695 = vadd.f32 0.0, %v7694
      %v7696 = vpop.f32.mrf.mxu0
      %7697 = vmatprep.mubr.bf16.mxu0 0
      %7698 = vmatmul.mubr.bf16.gmra.mxu0 %v6443
      %v7699 = vpop.f32.mrf.mxu0
      %v7700 = vadd.f32 0.0, %v7699
      %v7701 = vpop.f32.mrf.mxu0
      %v7702 = vpop.f32.mrf.mxu0
      %v7703 = vadd.f32 0.0, %v7702
      %v7704 = vpop.f32.mrf.mxu0
      %7705 = vmatprep.mubr.bf16.mxu0 0
      %7706 = vmatmul.mubr.bf16.gmra.mxu0 %v6446
      %v7707 = vpop.f32.mrf.mxu0
      %v7708 = vadd.f32 0.0, %v7707
      %v7709 = vpop.f32.mrf.mxu0
      %v7710 = vpop.f32.mrf.mxu0
      %v7711 = vadd.f32 0.0, %v7710
      %v7712 = vpop.f32.mrf.mxu0
      %7713 = vmatprep.mubr.bf16.mxu0 0
      %7714 = vmatmul.mubr.bf16.gmra.mxu0 %v6449
      %v7715 = vpop.f32.mrf.mxu0
      %v7716 = vadd.f32 0.0, %v7715
      %v7717 = vpop.f32.mrf.mxu0
      %v7718 = vpop.f32.mrf.mxu0
      %v7719 = vadd.f32 0.0, %v7718
      %v7720 = vpop.f32.mrf.mxu0
      %7721 = vmatprep.mubr.bf16.mxu0 0
      %7722 = vmatmul.mubr.bf16.gmra.mxu0 %v6452
      %v7723 = vpop.f32.mrf.mxu0
      %v7724 = vadd.f32 0.0, %v7723
      %v7725 = vpop.f32.mrf.mxu0
      %v7726 = vpop.f32.mrf.mxu0
      %v7727 = vadd.f32 0.0, %v7726
      %v7728 = vpop.f32.mrf.mxu0
      %7729 = vdwg.mxu0
      %v7730 = vadd.f32 %v7532, %v7604
      %v7731 = vadd.f32 %v7533, %v7607
      %v7732 = vadd.f32 %v7534, %v7612
      %v7733 = vadd.f32 %v7535, %v7615
      %v7734 = vadd.f32 %v7536, %v7620
      %v7735 = vadd.f32 %v7537, %v7623
      %v7736 = vadd.f32 %v7538, %v7628
      %v7737 = vadd.f32 %v7539, %v7631
      %v7738 = vadd.f32 %v7540, %v7636
      %v7739 = vadd.f32 %v7541, %v7639
      %v7740 = vadd.f32 %v7542, %v7644
      %v7741 = vadd.f32 %v7543, %v7647
      %v7742 = vadd.f32 %v7544, %v7652
      %v7743 = vadd.f32 %v7545, %v7655
      %v7744 = vadd.f32 %v7546, %v7660
      %v7745 = vadd.f32 %v7547, %v7663
      %v7746 = vadd.f32 %v7548, %v7668
      %v7747 = vadd.f32 %v7549, %v7671
      %v7748 = vadd.f32 %v7550, %v7676
      %v7749 = vadd.f32 %v7551, %v7679
      %v7750 = vadd.f32 %v7552, %v7684
      %v7751 = vadd.f32 %v7553, %v7687
      %v7752 = vadd.f32 %v7554, %v7692
      %v7753 = vadd.f32 %v7555, %v7695
      %v7754 = vadd.f32 %v7556, %v7700
      %v7755 = vadd.f32 %v7557, %v7703
      %v7756 = vadd.f32 %v7558, %v7708
      %v7757 = vadd.f32 %v7559, %v7711
      %v7758 = vadd.f32 %v7560, %v7716
      %v7759 = vadd.f32 %v7561, %v7719
      %v7760 = vadd.f32 %v7562, %v7724
      %v7761 = vadd.f32 %v7563, %v7727
      %s7762 = scalar_lea.vmem %s6, 10
      %v7763 = vld [vmem:[%s7762] sm:$0x3]
      %v7765 = vsel %vm1185, %v7763, 0
      %7767 = vmatprep.subr.bf16.mxu0 0
      %7768 = vmatpush1.bf16.msra.mxu0 0
      %7769 = vmatprep.subr.bf16.mxu0 0
      %7770 = vmatpush1.bf16.msra.mxu0 0
      %7771 = vmatprep.subr.bf16.mxu0 0
      %7772 = vmatpush1.bf16.msra.mxu0 0
      %7773 = vmatprep.subr.bf16.mxu0 0
      %7774 = vmatpush1.bf16.msra.mxu0 0
      %7775 = vmatprep.subr.bf16.mxu0 0
      %7776 = vmatpush1.bf16.msra.mxu0 0
      %7777 = vmatprep.subr.bf16.mxu0 0
      %7778 = vmatpush1.bf16.msra.mxu0 0
      %7779 = vmatprep.subr.bf16.mxu0 0
      %7780 = vmatpush1.bf16.msra.mxu0 0
      %7781 = vmatprep.subr.bf16.mxu0 0
      %7782 = vmatpush1.bf16.msra.mxu0 %v7765
      %7783 = vmatprep.subr.bf16.mxu0 0
      %7784 = vmatpush2.bf16.msra.mxu0 0
      %7785 = vmatprep.subr.bf16.mxu0 0
      %7786 = vmatpush2.bf16.msra.mxu0 0
      %7787 = vmatprep.subr.bf16.mxu0 0
      %7788 = vmatpush2.bf16.msra.mxu0 0
      %7789 = vmatprep.subr.bf16.mxu0 0
      %7790 = vmatpush2.bf16.msra.mxu0 0
      %7791 = vmatprep.subr.bf16.mxu0 0
      %7792 = vmatpush2.bf16.msra.mxu0 0
      %7793 = vmatprep.subr.bf16.mxu0 0
      %7794 = vmatpush2.bf16.msra.mxu0 0
      %7795 = vmatprep.subr.bf16.mxu0 0
      %7796 = vmatpush2.bf16.msra.mxu0 0
      %7797 = vmatprep.subr.bf16.mxu0 0
      %7798 = vmatpush2.bf16.msra.mxu0 0
      %7799 = vmatprep.mubr.bf16.mxu0 0
      %7800 = vmatmul.mubr.bf16.gmra.mxu0 %v6407
      %v7801 = vpop.f32.mrf.mxu0
      %v7802 = vadd.f32 0.0, %v7801
      %v7803 = vpop.f32.mrf.mxu0
      %v7804 = vpop.f32.mrf.mxu0
      %v7805 = vadd.f32 0.0, %v7804
      %v7806 = vpop.f32.mrf.mxu0
      %7807 = vmatprep.mubr.bf16.mxu0 0
      %7808 = vmatmul.mubr.bf16.gmra.mxu0 %v6410
      %v7809 = vpop.f32.mrf.mxu0
      %v7810 = vadd.f32 0.0, %v7809
      %v7811 = vpop.f32.mrf.mxu0
      %v7812 = vpop.f32.mrf.mxu0
      %v7813 = vadd.f32 0.0, %v7812
      %v7814 = vpop.f32.mrf.mxu0
      %7815 = vmatprep.mubr.bf16.mxu0 0
      %7816 = vmatmul.mubr.bf16.gmra.mxu0 %v6413
      %v7817 = vpop.f32.mrf.mxu0
      %v7818 = vadd.f32 0.0, %v7817
      %v7819 = vpop.f32.mrf.mxu0
      %v7820 = vpop.f32.mrf.mxu0
      %v7821 = vadd.f32 0.0, %v7820
      %v7822 = vpop.f32.mrf.mxu0
      %7823 = vmatprep.mubr.bf16.mxu0 0
      %7824 = vmatmul.mubr.bf16.gmra.mxu0 %v6416
      %v7825 = vpop.f32.mrf.mxu0
      %v7826 = vadd.f32 0.0, %v7825
      %v7827 = vpop.f32.mrf.mxu0
      %v7828 = vpop.f32.mrf.mxu0
      %v7829 = vadd.f32 0.0, %v7828
      %v7830 = vpop.f32.mrf.mxu0
      %7831 = vmatprep.mubr.bf16.mxu0 0
      %7832 = vmatmul.mubr.bf16.gmra.mxu0 %v6419
      %v7833 = vpop.f32.mrf.mxu0
      %v7834 = vadd.f32 0.0, %v7833
      %v7835 = vpop.f32.mrf.mxu0
      %v7836 = vpop.f32.mrf.mxu0
      %v7837 = vadd.f32 0.0, %v7836
      %v7838 = vpop.f32.mrf.mxu0
      %7839 = vmatprep.mubr.bf16.mxu0 0
      %7840 = vmatmul.mubr.bf16.gmra.mxu0 %v6422
      %v7841 = vpop.f32.mrf.mxu0
      %v7842 = vadd.f32 0.0, %v7841
      %v7843 = vpop.f32.mrf.mxu0
      %v7844 = vpop.f32.mrf.mxu0
      %v7845 = vadd.f32 0.0, %v7844
      %v7846 = vpop.f32.mrf.mxu0
      %7847 = vmatprep.mubr.bf16.mxu0 0
      %7848 = vmatmul.mubr.bf16.gmra.mxu0 %v6425
      %v7849 = vpop.f32.mrf.mxu0
      %v7850 = vadd.f32 0.0, %v7849
      %v7851 = vpop.f32.mrf.mxu0
      %v7852 = vpop.f32.mrf.mxu0
      %v7853 = vadd.f32 0.0, %v7852
      %v7854 = vpop.f32.mrf.mxu0
      %7855 = vmatprep.mubr.bf16.mxu0 0
      %7856 = vmatmul.mubr.bf16.gmra.mxu0 %v6428
      %v7857 = vpop.f32.mrf.mxu0
      %v7858 = vadd.f32 0.0, %v7857
      %v7859 = vpop.f32.mrf.mxu0
      %v7860 = vpop.f32.mrf.mxu0
      %v7861 = vadd.f32 0.0, %v7860
      %v7862 = vpop.f32.mrf.mxu0
      %7863 = vmatprep.mubr.bf16.mxu0 0
      %7864 = vmatmul.mubr.bf16.gmra.mxu0 %v6431
      %v7865 = vpop.f32.mrf.mxu0
      %v7866 = vadd.f32 0.0, %v7865
      %v7867 = vpop.f32.mrf.mxu0
      %v7868 = vpop.f32.mrf.mxu0
      %v7869 = vadd.f32 0.0, %v7868
      %v7870 = vpop.f32.mrf.mxu0
      %7871 = vmatprep.mubr.bf16.mxu0 0
      %7872 = vmatmul.mubr.bf16.gmra.mxu0 %v6434
      %v7873 = vpop.f32.mrf.mxu0
      %v7874 = vadd.f32 0.0, %v7873
      %v7875 = vpop.f32.mrf.mxu0
      %v7876 = vpop.f32.mrf.mxu0
      %v7877 = vadd.f32 0.0, %v7876
      %v7878 = vpop.f32.mrf.mxu0
      %7879 = vmatprep.mubr.bf16.mxu0 0
      %7880 = vmatmul.mubr.bf16.gmra.mxu0 %v6437
      %v7881 = vpop.f32.mrf.mxu0
      %v7882 = vadd.f32 0.0, %v7881
      %v7883 = vpop.f32.mrf.mxu0
      %v7884 = vpop.f32.mrf.mxu0
      %v7885 = vadd.f32 0.0, %v7884
      %v7886 = vpop.f32.mrf.mxu0
      %7887 = vmatprep.mubr.bf16.mxu0 0
      %7888 = vmatmul.mubr.bf16.gmra.mxu0 %v6440
      %v7889 = vpop.f32.mrf.mxu0
      %v7890 = vadd.f32 0.0, %v7889
      %v7891 = vpop.f32.mrf.mxu0
      %v7892 = vpop.f32.mrf.mxu0
      %v7893 = vadd.f32 0.0, %v7892
      %v7894 = vpop.f32.mrf.mxu0
      %7895 = vmatprep.mubr.bf16.mxu0 0
      %7896 = vmatmul.mubr.bf16.gmra.mxu0 %v6443
      %v7897 = vpop.f32.mrf.mxu0
      %v7898 = vadd.f32 0.0, %v7897
      %v7899 = vpop.f32.mrf.mxu0
      %v7900 = vpop.f32.mrf.mxu0
      %v7901 = vadd.f32 0.0, %v7900
      %v7902 = vpop.f32.mrf.mxu0
      %7903 = vmatprep.mubr.bf16.mxu0 0
      %7904 = vmatmul.mubr.bf16.gmra.mxu0 %v6446
      %v7905 = vpop.f32.mrf.mxu0
      %v7906 = vadd.f32 0.0, %v7905
      %v7907 = vpop.f32.mrf.mxu0
      %v7908 = vpop.f32.mrf.mxu0
      %v7909 = vadd.f32 0.0, %v7908
      %v7910 = vpop.f32.mrf.mxu0
      %7911 = vmatprep.mubr.bf16.mxu0 0
      %7912 = vmatmul.mubr.bf16.gmra.mxu0 %v6449
      %v7913 = vpop.f32.mrf.mxu0
      %v7914 = vadd.f32 0.0, %v7913
      %v7915 = vpop.f32.mrf.mxu0
      %v7916 = vpop.f32.mrf.mxu0
      %v7917 = vadd.f32 0.0, %v7916
      %v7918 = vpop.f32.mrf.mxu0
      %7919 = vmatprep.mubr.bf16.mxu0 0
      %7920 = vmatmul.mubr.bf16.gmra.mxu0 %v6452
      %v7921 = vpop.f32.mrf.mxu0
      %v7922 = vadd.f32 0.0, %v7921
      %v7923 = vpop.f32.mrf.mxu0
      %v7924 = vpop.f32.mrf.mxu0
      %v7925 = vadd.f32 0.0, %v7924
      %v7926 = vpop.f32.mrf.mxu0
      %7927 = vdwg.mxu0
      %v7928 = vrot.slane %v7802, 1
      %v7929 = vrot.slane %v7805, 1
      %v7930 = vrot.slane %v7810, 1
      %v7931 = vrot.slane %v7813, 1
      %v7932 = vrot.slane %v7818, 1
      %v7933 = vrot.slane %v7821, 1
      %v7934 = vrot.slane %v7826, 1
      %v7935 = vrot.slane %v7829, 1
      %v7936 = vrot.slane %v7834, 1
      %v7937 = vrot.slane %v7837, 1
      %v7938 = vrot.slane %v7842, 1
      %v7939 = vrot.slane %v7845, 1
      %v7940 = vrot.slane %v7850, 1
      %v7941 = vrot.slane %v7853, 1
      %v7942 = vrot.slane %v7858, 1
      %v7943 = vrot.slane %v7861, 1
      %v7944 = vrot.slane %v7866, 1
      %v7945 = vrot.slane %v7869, 1
      %v7946 = vrot.slane %v7874, 1
      %v7947 = vrot.slane %v7877, 1
      %v7948 = vrot.slane %v7882, 1
      %v7949 = vrot.slane %v7885, 1
      %v7950 = vrot.slane %v7890, 1
      %v7951 = vrot.slane %v7893, 1
      %v7952 = vrot.slane %v7898, 1
      %v7953 = vrot.slane %v7901, 1
      %v7954 = vrot.slane %v7906, 1
      %v7955 = vrot.slane %v7909, 1
      %v7956 = vrot.slane %v7914, 1
      %v7957 = vrot.slane %v7917, 1
      %v7958 = vrot.slane %v7922, 1
      %v7959 = vrot.slane %v7925, 1
      %v7960 = vsel %vm2853, %v7958, %v7959
      %v7961 = vsel %vm2853, %v7957, %v7958
      %v7962 = vsel %vm2853, %v7956, %v7957
      %v7963 = vsel %vm2853, %v7955, %v7956
      %v7964 = vsel %vm2853, %v7954, %v7955
      %v7965 = vsel %vm2853, %v7953, %v7954
      %v7966 = vsel %vm2853, %v7952, %v7953
      %v7967 = vsel %vm2853, %v7951, %v7952
      %v7968 = vsel %vm2853, %v7950, %v7951
      %v7969 = vsel %vm2853, %v7949, %v7950
      %v7970 = vsel %vm2853, %v7948, %v7949
      %v7971 = vsel %vm2853, %v7947, %v7948
      %v7972 = vsel %vm2853, %v7946, %v7947
      %v7973 = vsel %vm2853, %v7945, %v7946
      %v7974 = vsel %vm2853, %v7944, %v7945
      %v7975 = vsel %vm2853, %v7943, %v7944
      %v7976 = vsel %vm2853, %v7942, %v7943
      %v7977 = vsel %vm2853, %v7941, %v7942
      %v7978 = vsel %vm2853, %v7940, %v7941
      %v7979 = vsel %vm2853, %v7939, %v7940
      %v7980 = vsel %vm2853, %v7938, %v7939
      %v7981 = vsel %vm2853, %v7937, %v7938
      %v7982 = vsel %vm2853, %v7936, %v7937
      %v7983 = vsel %vm2853, %v7935, %v7936
      %v7984 = vsel %vm2853, %v7934, %v7935
      %v7985 = vsel %vm2853, %v7933, %v7934
      %v7986 = vsel %vm2853, %v7932, %v7933
      %v7987 = vsel %vm2853, %v7931, %v7932
      %v7988 = vsel %vm2853, %v7930, %v7931
      %v7989 = vsel %vm2853, %v7929, %v7930
      %v7990 = vsel %vm2853, %v7928, %v7929
      %v7991 = vsel %vm2853, %v7959, %v7928
      %v7992 = vmul.f32 %v7990, %v4428
      %v7993 = vmul.f32 %v7989, %v4432
      %v7994 = vmul.f32 %v7988, %v4436
      %v7995 = vmul.f32 %v7987, %v4440
      %v7996 = vmul.f32 %v7986, %v4444
      %v7997 = vmul.f32 %v7985, %v4448
      %v7998 = vmul.f32 %v7984, %v4452
      %v7999 = vmul.f32 %v7983, %v4456
      %v8000 = vmul.f32 %v7982, %v4460
      %v8001 = vmul.f32 %v7981, %v4464
      %v8002 = vmul.f32 %v7980, %v4468
      %v8003 = vmul.f32 %v7979, %v4472
      %v8004 = vmul.f32 %v7978, %v4476
      %v8005 = vmul.f32 %v7977, %v4480
      %v8006 = vmul.f32 %v7976, %v4484
      %v8007 = vmul.f32 %v7975, %v4488
      %v8008 = vmul.f32 %v7974, %v4492
      %v8009 = vmul.f32 %v7973, %v4496
      %v8010 = vmul.f32 %v7972, %v4500
      %v8011 = vmul.f32 %v7971, %v4504
      %v8012 = vmul.f32 %v7970, %v4508
      %v8013 = vmul.f32 %v7969, %v4512
      %v8014 = vmul.f32 %v7968, %v4516
      %v8015 = vmul.f32 %v7967, %v4520
      %v8016 = vmul.f32 %v7966, %v4524
      %v8017 = vmul.f32 %v7965, %v4528
      %v8018 = vmul.f32 %v7964, %v4532
      %v8019 = vmul.f32 %v7963, %v4536
      %v8020 = vmul.f32 %v7962, %v4540
      %v8021 = vmul.f32 %v7961, %v4544
      %v8022 = vmul.f32 %v7960, %v4548
      %v8023 = vmul.f32 %v7991, %v4552
      %v8024 = vadd.f32 %v7730, %v7992
      %v8025 = vadd.f32 %v7731, %v7993
      %v8026 = vadd.f32 %v7732, %v7994
      %v8027 = vadd.f32 %v7733, %v7995
      %v8028 = vadd.f32 %v7734, %v7996
      %v8029 = vadd.f32 %v7735, %v7997
      %v8030 = vadd.f32 %v7736, %v7998
      %v8031 = vadd.f32 %v7737, %v7999
      %v8032 = vadd.f32 %v7738, %v8000
      %v8033 = vadd.f32 %v7739, %v8001
      %v8034 = vadd.f32 %v7740, %v8002
      %v8035 = vadd.f32 %v7741, %v8003
      %v8036 = vadd.f32 %v7742, %v8004
      %v8037 = vadd.f32 %v7743, %v8005
      %v8038 = vadd.f32 %v7744, %v8006
      %v8039 = vadd.f32 %v7745, %v8007
      %v8040 = vadd.f32 %v7746, %v8008
      %v8041 = vadd.f32 %v7747, %v8009
      %v8042 = vadd.f32 %v7748, %v8010
      %v8043 = vadd.f32 %v7749, %v8011
      %v8044 = vadd.f32 %v7750, %v8012
      %v8045 = vadd.f32 %v7751, %v8013
      %v8046 = vadd.f32 %v7752, %v8014
      %v8047 = vadd.f32 %v7753, %v8015
      %v8048 = vadd.f32 %v7754, %v8016
      %v8049 = vadd.f32 %v7755, %v8017
      %v8050 = vadd.f32 %v7756, %v8018
      %v8051 = vadd.f32 %v7757, %v8019
      %v8052 = vadd.f32 %v7758, %v8020
      %v8053 = vadd.f32 %v7759, %v8021
      %v8054 = vadd.f32 %v7760, %v8022
      %v8055 = vadd.f32 %v7761, %v8023
      %s8056 = scalar_lea.vmem %s6, 12
      %v8057 = vld [vmem:[%s8056] sm:$0x3]
      %v8059 = vsel %vm1185, %v8057, 0
      %8061 = vmatprep.subr.bf16.mxu0 0
      %8062 = vmatpush1.bf16.msra.mxu0 0
      %8063 = vmatprep.subr.bf16.mxu0 0
      %8064 = vmatpush1.bf16.msra.mxu0 0
      %8065 = vmatprep.subr.bf16.mxu0 0
      %8066 = vmatpush1.bf16.msra.mxu0 0
      %8067 = vmatprep.subr.bf16.mxu0 0
      %8068 = vmatpush1.bf16.msra.mxu0 0
      %8069 = vmatprep.subr.bf16.mxu0 0
      %8070 = vmatpush1.bf16.msra.mxu0 0
      %8071 = vmatprep.subr.bf16.mxu0 0
      %8072 = vmatpush1.bf16.msra.mxu0 0
      %8073 = vmatprep.subr.bf16.mxu0 0
      %8074 = vmatpush1.bf16.msra.mxu0 0
      %8075 = vmatprep.subr.bf16.mxu0 0
      %8076 = vmatpush1.bf16.msra.mxu0 %v8059
      %8077 = vmatprep.subr.bf16.mxu0 0
      %8078 = vmatpush2.bf16.msra.mxu0 0
      %8079 = vmatprep.subr.bf16.mxu0 0
      %8080 = vmatpush2.bf16.msra.mxu0 0
      %8081 = vmatprep.subr.bf16.mxu0 0
      %8082 = vmatpush2.bf16.msra.mxu0 0
      %8083 = vmatprep.subr.bf16.mxu0 0
      %8084 = vmatpush2.bf16.msra.mxu0 0
      %8085 = vmatprep.subr.bf16.mxu0 0
      %8086 = vmatpush2.bf16.msra.mxu0 0
      %8087 = vmatprep.subr.bf16.mxu0 0
      %8088 = vmatpush2.bf16.msra.mxu0 0
      %8089 = vmatprep.subr.bf16.mxu0 0
      %8090 = vmatpush2.bf16.msra.mxu0 0
      %8091 = vmatprep.subr.bf16.mxu0 0
      %8092 = vmatpush2.bf16.msra.mxu0 0
      %8093 = vmatprep.mubr.bf16.mxu0 0
      %8094 = vmatmul.mubr.bf16.gmra.mxu0 %v6407
      %v8095 = vpop.f32.mrf.mxu0
      %v8096 = vadd.f32 0.0, %v8095
      %v8097 = vpop.f32.mrf.mxu0
      %v8098 = vpop.f32.mrf.mxu0
      %v8099 = vadd.f32 0.0, %v8098
      %v8100 = vpop.f32.mrf.mxu0
      %8101 = vmatprep.mubr.bf16.mxu0 0
      %8102 = vmatmul.mubr.bf16.gmra.mxu0 %v6410
      %v8103 = vpop.f32.mrf.mxu0
      %v8104 = vadd.f32 0.0, %v8103
      %v8105 = vpop.f32.mrf.mxu0
      %v8106 = vpop.f32.mrf.mxu0
      %v8107 = vadd.f32 0.0, %v8106
      %v8108 = vpop.f32.mrf.mxu0
      %8109 = vmatprep.mubr.bf16.mxu0 0
      %8110 = vmatmul.mubr.bf16.gmra.mxu0 %v6413
      %v8111 = vpop.f32.mrf.mxu0
      %v8112 = vadd.f32 0.0, %v8111
      %v8113 = vpop.f32.mrf.mxu0
      %v8114 = vpop.f32.mrf.mxu0
      %v8115 = vadd.f32 0.0, %v8114
      %v8116 = vpop.f32.mrf.mxu0
      %8117 = vmatprep.mubr.bf16.mxu0 0
      %8118 = vmatmul.mubr.bf16.gmra.mxu0 %v6416
      %v8119 = vpop.f32.mrf.mxu0
      %v8120 = vadd.f32 0.0, %v8119
      %v8121 = vpop.f32.mrf.mxu0
      %v8122 = vpop.f32.mrf.mxu0
      %v8123 = vadd.f32 0.0, %v8122
      %v8124 = vpop.f32.mrf.mxu0
      %8125 = vmatprep.mubr.bf16.mxu0 0
      %8126 = vmatmul.mubr.bf16.gmra.mxu0 %v6419
      %v8127 = vpop.f32.mrf.mxu0
      %v8128 = vadd.f32 0.0, %v8127
      %v8129 = vpop.f32.mrf.mxu0
      %v8130 = vpop.f32.mrf.mxu0
      %v8131 = vadd.f32 0.0, %v8130
      %v8132 = vpop.f32.mrf.mxu0
      %8133 = vmatprep.mubr.bf16.mxu0 0
      %8134 = vmatmul.mubr.bf16.gmra.mxu0 %v6422
      %v8135 = vpop.f32.mrf.mxu0
      %v8136 = vadd.f32 0.0, %v8135
      %v8137 = vpop.f32.mrf.mxu0
      %v8138 = vpop.f32.mrf.mxu0
      %v8139 = vadd.f32 0.0, %v8138
      %v8140 = vpop.f32.mrf.mxu0
      %8141 = vmatprep.mubr.bf16.mxu0 0
      %8142 = vmatmul.mubr.bf16.gmra.mxu0 %v6425
      %v8143 = vpop.f32.mrf.mxu0
      %v8144 = vadd.f32 0.0, %v8143
      %v8145 = vpop.f32.mrf.mxu0
      %v8146 = vpop.f32.mrf.mxu0
      %v8147 = vadd.f32 0.0, %v8146
      %v8148 = vpop.f32.mrf.mxu0
      %8149 = vmatprep.mubr.bf16.mxu0 0
      %8150 = vmatmul.mubr.bf16.gmra.mxu0 %v6428
      %v8151 = vpop.f32.mrf.mxu0
      %v8152 = vadd.f32 0.0, %v8151
      %v8153 = vpop.f32.mrf.mxu0
      %v8154 = vpop.f32.mrf.mxu0
      %v8155 = vadd.f32 0.0, %v8154
      %v8156 = vpop.f32.mrf.mxu0
      %8157 = vmatprep.mubr.bf16.mxu0 0
      %8158 = vmatmul.mubr.bf16.gmra.mxu0 %v6431
      %v8159 = vpop.f32.mrf.mxu0
      %v8160 = vadd.f32 0.0, %v8159
      %v8161 = vpop.f32.mrf.mxu0
      %v8162 = vpop.f32.mrf.mxu0
      %v8163 = vadd.f32 0.0, %v8162
      %v8164 = vpop.f32.mrf.mxu0
      %8165 = vmatprep.mubr.bf16.mxu0 0
      %8166 = vmatmul.mubr.bf16.gmra.mxu0 %v6434
      %v8167 = vpop.f32.mrf.mxu0
      %v8168 = vadd.f32 0.0, %v8167
      %v8169 = vpop.f32.mrf.mxu0
      %v8170 = vpop.f32.mrf.mxu0
      %v8171 = vadd.f32 0.0, %v8170
      %v8172 = vpop.f32.mrf.mxu0
      %8173 = vmatprep.mubr.bf16.mxu0 0
      %8174 = vmatmul.mubr.bf16.gmra.mxu0 %v6437
      %v8175 = vpop.f32.mrf.mxu0
      %v8176 = vadd.f32 0.0, %v8175
      %v8177 = vpop.f32.mrf.mxu0
      %v8178 = vpop.f32.mrf.mxu0
      %v8179 = vadd.f32 0.0, %v8178
      %v8180 = vpop.f32.mrf.mxu0
      %8181 = vmatprep.mubr.bf16.mxu0 0
      %8182 = vmatmul.mubr.bf16.gmra.mxu0 %v6440
      %v8183 = vpop.f32.mrf.mxu0
      %v8184 = vadd.f32 0.0, %v8183
      %v8185 = vpop.f32.mrf.mxu0
      %v8186 = vpop.f32.mrf.mxu0
      %v8187 = vadd.f32 0.0, %v8186
      %v8188 = vpop.f32.mrf.mxu0
      %8189 = vmatprep.mubr.bf16.mxu0 0
      %8190 = vmatmul.mubr.bf16.gmra.mxu0 %v6443
      %v8191 = vpop.f32.mrf.mxu0
      %v8192 = vadd.f32 0.0, %v8191
      %v8193 = vpop.f32.mrf.mxu0
      %v8194 = vpop.f32.mrf.mxu0
      %v8195 = vadd.f32 0.0, %v8194
      %v8196 = vpop.f32.mrf.mxu0
      %8197 = vmatprep.mubr.bf16.mxu0 0
      %8198 = vmatmul.mubr.bf16.gmra.mxu0 %v6446
      %v8199 = vpop.f32.mrf.mxu0
      %v8200 = vadd.f32 0.0, %v8199
      %v8201 = vpop.f32.mrf.mxu0
      %v8202 = vpop.f32.mrf.mxu0
      %v8203 = vadd.f32 0.0, %v8202
      %v8204 = vpop.f32.mrf.mxu0
      %8205 = vmatprep.mubr.bf16.mxu0 0
      %8206 = vmatmul.mubr.bf16.gmra.mxu0 %v6449
      %v8207 = vpop.f32.mrf.mxu0
      %v8208 = vadd.f32 0.0, %v8207
      %v8209 = vpop.f32.mrf.mxu0
      %v8210 = vpop.f32.mrf.mxu0
      %v8211 = vadd.f32 0.0, %v8210
      %v8212 = vpop.f32.mrf.mxu0
      %8213 = vmatprep.mubr.bf16.mxu0 0
      %8214 = vmatmul.mubr.bf16.gmra.mxu0 %v6452
      %v8215 = vpop.f32.mrf.mxu0
      %v8216 = vadd.f32 0.0, %v8215
      %v8217 = vpop.f32.mrf.mxu0
      %v8218 = vpop.f32.mrf.mxu0
      %v8219 = vadd.f32 0.0, %v8218
      %v8220 = vpop.f32.mrf.mxu0
      %8221 = vdwg.mxu0
      %v8222 = vrot.slane %v8096, 7
      %v8223 = vrot.slane %v8099, 7
      %v8224 = vrot.slane %v8104, 7
      %v8225 = vrot.slane %v8107, 7
      %v8226 = vrot.slane %v8112, 7
      %v8227 = vrot.slane %v8115, 7
      %v8228 = vrot.slane %v8120, 7
      %v8229 = vrot.slane %v8123, 7
      %v8230 = vrot.slane %v8128, 7
      %v8231 = vrot.slane %v8131, 7
      %v8232 = vrot.slane %v8136, 7
      %v8233 = vrot.slane %v8139, 7
      %v8234 = vrot.slane %v8144, 7
      %v8235 = vrot.slane %v8147, 7
      %v8236 = vrot.slane %v8152, 7
      %v8237 = vrot.slane %v8155, 7
      %v8238 = vrot.slane %v8160, 7
      %v8239 = vrot.slane %v8163, 7
      %v8240 = vrot.slane %v8168, 7
      %v8241 = vrot.slane %v8171, 7
      %v8242 = vrot.slane %v8176, 7
      %v8243 = vrot.slane %v8179, 7
      %v8244 = vrot.slane %v8184, 7
      %v8245 = vrot.slane %v8187, 7
      %v8246 = vrot.slane %v8192, 7
      %v8247 = vrot.slane %v8195, 7
      %v8248 = vrot.slane %v8200, 7
      %v8249 = vrot.slane %v8203, 7
      %v8250 = vrot.slane %v8208, 7
      %v8251 = vrot.slane %v8211, 7
      %v8252 = vrot.slane %v8216, 7
      %v8253 = vrot.slane %v8219, 7
      %v8254 = vsel %vm1676, %v8252, %v8253
      %v8255 = vsel %vm1676, %v8251, %v8252
      %v8256 = vsel %vm1676, %v8250, %v8251
      %v8257 = vsel %vm1676, %v8249, %v8250
      %v8258 = vsel %vm1676, %v8248, %v8249
      %v8259 = vsel %vm1676, %v8247, %v8248
      %v8260 = vsel %vm1676, %v8246, %v8247
      %v8261 = vsel %vm1676, %v8245, %v8246
      %v8262 = vsel %vm1676, %v8244, %v8245
      %v8263 = vsel %vm1676, %v8243, %v8244
      %v8264 = vsel %vm1676, %v8242, %v8243
      %v8265 = vsel %vm1676, %v8241, %v8242
      %v8266 = vsel %vm1676, %v8240, %v8241
      %v8267 = vsel %vm1676, %v8239, %v8240
      %v8268 = vsel %vm1676, %v8238, %v8239
      %v8269 = vsel %vm1676, %v8237, %v8238
      %v8270 = vsel %vm1676, %v8236, %v8237
      %v8271 = vsel %vm1676, %v8235, %v8236
      %v8272 = vsel %vm1676, %v8234, %v8235
      %v8273 = vsel %vm1676, %v8233, %v8234
      %v8274 = vsel %vm1676, %v8232, %v8233
      %v8275 = vsel %vm1676, %v8231, %v8232
      %v8276 = vsel %vm1676, %v8230, %v8231
      %v8277 = vsel %vm1676, %v8229, %v8230
      %v8278 = vsel %vm1676, %v8228, %v8229
      %v8279 = vsel %vm1676, %v8227, %v8228
      %v8280 = vsel %vm1676, %v8226, %v8227
      %v8281 = vsel %vm1676, %v8225, %v8226
      %v8282 = vsel %vm1676, %v8224, %v8225
      %v8283 = vsel %vm1676, %v8223, %v8224
      %v8284 = vsel %vm1676, %v8222, %v8223
      %v8285 = vsel %vm1676, %v8253, %v8222
      %v8286 = vmul.f32 %v8283, %v5016
      %v8287 = vmul.f32 %v8282, %v5020
      %v8288 = vmul.f32 %v8281, %v5024
      %v8289 = vmul.f32 %v8280, %v5028
      %v8290 = vmul.f32 %v8279, %v5032
      %v8291 = vmul.f32 %v8278, %v5036
      %v8292 = vmul.f32 %v8277, %v5040
      %v8293 = vmul.f32 %v8276, %v5044
      %v8294 = vmul.f32 %v8275, %v5048
      %v8295 = vmul.f32 %v8274, %v5052
      %v8296 = vmul.f32 %v8273, %v5056
      %v8297 = vmul.f32 %v8272, %v5060
      %v8298 = vmul.f32 %v8271, %v5064
      %v8299 = vmul.f32 %v8270, %v5068
      %v8300 = vmul.f32 %v8269, %v5072
      %v8301 = vmul.f32 %v8268, %v5076
      %v8302 = vmul.f32 %v8267, %v5080
      %v8303 = vmul.f32 %v8266, %v5084
      %v8304 = vmul.f32 %v8265, %v5088
      %v8305 = vmul.f32 %v8264, %v5092
      %v8306 = vmul.f32 %v8263, %v5096
      %v8307 = vmul.f32 %v8262, %v5100
      %v8308 = vmul.f32 %v8261, %v5104
      %v8309 = vmul.f32 %v8260, %v5108
      %v8310 = vmul.f32 %v8259, %v5112
      %v8311 = vmul.f32 %v8258, %v5116
      %v8312 = vmul.f32 %v8257, %v5120
      %v8313 = vmul.f32 %v8256, %v5124
      %v8314 = vmul.f32 %v8255, %v5128
      %v8315 = vmul.f32 %v8254, %v5132
      %v8316 = vmul.f32 %v8285, %v5136
      %v8317 = vmul.f32 %v8284, %v5140
      %v8318 = vadd.f32 %v8024, %v8286
      %v8319 = vadd.f32 %v8025, %v8287
      %v8320 = vadd.f32 %v8026, %v8288
      %v8321 = vadd.f32 %v8027, %v8289
      %v8322 = vadd.f32 %v8028, %v8290
      %v8323 = vadd.f32 %v8029, %v8291
      %v8324 = vadd.f32 %v8030, %v8292
      %v8325 = vadd.f32 %v8031, %v8293
      %v8326 = vadd.f32 %v8032, %v8294
      %v8327 = vadd.f32 %v8033, %v8295
      %v8328 = vadd.f32 %v8034, %v8296
      %v8329 = vadd.f32 %v8035, %v8297
      %v8330 = vadd.f32 %v8036, %v8298
      %v8331 = vadd.f32 %v8037, %v8299
      %v8332 = vadd.f32 %v8038, %v8300
      %v8333 = vadd.f32 %v8039, %v8301
      %v8334 = vadd.f32 %v8040, %v8302
      %v8335 = vadd.f32 %v8041, %v8303
      %v8336 = vadd.f32 %v8042, %v8304
      %v8337 = vadd.f32 %v8043, %v8305
      %v8338 = vadd.f32 %v8044, %v8306
      %v8339 = vadd.f32 %v8045, %v8307
      %v8340 = vadd.f32 %v8046, %v8308
      %v8341 = vadd.f32 %v8047, %v8309
      %v8342 = vadd.f32 %v8048, %v8310
      %v8343 = vadd.f32 %v8049, %v8311
      %v8344 = vadd.f32 %v8050, %v8312
      %v8345 = vadd.f32 %v8051, %v8313
      %v8346 = vadd.f32 %v8052, %v8314
      %v8347 = vadd.f32 %v8053, %v8315
      %v8348 = vadd.f32 %v8054, %v8316
      %v8349 = vadd.f32 %v8055, %v8317
      %s8350 = scalar_lea.vmem %s6, 14
      %v8351 = vld [vmem:[%s8350] sm:$0x3]
      %v8353 = vsel %vm1185, %v8351, 0
      %8355 = vmatprep.subr.bf16.mxu0 0
      %8356 = vmatpush1.bf16.msra.mxu0 0
      %8357 = vmatprep.subr.bf16.mxu0 0
      %8358 = vmatpush1.bf16.msra.mxu0 0
      %8359 = vmatprep.subr.bf16.mxu0 0
      %8360 = vmatpush1.bf16.msra.mxu0 0
      %8361 = vmatprep.subr.bf16.mxu0 0
      %8362 = vmatpush1.bf16.msra.mxu0 0
      %8363 = vmatprep.subr.bf16.mxu0 0
      %8364 = vmatpush1.bf16.msra.mxu0 0
      %8365 = vmatprep.subr.bf16.mxu0 0
      %8366 = vmatpush1.bf16.msra.mxu0 0
      %8367 = vmatprep.subr.bf16.mxu0 0
      %8368 = vmatpush1.bf16.msra.mxu0 0
      %8369 = vmatprep.subr.bf16.mxu0 0
      %8370 = vmatpush1.bf16.msra.mxu0 %v8353
      %8371 = vmatprep.subr.bf16.mxu0 0
      %8372 = vmatpush2.bf16.msra.mxu0 0
      %8373 = vmatprep.subr.bf16.mxu0 0
      %8374 = vmatpush2.bf16.msra.mxu0 0
      %8375 = vmatprep.subr.bf16.mxu0 0
      %8376 = vmatpush2.bf16.msra.mxu0 0
      %8377 = vmatprep.subr.bf16.mxu0 0
      %8378 = vmatpush2.bf16.msra.mxu0 0
      %8379 = vmatprep.subr.bf16.mxu0 0
      %8380 = vmatpush2.bf16.msra.mxu0 0
      %8381 = vmatprep.subr.bf16.mxu0 0
      %8382 = vmatpush2.bf16.msra.mxu0 0
      %8383 = vmatprep.subr.bf16.mxu0 0
      %8384 = vmatpush2.bf16.msra.mxu0 0
      %8385 = vmatprep.subr.bf16.mxu0 0
      %8386 = vmatpush2.bf16.msra.mxu0 0
      %8387 = vmatprep.mubr.bf16.mxu0 0
      %8388 = vmatmul.mubr.bf16.gmra.mxu0 %v6407
      %v8389 = vpop.f32.mrf.mxu0
      %v8390 = vadd.f32 0.0, %v8389
      %v8391 = vpop.f32.mrf.mxu0
      %v8392 = vpop.f32.mrf.mxu0
      %v8393 = vadd.f32 0.0, %v8392
      %v8394 = vpop.f32.mrf.mxu0
      %8395 = vmatprep.mubr.bf16.mxu0 0
      %8396 = vmatmul.mubr.bf16.gmra.mxu0 %v6410
      %v8397 = vpop.f32.mrf.mxu0
      %v8398 = vadd.f32 0.0, %v8397
      %v8399 = vpop.f32.mrf.mxu0
      %v8400 = vpop.f32.mrf.mxu0
      %v8401 = vadd.f32 0.0, %v8400
      %v8402 = vpop.f32.mrf.mxu0
      %8403 = vmatprep.mubr.bf16.mxu0 0
      %8404 = vmatmul.mubr.bf16.gmra.mxu0 %v6413
      %v8405 = vpop.f32.mrf.mxu0
      %v8406 = vadd.f32 0.0, %v8405
      %v8407 = vpop.f32.mrf.mxu0
      %v8408 = vpop.f32.mrf.mxu0
      %v8409 = vadd.f32 0.0, %v8408
      %v8410 = vpop.f32.mrf.mxu0
      %8411 = vmatprep.mubr.bf16.mxu0 0
      %8412 = vmatmul.mubr.bf16.gmra.mxu0 %v6416
      %v8413 = vpop.f32.mrf.mxu0
      %v8414 = vadd.f32 0.0, %v8413
      %v8415 = vpop.f32.mrf.mxu0
      %v8416 = vpop.f32.mrf.mxu0
      %v8417 = vadd.f32 0.0, %v8416
      %v8418 = vpop.f32.mrf.mxu0
      %8419 = vmatprep.mubr.bf16.mxu0 0
      %8420 = vmatmul.mubr.bf16.gmra.mxu0 %v6419
      %v8421 = vpop.f32.mrf.mxu0
      %v8422 = vadd.f32 0.0, %v8421
      %v8423 = vpop.f32.mrf.mxu0
      %v8424 = vpop.f32.mrf.mxu0
      %v8425 = vadd.f32 0.0, %v8424
      %v8426 = vpop.f32.mrf.mxu0
      %8427 = vmatprep.mubr.bf16.mxu0 0
      %8428 = vmatmul.mubr.bf16.gmra.mxu0 %v6422
      %v8429 = vpop.f32.mrf.mxu0
      %v8430 = vadd.f32 0.0, %v8429
      %v8431 = vpop.f32.mrf.mxu0
      %v8432 = vpop.f32.mrf.mxu0
      %v8433 = vadd.f32 0.0, %v8432
      %v8434 = vpop.f32.mrf.mxu0
      %8435 = vmatprep.mubr.bf16.mxu0 0
      %8436 = vmatmul.mubr.bf16.gmra.mxu0 %v6425
      %v8437 = vpop.f32.mrf.mxu0
      %v8438 = vadd.f32 0.0, %v8437
      %v8439 = vpop.f32.mrf.mxu0
      %v8440 = vpop.f32.mrf.mxu0
      %v8441 = vadd.f32 0.0, %v8440
      %v8442 = vpop.f32.mrf.mxu0
      %8443 = vmatprep.mubr.bf16.mxu0 0
      %8444 = vmatmul.mubr.bf16.gmra.mxu0 %v6428
      %v8445 = vpop.f32.mrf.mxu0
      %v8446 = vadd.f32 0.0, %v8445
      %v8447 = vpop.f32.mrf.mxu0
      %v8448 = vpop.f32.mrf.mxu0
      %v8449 = vadd.f32 0.0, %v8448
      %v8450 = vpop.f32.mrf.mxu0
      %8451 = vmatprep.mubr.bf16.mxu0 0
      %8452 = vmatmul.mubr.bf16.gmra.mxu0 %v6431
      %v8453 = vpop.f32.mrf.mxu0
      %v8454 = vadd.f32 0.0, %v8453
      %v8455 = vpop.f32.mrf.mxu0
      %v8456 = vpop.f32.mrf.mxu0
      %v8457 = vadd.f32 0.0, %v8456
      %v8458 = vpop.f32.mrf.mxu0
      %8459 = vmatprep.mubr.bf16.mxu0 0
      %8460 = vmatmul.mubr.bf16.gmra.mxu0 %v6434
      %v8461 = vpop.f32.mrf.mxu0
      %v8462 = vadd.f32 0.0, %v8461
      %v8463 = vpop.f32.mrf.mxu0
      %v8464 = vpop.f32.mrf.mxu0
      %v8465 = vadd.f32 0.0, %v8464
      %v8466 = vpop.f32.mrf.mxu0
      %8467 = vmatprep.mubr.bf16.mxu0 0
      %8468 = vmatmul.mubr.bf16.gmra.mxu0 %v6437
      %v8469 = vpop.f32.mrf.mxu0
      %v8470 = vadd.f32 0.0, %v8469
      %v8471 = vpop.f32.mrf.mxu0
      %v8472 = vpop.f32.mrf.mxu0
      %v8473 = vadd.f32 0.0, %v8472
      %v8474 = vpop.f32.mrf.mxu0
      %8475 = vmatprep.mubr.bf16.mxu0 0
      %8476 = vmatmul.mubr.bf16.gmra.mxu0 %v6440
      %v8477 = vpop.f32.mrf.mxu0
      %v8478 = vadd.f32 0.0, %v8477
      %v8479 = vpop.f32.mrf.mxu0
      %v8480 = vpop.f32.mrf.mxu0
      %v8481 = vadd.f32 0.0, %v8480
      %v8482 = vpop.f32.mrf.mxu0
      %8483 = vmatprep.mubr.bf16.mxu0 0
      %8484 = vmatmul.mubr.bf16.gmra.mxu0 %v6443
      %v8485 = vpop.f32.mrf.mxu0
      %v8486 = vadd.f32 0.0, %v8485
      %v8487 = vpop.f32.mrf.mxu0
      %v8488 = vpop.f32.mrf.mxu0
      %v8489 = vadd.f32 0.0, %v8488
      %v8490 = vpop.f32.mrf.mxu0
      %8491 = vmatprep.mubr.bf16.mxu0 0
      %8492 = vmatmul.mubr.bf16.gmra.mxu0 %v6446
      %v8493 = vpop.f32.mrf.mxu0
      %v8494 = vadd.f32 0.0, %v8493
      %v8495 = vpop.f32.mrf.mxu0
      %v8496 = vpop.f32.mrf.mxu0
      %v8497 = vadd.f32 0.0, %v8496
      %v8498 = vpop.f32.mrf.mxu0
      %8499 = vmatprep.mubr.bf16.mxu0 0
      %8500 = vmatmul.mubr.bf16.gmra.mxu0 %v6449
      %v8501 = vpop.f32.mrf.mxu0
      %v8502 = vadd.f32 0.0, %v8501
      %v8503 = vpop.f32.mrf.mxu0
      %v8504 = vpop.f32.mrf.mxu0
      %v8505 = vadd.f32 0.0, %v8504
      %v8506 = vpop.f32.mrf.mxu0
      %8507 = vmatprep.mubr.bf16.mxu0 0
      %8508 = vmatmul.mubr.bf16.gmra.mxu0 %v6452
      %v8509 = vpop.f32.mrf.mxu0
      %v8510 = vadd.f32 0.0, %v8509
      %v8511 = vpop.f32.mrf.mxu0
      %v8512 = vpop.f32.mrf.mxu0
      %v8513 = vadd.f32 0.0, %v8512
      %v8514 = vpop.f32.mrf.mxu0
      %8515 = vdwg.mxu0
      %v8516 = vmul.f32 %v8398, %v5540
      %v8517 = vmul.f32 %v8401, %v5544
      %v8518 = vmul.f32 %v8406, %v5548
      %v8519 = vmul.f32 %v8409, %v5552
      %v8520 = vmul.f32 %v8414, %v5556
      %v8521 = vmul.f32 %v8417, %v5560
      %v8522 = vmul.f32 %v8422, %v5564
      %v8523 = vmul.f32 %v8425, %v5568
      %v8524 = vmul.f32 %v8430, %v5572
      %v8525 = vmul.f32 %v8433, %v5576
      %v8526 = vmul.f32 %v8438, %v5580
      %v8527 = vmul.f32 %v8441, %v5584
      %v8528 = vmul.f32 %v8446, %v5588
      %v8529 = vmul.f32 %v8449, %v5592
      %v8530 = vmul.f32 %v8454, %v5596
      %v8531 = vmul.f32 %v8457, %v5600
      %v8532 = vmul.f32 %v8462, %v5604
      %v8533 = vmul.f32 %v8465, %v5608
      %v8534 = vmul.f32 %v8470, %v5612
      %v8535 = vmul.f32 %v8473, %v5616
      %v8536 = vmul.f32 %v8478, %v5620
      %v8537 = vmul.f32 %v8481, %v5624
      %v8538 = vmul.f32 %v8486, %v5628
      %v8539 = vmul.f32 %v8489, %v5632
      %v8540 = vmul.f32 %v8494, %v5636
      %v8541 = vmul.f32 %v8497, %v5640
      %v8542 = vmul.f32 %v8502, %v5644
      %v8543 = vmul.f32 %v8505, %v5648
      %v8544 = vmul.f32 %v8510, %v5652
      %v8545 = vmul.f32 %v8513, %v5656
      %v8546 = vmul.f32 %v8390, %v5660
      %v8547 = vmul.f32 %v8393, %v5664
      %v8548 = vadd.f32 %v8318, %v8516
      %v8549 = vadd.f32 %v8319, %v8517
      %v8550 = vadd.f32 %v8320, %v8518
      %v8551 = vadd.f32 %v8321, %v8519
      %v8552 = vadd.f32 %v8322, %v8520
      %v8553 = vadd.f32 %v8323, %v8521
      %v8554 = vadd.f32 %v8324, %v8522
      %v8555 = vadd.f32 %v8325, %v8523
      %v8556 = vadd.f32 %v8326, %v8524
      %v8557 = vadd.f32 %v8327, %v8525
      %v8558 = vadd.f32 %v8328, %v8526
      %v8559 = vadd.f32 %v8329, %v8527
      %v8560 = vadd.f32 %v8330, %v8528
      %v8561 = vadd.f32 %v8331, %v8529
      %v8562 = vadd.f32 %v8332, %v8530
      %v8563 = vadd.f32 %v8333, %v8531
      %v8564 = vadd.f32 %v8334, %v8532
      %v8565 = vadd.f32 %v8335, %v8533
      %v8566 = vadd.f32 %v8336, %v8534
      %v8567 = vadd.f32 %v8337, %v8535
      %v8568 = vadd.f32 %v8338, %v8536
      %v8569 = vadd.f32 %v8339, %v8537
      %v8570 = vadd.f32 %v8340, %v8538
      %v8571 = vadd.f32 %v8341, %v8539
      %v8572 = vadd.f32 %v8342, %v8540
      %v8573 = vadd.f32 %v8343, %v8541
      %v8574 = vadd.f32 %v8344, %v8542
      %v8575 = vadd.f32 %v8345, %v8543
      %v8576 = vadd.f32 %v8346, %v8544
      %v8577 = vadd.f32 %v8347, %v8545
      %v8578 = vadd.f32 %v8348, %v8546
      %v8579 = vadd.f32 %v8349, %v8547
      %s8580 = scalar_lea.vmem %s6, 16
      %v8581 = vld [vmem:[%s8580] sm:$0x3]
      %v8583 = vsel %vm1185, %v8581, 0
      %8585 = vmatprep.subr.bf16.mxu0 0
      %8586 = vmatpush1.bf16.msra.mxu0 0
      %8587 = vmatprep.subr.bf16.mxu0 0
      %8588 = vmatpush1.bf16.msra.mxu0 0
      %8589 = vmatprep.subr.bf16.mxu0 0
      %8590 = vmatpush1.bf16.msra.mxu0 0
      %8591 = vmatprep.subr.bf16.mxu0 0
      %8592 = vmatpush1.bf16.msra.mxu0 0
      %8593 = vmatprep.subr.bf16.mxu0 0
      %8594 = vmatpush1.bf16.msra.mxu0 0
      %8595 = vmatprep.subr.bf16.mxu0 0
      %8596 = vmatpush1.bf16.msra.mxu0 0
      %8597 = vmatprep.subr.bf16.mxu0 0
      %8598 = vmatpush1.bf16.msra.mxu0 0
      %8599 = vmatprep.subr.bf16.mxu0 0
      %8600 = vmatpush1.bf16.msra.mxu0 %v8583
      %8601 = vmatprep.subr.bf16.mxu0 0
      %8602 = vmatpush2.bf16.msra.mxu0 0
      %8603 = vmatprep.subr.bf16.mxu0 0
      %8604 = vmatpush2.bf16.msra.mxu0 0
      %8605 = vmatprep.subr.bf16.mxu0 0
      %8606 = vmatpush2.bf16.msra.mxu0 0
      %8607 = vmatprep.subr.bf16.mxu0 0
      %8608 = vmatpush2.bf16.msra.mxu0 0
      %8609 = vmatprep.subr.bf16.mxu0 0
      %8610 = vmatpush2.bf16.msra.mxu0 0
      %8611 = vmatprep.subr.bf16.mxu0 0
      %8612 = vmatpush2.bf16.msra.mxu0 0
      %8613 = vmatprep.subr.bf16.mxu0 0
      %8614 = vmatpush2.bf16.msra.mxu0 0
      %8615 = vmatprep.subr.bf16.mxu0 0
      %8616 = vmatpush2.bf16.msra.mxu0 0
      %8617 = vmatprep.mubr.bf16.mxu0 0
      %8618 = vmatmul.mubr.bf16.gmra.mxu0 %v6407
      %v8619 = vpop.f32.mrf.mxu0
      %v8620 = vadd.f32 0.0, %v8619
      %v8621 = vpop.f32.mrf.mxu0
      %v8622 = vpop.f32.mrf.mxu0
      %v8623 = vadd.f32 0.0, %v8622
      %v8624 = vpop.f32.mrf.mxu0
      %8625 = vmatprep.mubr.bf16.mxu0 0
      %8626 = vmatmul.mubr.bf16.gmra.mxu0 %v6410
      %v8627 = vpop.f32.mrf.mxu0
      %v8628 = vadd.f32 0.0, %v8627
      %v8629 = vpop.f32.mrf.mxu0
      %v8630 = vpop.f32.mrf.mxu0
      %v8631 = vadd.f32 0.0, %v8630
      %v8632 = vpop.f32.mrf.mxu0
      %8633 = vmatprep.mubr.bf16.mxu0 0
      %8634 = vmatmul.mubr.bf16.gmra.mxu0 %v6413
      %v8635 = vpop.f32.mrf.mxu0
      %v8636 = vadd.f32 0.0, %v8635
      %v8637 = vpop.f32.mrf.mxu0
      %v8638 = vpop.f32.mrf.mxu0
      %v8639 = vadd.f32 0.0, %v8638
      %v8640 = vpop.f32.mrf.mxu0
      %8641 = vmatprep.mubr.bf16.mxu0 0
      %8642 = vmatmul.mubr.bf16.gmra.mxu0 %v6416
      %v8643 = vpop.f32.mrf.mxu0
      %v8644 = vadd.f32 0.0, %v8643
      %v8645 = vpop.f32.mrf.mxu0
      %v8646 = vpop.f32.mrf.mxu0
      %v8647 = vadd.f32 0.0, %v8646
      %v8648 = vpop.f32.mrf.mxu0
      %8649 = vmatprep.mubr.bf16.mxu0 0
      %8650 = vmatmul.mubr.bf16.gmra.mxu0 %v6419
      %v8651 = vpop.f32.mrf.mxu0
      %v8652 = vadd.f32 0.0, %v8651
      %v8653 = vpop.f32.mrf.mxu0
      %v8654 = vpop.f32.mrf.mxu0
      %v8655 = vadd.f32 0.0, %v8654
      %v8656 = vpop.f32.mrf.mxu0
      %8657 = vmatprep.mubr.bf16.mxu0 0
      %8658 = vmatmul.mubr.bf16.gmra.mxu0 %v6422
      %v8659 = vpop.f32.mrf.mxu0
      %v8660 = vadd.f32 0.0, %v8659
      %v8661 = vpop.f32.mrf.mxu0
      %v8662 = vpop.f32.mrf.mxu0
      %v8663 = vadd.f32 0.0, %v8662
      %v8664 = vpop.f32.mrf.mxu0
      %8665 = vmatprep.mubr.bf16.mxu0 0
      %8666 = vmatmul.mubr.bf16.gmra.mxu0 %v6425
      %v8667 = vpop.f32.mrf.mxu0
      %v8668 = vadd.f32 0.0, %v8667
      %v8669 = vpop.f32.mrf.mxu0
      %v8670 = vpop.f32.mrf.mxu0
      %v8671 = vadd.f32 0.0, %v8670
      %v8672 = vpop.f32.mrf.mxu0
      %8673 = vmatprep.mubr.bf16.mxu0 0
      %8674 = vmatmul.mubr.bf16.gmra.mxu0 %v6428
      %v8675 = vpop.f32.mrf.mxu0
      %v8676 = vadd.f32 0.0, %v8675
      %v8677 = vpop.f32.mrf.mxu0
      %v8678 = vpop.f32.mrf.mxu0
      %v8679 = vadd.f32 0.0, %v8678
      %v8680 = vpop.f32.mrf.mxu0
      %8681 = vmatprep.mubr.bf16.mxu0 0
      %8682 = vmatmul.mubr.bf16.gmra.mxu0 %v6431
      %v8683 = vpop.f32.mrf.mxu0
      %v8684 = vadd.f32 0.0, %v8683
      %v8685 = vpop.f32.mrf.mxu0
      %v8686 = vpop.f32.mrf.mxu0
      %v8687 = vadd.f32 0.0, %v8686
      %v8688 = vpop.f32.mrf.mxu0
      %8689 = vmatprep.mubr.bf16.mxu0 0
      %8690 = vmatmul.mubr.bf16.gmra.mxu0 %v6434
      %v8691 = vpop.f32.mrf.mxu0
      %v8692 = vadd.f32 0.0, %v8691
      %v8693 = vpop.f32.mrf.mxu0
      %v8694 = vpop.f32.mrf.mxu0
      %v8695 = vadd.f32 0.0, %v8694
      %v8696 = vpop.f32.mrf.mxu0
      %8697 = vmatprep.mubr.bf16.mxu0 0
      %8698 = vmatmul.mubr.bf16.gmra.mxu0 %v6437
      %v8699 = vpop.f32.mrf.mxu0
      %v8700 = vadd.f32 0.0, %v8699
      %v8701 = vpop.f32.mrf.mxu0
      %v8702 = vpop.f32.mrf.mxu0
      %v8703 = vadd.f32 0.0, %v8702
      %v8704 = vpop.f32.mrf.mxu0
      %8705 = vmatprep.mubr.bf16.mxu0 0
      %8706 = vmatmul.mubr.bf16.gmra.mxu0 %v6440
      %v8707 = vpop.f32.mrf.mxu0
      %v8708 = vadd.f32 0.0, %v8707
      %v8709 = vpop.f32.mrf.mxu0
      %v8710 = vpop.f32.mrf.mxu0
      %v8711 = vadd.f32 0.0, %v8710
      %v8712 = vpop.f32.mrf.mxu0
      %8713 = vmatprep.mubr.bf16.mxu0 0
      %8714 = vmatmul.mubr.bf16.gmra.mxu0 %v6443
      %v8715 = vpop.f32.mrf.mxu0
      %v8716 = vadd.f32 0.0, %v8715
      %v8717 = vpop.f32.mrf.mxu0
      %v8718 = vpop.f32.mrf.mxu0
      %v8719 = vadd.f32 0.0, %v8718
      %v8720 = vpop.f32.mrf.mxu0
      %8721 = vmatprep.mubr.bf16.mxu0 0
      %8722 = vmatmul.mubr.bf16.gmra.mxu0 %v6446
      %v8723 = vpop.f32.mrf.mxu0
      %v8724 = vadd.f32 0.0, %v8723
      %v8725 = vpop.f32.mrf.mxu0
      %v8726 = vpop.f32.mrf.mxu0
      %v8727 = vadd.f32 0.0, %v8726
      %v8728 = vpop.f32.mrf.mxu0
      %8729 = vmatprep.mubr.bf16.mxu0 0
      %8730 = vmatmul.mubr.bf16.gmra.mxu0 %v6449
      %v8731 = vpop.f32.mrf.mxu0
      %v8732 = vadd.f32 0.0, %v8731
      %v8733 = vpop.f32.mrf.mxu0
      %v8734 = vpop.f32.mrf.mxu0
      %v8735 = vadd.f32 0.0, %v8734
      %v8736 = vpop.f32.mrf.mxu0
      %8737 = vmatprep.mubr.bf16.mxu0 0
      %8738 = vmatmul.mubr.bf16.gmra.mxu0 %v6452
      %v8739 = vpop.f32.mrf.mxu0
      %v8740 = vadd.f32 0.0, %v8739
      %v8741 = vpop.f32.mrf.mxu0
      %v8742 = vpop.f32.mrf.mxu0
      %v8743 = vadd.f32 0.0, %v8742
      %v8744 = vpop.f32.mrf.mxu0
      %8745 = vdwg.mxu0
      %v8746 = vrot.slane %v8620, 1
      %v8747 = vrot.slane %v8623, 1
      %v8748 = vrot.slane %v8628, 1
      %v8749 = vrot.slane %v8631, 1
      %v8750 = vrot.slane %v8636, 1
      %v8751 = vrot.slane %v8639, 1
      %v8752 = vrot.slane %v8644, 1
      %v8753 = vrot.slane %v8647, 1
      %v8754 = vrot.slane %v8652, 1
      %v8755 = vrot.slane %v8655, 1
      %v8756 = vrot.slane %v8660, 1
      %v8757 = vrot.slane %v8663, 1
      %v8758 = vrot.slane %v8668, 1
      %v8759 = vrot.slane %v8671, 1
      %v8760 = vrot.slane %v8676, 1
      %v8761 = vrot.slane %v8679, 1
      %v8762 = vrot.slane %v8684, 1
      %v8763 = vrot.slane %v8687, 1
      %v8764 = vrot.slane %v8692, 1
      %v8765 = vrot.slane %v8695, 1
      %v8766 = vrot.slane %v8700, 1
      %v8767 = vrot.slane %v8703, 1
      %v8768 = vrot.slane %v8708, 1
      %v8769 = vrot.slane %v8711, 1
      %v8770 = vrot.slane %v8716, 1
      %v8771 = vrot.slane %v8719, 1
      %v8772 = vrot.slane %v8724, 1
      %v8773 = vrot.slane %v8727, 1
      %v8774 = vrot.slane %v8732, 1
      %v8775 = vrot.slane %v8735, 1
      %v8776 = vrot.slane %v8740, 1
      %v8777 = vrot.slane %v8743, 1
      %v8778 = vsel %vm2853, %v8776, %v8777
      %v8779 = vsel %vm2853, %v8775, %v8776
      %v8780 = vsel %vm2853, %v8774, %v8775
      %v8781 = vsel %vm2853, %v8773, %v8774
      %v8782 = vsel %vm2853, %v8772, %v8773
      %v8783 = vsel %vm2853, %v8771, %v8772
      %v8784 = vsel %vm2853, %v8770, %v8771
      %v8785 = vsel %vm2853, %v8769, %v8770
      %v8786 = vsel %vm2853, %v8768, %v8769
      %v8787 = vsel %vm2853, %v8767, %v8768
      %v8788 = vsel %vm2853, %v8766, %v8767
      %v8789 = vsel %vm2853, %v8765, %v8766
      %v8790 = vsel %vm2853, %v8764, %v8765
      %v8791 = vsel %vm2853, %v8763, %v8764
      %v8792 = vsel %vm2853, %v8762, %v8763
      %v8793 = vsel %vm2853, %v8761, %v8762
      %v8794 = vsel %vm2853, %v8760, %v8761
      %v8795 = vsel %vm2853, %v8759, %v8760
      %v8796 = vsel %vm2853, %v8758, %v8759
      %v8797 = vsel %vm2853, %v8757, %v8758
      %v8798 = vsel %vm2853, %v8756, %v8757
      %v8799 = vsel %vm2853, %v8755, %v8756
      %v8800 = vsel %vm2853, %v8754, %v8755
      %v8801 = vsel %vm2853, %v8753, %v8754
      %v8802 = vsel %vm2853, %v8752, %v8753
      %v8803 = vsel %vm2853, %v8751, %v8752
      %v8804 = vsel %vm2853, %v8750, %v8751
      %v8805 = vsel %vm2853, %v8749, %v8750
      %v8806 = vsel %vm2853, %v8748, %v8749
      %v8807 = vsel %vm2853, %v8747, %v8748
      %v8808 = vsel %vm2853, %v8746, %v8747
      %v8809 = vsel %vm2853, %v8777, %v8746
      %v8810 = vmul.f32 %v8806, %v6128
      %v8811 = vmul.f32 %v8805, %v6132
      %v8812 = vmul.f32 %v8804, %v6136
      %v8813 = vmul.f32 %v8803, %v6140
      %v8814 = vmul.f32 %v8802, %v6144
      %v8815 = vmul.f32 %v8801, %v6148
      %v8816 = vmul.f32 %v8800, %v6152
      %v8817 = vmul.f32 %v8799, %v6156
      %v8818 = vmul.f32 %v8798, %v6160
      %v8819 = vmul.f32 %v8797, %v6164
      %v8820 = vmul.f32 %v8796, %v6168
      %v8821 = vmul.f32 %v8795, %v6172
      %v8822 = vmul.f32 %v8794, %v6176
      %v8823 = vmul.f32 %v8793, %v6180
      %v8824 = vmul.f32 %v8792, %v6184
      %v8825 = vmul.f32 %v8791, %v6188
      %v8826 = vmul.f32 %v8790, %v6192
      %v8827 = vmul.f32 %v8789, %v6196
      %v8828 = vmul.f32 %v8788, %v6200
      %v8829 = vmul.f32 %v8787, %v6204
      %v8830 = vmul.f32 %v8786, %v6208
      %v8831 = vmul.f32 %v8785, %v6212
      %v8832 = vmul.f32 %v8784, %v6216
      %v8833 = vmul.f32 %v8783, %v6220
      %v8834 = vmul.f32 %v8782, %v6224
      %v8835 = vmul.f32 %v8781, %v6228
      %v8836 = vmul.f32 %v8780, %v6232
      %v8837 = vmul.f32 %v8779, %v6236
      %v8838 = vmul.f32 %v8778, %v6240
      %v8839 = vmul.f32 %v8809, %v6244
      %v8840 = vmul.f32 %v8808, %v6248
      %v8841 = vmul.f32 %v8807, %v6252
      %v8842 = vadd.f32 %v8548, %v8810
      %v8843 = vadd.f32 %v8549, %v8811
      %v8844 = vadd.f32 %v8550, %v8812
      %v8845 = vadd.f32 %v8551, %v8813
      %v8846 = vadd.f32 %v8552, %v8814
      %v8847 = vadd.f32 %v8553, %v8815
      %v8848 = vadd.f32 %v8554, %v8816
      %v8849 = vadd.f32 %v8555, %v8817
      %v8850 = vadd.f32 %v8556, %v8818
      %v8851 = vadd.f32 %v8557, %v8819
      %v8852 = vadd.f32 %v8558, %v8820
      %v8853 = vadd.f32 %v8559, %v8821
      %v8854 = vadd.f32 %v8560, %v8822
      %v8855 = vadd.f32 %v8561, %v8823
      %v8856 = vadd.f32 %v8562, %v8824
      %v8857 = vadd.f32 %v8563, %v8825
      %v8858 = vadd.f32 %v8564, %v8826
      %v8859 = vadd.f32 %v8565, %v8827
      %v8860 = vadd.f32 %v8566, %v8828
      %v8861 = vadd.f32 %v8567, %v8829
      %v8862 = vadd.f32 %v8568, %v8830
      %v8863 = vadd.f32 %v8569, %v8831
      %v8864 = vadd.f32 %v8570, %v8832
      %v8865 = vadd.f32 %v8571, %v8833
      %v8866 = vadd.f32 %v8572, %v8834
      %v8867 = vadd.f32 %v8573, %v8835
      %v8868 = vadd.f32 %v8574, %v8836
      %v8869 = vadd.f32 %v8575, %v8837
      %v8870 = vadd.f32 %v8576, %v8838
      %v8871 = vadd.f32 %v8577, %v8839
      %v8872 = vadd.f32 %v8578, %v8840
      %v8873 = vadd.f32 %v8579, %v8841
      %v8874 = vld [vmem:[%s7] sm:$0x1]
      %v8876 = vlaneseq
      %v8877 = vshrl.u32 %v8876, 7
      %v8878 = vsub.s32 0, %v8877
      %v8879 = vrot.slane %v8874, %v8878
      %v8881 = vadd.f32 %v8842, %v8879
      %v8882 = vadd.f32 %v8843, %v8879
      %v8883 = vadd.f32 %v8844, %v8879
      %v8884 = vadd.f32 %v8845, %v8879
      %v8885 = vadd.f32 %v8846, %v8879
      %v8886 = vadd.f32 %v8847, %v8879
      %v8887 = vadd.f32 %v8848, %v8879
      %v8888 = vadd.f32 %v8849, %v8879
      %v8889 = vadd.f32 %v8850, %v8879
      %v8890 = vadd.f32 %v8851, %v8879
      %v8891 = vadd.f32 %v8852, %v8879
      %v8892 = vadd.f32 %v8853, %v8879
      %v8893 = vadd.f32 %v8854, %v8879
      %v8894 = vadd.f32 %v8855, %v8879
      %v8895 = vadd.f32 %v8856, %v8879
      %v8896 = vadd.f32 %v8857, %v8879
      %v8897 = vadd.f32 %v8858, %v8879
      %v8898 = vadd.f32 %v8859, %v8879
      %v8899 = vadd.f32 %v8860, %v8879
      %v8900 = vadd.f32 %v8861, %v8879
      %v8901 = vadd.f32 %v8862, %v8879
      %v8902 = vadd.f32 %v8863, %v8879
      %v8903 = vadd.f32 %v8864, %v8879
      %v8904 = vadd.f32 %v8865, %v8879
      %v8905 = vadd.f32 %v8866, %v8879
      %v8906 = vadd.f32 %v8867, %v8879
      %v8907 = vadd.f32 %v8868, %v8879
      %v8908 = vadd.f32 %v8869, %v8879
      %v8909 = vadd.f32 %v8870, %v8879
      %v8910 = vadd.f32 %v8871, %v8879
      %v8911 = vadd.f32 %v8872, %v8879
      %v8912 = vadd.f32 %v8873, %v8879
      %v8913 = vmax.f32 %v8881, 0.0
      %v8914 = vmax.f32 %v8882, 0.0
      %v8915 = vmax.f32 %v8883, 0.0
      %v8916 = vmax.f32 %v8884, 0.0
      %v8917 = vmax.f32 %v8885, 0.0
      %v8918 = vmax.f32 %v8886, 0.0
      %v8919 = vmax.f32 %v8887, 0.0
      %v8920 = vmax.f32 %v8888, 0.0
      %v8921 = vmax.f32 %v8889, 0.0
      %v8922 = vmax.f32 %v8890, 0.0
      %v8923 = vmax.f32 %v8891, 0.0
      %v8924 = vmax.f32 %v8892, 0.0
      %v8925 = vmax.f32 %v8893, 0.0
      %v8926 = vmax.f32 %v8894, 0.0
      %v8927 = vmax.f32 %v8895, 0.0
      %v8928 = vmax.f32 %v8896, 0.0
      %v8929 = vmax.f32 %v8897, 0.0
      %v8930 = vmax.f32 %v8898, 0.0
      %v8931 = vmax.f32 %v8899, 0.0
      %v8932 = vmax.f32 %v8900, 0.0
      %v8933 = vmax.f32 %v8901, 0.0
      %v8934 = vmax.f32 %v8902, 0.0
      %v8935 = vmax.f32 %v8903, 0.0
      %v8936 = vmax.f32 %v8904, 0.0
      %v8937 = vmax.f32 %v8905, 0.0
      %v8938 = vmax.f32 %v8906, 0.0
      %v8939 = vmax.f32 %v8907, 0.0
      %v8940 = vmax.f32 %v8908, 0.0
      %v8941 = vmax.f32 %v8909, 0.0
      %v8942 = vmax.f32 %v8910, 0.0
      %v8943 = vmax.f32 %v8911, 0.0
      %v8944 = vmax.f32 %v8912, 0.0
      %8945 = vst.msk [vmem:[%s352] sm:$0xff] %vm377, %v8913
      %8946 = vst.msk [vmem:[%s352 + $0x8] sm:$0xff] %vm377, %v8914
      %8947 = vst.msk [vmem:[%s352 + $0x10] sm:$0xff] %vm377, %v8915
      %8948 = vst.msk [vmem:[%s352 + $0x18] sm:$0xff] %vm377, %v8916
      %8949 = vst.msk [vmem:[%s352 + $0x20] sm:$0xff] %vm377, %v8917
      %8950 = vst.msk [vmem:[%s352 + $0x28] sm:$0xff] %vm377, %v8918
      %8951 = vst.msk [vmem:[%s352 + $0x30] sm:$0xff] %vm377, %v8919
      %8952 = vst.msk [vmem:[%s352 + $0x38] sm:$0xff] %vm377, %v8920
      %8953 = vst.msk [vmem:[%s352 + $0x40] sm:$0xff] %vm377, %v8921
      %8954 = vst.msk [vmem:[%s352 + $0x48] sm:$0xff] %vm377, %v8922
      %8955 = vst.msk [vmem:[%s352 + $0x50] sm:$0xff] %vm377, %v8923
      %8956 = vst.msk [vmem:[%s352 + $0x58] sm:$0xff] %vm377, %v8924
      %8957 = vst.msk [vmem:[%s352 + $0x60] sm:$0xff] %vm377, %v8925
      %8958 = vst.msk [vmem:[%s352 + $0x68] sm:$0xff] %vm377, %v8926
      %8959 = vst.msk [vmem:[%s352 + $0x70] sm:$0xff] %vm377, %v8927
      %8960 = vst.msk [vmem:[%s352 + $0x78] sm:$0xff] %vm377, %v8928
      %8961 = vst.msk [vmem:[%s352 + $0x80] sm:$0xff] %vm377, %v8929
      %8962 = vst.msk [vmem:[%s352 + $0x88] sm:$0xff] %vm377, %v8930
      %8963 = vst.msk [vmem:[%s352 + $0x90] sm:$0xff] %vm377, %v8931
      %8964 = vst.msk [vmem:[%s352 + $0x98] sm:$0xff] %vm377, %v8932
      %8965 = vst.msk [vmem:[%s352 + $0xa0] sm:$0xff] %vm377, %v8933
      %8966 = vst.msk [vmem:[%s352 + $0xa8] sm:$0xff] %vm377, %v8934
      %8967 = vst.msk [vmem:[%s352 + $0xb0] sm:$0xff] %vm377, %v8935
      %8968 = vst.msk [vmem:[%s352 + $0xb8] sm:$0xff] %vm377, %v8936
      %8969 = vst.msk [vmem:[%s352 + $0xc0] sm:$0xff] %vm377, %v8937
      %8970 = vst.msk [vmem:[%s352 + $0xc8] sm:$0xff] %vm377, %v8938
      %8971 = vst.msk [vmem:[%s352 + $0xd0] sm:$0xff] %vm377, %v8939
      %8972 = vst.msk [vmem:[%s352 + $0xd8] sm:$0xff] %vm377, %v8940
      %8973 = vst.msk [vmem:[%s352 + $0xe0] sm:$0xff] %vm377, %v8941
      %8974 = vst.msk [vmem:[%s352 + $0xe8] sm:$0xff] %vm377, %v8942
      %8975 = vst.msk [vmem:[%s352 + $0xf0] sm:$0xff] %vm377, %v8943
      %8976 = vst.msk [vmem:[%s352 + $0xf8] sm:$0xff] %vm377, %v8944
      %p8977 = scmp.lt.s32.totalorder %s20, 1
      %s8978 = scalar_select %p8977, %s20, 1
      %s8979 = smul.addr %s8978, 32
      %s8980 = smul.addr %s8979, 8
      %s8981 = scalar_lea.vmem %s9, %s8980
      // Predicated region
      $region57: #{tpu_custom_call.1} parent=55 // pred_check
        %p8982 = pneg %p237
      $region58: #{tpu_custom_call.1} parent=55 // pred_check_branch
        %8984 = sbr.rel (%p8982) target = $region60
      $region59: #{tpu_custom_call.1} parent=55 // pred_region
        _
      $region60: #{tpu_custom_call.1} parent=55 // pred_fallthru
        _
    $region56: #{tpu_custom_call.1} parent=5 // pred_fallthru
      _
    %p8985 = scmp.le.s32.totalorder 2, %s15
    // Predicated region
    $region61: #{tpu_custom_call.1} parent=5 // pred_check
      %p8986 = pneg %p8985
    $region62: #{tpu_custom_call.1} parent=5 // pred_check_branch
      %8988 = sbr.rel (%p8986) target = $region64
    $region63: #{tpu_custom_call.1} parent=5 // pred_region
      %s8989 = ssub.s32 %s15, 2
      // Predicated region
      $region65: #{tpu_custom_call.1} parent=63 // pred_check
        %p8990 = pneg %p243
      $region66: #{tpu_custom_call.1} parent=63 // pred_check_branch
        %8992 = sbr.rel (%p8990) target = $region68
      $region67: #{tpu_custom_call.1} parent=63 // pred_region
        %p8993 = scmp.lt.s32.totalorder %s21, 1
        %s8994 = scalar_select %p8993, %s21, 1
        %s8995 = smul.addr %s8994, 32
        %s8996 = smul.addr %s8995, 8
        %s8997 = scalar_lea.vmem %s9, %s8996
      $region68: #{tpu_custom_call.1} parent=63 // pred_fallthru
        _
    $region64: #{tpu_custom_call.1} parent=5 // pred_fallthru
      _
  $region6: #{tpu_custom_call.1} parent=0 // loop_footer
    %s19 = sadd.s32 1, %s15
  $region7: #{tpu_custom_call.1} parent=0 // loop_footer_branch
    %14 = sbr.rel target = $region3
  $region8: #{tpu_custom_call.1} parent=0 // loop_exit
    _

</llo_original>
